<compile_context>
chip_gen: v7x
topology: tpu7x:2x2x1
jax: 0.10.0
libtpu: 0.0.40
codegen_flags: <defaults>
</compile_context>

<pallas_src>
import functools

import jax
import jax.numpy as jnp
from jax.experimental import pallas as pl
from jax.experimental.pallas import tpu as pltpu

N = 3                      # SU(3)
NSQ = N * N                # 9 complex entries per matrix
HIDDEN = 32                # hidden width of `func`
IN_DIM = 2 * NSQ + 1       # [Re(x), Im(x), t]  (parameter layout of w1)
IN_F = IN_DIM + 1          # + constant-ones feature (folds b1)
OUT_DIM = 2 * NSQ          # [Re(u), Im(u)]
SUB = 8                    # sublanes per f32 vreg
LANE = 128                 # lanes per vreg
CHUNK = SUB * LANE         # 1024 batch elements per inner chunk
F_ROWS = IN_F * SUB        # 160 rows of the per-chunk feature slab
O_ROWS = OUT_DIM * SUB     # 144 rows of the per-chunk output slab
BATCH = 8000               # demo batch (pads to 8192 -> grid of 2 steps, cps=4)


# ------- complex helpers on (re, im) tuples of (8, 128) float32 tiles -------
def _cmul(a, b):
    return (a[0] * b[0] - a[1] * b[1], a[0] * b[1] + a[1] * b[0])


def _cadd(a, b):
    return (a[0] + b[0], a[1] + b[1])


def _csub(a, b):
    return (a[0] - b[0], a[1] - b[1])


def _cneg(a):
    return (-a[0], -a[1])


# ------------------------------- Pallas kernel -------------------------------
def ambient_proj_kernel(f2_ref, w1e_ref, w2e_ref, b2e_ref, out_ref, u_scr, *, cps):
    zero = jnp.zeros((SUB, LANE), jnp.float32)

    # Static inner loop over 1024-element batch chunks (amortizes grid-step
    # overhead without growing the per-chunk live vreg set).
    for c in range(cps):
        fbase = c * F_ROWS
        obase = c * O_ROWS

        # ---- func(t, x): MLP on the MXU; output already batch-in-sublanes ----
        f2 = f2_ref[fbase:fbase + F_ROWS, :]                              # (160, 128)
        h = jnp.tanh(jnp.dot(w1e_ref[...], f2,
                             preferred_element_type=jnp.float32))         # (256, 128)
        u_scr[...] = (jnp.dot(w2e_ref[...], h,
                              preferred_element_type=jnp.float32)
                      + b2e_ref[...])                                     # (144, 128)

        # entry accessors: each is one full, 8-aligned (8, 128) vreg tile
        def xent(i, j):
            k = (i * N + j) * SUB
            return (f2_ref[fbase + k:fbase + k + SUB, :],
                    f2_ref[fbase + NSQ * SUB + k:fbase + NSQ * SUB + k + SUB, :])

        def uent(i, j):
            k = (i * N + j) * SUB
            return (u_scr[k:k + SUB, :],
                    u_scr[NSQ * SUB + k:NSQ * SUB + k + SUB, :])

        X = [[xent(i, j) for j in range(N)] for i in range(N)]

        # --- proju step 1: a = x^{-1} u via explicit 3x3 adjugate (Cramer) ---
        def cof(i, j):
            r = [a for a in range(N) if a != i]
            s = [a for a in range(N) if a != j]
            m = _csub(_cmul(X[r[0]][s[0]], X[r[1]][s[1]]),
                      _cmul(X[r[0]][s[1]], X[r[1]][s[0]]))
            return _cneg(m) if (i + j) % 2 == 1 else m

        C = [[cof(i, j) for j in range(N)] for i in range(N)]
        det = functools.reduce(_cadd, [_cmul(X[0][j], C[0][j]) for j in range(N)])

        # 1/|det|^2 on the EUP (approx) + one Newton refinement step
        den = det[0] * det[0] + det[1] * det[1]
        inv = pl.reciprocal(den, approx=True)
        inv = inv * (2.0 - den * inv)
        dcs = (det[0] * inv, -det[1] * inv)            # conj(det) / |det|^2

        def a_entry(i, j):                             # A[i][j] of a = x^{-1} u
            s = functools.reduce(
                _cadd, [_cmul(C[k][i], uent(k, j)) for k in range(N)])
            return _cmul(s, dcs)

        def store(i, j, re, im):
            k = (i * N + j) * SUB
            out_ref[obase + k:obase + k + SUB, :] = re
            out_ref[obase + NSQ * SUB + k:obase + NSQ * SUB + k + SUB, :] = im

        # --- proju step 2: B = (A - A^H)/2, A never materialized ---
        for (i, j) in ((0, 1), (0, 2), (1, 2)):
            aij = a_entry(i, j)
            aji = a_entry(j, i)
            re = (aij[0] - aji[0]) * 0.5
            im = (aij[1] + aji[1]) * 0.5
            store(i, j, re, im)
            store(j, i, -re, im)                       # B[j][i] = -conj(B[i][j])

        # --- proju step 3: diagonal. Re part of (A - A^H)/2 is exactly 0;
        #     remove trace/N from the imaginary part. ---
        d_im = [a_entry(i, i)[1] for i in range(N)]
        tr3 = (d_im[0] + d_im[1] + d_im[2]) * (1.0 / N)
        for i in range(N):
            store(i, i, zero, d_im[i] - tr3)


# ------------------------------- wrapper (glue) -------------------------------
def ambient_proj_nn(t, x, params, chunks_per_step=4):
    """t: scalar, x: (B, 3, 3) complex64 -> (B, 3, 3) complex64 tangent element."""
    w1, b1, w2, b2 = params
    bsz = x.shape[0]

    xr = jnp.real(x).reshape(bsz, NSQ).astype(jnp.float32)
    xi = jnp.imag(x).reshape(bsz, NSQ).astype(jnp.float32)
    feat = jnp.concatenate(
        [xr, xi,
         jnp.full((bsz, 1), t, jnp.float32),
         jnp.ones((bsz, 1), jnp.float32)], axis=-1)                 # (B, 20); ones folds b1

    # batch chunks of 1024 = 8 sublanes x 128 lanes
    n_needed = -(-bsz // CHUNK)
    cps = int(chunks_per_step)
    if n_needed < 2 * cps:                 # keep >= 2 grid steps (megacore) when possible
        cps = max(1, n_needed // 2) if n_needed >= 2 else 1
    nc = -(-n_needed // cps) * cps
    bp = nc * CHUNK

    if bp != bsz:                          # pad with x = I (finite det), same t
        pad_row = jnp.concatenate(
            [jnp.eye(N, dtype=jnp.float32).reshape(NSQ),
             jnp.zeros((NSQ,), jnp.float32),
             jnp.full((1,), t, jnp.float32),
             jnp.ones((1,), jnp.float32)])
        feat = jnp.concatenate(
            [feat, jnp.tile(pad_row[None, :], (bp - bsz, 1))], axis=0)

    # (B, 20) -> (nc*160, 128): row = chunk*160 + feature*8 + sublane, lane = batch%128
    f2 = (feat.reshape(nc, SUB, LANE, IN_F)
              .transpose(0, 3, 1, 2)
              .reshape(nc * F_ROWS, LANE))

    # Kronecker-expand weights with I8 so the MXU output is batch-in-sublanes.
    eye8 = jnp.eye(SUB, dtype=jnp.float32)
    w1a = jnp.concatenate([w1, b1[None, :]], axis=0).astype(jnp.float32)      # (20, 32)
    w1e = (w1a.T[:, None, :, None] *
           eye8[None, :, None, :]).reshape(HIDDEN * SUB, IN_F * SUB)          # (256, 160)
    w2e = (w2.T.astype(jnp.float32)[:, None, :, None] *
           eye8[None, :, None, :]).reshape(OUT_DIM * SUB, HIDDEN * SUB)       # (144, 256)
    b2e = jnp.repeat(b2.astype(jnp.float32), SUB)[:, None]                    # (144, 1)

    out = pl.pallas_call(
        functools.partial(ambient_proj_kernel, cps=cps),
        out_shape=jax.ShapeDtypeStruct((nc * O_ROWS, LANE), jnp.float32),
        grid_spec=pltpu.PrefetchScalarGridSpec(
            num_scalar_prefetch=0,
            grid=(nc // cps,),
            in_specs=[
                pl.BlockSpec((cps * F_ROWS, LANE), lambda i: (i, 0)),         # feature slab
                pl.BlockSpec((HIDDEN * SUB, IN_F * SUB), lambda i: (0, 0)),   # W1 (x) I8
                pl.BlockSpec((OUT_DIM * SUB, HIDDEN * SUB), lambda i: (0, 0)),# W2 (x) I8
                pl.BlockSpec((OUT_DIM * SUB, 1), lambda i: (0, 0)),           # b2 (repeated)
            ],
            out_specs=pl.BlockSpec((cps * O_ROWS, LANE), lambda i: (i, 0)),
            scratch_shapes=[pltpu.VMEM((O_ROWS, LANE), jnp.float32)],         # parked u
        ),
        compiler_params=pltpu.CompilerParams(
            dimension_semantics=("parallel",)),                               # megacore split
    )(f2, w1e, w2e, b2e)

    # un-permute: (nc*144, 128) -> (B, 18) -> complex (B, 3, 3)
    outp = (out.reshape(nc, OUT_DIM, SUB, LANE)
               .transpose(0, 2, 3, 1)
               .reshape(bp, OUT_DIM)[:bsz])
    return (outp[:, :NSQ] + 1j * outp[:, NSQ:]).reshape(bsz, N, N).astype(jnp.complex64)


# ---------------------- pure-JAX reference (for sanity check) --------------------
def reference(t, x, params):
    w1, b1, w2, b2 = params
    bsz = x.shape[0]
    xr = jnp.real(x).reshape(bsz, NSQ).astype(jnp.float32)
    xi = jnp.imag(x).reshape(bsz, NSQ).astype(jnp.float32)
    feat = jnp.concatenate(
        [xr, xi, jnp.full((bsz, 1), t, jnp.float32)], axis=-1)
    h = jnp.tanh(feat @ w1 + b1)
    u = h @ w2 + b2
    u_c = (u[:, :NSQ] + 1j * u[:, NSQ:]).reshape(bsz, N, N).astype(jnp.complex64)

    # solve x a = u via the equivalent real 2n x 2n system (TPU-safe real solve)
    Xr, Xi = jnp.real(x), jnp.imag(x)
    M = jnp.concatenate([jnp.concatenate([Xr, -Xi], axis=-1),
                         jnp.concatenate([Xi, Xr], axis=-1)], axis=-2)
    rhs = jnp.concatenate([jnp.real(u_c), jnp.imag(u_c)], axis=-2)
    sol = jnp.linalg.solve(M, rhs)
    a = (sol[:, :N, :] + 1j * sol[:, N:, :]).astype(jnp.complex64)

    Bm = (a - jnp.conj(jnp.swapaxes(a, -1, -2))) / 2
    tr = jnp.trace(Bm, axis1=-2, axis2=-1)
    Bm = Bm - (tr / N)[:, None, None] * jnp.eye(N, dtype=Bm.dtype)
    return Bm


if __name__ == "__main__":
    key = jax.random.PRNGKey(0)
    k1, k2, k3, k4, k5, k6 = jax.random.split(key, 6)

    # deterministic parameters for `func`
    w1 = jax.random.normal(k1, (IN_DIM, HIDDEN), jnp.float32) * 0.2
    b1 = jax.random.normal(k2, (HIDDEN,), jnp.float32) * 0.1
    w2 = jax.random.normal(k3, (HIDDEN, OUT_DIM), jnp.float32) * 0.2
    b2 = jax.random.normal(k4, (OUT_DIM,), jnp.float32) * 0.1
    params = (w1, b1, w2, b2)

    # well-conditioned complex 3x3 batch (general x^{-1}u semantics is implemented;
    # Cramer in f32 has no pivoting, so near-singular x would lose precision)
    ar = jax.random.normal(k5, (BATCH, N, N), jnp.float32) * 0.5
    ai = jax.random.normal(k6, (BATCH, N, N), jnp.float32) * 0.5
    x = (ar + 1j * ai).astype(jnp.complex64) + 2.0 * jnp.eye(N, dtype=jnp.complex64)
    t = jnp.float32(0.5)

    out = ambient_proj_nn(t, x, params)
    out = jax.block_until_ready(out)

    ref = reference(t, x, params)
    assert out.shape == (BATCH, N, N) and out.dtype == jnp.complex64
    assert jnp.allclose(out, ref, atol=1e-3, rtol=5e-3)
    print("KERNEL_OK")
</pallas_src>

<mosaic_0001>
module attributes {stable_mosaic.version = 11 : i64} {
  func.func @ambient_proj_kernel(%arg0: i32, %arg1: memref<640x128xf32, #tpu.memory_space<vmem>>, %arg2: memref<256x160xf32, #tpu.memory_space<vmem>>, %arg3: memref<144x256xf32, #tpu.memory_space<vmem>>, %arg4: memref<144x1xf32, #tpu.memory_space<vmem>>, %arg5: memref<576x128xf32, #tpu.memory_space<vmem>>, %arg6: memref<144x128xf32, #tpu.memory_space<vmem>>) attributes {dimension_semantics = [#tpu.dimension_semantics<parallel>], iteration_bounds = array<i64: 2>, scalar_prefetch = 0 : i64, scratch_operands = 1 : i64, tpu.core_type = #tpu.core_type<tc>, window_params = [{transform_indices = @transform_0, window_bounds = array<i64: 640, 128>}, {pipeline_mode = #tpu.pipeline_mode<synchronous>, transform_indices = @transform_1, window_bounds = array<i64: 256, 160>}, {pipeline_mode = #tpu.pipeline_mode<synchronous>, transform_indices = @transform_2, window_bounds = array<i64: 144, 256>}, {pipeline_mode = #tpu.pipeline_mode<synchronous>, transform_indices = @transform_3, window_bounds = array<i64: 144, 1>}, {transform_indices = @transform_4, window_bounds = array<i64: 576, 128>}]} {
    %cst = arith.constant 0.000000e+00 : f32
    %0 = vector.broadcast %cst : f32 to vector<8x128xf32>
    %c0 = arith.constant 0 : index
    %c0_0 = arith.constant 0 : index
    %1 = vector.load %arg1[%c0, %c0_0] : memref<640x128xf32, #tpu.memory_space<vmem>>, vector<160x128xf32>
    %c0_1 = arith.constant 0 : index
    %c0_2 = arith.constant 0 : index
    %2 = vector.load %arg2[%c0_1, %c0_2] : memref<256x160xf32, #tpu.memory_space<vmem>>, vector<256x160xf32>
    %cst_3 = arith.constant dense<0.000000e+00> : vector<256x128xf32>
    %3 = tpu.matmul %2, %1, %cst_3 {dimension_numbers = #tpu.dot_dimension_numbers<[1], [0], [0], [1], [0, 0, 1, 1], [], []>} : vector<256x160xf32>, vector<160x128xf32>, vector<256x128xf32> -> vector<256x128xf32>
    %4 = math.tanh %3 : vector<256x128xf32>
    %c0_4 = arith.constant 0 : index
    %c0_5 = arith.constant 0 : index
    %5 = vector.load %arg3[%c0_4, %c0_5] : memref<144x256xf32, #tpu.memory_space<vmem>>, vector<144x256xf32>
    %cst_6 = arith.constant dense<0.000000e+00> : vector<144x128xf32>
    %6 = tpu.matmul %5, %4, %cst_6 {dimension_numbers = #tpu.dot_dimension_numbers<[1], [0], [0], [1], [0, 0, 1, 1], [], []>} : vector<144x256xf32>, vector<256x128xf32>, vector<144x128xf32> -> vector<144x128xf32>
    %c0_7 = arith.constant 0 : index
    %c0_8 = arith.constant 0 : index
    %7 = vector.load %arg4[%c0_7, %c0_8] : memref<144x1xf32, #tpu.memory_space<vmem>>, vector<144x1xf32>
    %8 = vector.broadcast %7 : vector<144x1xf32> to vector<144x128xf32>
    %9 = arith.addf %6, %8 : vector<144x128xf32>
    %c0_9 = arith.constant 0 : index
    %c0_10 = arith.constant 0 : index
    %10 = vector.load %arg6[%c0_9, %c0_10] : memref<144x128xf32, #tpu.memory_space<vmem>>, vector<144x128xf32>
    tpu.vector_store %arg6[%c0_9, %c0_10], %9 {strides = array<i32>} : memref<144x128xf32, #tpu.memory_space<vmem>>, vector<144x128xf32>,
    %c0_11 = arith.constant 0 : index
    %c0_12 = arith.constant 0 : index
    %11 = vector.load %arg1[%c0_11, %c0_12] : memref<640x128xf32, #tpu.memory_space<vmem>>, vector<8x128xf32>
    %c72 = arith.constant 72 : index
    %c0_13 = arith.constant 0 : index
    %12 = vector.load %arg1[%c72, %c0_13] : memref<640x128xf32, #tpu.memory_space<vmem>>, vector<8x128xf32>
    %c8 = arith.constant 8 : index
    %c0_14 = arith.constant 0 : index
    %13 = vector.load %arg1[%c8, %c0_14] : memref<640x128xf32, #tpu.memory_space<vmem>>, vector<8x128xf32>
    %c80 = arith.constant 80 : index
    %c0_15 = arith.constant 0 : index
    %14 = vector.load %arg1[%c80, %c0_15] : memref<640x128xf32, #tpu.memory_space<vmem>>, vector<8x128xf32>
    %c16 = arith.constant 16 : index
    %c0_16 = arith.constant 0 : index
    %15 = vector.load %arg1[%c16, %c0_16] : memref<640x128xf32, #tpu.memory_space<vmem>>, vector<8x128xf32>
    %c88 = arith.constant 88 : index
    %c0_17 = arith.constant 0 : index
    %16 = vector.load %arg1[%c88, %c0_17] : memref<640x128xf32, #tpu.memory_space<vmem>>, vector<8x128xf32>
    %c24 = arith.constant 24 : index
    %c0_18 = arith.constant 0 : index
    %17 = vector.load %arg1[%c24, %c0_18] : memref<640x128xf32, #tpu.memory_space<vmem>>, vector<8x128xf32>
    %c96 = arith.constant 96 : index
    %c0_19 = arith.constant 0 : index
    %18 = vector.load %arg1[%c96, %c0_19] : memref<640x128xf32, #tpu.memory_space<vmem>>, vector<8x128xf32>
    %c32 = arith.constant 32 : index
    %c0_20 = arith.constant 0 : index
    %19 = vector.load %arg1[%c32, %c0_20] : memref<640x128xf32, #tpu.memory_space<vmem>>, vector<8x128xf32>
    %c104 = arith.constant 104 : index
    %c0_21 = arith.constant 0 : index
    %20 = vector.load %arg1[%c104, %c0_21] : memref<640x128xf32, #tpu.memory_space<vmem>>, vector<8x128xf32>
    %c40 = arith.constant 40 : index
    %c0_22 = arith.constant 0 : index
    %21 = vector.load %arg1[%c40, %c0_22] : memref<640x128xf32, #tpu.memory_space<vmem>>, vector<8x128xf32>
    %c112 = arith.constant 112 : index
    %c0_23 = arith.constant 0 : index
    %22 = vector.load %arg1[%c112, %c0_23] : memref<640x128xf32, #tpu.memory_space<vmem>>, vector<8x128xf32>
    %c48 = arith.constant 48 : index
    %c0_24 = arith.constant 0 : index
    %23 = vector.load %arg1[%c48, %c0_24] : memref<640x128xf32, #tpu.memory_space<vmem>>, vector<8x128xf32>
    %c120 = arith.constant 120 : index
    %c0_25 = arith.constant 0 : index
    %24 = vector.load %arg1[%c120, %c0_25] : memref<640x128xf32, #tpu.memory_space<vmem>>, vector<8x128xf32>
    %c56 = arith.constant 56 : index
    %c0_26 = arith.constant 0 : index
    %25 = vector.load %arg1[%c56, %c0_26] : memref<640x128xf32, #tpu.memory_space<vmem>>, vector<8x128xf32>
    %c128 = arith.constant 128 : index
    %c0_27 = arith.constant 0 : index
    %26 = vector.load %arg1[%c128, %c0_27] : memref<640x128xf32, #tpu.memory_space<vmem>>, vector<8x128xf32>
    %c64 = arith.constant 64 : index
    %c0_28 = arith.constant 0 : index
    %27 = vector.load %arg1[%c64, %c0_28] : memref<640x128xf32, #tpu.memory_space<vmem>>, vector<8x128xf32>
    %c136 = arith.constant 136 : index
    %c0_29 = arith.constant 0 : index
    %28 = vector.load %arg1[%c136, %c0_29] : memref<640x128xf32, #tpu.memory_space<vmem>>, vector<8x128xf32>
    %29 = arith.mulf %19, %27 : vector<8x128xf32>
    %30 = arith.mulf %20, %28 : vector<8x128xf32>
    %31 = arith.subf %29, %30 : vector<8x128xf32>
    %32 = arith.mulf %19, %28 : vector<8x128xf32>
    %33 = arith.mulf %20, %27 : vector<8x128xf32>
    %34 = arith.addf %32, %33 : vector<8x128xf32>
    %35 = arith.mulf %21, %25 : vector<8x128xf32>
    %36 = arith.mulf %22, %26 : vector<8x128xf32>
    %37 = arith.subf %35, %36 : vector<8x128xf32>
    %38 = arith.mulf %21, %26 : vector<8x128xf32>
    %39 = arith.mulf %22, %25 : vector<8x128xf32>
    %40 = arith.addf %38, %39 : vector<8x128xf32>
    %41 = arith.subf %31, %37 : vector<8x128xf32>
    %42 = arith.subf %34, %40 : vector<8x128xf32>
    %43 = arith.mulf %17, %27 : vector<8x128xf32>
    %44 = arith.mulf %18, %28 : vector<8x128xf32>
    %45 = arith.subf %43, %44 : vector<8x128xf32>
    %46 = arith.mulf %17, %28 : vector<8x128xf32>
    %47 = arith.mulf %18, %27 : vector<8x128xf32>
    %48 = arith.addf %46, %47 : vector<8x128xf32>
    %49 = arith.mulf %21, %23 : vector<8x128xf32>
    %50 = arith.mulf %22, %24 : vector<8x128xf32>
    %51 = arith.subf %49, %50 : vector<8x128xf32>
    %52 = arith.mulf %21, %24 : vector<8x128xf32>
    %53 = arith.mulf %22, %23 : vector<8x128xf32>
    %54 = arith.addf %52, %53 : vector<8x128xf32>
    %55 = arith.subf %45, %51 : vector<8x128xf32>
    %56 = arith.subf %48, %54 : vector<8x128xf32>
    %cst_30 = arith.constant 0.000000e+00 : f32
    %57 = vector.broadcast %cst_30 : f32 to vector<8x128xf32>
    %58 = arith.subf %57, %55 : vector<8x128xf32>
    %cst_31 = arith.constant 0.000000e+00 : f32
    %59 = vector.broadcast %cst_31 : f32 to vector<8x128xf32>
    %60 = arith.subf %59, %56 : vector<8x128xf32>
    %61 = arith.mulf %17, %25 : vector<8x128xf32>
    %62 = arith.mulf %18, %26 : vector<8x128xf32>
    %63 = arith.subf %61, %62 : vector<8x128xf32>
    %64 = arith.mulf %17, %26 : vector<8x128xf32>
    %65 = arith.mulf %18, %25 : vector<8x128xf32>
    %66 = arith.addf %64, %65 : vector<8x128xf32>
    %67 = arith.mulf %19, %23 : vector<8x128xf32>
    %68 = arith.mulf %20, %24 : vector<8x128xf32>
    %69 = arith.subf %67, %68 : vector<8x128xf32>
    %70 = arith.mulf %19, %24 : vector<8x128xf32>
    %71 = arith.mulf %20, %23 : vector<8x128xf32>
    %72 = arith.addf %70, %71 : vector<8x128xf32>
    %73 = arith.subf %63, %69 : vector<8x128xf32>
    %74 = arith.subf %66, %72 : vector<8x128xf32>
    %75 = arith.mulf %13, %27 : vector<8x128xf32>
    %76 = arith.mulf %14, %28 : vector<8x128xf32>
    %77 = arith.subf %75, %76 : vector<8x128xf32>
    %78 = arith.mulf %13, %28 : vector<8x128xf32>
    %79 = arith.mulf %14, %27 : vector<8x128xf32>
    %80 = arith.addf %78, %79 : vector<8x128xf32>
    %81 = arith.mulf %15, %25 : vector<8x128xf32>
    %82 = arith.mulf %16, %26 : vector<8x128xf32>
    %83 = arith.subf %81, %82 : vector<8x128xf32>
    %84 = arith.mulf %15, %26 : vector<8x128xf32>
    %85 = arith.mulf %16, %25 : vector<8x128xf32>
    %86 = arith.addf %84, %85 : vector<8x128xf32>
    %87 = arith.subf %77, %83 : vector<8x128xf32>
    %88 = arith.subf %80, %86 : vector<8x128xf32>
    %cst_32 = arith.constant 0.000000e+00 : f32
    %89 = vector.broadcast %cst_32 : f32 to vector<8x128xf32>
    %90 = arith.subf %89, %87 : vector<8x128xf32>
    %cst_33 = arith.constant 0.000000e+00 : f32
    %91 = vector.broadcast %cst_33 : f32 to vector<8x128xf32>
    %92 = arith.subf %91, %88 : vector<8x128xf32>
    %93 = arith.mulf %11, %27 : vector<8x128xf32>
    %94 = arith.mulf %12, %28 : vector<8x128xf32>
    %95 = arith.subf %93, %94 : vector<8x128xf32>
    %96 = arith.mulf %11, %28 : vector<8x128xf32>
    %97 = arith.mulf %12, %27 : vector<8x128xf32>
    %98 = arith.addf %96, %97 : vector<8x128xf32>
    %99 = arith.mulf %15, %23 : vector<8x128xf32>
    %100 = arith.mulf %16, %24 : vector<8x128xf32>
    %101 = arith.subf %99, %100 : vector<8x128xf32>
    %102 = arith.mulf %15, %24 : vector<8x128xf32>
    %103 = arith.mulf %16, %23 : vector<8x128xf32>
    %104 = arith.addf %102, %103 : vector<8x128xf32>
    %105 = arith.subf %95, %101 : vector<8x128xf32>
    %106 = arith.subf %98, %104 : vector<8x128xf32>
    %107 = arith.mulf %11, %25 : vector<8x128xf32>
    %108 = arith.mulf %12, %26 : vector<8x128xf32>
    %109 = arith.subf %107, %108 : vector<8x128xf32>
    %110 = arith.mulf %11, %26 : vector<8x128xf32>
    %111 = arith.mulf %12, %25 : vector<8x128xf32>
    %112 = arith.addf %110, %111 : vector<8x128xf32>
    %113 = arith.mulf %13, %23 : vector<8x128xf32>
    %114 = arith.mulf %14, %24 : vector<8x128xf32>
    %115 = arith.subf %113, %114 : vector<8x128xf32>
    %116 = arith.mulf %13, %24 : vector<8x128xf32>
    %117 = arith.mulf %14, %23 : vector<8x128xf32>
    %118 = arith.addf %116, %117 : vector<8x128xf32>
    %119 = arith.subf %109, %115 : vector<8x128xf32>
    %120 = arith.subf %112, %118 : vector<8x128xf32>
    %cst_34 = arith.constant 0.000000e+00 : f32
    %121 = vector.broadcast %cst_34 : f32 to vector<8x128xf32>
    %122 = arith.subf %121, %119 : vector<8x128xf32>
    %cst_35 = arith.constant 0.000000e+00 : f32
    %123 = vector.broadcast %cst_35 : f32 to vector<8x128xf32>
    %124 = arith.subf %123, %120 : vector<8x128xf32>
    %125 = arith.mulf %13, %21 : vector<8x128xf32>
    %126 = arith.mulf %14, %22 : vector<8x128xf32>
    %127 = arith.subf %125, %126 : vector<8x128xf32>
    %128 = arith.mulf %13, %22 : vector<8x128xf32>
    %129 = arith.mulf %14, %21 : vector<8x128xf32>
    %130 = arith.addf %128, %129 : vector<8x128xf32>
    %131 = arith.mulf %15, %19 : vector<8x128xf32>
    %132 = arith.mulf %16, %20 : vector<8x128xf32>
    %133 = arith.subf %131, %132 : vector<8x128xf32>
    %134 = arith.mulf %15, %20 : vector<8x128xf32>
    %135 = arith.mulf %16, %19 : vector<8x128xf32>
    %136 = arith.addf %134, %135 : vector<8x128xf32>
    %137 = arith.subf %127, %133 : vector<8x128xf32>
    %138 = arith.subf %130, %136 : vector<8x128xf32>
    %139 = arith.mulf %11, %21 : vector<8x128xf32>
    %140 = arith.mulf %12, %22 : vector<8x128xf32>
    %141 = arith.subf %139, %140 : vector<8x128xf32>
    %142 = arith.mulf %11, %22 : vector<8x128xf32>
    %143 = arith.mulf %12, %21 : vector<8x128xf32>
    %144 = arith.addf %142, %143 : vector<8x128xf32>
    %145 = arith.mulf %15, %17 : vector<8x128xf32>
    %146 = arith.mulf %16, %18 : vector<8x128xf32>
    %147 = arith.subf %145, %146 : vector<8x128xf32>
    %148 = arith.mulf %15, %18 : vector<8x128xf32>
    %149 = arith.mulf %16, %17 : vector<8x128xf32>
    %150 = arith.addf %148, %149 : vector<8x128xf32>
    %151 = arith.subf %141, %147 : vector<8x128xf32>
    %152 = arith.subf %144, %150 : vector<8x128xf32>
    %cst_36 = arith.constant 0.000000e+00 : f32
    %153 = vector.broadcast %cst_36 : f32 to vector<8x128xf32>
    %154 = arith.subf %153, %151 : vector<8x128xf32>
    %cst_37 = arith.constant 0.000000e+00 : f32
    %155 = vector.broadcast %cst_37 : f32 to vector<8x128xf32>
    %156 = arith.subf %155, %152 : vector<8x128xf32>
    %157 = arith.mulf %11, %19 : vector<8x128xf32>
    %158 = arith.mulf %12, %20 : vector<8x128xf32>
    %159 = arith.subf %157, %158 : vector<8x128xf32>
    %160 = arith.mulf %11, %20 : vector<8x128xf32>
    %161 = arith.mulf %12, %19 : vector<8x128xf32>
    %162 = arith.addf %160, %161 : vector<8x128xf32>
    %163 = arith.mulf %13, %17 : vector<8x128xf32>
    %164 = arith.mulf %14, %18 : vector<8x128xf32>
    %165 = arith.subf %163, %164 : vector<8x128xf32>
    %166 = arith.mulf %13, %18 : vector<8x128xf32>
    %167 = arith.mulf %14, %17 : vector<8x128xf32>
    %168 = arith.addf %166, %167 : vector<8x128xf32>
    %169 = arith.subf %159, %165 : vector<8x128xf32>
    %170 = arith.subf %162, %168 : vector<8x128xf32>
    %171 = arith.mulf %11, %41 : vector<8x128xf32>
    %172 = arith.mulf %12, %42 : vector<8x128xf32>
    %173 = arith.subf %171, %172 : vector<8x128xf32>
    %174 = arith.mulf %11, %42 : vector<8x128xf32>
    %175 = arith.mulf %12, %41 : vector<8x128xf32>
    %176 = arith.addf %174, %175 : vector<8x128xf32>
    %177 = arith.mulf %13, %58 : vector<8x128xf32>
    %178 = arith.mulf %14, %60 : vector<8x128xf32>
    %179 = arith.subf %177, %178 : vector<8x128xf32>
    %180 = arith.mulf %13, %60 : vector<8x128xf32>
    %181 = arith.mulf %14, %58 : vector<8x128xf32>
    %182 = arith.addf %180, %181 : vector<8x128xf32>
    %183 = arith.mulf %15, %73 : vector<8x128xf32>
    %184 = arith.mulf %16, %74 : vector<8x128xf32>
    %185 = arith.subf %183, %184 : vector<8x128xf32>
    %186 = arith.mulf %15, %74 : vector<8x128xf32>
    %187 = arith.mulf %16, %73 : vector<8x128xf32>
    %188 = arith.addf %186, %187 : vector<8x128xf32>
    %189 = arith.addf %173, %179 : vector<8x128xf32>
    %190 = arith.addf %176, %182 : vector<8x128xf32>
    %191 = arith.addf %189, %185 : vector<8x128xf32>
    %192 = arith.addf %190, %188 : vector<8x128xf32>
    %193 = arith.mulf %191, %191 : vector<8x128xf32>
    %194 = arith.mulf %192, %192 : vector<8x128xf32>
    %195 = arith.addf %193, %194 : vector<8x128xf32>
    %196 = tpu.reciprocal %195 {approx = true} : vector<8x128xf32> -> vector<8x128xf32>
    %197 = arith.mulf %195, %196 : vector<8x128xf32>
    %cst_38 = arith.constant 2.000000e+00 : f32
    %198 = vector.broadcast %cst_38 : f32 to vector<8x128xf32>
    %199 = arith.subf %198, %197 : vector<8x128xf32>
    %200 = arith.mulf %196, %199 : vector<8x128xf32>
    %201 = arith.mulf %191, %200 : vector<8x128xf32>
    %cst_39 = arith.constant 0.000000e+00 : f32
    %202 = vector.broadcast %cst_39 : f32 to vector<8x128xf32>
    %203 = arith.subf %202, %192 : vector<8x128xf32>
    %204 = arith.mulf %203, %200 : vector<8x128xf32>
    %c8_40 = arith.constant 8 : index
    %c0_41 = arith.constant 0 : index
    %205 = vector.load %arg6[%c8_40, %c0_41] : memref<144x128xf32, #tpu.memory_space<vmem>>, vector<8x128xf32>
    %c80_42 = arith.constant 80 : index
    %c0_43 = arith.constant 0 : index
    %206 = vector.load %arg6[%c80_42, %c0_43] : memref<144x128xf32, #tpu.memory_space<vmem>>, vector<8x128xf32>
    %207 = arith.mulf %41, %205 : vector<8x128xf32>
    %208 = arith.mulf %42, %206 : vector<8x128xf32>
    %209 = arith.subf %207, %208 : vector<8x128xf32>
    %210 = arith.mulf %41, %206 : vector<8x128xf32>
    %211 = arith.mulf %42, %205 : vector<8x128xf32>
    %212 = arith.addf %210, %211 : vector<8x128xf32>
    %c32_44 = arith.constant 32 : index
    %c0_45 = arith.constant 0 : index
    %213 = vector.load %arg6[%c32_44, %c0_45] : memref<144x128xf32, #tpu.memory_space<vmem>>, vector<8x128xf32>
    %c104_46 = arith.constant 104 : index
    %c0_47 = arith.constant 0 : index
    %214 = vector.load %arg6[%c104_46, %c0_47] : memref<144x128xf32, #tpu.memory_space<vmem>>, vector<8x128xf32>
    %215 = arith.mulf %90, %213 : vector<8x128xf32>
    %216 = arith.mulf %92, %214 : vector<8x128xf32>
    %217 = arith.subf %215, %216 : vector<8x128xf32>
    %218 = arith.mulf %90, %214 : vector<8x128xf32>
    %219 = arith.mulf %92, %213 : vector<8x128xf32>
    %220 = arith.addf %218, %219 : vector<8x128xf32>
    %c56_48 = arith.constant 56 : index
    %c0_49 = arith.constant 0 : index
    %221 = vector.load %arg6[%c56_48, %c0_49] : memref<144x128xf32, #tpu.memory_space<vmem>>, vector<8x128xf32>
    %c128_50 = arith.constant 128 : index
    %c0_51 = arith.constant 0 : index
    %222 = vector.load %arg6[%c128_50, %c0_51] : memref<144x128xf32, #tpu.memory_space<vmem>>, vector<8x128xf32>
    %223 = arith.mulf %137, %221 : vector<8x128xf32>
    %224 = arith.mulf %138, %222 : vector<8x128xf32>
    %225 = arith.subf %223, %224 : vector<8x128xf32>
    %226 = arith.mulf %137, %222 : vector<8x128xf32>
    %227 = arith.mulf %138, %221 : vector<8x128xf32>
    %228 = arith.addf %226, %227 : vector<8x128xf32>
    %229 = arith.addf %209, %217 : vector<8x128xf32>
    %230 = arith.addf %212, %220 : vector<8x128xf32>
    %231 = arith.addf %229, %225 : vector<8x128xf32>
    %232 = arith.addf %230, %228 : vector<8x128xf32>
    %233 = arith.mulf %231, %201 : vector<8x128xf32>
    %234 = arith.mulf %232, %204 : vector<8x128xf32>
    %235 = arith.subf %233, %234 : vector<8x128xf32>
    %236 = arith.mulf %231, %204 : vector<8x128xf32>
    %237 = arith.mulf %232, %201 : vector<8x128xf32>
    %238 = arith.addf %236, %237 : vector<8x128xf32>
    %c0_52 = arith.constant 0 : index
    %c0_53 = arith.constant 0 : index
    %239 = vector.load %arg6[%c0_52, %c0_53] : memref<144x128xf32, #tpu.memory_space<vmem>>, vector<8x128xf32>
    %c72_54 = arith.constant 72 : index
    %c0_55 = arith.constant 0 : index
    %240 = vector.load %arg6[%c72_54, %c0_55] : memref<144x128xf32, #tpu.memory_space<vmem>>, vector<8x128xf32>
    %241 = arith.mulf %58, %239 : vector<8x128xf32>
    %242 = arith.mulf %60, %240 : vector<8x128xf32>
    %243 = arith.subf %241, %242 : vector<8x128xf32>
    %244 = arith.mulf %58, %240 : vector<8x128xf32>
    %245 = arith.mulf %60, %239 : vector<8x128xf32>
    %246 = arith.addf %244, %245 : vector<8x128xf32>
    %c24_56 = arith.constant 24 : index
    %c0_57 = arith.constant 0 : index
    %247 = vector.load %arg6[%c24_56, %c0_57] : memref<144x128xf32, #tpu.memory_space<vmem>>, vector<8x128xf32>
    %c96_58 = arith.constant 96 : index
    %c0_59 = arith.constant 0 : index
    %248 = vector.load %arg6[%c96_58, %c0_59] : memref<144x128xf32, #tpu.memory_space<vmem>>, vector<8x128xf32>
    %249 = arith.mulf %105, %247 : vector<8x128xf32>
    %250 = arith.mulf %106, %248 : vector<8x128xf32>
    %251 = arith.subf %249, %250 : vector<8x128xf32>
    %252 = arith.mulf %105, %248 : vector<8x128xf32>
    %253 = arith.mulf %106, %247 : vector<8x128xf32>
    %254 = arith.addf %252, %253 : vector<8x128xf32>
    %c48_60 = arith.constant 48 : index
    %c0_61 = arith.constant 0 : index
    %255 = vector.load %arg6[%c48_60, %c0_61] : memref<144x128xf32, #tpu.memory_space<vmem>>, vector<8x128xf32>
    %c120_62 = arith.constant 120 : index
    %c0_63 = arith.constant 0 : index
    %256 = vector.load %arg6[%c120_62, %c0_63] : memref<144x128xf32, #tpu.memory_space<vmem>>, vector<8x128xf32>
    %257 = arith.mulf %154, %255 : vector<8x128xf32>
    %258 = arith.mulf %156, %256 : vector<8x128xf32>
    %259 = arith.subf %257, %258 : vector<8x128xf32>
    %260 = arith.mulf %154, %256 : vector<8x128xf32>
    %261 = arith.mulf %156, %255 : vector<8x128xf32>
    %262 = arith.addf %260, %261 : vector<8x128xf32>
    %263 = arith.addf %243, %251 : vector<8x128xf32>
    %264 = arith.addf %246, %254 : vector<8x128xf32>
    %265 = arith.addf %263, %259 : vector<8x128xf32>
    %266 = arith.addf %264, %262 : vector<8x128xf32>
    %267 = arith.mulf %265, %201 : vector<8x128xf32>
    %268 = arith.mulf %266, %204 : vector<8x128xf32>
    %269 = arith.subf %267, %268 : vector<8x128xf32>
    %270 = arith.mulf %265, %204 : vector<8x128xf32>
    %271 = arith.mulf %266, %201 : vector<8x128xf32>
    %272 = arith.addf %270, %271 : vector<8x128xf32>
    %273 = arith.subf %235, %269 : vector<8x128xf32>
    %cst_64 = arith.constant 5.000000e-01 : f32
    %274 = vector.broadcast %cst_64 : f32 to vector<8x128xf32>
    %275 = arith.mulf %273, %274 : vector<8x128xf32>
    %276 = arith.addf %238, %272 : vector<8x128xf32>
    %cst_65 = arith.constant 5.000000e-01 : f32
    %277 = vector.broadcast %cst_65 : f32 to vector<8x128xf32>
    %278 = arith.mulf %276, %277 : vector<8x128xf32>
    %c8_66 = arith.constant 8 : index
    %c0_67 = arith.constant 0 : index
    %279 = vector.load %arg5[%c8_66, %c0_67] : memref<576x128xf32, #tpu.memory_space<vmem>>, vector<8x128xf32>
    tpu.vector_store %arg5[%c8_66, %c0_67], %275 {strides = array<i32>} : memref<576x128xf32, #tpu.memory_space<vmem>>, vector<8x128xf32>,
    %c80_68 = arith.constant 80 : index
    %c0_69 = arith.constant 0 : index
    %280 = vector.load %arg5[%c80_68, %c0_69] : memref<576x128xf32, #tpu.memory_space<vmem>>, vector<8x128xf32>
    tpu.vector_store %arg5[%c80_68, %c0_69], %278 {strides = array<i32>} : memref<576x128xf32, #tpu.memory_space<vmem>>, vector<8x128xf32>,
    %cst_70 = arith.constant 0.000000e+00 : f32
    %281 = vector.broadcast %cst_70 : f32 to vector<8x128xf32>
    %282 = arith.subf %281, %275 : vector<8x128xf32>
    %c24_71 = arith.constant 24 : index
    %c0_72 = arith.constant 0 : index
    %283 = vector.load %arg5[%c24_71, %c0_72] : memref<576x128xf32, #tpu.memory_space<vmem>>, vector<8x128xf32>
    tpu.vector_store %arg5[%c24_71, %c0_72], %282 {strides = array<i32>} : memref<576x128xf32, #tpu.memory_space<vmem>>, vector<8x128xf32>,
    %c96_73 = arith.constant 96 : index
    %c0_74 = arith.constant 0 : index
    %284 = vector.load %arg5[%c96_73, %c0_74] : memref<576x128xf32, #tpu.memory_space<vmem>>, vector<8x128xf32>
    tpu.vector_store %arg5[%c96_73, %c0_74], %278 {strides = array<i32>} : memref<576x128xf32, #tpu.memory_space<vmem>>, vector<8x128xf32>,
    %c16_75 = arith.constant 16 : index
    %c0_76 = arith.constant 0 : index
    %285 = vector.load %arg6[%c16_75, %c0_76] : memref<144x128xf32, #tpu.memory_space<vmem>>, vector<8x128xf32>
    %c88_77 = arith.constant 88 : index
    %c0_78 = arith.constant 0 : index
    %286 = vector.load %arg6[%c88_77, %c0_78] : memref<144x128xf32, #tpu.memory_space<vmem>>, vector<8x128xf32>
    %287 = arith.mulf %41, %285 : vector<8x128xf32>
    %288 = arith.mulf %42, %286 : vector<8x128xf32>
    %289 = arith.subf %287, %288 : vector<8x128xf32>
    %290 = arith.mulf %41, %286 : vector<8x128xf32>
    %291 = arith.mulf %42, %285 : vector<8x128xf32>
    %292 = arith.addf %290, %291 : vector<8x128xf32>
    %c40_79 = arith.constant 40 : index
    %c0_80 = arith.constant 0 : index
    %293 = vector.load %arg6[%c40_79, %c0_80] : memref<144x128xf32, #tpu.memory_space<vmem>>, vector<8x128xf32>
    %c112_81 = arith.constant 112 : index
    %c0_82 = arith.constant 0 : index
    %294 = vector.load %arg6[%c112_81, %c0_82] : memref<144x128xf32, #tpu.memory_space<vmem>>, vector<8x128xf32>
    %295 = arith.mulf %90, %293 : vector<8x128xf32>
    %296 = arith.mulf %92, %294 : vector<8x128xf32>
    %297 = arith.subf %295, %296 : vector<8x128xf32>
    %298 = arith.mulf %90, %294 : vector<8x128xf32>
    %299 = arith.mulf %92, %293 : vector<8x128xf32>
    %300 = arith.addf %298, %299 : vector<8x128xf32>
    %c64_83 = arith.constant 64 : index
    %c0_84 = arith.constant 0 : index
    %301 = vector.load %arg6[%c64_83, %c0_84] : memref<144x128xf32, #tpu.memory_space<vmem>>, vector<8x128xf32>
    %c136_85 = arith.constant 136 : index
    %c0_86 = arith.constant 0 : index
    %302 = vector.load %arg6[%c136_85, %c0_86] : memref<144x128xf32, #tpu.memory_space<vmem>>, vector<8x128xf32>
    %303 = arith.mulf %137, %301 : vector<8x128xf32>
    %304 = arith.mulf %138, %302 : vector<8x128xf32>
    %305 = arith.subf %303, %304 : vector<8x128xf32>
    %306 = arith.mulf %137, %302 : vector<8x128xf32>
    %307 = arith.mulf %138, %301 : vector<8x128xf32>
    %308 = arith.addf %306, %307 : vector<8x128xf32>
    %309 = arith.addf %289, %297 : vector<8x128xf32>
    %310 = arith.addf %292, %300 : vector<8x128xf32>
    %311 = arith.addf %309, %305 : vector<8x128xf32>
    %312 = arith.addf %310, %308 : vector<8x128xf32>
    %313 = arith.mulf %311, %201 : vector<8x128xf32>
    %314 = arith.mulf %312, %204 : vector<8x128xf32>
    %315 = arith.subf %313, %314 : vector<8x128xf32>
    %316 = arith.mulf %311, %204 : vector<8x128xf32>
    %317 = arith.mulf %312, %201 : vector<8x128xf32>
    %318 = arith.addf %316, %317 : vector<8x128xf32>
    %c0_87 = arith.constant 0 : index
    %c0_88 = arith.constant 0 : index
    %319 = vector.load %arg6[%c0_87, %c0_88] : memref<144x128xf32, #tpu.memory_space<vmem>>, vector<8x128xf32>
    %c72_89 = arith.constant 72 : index
    %c0_90 = arith.constant 0 : index
    %320 = vector.load %arg6[%c72_89, %c0_90] : memref<144x128xf32, #tpu.memory_space<vmem>>, vector<8x128xf32>
    %321 = arith.mulf %73, %319 : vector<8x128xf32>
    %322 = arith.mulf %74, %320 : vector<8x128xf32>
    %323 = arith.subf %321, %322 : vector<8x128xf32>
    %324 = arith.mulf %73, %320 : vector<8x128xf32>
    %325 = arith.mulf %74, %319 : vector<8x128xf32>
    %326 = arith.addf %324, %325 : vector<8x128xf32>
    %c24_91 = arith.constant 24 : index
    %c0_92 = arith.constant 0 : index
    %327 = vector.load %arg6[%c24_91, %c0_92] : memref<144x128xf32, #tpu.memory_space<vmem>>, vector<8x128xf32>
    %c96_93 = arith.constant 96 : index
    %c0_94 = arith.constant 0 : index
    %328 = vector.load %arg6[%c96_93, %c0_94] : memref<144x128xf32, #tpu.memory_space<vmem>>, vector<8x128xf32>
    %329 = arith.mulf %122, %327 : vector<8x128xf32>
    %330 = arith.mulf %124, %328 : vector<8x128xf32>
    %331 = arith.subf %329, %330 : vector<8x128xf32>
    %332 = arith.mulf %122, %328 : vector<8x128xf32>
    %333 = arith.mulf %124, %327 : vector<8x128xf32>
    %334 = arith.addf %332, %333 : vector<8x128xf32>
    %c48_95 = arith.constant 48 : index
    %c0_96 = arith.constant 0 : index
    %335 = vector.load %arg6[%c48_95, %c0_96] : memref<144x128xf32, #tpu.memory_space<vmem>>, vector<8x128xf32>
    %c120_97 = arith.constant 120 : index
    %c0_98 = arith.constant 0 : index
    %336 = vector.load %arg6[%c120_97, %c0_98] : memref<144x128xf32, #tpu.memory_space<vmem>>, vector<8x128xf32>
    %337 = arith.mulf %169, %335 : vector<8x128xf32>
    %338 = arith.mulf %170, %336 : vector<8x128xf32>
    %339 = arith.subf %337, %338 : vector<8x128xf32>
    %340 = arith.mulf %169, %336 : vector<8x128xf32>
    %341 = arith.mulf %170, %335 : vector<8x128xf32>
    %342 = arith.addf %340, %341 : vector<8x128xf32>
    %343 = arith.addf %323, %331 : vector<8x128xf32>
    %344 = arith.addf %326, %334 : vector<8x128xf32>
    %345 = arith.addf %343, %339 : vector<8x128xf32>
    %346 = arith.addf %344, %342 : vector<8x128xf32>
    %347 = arith.mulf %345, %201 : vector<8x128xf32>
    %348 = arith.mulf %346, %204 : vector<8x128xf32>
    %349 = arith.subf %347, %348 : vector<8x128xf32>
    %350 = arith.mulf %345, %204 : vector<8x128xf32>
    %351 = arith.mulf %346, %201 : vector<8x128xf32>
    %352 = arith.addf %350, %351 : vector<8x128xf32>
    %353 = arith.subf %315, %349 : vector<8x128xf32>
    %cst_99 = arith.constant 5.000000e-01 : f32
    %354 = vector.broadcast %cst_99 : f32 to vector<8x128xf32>
    %355 = arith.mulf %353, %354 : vector<8x128xf32>
    %356 = arith.addf %318, %352 : vector<8x128xf32>
    %cst_100 = arith.constant 5.000000e-01 : f32
    %357 = vector.broadcast %cst_100 : f32 to vector<8x128xf32>
    %358 = arith.mulf %356, %357 : vector<8x128xf32>
    %c16_101 = arith.constant 16 : index
    %c0_102 = arith.constant 0 : index
    %359 = vector.load %arg5[%c16_101, %c0_102] : memref<576x128xf32, #tpu.memory_space<vmem>>, vector<8x128xf32>
    tpu.vector_store %arg5[%c16_101, %c0_102], %355 {strides = array<i32>} : memref<576x128xf32, #tpu.memory_space<vmem>>, vector<8x128xf32>,
    %c88_103 = arith.constant 88 : index
    %c0_104 = arith.constant 0 : index
    %360 = vector.load %arg5[%c88_103, %c0_104] : memref<576x128xf32, #tpu.memory_space<vmem>>, vector<8x128xf32>
    tpu.vector_store %arg5[%c88_103, %c0_104], %358 {strides = array<i32>} : memref<576x128xf32, #tpu.memory_space<vmem>>, vector<8x128xf32>,
    %cst_105 = arith.constant 0.000000e+00 : f32
    %361 = vector.broadcast %cst_105 : f32 to vector<8x128xf32>
    %362 = arith.subf %361, %355 : vector<8x128xf32>
    %c48_106 = arith.constant 48 : index
    %c0_107 = arith.constant 0 : index
    %363 = vector.load %arg5[%c48_106, %c0_107] : memref<576x128xf32, #tpu.memory_space<vmem>>, vector<8x128xf32>
    tpu.vector_store %arg5[%c48_106, %c0_107], %362 {strides = array<i32>} : memref<576x128xf32, #tpu.memory_space<vmem>>, vector<8x128xf32>,
    %c120_108 = arith.constant 120 : index
    %c0_109 = arith.constant 0 : index
    %364 = vector.load %arg5[%c120_108, %c0_109] : memref<576x128xf32, #tpu.memory_space<vmem>>, vector<8x128xf32>
    tpu.vector_store %arg5[%c120_108, %c0_109], %358 {strides = array<i32>} : memref<576x128xf32, #tpu.memory_space<vmem>>, vector<8x128xf32>,
    %c16_110 = arith.constant 16 : index
    %c0_111 = arith.constant 0 : index
    %365 = vector.load %arg6[%c16_110, %c0_111] : memref<144x128xf32, #tpu.memory_space<vmem>>, vector<8x128xf32>
    %c88_112 = arith.constant 88 : index
    %c0_113 = arith.constant 0 : index
    %366 = vector.load %arg6[%c88_112, %c0_113] : memref<144x128xf32, #tpu.memory_space<vmem>>, vector<8x128xf32>
    %367 = arith.mulf %58, %365 : vector<8x128xf32>
    %368 = arith.mulf %60, %366 : vector<8x128xf32>
    %369 = arith.subf %367, %368 : vector<8x128xf32>
    %370 = arith.mulf %58, %366 : vector<8x128xf32>
    %371 = arith.mulf %60, %365 : vector<8x128xf32>
    %372 = arith.addf %370, %371 : vector<8x128xf32>
    %c40_114 = arith.constant 40 : index
    %c0_115 = arith.constant 0 : index
    %373 = vector.load %arg6[%c40_114, %c0_115] : memref<144x128xf32, #tpu.memory_space<vmem>>, vector<8x128xf32>
    %c112_116 = arith.constant 112 : index
    %c0_117 = arith.constant 0 : index
    %374 = vector.load %arg6[%c112_116, %c0_117] : memref<144x128xf32, #tpu.memory_space<vmem>>, vector<8x128xf32>
    %375 = arith.mulf %105, %373 : vector<8x128xf32>
    %376 = arith.mulf %106, %374 : vector<8x128xf32>
    %377 = arith.subf %375, %376 : vector<8x128xf32>
    %378 = arith.mulf %105, %374 : vector<8x128xf32>
    %379 = arith.mulf %106, %373 : vector<8x128xf32>
    %380 = arith.addf %378, %379 : vector<8x128xf32>
    %c64_118 = arith.constant 64 : index
    %c0_119 = arith.constant 0 : index
    %381 = vector.load %arg6[%c64_118, %c0_119] : memref<144x128xf32, #tpu.memory_space<vmem>>, vector<8x128xf32>
    %c136_120 = arith.constant 136 : index
    %c0_121 = arith.constant 0 : index
    %382 = vector.load %arg6[%c136_120, %c0_121] : memref<144x128xf32, #tpu.memory_space<vmem>>, vector<8x128xf32>
    %383 = arith.mulf %154, %381 : vector<8x128xf32>
    %384 = arith.mulf %156, %382 : vector<8x128xf32>
    %385 = arith.subf %383, %384 : vector<8x128xf32>
    %386 = arith.mulf %154, %382 : vector<8x128xf32>
    %387 = arith.mulf %156, %381 : vector<8x128xf32>
    %388 = arith.addf %386, %387 : vector<8x128xf32>
    %389 = arith.addf %369, %377 : vector<8x128xf32>
    %390 = arith.addf %372, %380 : vector<8x128xf32>
    %391 = arith.addf %389, %385 : vector<8x128xf32>
    %392 = arith.addf %390, %388 : vector<8x128xf32>
    %393 = arith.mulf %391, %201 : vector<8x128xf32>
    %394 = arith.mulf %392, %204 : vector<8x128xf32>
    %395 = arith.subf %393, %394 : vector<8x128xf32>
    %396 = arith.mulf %391, %204 : vector<8x128xf32>
    %397 = arith.mulf %392, %201 : vector<8x128xf32>
    %398 = arith.addf %396, %397 : vector<8x128xf32>
    %c8_122 = arith.constant 8 : index
    %c0_123 = arith.constant 0 : index
    %399 = vector.load %arg6[%c8_122, %c0_123] : memref<144x128xf32, #tpu.memory_space<vmem>>, vector<8x128xf32>
    %c80_124 = arith.constant 80 : index
    %c0_125 = arith.constant 0 : index
    %400 = vector.load %arg6[%c80_124, %c0_125] : memref<144x128xf32, #tpu.memory_space<vmem>>, vector<8x128xf32>
    %401 = arith.mulf %73, %399 : vector<8x128xf32>
    %402 = arith.mulf %74, %400 : vector<8x128xf32>
    %403 = arith.subf %401, %402 : vector<8x128xf32>
    %404 = arith.mulf %73, %400 : vector<8x128xf32>
    %405 = arith.mulf %74, %399 : vector<8x128xf32>
    %406 = arith.addf %404, %405 : vector<8x128xf32>
    %c32_126 = arith.constant 32 : index
    %c0_127 = arith.constant 0 : index
    %407 = vector.load %arg6[%c32_126, %c0_127] : memref<144x128xf32, #tpu.memory_space<vmem>>, vector<8x128xf32>
    %c104_128 = arith.constant 104 : index
    %c0_129 = arith.constant 0 : index
    %408 = vector.load %arg6[%c104_128, %c0_129] : memref<144x128xf32, #tpu.memory_space<vmem>>, vector<8x128xf32>
    %409 = arith.mulf %122, %407 : vector<8x128xf32>
    %410 = arith.mulf %124, %408 : vector<8x128xf32>
    %411 = arith.subf %409, %410 : vector<8x128xf32>
    %412 = arith.mulf %122, %408 : vector<8x128xf32>
    %413 = arith.mulf %124, %407 : vector<8x128xf32>
    %414 = arith.addf %412, %413 : vector<8x128xf32>
    %c56_130 = arith.constant 56 : index
    %c0_131 = arith.constant 0 : index
    %415 = vector.load %arg6[%c56_130, %c0_131] : memref<144x128xf32, #tpu.memory_space<vmem>>, vector<8x128xf32>
    %c128_132 = arith.constant 128 : index
    %c0_133 = arith.constant 0 : index
    %416 = vector.load %arg6[%c128_132, %c0_133] : memref<144x128xf32, #tpu.memory_space<vmem>>, vector<8x128xf32>
    %417 = arith.mulf %169, %415 : vector<8x128xf32>
    %418 = arith.mulf %170, %416 : vector<8x128xf32>
    %419 = arith.subf %417, %418 : vector<8x128xf32>
    %420 = arith.mulf %169, %416 : vector<8x128xf32>
    %421 = arith.mulf %170, %415 : vector<8x128xf32>
    %422 = arith.addf %420, %421 : vector<8x128xf32>
    %423 = arith.addf %403, %411 : vector<8x128xf32>
    %424 = arith.addf %406, %414 : vector<8x128xf32>
    %425 = arith.addf %423, %419 : vector<8x128xf32>
    %426 = arith.addf %424, %422 : vector<8x128xf32>
    %427 = arith.mulf %425, %201 : vector<8x128xf32>
    %428 = arith.mulf %426, %204 : vector<8x128xf32>
    %429 = arith.subf %427, %428 : vector<8x128xf32>
    %430 = arith.mulf %425, %204 : vector<8x128xf32>
    %431 = arith.mulf %426, %201 : vector<8x128xf32>
    %432 = arith.addf %430, %431 : vector<8x128xf32>
    %433 = arith.subf %395, %429 : vector<8x128xf32>
    %cst_134 = arith.constant 5.000000e-01 : f32
    %434 = vector.broadcast %cst_134 : f32 to vector<8x128xf32>
    %435 = arith.mulf %433, %434 : vector<8x128xf32>
    %436 = arith.addf %398, %432 : vector<8x128xf32>
    %cst_135 = arith.constant 5.000000e-01 : f32
    %437 = vector.broadcast %cst_135 : f32 to vector<8x128xf32>
    %438 = arith.mulf %436, %437 : vector<8x128xf32>
    %c40_136 = arith.constant 40 : index
    %c0_137 = arith.constant 0 : index
    %439 = vector.load %arg5[%c40_136, %c0_137] : memref<576x128xf32, #tpu.memory_space<vmem>>, vector<8x128xf32>
    tpu.vector_store %arg5[%c40_136, %c0_137], %435 {strides = array<i32>} : memref<576x128xf32, #tpu.memory_space<vmem>>, vector<8x128xf32>,
    %c112_138 = arith.constant 112 : index
    %c0_139 = arith.constant 0 : index
    %440 = vector.load %arg5[%c112_138, %c0_139] : memref<576x128xf32, #tpu.memory_space<vmem>>, vector<8x128xf32>
    tpu.vector_store %arg5[%c112_138, %c0_139], %438 {strides = array<i32>} : memref<576x128xf32, #tpu.memory_space<vmem>>, vector<8x128xf32>,
    %cst_140 = arith.constant 0.000000e+00 : f32
    %441 = vector.broadcast %cst_140 : f32 to vector<8x128xf32>
    %442 = arith.subf %441, %435 : vector<8x128xf32>
    %c56_141 = arith.constant 56 : index
    %c0_142 = arith.constant 0 : index
    %443 = vector.load %arg5[%c56_141, %c0_142] : memref<576x128xf32, #tpu.memory_space<vmem>>, vector<8x128xf32>
    tpu.vector_store %arg5[%c56_141, %c0_142], %442 {strides = array<i32>} : memref<576x128xf32, #tpu.memory_space<vmem>>, vector<8x128xf32>,
    %c128_143 = arith.constant 128 : index
    %c0_144 = arith.constant 0 : index
    %444 = vector.load %arg5[%c128_143, %c0_144] : memref<576x128xf32, #tpu.memory_space<vmem>>, vector<8x128xf32>
    tpu.vector_store %arg5[%c128_143, %c0_144], %438 {strides = array<i32>} : memref<576x128xf32, #tpu.memory_space<vmem>>, vector<8x128xf32>,
    %c0_145 = arith.constant 0 : index
    %c0_146 = arith.constant 0 : index
    %445 = vector.load %arg6[%c0_145, %c0_146] : memref<144x128xf32, #tpu.memory_space<vmem>>, vector<8x128xf32>
    %c72_147 = arith.constant 72 : index
    %c0_148 = arith.constant 0 : index
    %446 = vector.load %arg6[%c72_147, %c0_148] : memref<144x128xf32, #tpu.memory_space<vmem>>, vector<8x128xf32>
    %447 = arith.mulf %41, %445 : vector<8x128xf32>
    %448 = arith.mulf %42, %446 : vector<8x128xf32>
    %449 = arith.subf %447, %448 : vector<8x128xf32>
    %450 = arith.mulf %41, %446 : vector<8x128xf32>
    %451 = arith.mulf %42, %445 : vector<8x128xf32>
    %452 = arith.addf %450, %451 : vector<8x128xf32>
    %c24_149 = arith.constant 24 : index
    %c0_150 = arith.constant 0 : index
    %453 = vector.load %arg6[%c24_149, %c0_150] : memref<144x128xf32, #tpu.memory_space<vmem>>, vector<8x128xf32>
    %c96_151 = arith.constant 96 : index
    %c0_152 = arith.constant 0 : index
    %454 = vector.load %arg6[%c96_151, %c0_152] : memref<144x128xf32, #tpu.memory_space<vmem>>, vector<8x128xf32>
    %455 = arith.mulf %90, %453 : vector<8x128xf32>
    %456 = arith.mulf %92, %454 : vector<8x128xf32>
    %457 = arith.subf %455, %456 : vector<8x128xf32>
    %458 = arith.mulf %90, %454 : vector<8x128xf32>
    %459 = arith.mulf %92, %453 : vector<8x128xf32>
    %460 = arith.addf %458, %459 : vector<8x128xf32>
    %c48_153 = arith.constant 48 : index
    %c0_154 = arith.constant 0 : index
    %461 = vector.load %arg6[%c48_153, %c0_154] : memref<144x128xf32, #tpu.memory_space<vmem>>, vector<8x128xf32>
    %c120_155 = arith.constant 120 : index
    %c0_156 = arith.constant 0 : index
    %462 = vector.load %arg6[%c120_155, %c0_156] : memref<144x128xf32, #tpu.memory_space<vmem>>, vector<8x128xf32>
    %463 = arith.mulf %137, %461 : vector<8x128xf32>
    %464 = arith.mulf %138, %462 : vector<8x128xf32>
    %465 = arith.subf %463, %464 : vector<8x128xf32>
    %466 = arith.mulf %137, %462 : vector<8x128xf32>
    %467 = arith.mulf %138, %461 : vector<8x128xf32>
    %468 = arith.addf %466, %467 : vector<8x128xf32>
    %469 = arith.addf %449, %457 : vector<8x128xf32>
    %470 = arith.addf %452, %460 : vector<8x128xf32>
    %471 = arith.addf %469, %465 : vector<8x128xf32>
    %472 = arith.addf %470, %468 : vector<8x128xf32>
    %473 = arith.mulf %471, %204 : vector<8x128xf32>
    %474 = arith.mulf %472, %201 : vector<8x128xf32>
    %475 = arith.addf %473, %474 : vector<8x128xf32>
    %c8_157 = arith.constant 8 : index
    %c0_158 = arith.constant 0 : index
    %476 = vector.load %arg6[%c8_157, %c0_158] : memref<144x128xf32, #tpu.memory_space<vmem>>, vector<8x128xf32>
    %c80_159 = arith.constant 80 : index
    %c0_160 = arith.constant 0 : index
    %477 = vector.load %arg6[%c80_159, %c0_160] : memref<144x128xf32, #tpu.memory_space<vmem>>, vector<8x128xf32>
    %478 = arith.mulf %58, %476 : vector<8x128xf32>
    %479 = arith.mulf %60, %477 : vector<8x128xf32>
    %480 = arith.subf %478, %479 : vector<8x128xf32>
    %481 = arith.mulf %58, %477 : vector<8x128xf32>
    %482 = arith.mulf %60, %476 : vector<8x128xf32>
    %483 = arith.addf %481, %482 : vector<8x128xf32>
    %c32_161 = arith.constant 32 : index
    %c0_162 = arith.constant 0 : index
    %484 = vector.load %arg6[%c32_161, %c0_162] : memref<144x128xf32, #tpu.memory_space<vmem>>, vector<8x128xf32>
    %c104_163 = arith.constant 104 : index
    %c0_164 = arith.constant 0 : index
    %485 = vector.load %arg6[%c104_163, %c0_164] : memref<144x128xf32, #tpu.memory_space<vmem>>, vector<8x128xf32>
    %486 = arith.mulf %105, %484 : vector<8x128xf32>
    %487 = arith.mulf %106, %485 : vector<8x128xf32>
    %488 = arith.subf %486, %487 : vector<8x128xf32>
    %489 = arith.mulf %105, %485 : vector<8x128xf32>
    %490 = arith.mulf %106, %484 : vector<8x128xf32>
    %491 = arith.addf %489, %490 : vector<8x128xf32>
    %c56_165 = arith.constant 56 : index
    %c0_166 = arith.constant 0 : index
    %492 = vector.load %arg6[%c56_165, %c0_166] : memref<144x128xf32, #tpu.memory_space<vmem>>, vector<8x128xf32>
    %c128_167 = arith.constant 128 : index
    %c0_168 = arith.constant 0 : index
    %493 = vector.load %arg6[%c128_167, %c0_168] : memref<144x128xf32, #tpu.memory_space<vmem>>, vector<8x128xf32>
    %494 = arith.mulf %154, %492 : vector<8x128xf32>
    %495 = arith.mulf %156, %493 : vector<8x128xf32>
    %496 = arith.subf %494, %495 : vector<8x128xf32>
    %497 = arith.mulf %154, %493 : vector<8x128xf32>
    %498 = arith.mulf %156, %492 : vector<8x128xf32>
    %499 = arith.addf %497, %498 : vector<8x128xf32>
    %500 = arith.addf %480, %488 : vector<8x128xf32>
    %501 = arith.addf %483, %491 : vector<8x128xf32>
    %502 = arith.addf %500, %496 : vector<8x128xf32>
    %503 = arith.addf %501, %499 : vector<8x128xf32>
    %504 = arith.mulf %502, %204 : vector<8x128xf32>
    %505 = arith.mulf %503, %201 : vector<8x128xf32>
    %506 = arith.addf %504, %505 : vector<8x128xf32>
    %c16_169 = arith.constant 16 : index
    %c0_170 = arith.constant 0 : index
    %507 = vector.load %arg6[%c16_169, %c0_170] : memref<144x128xf32, #tpu.memory_space<vmem>>, vector<8x128xf32>
    %c88_171 = arith.constant 88 : index
    %c0_172 = arith.constant 0 : index
    %508 = vector.load %arg6[%c88_171, %c0_172] : memref<144x128xf32, #tpu.memory_space<vmem>>, vector<8x128xf32>
    %509 = arith.mulf %73, %507 : vector<8x128xf32>
    %510 = arith.mulf %74, %508 : vector<8x128xf32>
    %511 = arith.subf %509, %510 : vector<8x128xf32>
    %512 = arith.mulf %73, %508 : vector<8x128xf32>
    %513 = arith.mulf %74, %507 : vector<8x128xf32>
    %514 = arith.addf %512, %513 : vector<8x128xf32>
    %c40_173 = arith.constant 40 : index
    %c0_174 = arith.constant 0 : index
    %515 = vector.load %arg6[%c40_173, %c0_174] : memref<144x128xf32, #tpu.memory_space<vmem>>, vector<8x128xf32>
    %c112_175 = arith.constant 112 : index
    %c0_176 = arith.constant 0 : index
    %516 = vector.load %arg6[%c112_175, %c0_176] : memref<144x128xf32, #tpu.memory_space<vmem>>, vector<8x128xf32>
    %517 = arith.mulf %122, %515 : vector<8x128xf32>
    %518 = arith.mulf %124, %516 : vector<8x128xf32>
    %519 = arith.subf %517, %518 : vector<8x128xf32>
    %520 = arith.mulf %122, %516 : vector<8x128xf32>
    %521 = arith.mulf %124, %515 : vector<8x128xf32>
    %522 = arith.addf %520, %521 : vector<8x128xf32>
    %c64_177 = arith.constant 64 : index
    %c0_178 = arith.constant 0 : index
    %523 = vector.load %arg6[%c64_177, %c0_178] : memref<144x128xf32, #tpu.memory_space<vmem>>, vector<8x128xf32>
    %c136_179 = arith.constant 136 : index
    %c0_180 = arith.constant 0 : index
    %524 = vector.load %arg6[%c136_179, %c0_180] : memref<144x128xf32, #tpu.memory_space<vmem>>, vector<8x128xf32>
    %525 = arith.mulf %169, %523 : vector<8x128xf32>
    %526 = arith.mulf %170, %524 : vector<8x128xf32>
    %527 = arith.subf %525, %526 : vector<8x128xf32>
    %528 = arith.mulf %169, %524 : vector<8x128xf32>
    %529 = arith.mulf %170, %523 : vector<8x128xf32>
    %530 = arith.addf %528, %529 : vector<8x128xf32>
    %531 = arith.addf %511, %519 : vector<8x128xf32>
    %532 = arith.addf %514, %522 : vector<8x128xf32>
    %533 = arith.addf %531, %527 : vector<8x128xf32>
    %534 = arith.addf %532, %530 : vector<8x128xf32>
    %535 = arith.mulf %533, %204 : vector<8x128xf32>
    %536 = arith.mulf %534, %201 : vector<8x128xf32>
    %537 = arith.addf %535, %536 : vector<8x128xf32>
    %538 = arith.addf %475, %506 : vector<8x128xf32>
    %539 = arith.addf %538, %537 : vector<8x128xf32>
    %cst_181 = arith.constant 0.333333343 : f32
    %540 = vector.broadcast %cst_181 : f32 to vector<8x128xf32>
    %541 = arith.mulf %539, %540 : vector<8x128xf32>
    %542 = arith.subf %475, %541 : vector<8x128xf32>
    %c0_182 = arith.constant 0 : index
    %c0_183 = arith.constant 0 : index
    %543 = vector.load %arg5[%c0_182, %c0_183] : memref<576x128xf32, #tpu.memory_space<vmem>>, vector<8x128xf32>
    tpu.vector_store %arg5[%c0_182, %c0_183], %0 {strides = array<i32>} : memref<576x128xf32, #tpu.memory_space<vmem>>, vector<8x128xf32>,
    %c72_184 = arith.constant 72 : index
    %c0_185 = arith.constant 0 : index
    %544 = vector.load %arg5[%c72_184, %c0_185] : memref<576x128xf32, #tpu.memory_space<vmem>>, vector<8x128xf32>
    tpu.vector_store %arg5[%c72_184, %c0_185], %542 {strides = array<i32>} : memref<576x128xf32, #tpu.memory_space<vmem>>, vector<8x128xf32>,
    %545 = arith.subf %506, %541 : vector<8x128xf32>
    %c32_186 = arith.constant 32 : index
    %c0_187 = arith.constant 0 : index
    %546 = vector.load %arg5[%c32_186, %c0_187] : memref<576x128xf32, #tpu.memory_space<vmem>>, vector<8x128xf32>
    tpu.vector_store %arg5[%c32_186, %c0_187], %0 {strides = array<i32>} : memref<576x128xf32, #tpu.memory_space<vmem>>, vector<8x128xf32>,
    %c104_188 = arith.constant 104 : index
    %c0_189 = arith.constant 0 : index
    %547 = vector.load %arg5[%c104_188, %c0_189] : memref<576x128xf32, #tpu.memory_space<vmem>>, vector<8x128xf32>
    tpu.vector_store %arg5[%c104_188, %c0_189], %545 {strides = array<i32>} : memref<576x128xf32, #tpu.memory_space<vmem>>, vector<8x128xf32>,
    %548 = arith.subf %537, %541 : vector<8x128xf32>
    %c64_190 = arith.constant 64 : index
    %c0_191 = arith.constant 0 : index
    %549 = vector.load %arg5[%c64_190, %c0_191] : memref<576x128xf32, #tpu.memory_space<vmem>>, vector<8x128xf32>
    tpu.vector_store %arg5[%c64_190, %c0_191], %0 {strides = array<i32>} : memref<576x128xf32, #tpu.memory_space<vmem>>, vector<8x128xf32>,
    %c136_192 = arith.constant 136 : index
    %c0_193 = arith.constant 0 : index
    %550 = vector.load %arg5[%c136_192, %c0_193] : memref<576x128xf32, #tpu.memory_space<vmem>>, vector<8x128xf32>
    tpu.vector_store %arg5[%c136_192, %c0_193], %548 {strides = array<i32>} : memref<576x128xf32, #tpu.memory_space<vmem>>, vector<8x128xf32>,
    %c160 = arith.constant 160 : index
    %c0_194 = arith.constant 0 : index
    %551 = vector.load %arg1[%c160, %c0_194] : memref<640x128xf32, #tpu.memory_space<vmem>>, vector<160x128xf32>
    %c0_195 = arith.constant 0 : index
    %c0_196 = arith.constant 0 : index
    %552 = vector.load %arg2[%c0_195, %c0_196] : memref<256x160xf32, #tpu.memory_space<vmem>>, vector<256x160xf32>
    %cst_197 = arith.constant dense<0.000000e+00> : vector<256x128xf32>
    %553 = tpu.matmul %552, %551, %cst_197 {dimension_numbers = #tpu.dot_dimension_numbers<[1], [0], [0], [1], [0, 0, 1, 1], [], []>} : vector<256x160xf32>, vector<160x128xf32>, vector<256x128xf32> -> vector<256x128xf32>
    %554 = math.tanh %553 : vector<256x128xf32>
    %c0_198 = arith.constant 0 : index
    %c0_199 = arith.constant 0 : index
    %555 = vector.load %arg3[%c0_198, %c0_199] : memref<144x256xf32, #tpu.memory_space<vmem>>, vector<144x256xf32>
    %cst_200 = arith.constant dense<0.000000e+00> : vector<144x128xf32>
    %556 = tpu.matmul %555, %554, %cst_200 {dimension_numbers = #tpu.dot_dimension_numbers<[1], [0], [0], [1], [0, 0, 1, 1], [], []>} : vector<144x256xf32>, vector<256x128xf32>, vector<144x128xf32> -> vector<144x128xf32>
    %c0_201 = arith.constant 0 : index
    %c0_202 = arith.constant 0 : index
    %557 = vector.load %arg4[%c0_201, %c0_202] : memref<144x1xf32, #tpu.memory_space<vmem>>, vector<144x1xf32>
    %558 = vector.broadcast %557 : vector<144x1xf32> to vector<144x128xf32>
    %559 = arith.addf %556, %558 : vector<144x128xf32>
    %c0_203 = arith.constant 0 : index
    %c0_204 = arith.constant 0 : index
    %560 = vector.load %arg6[%c0_203, %c0_204] : memref<144x128xf32, #tpu.memory_space<vmem>>, vector<144x128xf32>
    tpu.vector_store %arg6[%c0_203, %c0_204], %559 {strides = array<i32>} : memref<144x128xf32, #tpu.memory_space<vmem>>, vector<144x128xf32>,
    %c160_205 = arith.constant 160 : index
    %c0_206 = arith.constant 0 : index
    %561 = vector.load %arg1[%c160_205, %c0_206] : memref<640x128xf32, #tpu.memory_space<vmem>>, vector<8x128xf32>
    %c232 = arith.constant 232 : index
    %c0_207 = arith.constant 0 : index
    %562 = vector.load %arg1[%c232, %c0_207] : memref<640x128xf32, #tpu.memory_space<vmem>>, vector<8x128xf32>
    %c168 = arith.constant 168 : index
    %c0_208 = arith.constant 0 : index
    %563 = vector.load %arg1[%c168, %c0_208] : memref<640x128xf32, #tpu.memory_space<vmem>>, vector<8x128xf32>
    %c240 = arith.constant 240 : index
    %c0_209 = arith.constant 0 : index
    %564 = vector.load %arg1[%c240, %c0_209] : memref<640x128xf32, #tpu.memory_space<vmem>>, vector<8x128xf32>
    %c176 = arith.constant 176 : index
    %c0_210 = arith.constant 0 : index
    %565 = vector.load %arg1[%c176, %c0_210] : memref<640x128xf32, #tpu.memory_space<vmem>>, vector<8x128xf32>
    %c248 = arith.constant 248 : index
    %c0_211 = arith.constant 0 : index
    %566 = vector.load %arg1[%c248, %c0_211] : memref<640x128xf32, #tpu.memory_space<vmem>>, vector<8x128xf32>
    %c184 = arith.constant 184 : index
    %c0_212 = arith.constant 0 : index
    %567 = vector.load %arg1[%c184, %c0_212] : memref<640x128xf32, #tpu.memory_space<vmem>>, vector<8x128xf32>
    %c256 = arith.constant 256 : index
    %c0_213 = arith.constant 0 : index
    %568 = vector.load %arg1[%c256, %c0_213] : memref<640x128xf32, #tpu.memory_space<vmem>>, vector<8x128xf32>
    %c192 = arith.constant 192 : index
    %c0_214 = arith.constant 0 : index
    %569 = vector.load %arg1[%c192, %c0_214] : memref<640x128xf32, #tpu.memory_space<vmem>>, vector<8x128xf32>
    %c264 = arith.constant 264 : index
    %c0_215 = arith.constant 0 : index
    %570 = vector.load %arg1[%c264, %c0_215] : memref<640x128xf32, #tpu.memory_space<vmem>>, vector<8x128xf32>
    %c200 = arith.constant 200 : index
    %c0_216 = arith.constant 0 : index
    %571 = vector.load %arg1[%c200, %c0_216] : memref<640x128xf32, #tpu.memory_space<vmem>>, vector<8x128xf32>
    %c272 = arith.constant 272 : index
    %c0_217 = arith.constant 0 : index
    %572 = vector.load %arg1[%c272, %c0_217] : memref<640x128xf32, #tpu.memory_space<vmem>>, vector<8x128xf32>
    %c208 = arith.constant 208 : index
    %c0_218 = arith.constant 0 : index
    %573 = vector.load %arg1[%c208, %c0_218] : memref<640x128xf32, #tpu.memory_space<vmem>>, vector<8x128xf32>
    %c280 = arith.constant 280 : index
    %c0_219 = arith.constant 0 : index
    %574 = vector.load %arg1[%c280, %c0_219] : memref<640x128xf32, #tpu.memory_space<vmem>>, vector<8x128xf32>
    %c216 = arith.constant 216 : index
    %c0_220 = arith.constant 0 : index
    %575 = vector.load %arg1[%c216, %c0_220] : memref<640x128xf32, #tpu.memory_space<vmem>>, vector<8x128xf32>
    %c288 = arith.constant 288 : index
    %c0_221 = arith.constant 0 : index
    %576 = vector.load %arg1[%c288, %c0_221] : memref<640x128xf32, #tpu.memory_space<vmem>>, vector<8x128xf32>
    %c224 = arith.constant 224 : index
    %c0_222 = arith.constant 0 : index
    %577 = vector.load %arg1[%c224, %c0_222] : memref<640x128xf32, #tpu.memory_space<vmem>>, vector<8x128xf32>
    %c296 = arith.constant 296 : index
    %c0_223 = arith.constant 0 : index
    %578 = vector.load %arg1[%c296, %c0_223] : memref<640x128xf32, #tpu.memory_space<vmem>>, vector<8x128xf32>
    %579 = arith.mulf %569, %577 : vector<8x128xf32>
    %580 = arith.mulf %570, %578 : vector<8x128xf32>
    %581 = arith.subf %579, %580 : vector<8x128xf32>
    %582 = arith.mulf %569, %578 : vector<8x128xf32>
    %583 = arith.mulf %570, %577 : vector<8x128xf32>
    %584 = arith.addf %582, %583 : vector<8x128xf32>
    %585 = arith.mulf %571, %575 : vector<8x128xf32>
    %586 = arith.mulf %572, %576 : vector<8x128xf32>
    %587 = arith.subf %585, %586 : vector<8x128xf32>
    %588 = arith.mulf %571, %576 : vector<8x128xf32>
    %589 = arith.mulf %572, %575 : vector<8x128xf32>
    %590 = arith.addf %588, %589 : vector<8x128xf32>
    %591 = arith.subf %581, %587 : vector<8x128xf32>
    %592 = arith.subf %584, %590 : vector<8x128xf32>
    %593 = arith.mulf %567, %577 : vector<8x128xf32>
    %594 = arith.mulf %568, %578 : vector<8x128xf32>
    %595 = arith.subf %593, %594 : vector<8x128xf32>
    %596 = arith.mulf %567, %578 : vector<8x128xf32>
    %597 = arith.mulf %568, %577 : vector<8x128xf32>
    %598 = arith.addf %596, %597 : vector<8x128xf32>
    %599 = arith.mulf %571, %573 : vector<8x128xf32>
    %600 = arith.mulf %572, %574 : vector<8x128xf32>
    %601 = arith.subf %599, %600 : vector<8x128xf32>
    %602 = arith.mulf %571, %574 : vector<8x128xf32>
    %603 = arith.mulf %572, %573 : vector<8x128xf32>
    %604 = arith.addf %602, %603 : vector<8x128xf32>
    %605 = arith.subf %595, %601 : vector<8x128xf32>
    %606 = arith.subf %598, %604 : vector<8x128xf32>
    %cst_224 = arith.constant 0.000000e+00 : f32
    %607 = vector.broadcast %cst_224 : f32 to vector<8x128xf32>
    %608 = arith.subf %607, %605 : vector<8x128xf32>
    %cst_225 = arith.constant 0.000000e+00 : f32
    %609 = vector.broadcast %cst_225 : f32 to vector<8x128xf32>
    %610 = arith.subf %609, %606 : vector<8x128xf32>
    %611 = arith.mulf %567, %575 : vector<8x128xf32>
    %612 = arith.mulf %568, %576 : vector<8x128xf32>
    %613 = arith.subf %611, %612 : vector<8x128xf32>
    %614 = arith.mulf %567, %576 : vector<8x128xf32>
    %615 = arith.mulf %568, %575 : vector<8x128xf32>
    %616 = arith.addf %614, %615 : vector<8x128xf32>
    %617 = arith.mulf %569, %573 : vector<8x128xf32>
    %618 = arith.mulf %570, %574 : vector<8x128xf32>
    %619 = arith.subf %617, %618 : vector<8x128xf32>
    %620 = arith.mulf %569, %574 : vector<8x128xf32>
    %621 = arith.mulf %570, %573 : vector<8x128xf32>
    %622 = arith.addf %620, %621 : vector<8x128xf32>
    %623 = arith.subf %613, %619 : vector<8x128xf32>
    %624 = arith.subf %616, %622 : vector<8x128xf32>
    %625 = arith.mulf %563, %577 : vector<8x128xf32>
    %626 = arith.mulf %564, %578 : vector<8x128xf32>
    %627 = arith.subf %625, %626 : vector<8x128xf32>
    %628 = arith.mulf %563, %578 : vector<8x128xf32>
    %629 = arith.mulf %564, %577 : vector<8x128xf32>
    %630 = arith.addf %628, %629 : vector<8x128xf32>
    %631 = arith.mulf %565, %575 : vector<8x128xf32>
    %632 = arith.mulf %566, %576 : vector<8x128xf32>
    %633 = arith.subf %631, %632 : vector<8x128xf32>
    %634 = arith.mulf %565, %576 : vector<8x128xf32>
    %635 = arith.mulf %566, %575 : vector<8x128xf32>
    %636 = arith.addf %634, %635 : vector<8x128xf32>
    %637 = arith.subf %627, %633 : vector<8x128xf32>
    %638 = arith.subf %630, %636 : vector<8x128xf32>
    %cst_226 = arith.constant 0.000000e+00 : f32
    %639 = vector.broadcast %cst_226 : f32 to vector<8x128xf32>
    %640 = arith.subf %639, %637 : vector<8x128xf32>
    %cst_227 = arith.constant 0.000000e+00 : f32
    %641 = vector.broadcast %cst_227 : f32 to vector<8x128xf32>
    %642 = arith.subf %641, %638 : vector<8x128xf32>
    %643 = arith.mulf %561, %577 : vector<8x128xf32>
    %644 = arith.mulf %562, %578 : vector<8x128xf32>
    %645 = arith.subf %643, %644 : vector<8x128xf32>
    %646 = arith.mulf %561, %578 : vector<8x128xf32>
    %647 = arith.mulf %562, %577 : vector<8x128xf32>
    %648 = arith.addf %646, %647 : vector<8x128xf32>
    %649 = arith.mulf %565, %573 : vector<8x128xf32>
    %650 = arith.mulf %566, %574 : vector<8x128xf32>
    %651 = arith.subf %649, %650 : vector<8x128xf32>
    %652 = arith.mulf %565, %574 : vector<8x128xf32>
    %653 = arith.mulf %566, %573 : vector<8x128xf32>
    %654 = arith.addf %652, %653 : vector<8x128xf32>
    %655 = arith.subf %645, %651 : vector<8x128xf32>
    %656 = arith.subf %648, %654 : vector<8x128xf32>
    %657 = arith.mulf %561, %575 : vector<8x128xf32>
    %658 = arith.mulf %562, %576 : vector<8x128xf32>
    %659 = arith.subf %657, %658 : vector<8x128xf32>
    %660 = arith.mulf %561, %576 : vector<8x128xf32>
    %661 = arith.mulf %562, %575 : vector<8x128xf32>
    %662 = arith.addf %660, %661 : vector<8x128xf32>
    %663 = arith.mulf %563, %573 : vector<8x128xf32>
    %664 = arith.mulf %564, %574 : vector<8x128xf32>
    %665 = arith.subf %663, %664 : vector<8x128xf32>
    %666 = arith.mulf %563, %574 : vector<8x128xf32>
    %667 = arith.mulf %564, %573 : vector<8x128xf32>
    %668 = arith.addf %666, %667 : vector<8x128xf32>
    %669 = arith.subf %659, %665 : vector<8x128xf32>
    %670 = arith.subf %662, %668 : vector<8x128xf32>
    %cst_228 = arith.constant 0.000000e+00 : f32
    %671 = vector.broadcast %cst_228 : f32 to vector<8x128xf32>
    %672 = arith.subf %671, %669 : vector<8x128xf32>
    %cst_229 = arith.constant 0.000000e+00 : f32
    %673 = vector.broadcast %cst_229 : f32 to vector<8x128xf32>
    %674 = arith.subf %673, %670 : vector<8x128xf32>
    %675 = arith.mulf %563, %571 : vector<8x128xf32>
    %676 = arith.mulf %564, %572 : vector<8x128xf32>
    %677 = arith.subf %675, %676 : vector<8x128xf32>
    %678 = arith.mulf %563, %572 : vector<8x128xf32>
    %679 = arith.mulf %564, %571 : vector<8x128xf32>
    %680 = arith.addf %678, %679 : vector<8x128xf32>
    %681 = arith.mulf %565, %569 : vector<8x128xf32>
    %682 = arith.mulf %566, %570 : vector<8x128xf32>
    %683 = arith.subf %681, %682 : vector<8x128xf32>
    %684 = arith.mulf %565, %570 : vector<8x128xf32>
    %685 = arith.mulf %566, %569 : vector<8x128xf32>
    %686 = arith.addf %684, %685 : vector<8x128xf32>
    %687 = arith.subf %677, %683 : vector<8x128xf32>
    %688 = arith.subf %680, %686 : vector<8x128xf32>
    %689 = arith.mulf %561, %571 : vector<8x128xf32>
    %690 = arith.mulf %562, %572 : vector<8x128xf32>
    %691 = arith.subf %689, %690 : vector<8x128xf32>
    %692 = arith.mulf %561, %572 : vector<8x128xf32>
    %693 = arith.mulf %562, %571 : vector<8x128xf32>
    %694 = arith.addf %692, %693 : vector<8x128xf32>
    %695 = arith.mulf %565, %567 : vector<8x128xf32>
    %696 = arith.mulf %566, %568 : vector<8x128xf32>
    %697 = arith.subf %695, %696 : vector<8x128xf32>
    %698 = arith.mulf %565, %568 : vector<8x128xf32>
    %699 = arith.mulf %566, %567 : vector<8x128xf32>
    %700 = arith.addf %698, %699 : vector<8x128xf32>
    %701 = arith.subf %691, %697 : vector<8x128xf32>
    %702 = arith.subf %694, %700 : vector<8x128xf32>
    %cst_230 = arith.constant 0.000000e+00 : f32
    %703 = vector.broadcast %cst_230 : f32 to vector<8x128xf32>
    %704 = arith.subf %703, %701 : vector<8x128xf32>
    %cst_231 = arith.constant 0.000000e+00 : f32
    %705 = vector.broadcast %cst_231 : f32 to vector<8x128xf32>
    %706 = arith.subf %705, %702 : vector<8x128xf32>
    %707 = arith.mulf %561, %569 : vector<8x128xf32>
    %708 = arith.mulf %562, %570 : vector<8x128xf32>
    %709 = arith.subf %707, %708 : vector<8x128xf32>
    %710 = arith.mulf %561, %570 : vector<8x128xf32>
    %711 = arith.mulf %562, %569 : vector<8x128xf32>
    %712 = arith.addf %710, %711 : vector<8x128xf32>
    %713 = arith.mulf %563, %567 : vector<8x128xf32>
    %714 = arith.mulf %564, %568 : vector<8x128xf32>
    %715 = arith.subf %713, %714 : vector<8x128xf32>
    %716 = arith.mulf %563, %568 : vector<8x128xf32>
    %717 = arith.mulf %564, %567 : vector<8x128xf32>
    %718 = arith.addf %716, %717 : vector<8x128xf32>
    %719 = arith.subf %709, %715 : vector<8x128xf32>
    %720 = arith.subf %712, %718 : vector<8x128xf32>
    %721 = arith.mulf %561, %591 : vector<8x128xf32>
    %722 = arith.mulf %562, %592 : vector<8x128xf32>
    %723 = arith.subf %721, %722 : vector<8x128xf32>
    %724 = arith.mulf %561, %592 : vector<8x128xf32>
    %725 = arith.mulf %562, %591 : vector<8x128xf32>
    %726 = arith.addf %724, %725 : vector<8x128xf32>
    %727 = arith.mulf %563, %608 : vector<8x128xf32>
    %728 = arith.mulf %564, %610 : vector<8x128xf32>
    %729 = arith.subf %727, %728 : vector<8x128xf32>
    %730 = arith.mulf %563, %610 : vector<8x128xf32>
    %731 = arith.mulf %564, %608 : vector<8x128xf32>
    %732 = arith.addf %730, %731 : vector<8x128xf32>
    %733 = arith.mulf %565, %623 : vector<8x128xf32>
    %734 = arith.mulf %566, %624 : vector<8x128xf32>
    %735 = arith.subf %733, %734 : vector<8x128xf32>
    %736 = arith.mulf %565, %624 : vector<8x128xf32>
    %737 = arith.mulf %566, %623 : vector<8x128xf32>
    %738 = arith.addf %736, %737 : vector<8x128xf32>
    %739 = arith.addf %723, %729 : vector<8x128xf32>
    %740 = arith.addf %726, %732 : vector<8x128xf32>
    %741 = arith.addf %739, %735 : vector<8x128xf32>
    %742 = arith.addf %740, %738 : vector<8x128xf32>
    %743 = arith.mulf %741, %741 : vector<8x128xf32>
    %744 = arith.mulf %742, %742 : vector<8x128xf32>
    %745 = arith.addf %743, %744 : vector<8x128xf32>
    %746 = tpu.reciprocal %745 {approx = true} : vector<8x128xf32> -> vector<8x128xf32>
    %747 = arith.mulf %745, %746 : vector<8x128xf32>
    %cst_232 = arith.constant 2.000000e+00 : f32
    %748 = vector.broadcast %cst_232 : f32 to vector<8x128xf32>
    %749 = arith.subf %748, %747 : vector<8x128xf32>
    %750 = arith.mulf %746, %749 : vector<8x128xf32>
    %751 = arith.mulf %741, %750 : vector<8x128xf32>
    %cst_233 = arith.constant 0.000000e+00 : f32
    %752 = vector.broadcast %cst_233 : f32 to vector<8x128xf32>
    %753 = arith.subf %752, %742 : vector<8x128xf32>
    %754 = arith.mulf %753, %750 : vector<8x128xf32>
    %c8_234 = arith.constant 8 : index
    %c0_235 = arith.constant 0 : index
    %755 = vector.load %arg6[%c8_234, %c0_235] : memref<144x128xf32, #tpu.memory_space<vmem>>, vector<8x128xf32>
    %c80_236 = arith.constant 80 : index
    %c0_237 = arith.constant 0 : index
    %756 = vector.load %arg6[%c80_236, %c0_237] : memref<144x128xf32, #tpu.memory_space<vmem>>, vector<8x128xf32>
    %757 = arith.mulf %591, %755 : vector<8x128xf32>
    %758 = arith.mulf %592, %756 : vector<8x128xf32>
    %759 = arith.subf %757, %758 : vector<8x128xf32>
    %760 = arith.mulf %591, %756 : vector<8x128xf32>
    %761 = arith.mulf %592, %755 : vector<8x128xf32>
    %762 = arith.addf %760, %761 : vector<8x128xf32>
    %c32_238 = arith.constant 32 : index
    %c0_239 = arith.constant 0 : index
    %763 = vector.load %arg6[%c32_238, %c0_239] : memref<144x128xf32, #tpu.memory_space<vmem>>, vector<8x128xf32>
    %c104_240 = arith.constant 104 : index
    %c0_241 = arith.constant 0 : index
    %764 = vector.load %arg6[%c104_240, %c0_241] : memref<144x128xf32, #tpu.memory_space<vmem>>, vector<8x128xf32>
    %765 = arith.mulf %640, %763 : vector<8x128xf32>
    %766 = arith.mulf %642, %764 : vector<8x128xf32>
    %767 = arith.subf %765, %766 : vector<8x128xf32>
    %768 = arith.mulf %640, %764 : vector<8x128xf32>
    %769 = arith.mulf %642, %763 : vector<8x128xf32>
    %770 = arith.addf %768, %769 : vector<8x128xf32>
    %c56_242 = arith.constant 56 : index
    %c0_243 = arith.constant 0 : index
    %771 = vector.load %arg6[%c56_242, %c0_243] : memref<144x128xf32, #tpu.memory_space<vmem>>, vector<8x128xf32>
    %c128_244 = arith.constant 128 : index
    %c0_245 = arith.constant 0 : index
    %772 = vector.load %arg6[%c128_244, %c0_245] : memref<144x128xf32, #tpu.memory_space<vmem>>, vector<8x128xf32>
    %773 = arith.mulf %687, %771 : vector<8x128xf32>
    %774 = arith.mulf %688, %772 : vector<8x128xf32>
    %775 = arith.subf %773, %774 : vector<8x128xf32>
    %776 = arith.mulf %687, %772 : vector<8x128xf32>
    %777 = arith.mulf %688, %771 : vector<8x128xf32>
    %778 = arith.addf %776, %777 : vector<8x128xf32>
    %779 = arith.addf %759, %767 : vector<8x128xf32>
    %780 = arith.addf %762, %770 : vector<8x128xf32>
    %781 = arith.addf %779, %775 : vector<8x128xf32>
    %782 = arith.addf %780, %778 : vector<8x128xf32>
    %783 = arith.mulf %781, %751 : vector<8x128xf32>
    %784 = arith.mulf %782, %754 : vector<8x128xf32>
    %785 = arith.subf %783, %784 : vector<8x128xf32>
    %786 = arith.mulf %781, %754 : vector<8x128xf32>
    %787 = arith.mulf %782, %751 : vector<8x128xf32>
    %788 = arith.addf %786, %787 : vector<8x128xf32>
    %c0_246 = arith.constant 0 : index
    %c0_247 = arith.constant 0 : index
    %789 = vector.load %arg6[%c0_246, %c0_247] : memref<144x128xf32, #tpu.memory_space<vmem>>, vector<8x128xf32>
    %c72_248 = arith.constant 72 : index
    %c0_249 = arith.constant 0 : index
    %790 = vector.load %arg6[%c72_248, %c0_249] : memref<144x128xf32, #tpu.memory_space<vmem>>, vector<8x128xf32>
    %791 = arith.mulf %608, %789 : vector<8x128xf32>
    %792 = arith.mulf %610, %790 : vector<8x128xf32>
    %793 = arith.subf %791, %792 : vector<8x128xf32>
    %794 = arith.mulf %608, %790 : vector<8x128xf32>
    %795 = arith.mulf %610, %789 : vector<8x128xf32>
    %796 = arith.addf %794, %795 : vector<8x128xf32>
    %c24_250 = arith.constant 24 : index
    %c0_251 = arith.constant 0 : index
    %797 = vector.load %arg6[%c24_250, %c0_251] : memref<144x128xf32, #tpu.memory_space<vmem>>, vector<8x128xf32>
    %c96_252 = arith.constant 96 : index
    %c0_253 = arith.constant 0 : index
    %798 = vector.load %arg6[%c96_252, %c0_253] : memref<144x128xf32, #tpu.memory_space<vmem>>, vector<8x128xf32>
    %799 = arith.mulf %655, %797 : vector<8x128xf32>
    %800 = arith.mulf %656, %798 : vector<8x128xf32>
    %801 = arith.subf %799, %800 : vector<8x128xf32>
    %802 = arith.mulf %655, %798 : vector<8x128xf32>
    %803 = arith.mulf %656, %797 : vector<8x128xf32>
    %804 = arith.addf %802, %803 : vector<8x128xf32>
    %c48_254 = arith.constant 48 : index
    %c0_255 = arith.constant 0 : index
    %805 = vector.load %arg6[%c48_254, %c0_255] : memref<144x128xf32, #tpu.memory_space<vmem>>, vector<8x128xf32>
    %c120_256 = arith.constant 120 : index
    %c0_257 = arith.constant 0 : index
    %806 = vector.load %arg6[%c120_256, %c0_257] : memref<144x128xf32, #tpu.memory_space<vmem>>, vector<8x128xf32>
    %807 = arith.mulf %704, %805 : vector<8x128xf32>
    %808 = arith.mulf %706, %806 : vector<8x128xf32>
    %809 = arith.subf %807, %808 : vector<8x128xf32>
    %810 = arith.mulf %704, %806 : vector<8x128xf32>
    %811 = arith.mulf %706, %805 : vector<8x128xf32>
    %812 = arith.addf %810, %811 : vector<8x128xf32>
    %813 = arith.addf %793, %801 : vector<8x128xf32>
    %814 = arith.addf %796, %804 : vector<8x128xf32>
    %815 = arith.addf %813, %809 : vector<8x128xf32>
    %816 = arith.addf %814, %812 : vector<8x128xf32>
    %817 = arith.mulf %815, %751 : vector<8x128xf32>
    %818 = arith.mulf %816, %754 : vector<8x128xf32>
    %819 = arith.subf %817, %818 : vector<8x128xf32>
    %820 = arith.mulf %815, %754 : vector<8x128xf32>
    %821 = arith.mulf %816, %751 : vector<8x128xf32>
    %822 = arith.addf %820, %821 : vector<8x128xf32>
    %823 = arith.subf %785, %819 : vector<8x128xf32>
    %cst_258 = arith.constant 5.000000e-01 : f32
    %824 = vector.broadcast %cst_258 : f32 to vector<8x128xf32>
    %825 = arith.mulf %823, %824 : vector<8x128xf32>
    %826 = arith.addf %788, %822 : vector<8x128xf32>
    %cst_259 = arith.constant 5.000000e-01 : f32
    %827 = vector.broadcast %cst_259 : f32 to vector<8x128xf32>
    %828 = arith.mulf %826, %827 : vector<8x128xf32>
    %c152 = arith.constant 152 : index
    %c0_260 = arith.constant 0 : index
    %829 = vector.load %arg5[%c152, %c0_260] : memref<576x128xf32, #tpu.memory_space<vmem>>, vector<8x128xf32>
    tpu.vector_store %arg5[%c152, %c0_260], %825 {strides = array<i32>} : memref<576x128xf32, #tpu.memory_space<vmem>>, vector<8x128xf32>,
    %c224_261 = arith.constant 224 : index
    %c0_262 = arith.constant 0 : index
    %830 = vector.load %arg5[%c224_261, %c0_262] : memref<576x128xf32, #tpu.memory_space<vmem>>, vector<8x128xf32>
    tpu.vector_store %arg5[%c224_261, %c0_262], %828 {strides = array<i32>} : memref<576x128xf32, #tpu.memory_space<vmem>>, vector<8x128xf32>,
    %cst_263 = arith.constant 0.000000e+00 : f32
    %831 = vector.broadcast %cst_263 : f32 to vector<8x128xf32>
    %832 = arith.subf %831, %825 : vector<8x128xf32>
    %c168_264 = arith.constant 168 : index
    %c0_265 = arith.constant 0 : index
    %833 = vector.load %arg5[%c168_264, %c0_265] : memref<576x128xf32, #tpu.memory_space<vmem>>, vector<8x128xf32>
    tpu.vector_store %arg5[%c168_264, %c0_265], %832 {strides = array<i32>} : memref<576x128xf32, #tpu.memory_space<vmem>>, vector<8x128xf32>,
    %c240_266 = arith.constant 240 : index
    %c0_267 = arith.constant 0 : index
    %834 = vector.load %arg5[%c240_266, %c0_267] : memref<576x128xf32, #tpu.memory_space<vmem>>, vector<8x128xf32>
    tpu.vector_store %arg5[%c240_266, %c0_267], %828 {strides = array<i32>} : memref<576x128xf32, #tpu.memory_space<vmem>>, vector<8x128xf32>,
    %c16_268 = arith.constant 16 : index
    %c0_269 = arith.constant 0 : index
    %835 = vector.load %arg6[%c16_268, %c0_269] : memref<144x128xf32, #tpu.memory_space<vmem>>, vector<8x128xf32>
    %c88_270 = arith.constant 88 : index
    %c0_271 = arith.constant 0 : index
    %836 = vector.load %arg6[%c88_270, %c0_271] : memref<144x128xf32, #tpu.memory_space<vmem>>, vector<8x128xf32>
    %837 = arith.mulf %591, %835 : vector<8x128xf32>
    %838 = arith.mulf %592, %836 : vector<8x128xf32>
    %839 = arith.subf %837, %838 : vector<8x128xf32>
    %840 = arith.mulf %591, %836 : vector<8x128xf32>
    %841 = arith.mulf %592, %835 : vector<8x128xf32>
    %842 = arith.addf %840, %841 : vector<8x128xf32>
    %c40_272 = arith.constant 40 : index
    %c0_273 = arith.constant 0 : index
    %843 = vector.load %arg6[%c40_272, %c0_273] : memref<144x128xf32, #tpu.memory_space<vmem>>, vector<8x128xf32>
    %c112_274 = arith.constant 112 : index
    %c0_275 = arith.constant 0 : index
    %844 = vector.load %arg6[%c112_274, %c0_275] : memref<144x128xf32, #tpu.memory_space<vmem>>, vector<8x128xf32>
    %845 = arith.mulf %640, %843 : vector<8x128xf32>
    %846 = arith.mulf %642, %844 : vector<8x128xf32>
    %847 = arith.subf %845, %846 : vector<8x128xf32>
    %848 = arith.mulf %640, %844 : vector<8x128xf32>
    %849 = arith.mulf %642, %843 : vector<8x128xf32>
    %850 = arith.addf %848, %849 : vector<8x128xf32>
    %c64_276 = arith.constant 64 : index
    %c0_277 = arith.constant 0 : index
    %851 = vector.load %arg6[%c64_276, %c0_277] : memref<144x128xf32, #tpu.memory_space<vmem>>, vector<8x128xf32>
    %c136_278 = arith.constant 136 : index
    %c0_279 = arith.constant 0 : index
    %852 = vector.load %arg6[%c136_278, %c0_279] : memref<144x128xf32, #tpu.memory_space<vmem>>, vector<8x128xf32>
    %853 = arith.mulf %687, %851 : vector<8x128xf32>
    %854 = arith.mulf %688, %852 : vector<8x128xf32>
    %855 = arith.subf %853, %854 : vector<8x128xf32>
    %856 = arith.mulf %687, %852 : vector<8x128xf32>
    %857 = arith.mulf %688, %851 : vector<8x128xf32>
    %858 = arith.addf %856, %857 : vector<8x128xf32>
    %859 = arith.addf %839, %847 : vector<8x128xf32>
    %860 = arith.addf %842, %850 : vector<8x128xf32>
    %861 = arith.addf %859, %855 : vector<8x128xf32>
    %862 = arith.addf %860, %858 : vector<8x128xf32>
    %863 = arith.mulf %861, %751 : vector<8x128xf32>
    %864 = arith.mulf %862, %754 : vector<8x128xf32>
    %865 = arith.subf %863, %864 : vector<8x128xf32>
    %866 = arith.mulf %861, %754 : vector<8x128xf32>
    %867 = arith.mulf %862, %751 : vector<8x128xf32>
    %868 = arith.addf %866, %867 : vector<8x128xf32>
    %c0_280 = arith.constant 0 : index
    %c0_281 = arith.constant 0 : index
    %869 = vector.load %arg6[%c0_280, %c0_281] : memref<144x128xf32, #tpu.memory_space<vmem>>, vector<8x128xf32>
    %c72_282 = arith.constant 72 : index
    %c0_283 = arith.constant 0 : index
    %870 = vector.load %arg6[%c72_282, %c0_283] : memref<144x128xf32, #tpu.memory_space<vmem>>, vector<8x128xf32>
    %871 = arith.mulf %623, %869 : vector<8x128xf32>
    %872 = arith.mulf %624, %870 : vector<8x128xf32>
    %873 = arith.subf %871, %872 : vector<8x128xf32>
    %874 = arith.mulf %623, %870 : vector<8x128xf32>
    %875 = arith.mulf %624, %869 : vector<8x128xf32>
    %876 = arith.addf %874, %875 : vector<8x128xf32>
    %c24_284 = arith.constant 24 : index
    %c0_285 = arith.constant 0 : index
    %877 = vector.load %arg6[%c24_284, %c0_285] : memref<144x128xf32, #tpu.memory_space<vmem>>, vector<8x128xf32>
    %c96_286 = arith.constant 96 : index
    %c0_287 = arith.constant 0 : index
    %878 = vector.load %arg6[%c96_286, %c0_287] : memref<144x128xf32, #tpu.memory_space<vmem>>, vector<8x128xf32>
    %879 = arith.mulf %672, %877 : vector<8x128xf32>
    %880 = arith.mulf %674, %878 : vector<8x128xf32>
    %881 = arith.subf %879, %880 : vector<8x128xf32>
    %882 = arith.mulf %672, %878 : vector<8x128xf32>
    %883 = arith.mulf %674, %877 : vector<8x128xf32>
    %884 = arith.addf %882, %883 : vector<8x128xf32>
    %c48_288 = arith.constant 48 : index
    %c0_289 = arith.constant 0 : index
    %885 = vector.load %arg6[%c48_288, %c0_289] : memref<144x128xf32, #tpu.memory_space<vmem>>, vector<8x128xf32>
    %c120_290 = arith.constant 120 : index
    %c0_291 = arith.constant 0 : index
    %886 = vector.load %arg6[%c120_290, %c0_291] : memref<144x128xf32, #tpu.memory_space<vmem>>, vector<8x128xf32>
    %887 = arith.mulf %719, %885 : vector<8x128xf32>
    %888 = arith.mulf %720, %886 : vector<8x128xf32>
    %889 = arith.subf %887, %888 : vector<8x128xf32>
    %890 = arith.mulf %719, %886 : vector<8x128xf32>
    %891 = arith.mulf %720, %885 : vector<8x128xf32>
    %892 = arith.addf %890, %891 : vector<8x128xf32>
    %893 = arith.addf %873, %881 : vector<8x128xf32>
    %894 = arith.addf %876, %884 : vector<8x128xf32>
    %895 = arith.addf %893, %889 : vector<8x128xf32>
    %896 = arith.addf %894, %892 : vector<8x128xf32>
    %897 = arith.mulf %895, %751 : vector<8x128xf32>
    %898 = arith.mulf %896, %754 : vector<8x128xf32>
    %899 = arith.subf %897, %898 : vector<8x128xf32>
    %900 = arith.mulf %895, %754 : vector<8x128xf32>
    %901 = arith.mulf %896, %751 : vector<8x128xf32>
    %902 = arith.addf %900, %901 : vector<8x128xf32>
    %903 = arith.subf %865, %899 : vector<8x128xf32>
    %cst_292 = arith.constant 5.000000e-01 : f32
    %904 = vector.broadcast %cst_292 : f32 to vector<8x128xf32>
    %905 = arith.mulf %903, %904 : vector<8x128xf32>
    %906 = arith.addf %868, %902 : vector<8x128xf32>
    %cst_293 = arith.constant 5.000000e-01 : f32
    %907 = vector.broadcast %cst_293 : f32 to vector<8x128xf32>
    %908 = arith.mulf %906, %907 : vector<8x128xf32>
    %c160_294 = arith.constant 160 : index
    %c0_295 = arith.constant 0 : index
    %909 = vector.load %arg5[%c160_294, %c0_295] : memref<576x128xf32, #tpu.memory_space<vmem>>, vector<8x128xf32>
    tpu.vector_store %arg5[%c160_294, %c0_295], %905 {strides = array<i32>} : memref<576x128xf32, #tpu.memory_space<vmem>>, vector<8x128xf32>,
    %c232_296 = arith.constant 232 : index
    %c0_297 = arith.constant 0 : index
    %910 = vector.load %arg5[%c232_296, %c0_297] : memref<576x128xf32, #tpu.memory_space<vmem>>, vector<8x128xf32>
    tpu.vector_store %arg5[%c232_296, %c0_297], %908 {strides = array<i32>} : memref<576x128xf32, #tpu.memory_space<vmem>>, vector<8x128xf32>,
    %cst_298 = arith.constant 0.000000e+00 : f32
    %911 = vector.broadcast %cst_298 : f32 to vector<8x128xf32>
    %912 = arith.subf %911, %905 : vector<8x128xf32>
    %c192_299 = arith.constant 192 : index
    %c0_300 = arith.constant 0 : index
    %913 = vector.load %arg5[%c192_299, %c0_300] : memref<576x128xf32, #tpu.memory_space<vmem>>, vector<8x128xf32>
    tpu.vector_store %arg5[%c192_299, %c0_300], %912 {strides = array<i32>} : memref<576x128xf32, #tpu.memory_space<vmem>>, vector<8x128xf32>,
    %c264_301 = arith.constant 264 : index
    %c0_302 = arith.constant 0 : index
    %914 = vector.load %arg5[%c264_301, %c0_302] : memref<576x128xf32, #tpu.memory_space<vmem>>, vector<8x128xf32>
    tpu.vector_store %arg5[%c264_301, %c0_302], %908 {strides = array<i32>} : memref<576x128xf32, #tpu.memory_space<vmem>>, vector<8x128xf32>,
    %c16_303 = arith.constant 16 : index
    %c0_304 = arith.constant 0 : index
    %915 = vector.load %arg6[%c16_303, %c0_304] : memref<144x128xf32, #tpu.memory_space<vmem>>, vector<8x128xf32>
    %c88_305 = arith.constant 88 : index
    %c0_306 = arith.constant 0 : index
    %916 = vector.load %arg6[%c88_305, %c0_306] : memref<144x128xf32, #tpu.memory_space<vmem>>, vector<8x128xf32>
    %917 = arith.mulf %608, %915 : vector<8x128xf32>
    %918 = arith.mulf %610, %916 : vector<8x128xf32>
    %919 = arith.subf %917, %918 : vector<8x128xf32>
    %920 = arith.mulf %608, %916 : vector<8x128xf32>
    %921 = arith.mulf %610, %915 : vector<8x128xf32>
    %922 = arith.addf %920, %921 : vector<8x128xf32>
    %c40_307 = arith.constant 40 : index
    %c0_308 = arith.constant 0 : index
    %923 = vector.load %arg6[%c40_307, %c0_308] : memref<144x128xf32, #tpu.memory_space<vmem>>, vector<8x128xf32>
    %c112_309 = arith.constant 112 : index
    %c0_310 = arith.constant 0 : index
    %924 = vector.load %arg6[%c112_309, %c0_310] : memref<144x128xf32, #tpu.memory_space<vmem>>, vector<8x128xf32>
    %925 = arith.mulf %655, %923 : vector<8x128xf32>
    %926 = arith.mulf %656, %924 : vector<8x128xf32>
    %927 = arith.subf %925, %926 : vector<8x128xf32>
    %928 = arith.mulf %655, %924 : vector<8x128xf32>
    %929 = arith.mulf %656, %923 : vector<8x128xf32>
    %930 = arith.addf %928, %929 : vector<8x128xf32>
    %c64_311 = arith.constant 64 : index
    %c0_312 = arith.constant 0 : index
    %931 = vector.load %arg6[%c64_311, %c0_312] : memref<144x128xf32, #tpu.memory_space<vmem>>, vector<8x128xf32>
    %c136_313 = arith.constant 136 : index
    %c0_314 = arith.constant 0 : index
    %932 = vector.load %arg6[%c136_313, %c0_314] : memref<144x128xf32, #tpu.memory_space<vmem>>, vector<8x128xf32>
    %933 = arith.mulf %704, %931 : vector<8x128xf32>
    %934 = arith.mulf %706, %932 : vector<8x128xf32>
    %935 = arith.subf %933, %934 : vector<8x128xf32>
    %936 = arith.mulf %704, %932 : vector<8x128xf32>
    %937 = arith.mulf %706, %931 : vector<8x128xf32>
    %938 = arith.addf %936, %937 : vector<8x128xf32>
    %939 = arith.addf %919, %927 : vector<8x128xf32>
    %940 = arith.addf %922, %930 : vector<8x128xf32>
    %941 = arith.addf %939, %935 : vector<8x128xf32>
    %942 = arith.addf %940, %938 : vector<8x128xf32>
    %943 = arith.mulf %941, %751 : vector<8x128xf32>
    %944 = arith.mulf %942, %754 : vector<8x128xf32>
    %945 = arith.subf %943, %944 : vector<8x128xf32>
    %946 = arith.mulf %941, %754 : vector<8x128xf32>
    %947 = arith.mulf %942, %751 : vector<8x128xf32>
    %948 = arith.addf %946, %947 : vector<8x128xf32>
    %c8_315 = arith.constant 8 : index
    %c0_316 = arith.constant 0 : index
    %949 = vector.load %arg6[%c8_315, %c0_316] : memref<144x128xf32, #tpu.memory_space<vmem>>, vector<8x128xf32>
    %c80_317 = arith.constant 80 : index
    %c0_318 = arith.constant 0 : index
    %950 = vector.load %arg6[%c80_317, %c0_318] : memref<144x128xf32, #tpu.memory_space<vmem>>, vector<8x128xf32>
    %951 = arith.mulf %623, %949 : vector<8x128xf32>
    %952 = arith.mulf %624, %950 : vector<8x128xf32>
    %953 = arith.subf %951, %952 : vector<8x128xf32>
    %954 = arith.mulf %623, %950 : vector<8x128xf32>
    %955 = arith.mulf %624, %949 : vector<8x128xf32>
    %956 = arith.addf %954, %955 : vector<8x128xf32>
    %c32_319 = arith.constant 32 : index
    %c0_320 = arith.constant 0 : index
    %957 = vector.load %arg6[%c32_319, %c0_320] : memref<144x128xf32, #tpu.memory_space<vmem>>, vector<8x128xf32>
    %c104_321 = arith.constant 104 : index
    %c0_322 = arith.constant 0 : index
    %958 = vector.load %arg6[%c104_321, %c0_322] : memref<144x128xf32, #tpu.memory_space<vmem>>, vector<8x128xf32>
    %959 = arith.mulf %672, %957 : vector<8x128xf32>
    %960 = arith.mulf %674, %958 : vector<8x128xf32>
    %961 = arith.subf %959, %960 : vector<8x128xf32>
    %962 = arith.mulf %672, %958 : vector<8x128xf32>
    %963 = arith.mulf %674, %957 : vector<8x128xf32>
    %964 = arith.addf %962, %963 : vector<8x128xf32>
    %c56_323 = arith.constant 56 : index
    %c0_324 = arith.constant 0 : index
    %965 = vector.load %arg6[%c56_323, %c0_324] : memref<144x128xf32, #tpu.memory_space<vmem>>, vector<8x128xf32>
    %c128_325 = arith.constant 128 : index
    %c0_326 = arith.constant 0 : index
    %966 = vector.load %arg6[%c128_325, %c0_326] : memref<144x128xf32, #tpu.memory_space<vmem>>, vector<8x128xf32>
    %967 = arith.mulf %719, %965 : vector<8x128xf32>
    %968 = arith.mulf %720, %966 : vector<8x128xf32>
    %969 = arith.subf %967, %968 : vector<8x128xf32>
    %970 = arith.mulf %719, %966 : vector<8x128xf32>
    %971 = arith.mulf %720, %965 : vector<8x128xf32>
    %972 = arith.addf %970, %971 : vector<8x128xf32>
    %973 = arith.addf %953, %961 : vector<8x128xf32>
    %974 = arith.addf %956, %964 : vector<8x128xf32>
    %975 = arith.addf %973, %969 : vector<8x128xf32>
    %976 = arith.addf %974, %972 : vector<8x128xf32>
    %977 = arith.mulf %975, %751 : vector<8x128xf32>
    %978 = arith.mulf %976, %754 : vector<8x128xf32>
    %979 = arith.subf %977, %978 : vector<8x128xf32>
    %980 = arith.mulf %975, %754 : vector<8x128xf32>
    %981 = arith.mulf %976, %751 : vector<8x128xf32>
    %982 = arith.addf %980, %981 : vector<8x128xf32>
    %983 = arith.subf %945, %979 : vector<8x128xf32>
    %cst_327 = arith.constant 5.000000e-01 : f32
    %984 = vector.broadcast %cst_327 : f32 to vector<8x128xf32>
    %985 = arith.mulf %983, %984 : vector<8x128xf32>
    %986 = arith.addf %948, %982 : vector<8x128xf32>
    %cst_328 = arith.constant 5.000000e-01 : f32
    %987 = vector.broadcast %cst_328 : f32 to vector<8x128xf32>
    %988 = arith.mulf %986, %987 : vector<8x128xf32>
    %c184_329 = arith.constant 184 : index
    %c0_330 = arith.constant 0 : index
    %989 = vector.load %arg5[%c184_329, %c0_330] : memref<576x128xf32, #tpu.memory_space<vmem>>, vector<8x128xf32>
    tpu.vector_store %arg5[%c184_329, %c0_330], %985 {strides = array<i32>} : memref<576x128xf32, #tpu.memory_space<vmem>>, vector<8x128xf32>,
    %c256_331 = arith.constant 256 : index
    %c0_332 = arith.constant 0 : index
    %990 = vector.load %arg5[%c256_331, %c0_332] : memref<576x128xf32, #tpu.memory_space<vmem>>, vector<8x128xf32>
    tpu.vector_store %arg5[%c256_331, %c0_332], %988 {strides = array<i32>} : memref<576x128xf32, #tpu.memory_space<vmem>>, vector<8x128xf32>,
    %cst_333 = arith.constant 0.000000e+00 : f32
    %991 = vector.broadcast %cst_333 : f32 to vector<8x128xf32>
    %992 = arith.subf %991, %985 : vector<8x128xf32>
    %c200_334 = arith.constant 200 : index
    %c0_335 = arith.constant 0 : index
    %993 = vector.load %arg5[%c200_334, %c0_335] : memref<576x128xf32, #tpu.memory_space<vmem>>, vector<8x128xf32>
    tpu.vector_store %arg5[%c200_334, %c0_335], %992 {strides = array<i32>} : memref<576x128xf32, #tpu.memory_space<vmem>>, vector<8x128xf32>,
    %c272_336 = arith.constant 272 : index
    %c0_337 = arith.constant 0 : index
    %994 = vector.load %arg5[%c272_336, %c0_337] : memref<576x128xf32, #tpu.memory_space<vmem>>, vector<8x128xf32>
    tpu.vector_store %arg5[%c272_336, %c0_337], %988 {strides = array<i32>} : memref<576x128xf32, #tpu.memory_space<vmem>>, vector<8x128xf32>,
    %c0_338 = arith.constant 0 : index
    %c0_339 = arith.constant 0 : index
    %995 = vector.load %arg6[%c0_338, %c0_339] : memref<144x128xf32, #tpu.memory_space<vmem>>, vector<8x128xf32>
    %c72_340 = arith.constant 72 : index
    %c0_341 = arith.constant 0 : index
    %996 = vector.load %arg6[%c72_340, %c0_341] : memref<144x128xf32, #tpu.memory_space<vmem>>, vector<8x128xf32>
    %997 = arith.mulf %591, %995 : vector<8x128xf32>
    %998 = arith.mulf %592, %996 : vector<8x128xf32>
    %999 = arith.subf %997, %998 : vector<8x128xf32>
    %1000 = arith.mulf %591, %996 : vector<8x128xf32>
    %1001 = arith.mulf %592, %995 : vector<8x128xf32>
    %1002 = arith.addf %1000, %1001 : vector<8x128xf32>
    %c24_342 = arith.constant 24 : index
    %c0_343 = arith.constant 0 : index
    %1003 = vector.load %arg6[%c24_342, %c0_343] : memref<144x128xf32, #tpu.memory_space<vmem>>, vector<8x128xf32>
    %c96_344 = arith.constant 96 : index
    %c0_345 = arith.constant 0 : index
    %1004 = vector.load %arg6[%c96_344, %c0_345] : memref<144x128xf32, #tpu.memory_space<vmem>>, vector<8x128xf32>
    %1005 = arith.mulf %640, %1003 : vector<8x128xf32>
    %1006 = arith.mulf %642, %1004 : vector<8x128xf32>
    %1007 = arith.subf %1005, %1006 : vector<8x128xf32>
    %1008 = arith.mulf %640, %1004 : vector<8x128xf32>
    %1009 = arith.mulf %642, %1003 : vector<8x128xf32>
    %1010 = arith.addf %1008, %1009 : vector<8x128xf32>
    %c48_346 = arith.constant 48 : index
    %c0_347 = arith.constant 0 : index
    %1011 = vector.load %arg6[%c48_346, %c0_347] : memref<144x128xf32, #tpu.memory_space<vmem>>, vector<8x128xf32>
    %c120_348 = arith.constant 120 : index
    %c0_349 = arith.constant 0 : index
    %1012 = vector.load %arg6[%c120_348, %c0_349] : memref<144x128xf32, #tpu.memory_space<vmem>>, vector<8x128xf32>
    %1013 = arith.mulf %687, %1011 : vector<8x128xf32>
    %1014 = arith.mulf %688, %1012 : vector<8x128xf32>
    %1015 = arith.subf %1013, %1014 : vector<8x128xf32>
    %1016 = arith.mulf %687, %1012 : vector<8x128xf32>
    %1017 = arith.mulf %688, %1011 : vector<8x128xf32>
    %1018 = arith.addf %1016, %1017 : vector<8x128xf32>
    %1019 = arith.addf %999, %1007 : vector<8x128xf32>
    %1020 = arith.addf %1002, %1010 : vector<8x128xf32>
    %1021 = arith.addf %1019, %1015 : vector<8x128xf32>
    %1022 = arith.addf %1020, %1018 : vector<8x128xf32>
    %1023 = arith.mulf %1021, %754 : vector<8x128xf32>
    %1024 = arith.mulf %1022, %751 : vector<8x128xf32>
    %1025 = arith.addf %1023, %1024 : vector<8x128xf32>
    %c8_350 = arith.constant 8 : index
    %c0_351 = arith.constant 0 : index
    %1026 = vector.load %arg6[%c8_350, %c0_351] : memref<144x128xf32, #tpu.memory_space<vmem>>, vector<8x128xf32>
    %c80_352 = arith.constant 80 : index
    %c0_353 = arith.constant 0 : index
    %1027 = vector.load %arg6[%c80_352, %c0_353] : memref<144x128xf32, #tpu.memory_space<vmem>>, vector<8x128xf32>
    %1028 = arith.mulf %608, %1026 : vector<8x128xf32>
    %1029 = arith.mulf %610, %1027 : vector<8x128xf32>
    %1030 = arith.subf %1028, %1029 : vector<8x128xf32>
    %1031 = arith.mulf %608, %1027 : vector<8x128xf32>
    %1032 = arith.mulf %610, %1026 : vector<8x128xf32>
    %1033 = arith.addf %1031, %1032 : vector<8x128xf32>
    %c32_354 = arith.constant 32 : index
    %c0_355 = arith.constant 0 : index
    %1034 = vector.load %arg6[%c32_354, %c0_355] : memref<144x128xf32, #tpu.memory_space<vmem>>, vector<8x128xf32>
    %c104_356 = arith.constant 104 : index
    %c0_357 = arith.constant 0 : index
    %1035 = vector.load %arg6[%c104_356, %c0_357] : memref<144x128xf32, #tpu.memory_space<vmem>>, vector<8x128xf32>
    %1036 = arith.mulf %655, %1034 : vector<8x128xf32>
    %1037 = arith.mulf %656, %1035 : vector<8x128xf32>
    %1038 = arith.subf %1036, %1037 : vector<8x128xf32>
    %1039 = arith.mulf %655, %1035 : vector<8x128xf32>
    %1040 = arith.mulf %656, %1034 : vector<8x128xf32>
    %1041 = arith.addf %1039, %1040 : vector<8x128xf32>
    %c56_358 = arith.constant 56 : index
    %c0_359 = arith.constant 0 : index
    %1042 = vector.load %arg6[%c56_358, %c0_359] : memref<144x128xf32, #tpu.memory_space<vmem>>, vector<8x128xf32>
    %c128_360 = arith.constant 128 : index
    %c0_361 = arith.constant 0 : index
    %1043 = vector.load %arg6[%c128_360, %c0_361] : memref<144x128xf32, #tpu.memory_space<vmem>>, vector<8x128xf32>
    %1044 = arith.mulf %704, %1042 : vector<8x128xf32>
    %1045 = arith.mulf %706, %1043 : vector<8x128xf32>
    %1046 = arith.subf %1044, %1045 : vector<8x128xf32>
    %1047 = arith.mulf %704, %1043 : vector<8x128xf32>
    %1048 = arith.mulf %706, %1042 : vector<8x128xf32>
    %1049 = arith.addf %1047, %1048 : vector<8x128xf32>
    %1050 = arith.addf %1030, %1038 : vector<8x128xf32>
    %1051 = arith.addf %1033, %1041 : vector<8x128xf32>
    %1052 = arith.addf %1050, %1046 : vector<8x128xf32>
    %1053 = arith.addf %1051, %1049 : vector<8x128xf32>
    %1054 = arith.mulf %1052, %754 : vector<8x128xf32>
    %1055 = arith.mulf %1053, %751 : vector<8x128xf32>
    %1056 = arith.addf %1054, %1055 : vector<8x128xf32>
    %c16_362 = arith.constant 16 : index
    %c0_363 = arith.constant 0 : index
    %1057 = vector.load %arg6[%c16_362, %c0_363] : memref<144x128xf32, #tpu.memory_space<vmem>>, vector<8x128xf32>
    %c88_364 = arith.constant 88 : index
    %c0_365 = arith.constant 0 : index
    %1058 = vector.load %arg6[%c88_364, %c0_365] : memref<144x128xf32, #tpu.memory_space<vmem>>, vector<8x128xf32>
    %1059 = arith.mulf %623, %1057 : vector<8x128xf32>
    %1060 = arith.mulf %624, %1058 : vector<8x128xf32>
    %1061 = arith.subf %1059, %1060 : vector<8x128xf32>
    %1062 = arith.mulf %623, %1058 : vector<8x128xf32>
    %1063 = arith.mulf %624, %1057 : vector<8x128xf32>
    %1064 = arith.addf %1062, %1063 : vector<8x128xf32>
    %c40_366 = arith.constant 40 : index
    %c0_367 = arith.constant 0 : index
    %1065 = vector.load %arg6[%c40_366, %c0_367] : memref<144x128xf32, #tpu.memory_space<vmem>>, vector<8x128xf32>
    %c112_368 = arith.constant 112 : index
    %c0_369 = arith.constant 0 : index
    %1066 = vector.load %arg6[%c112_368, %c0_369] : memref<144x128xf32, #tpu.memory_space<vmem>>, vector<8x128xf32>
    %1067 = arith.mulf %672, %1065 : vector<8x128xf32>
    %1068 = arith.mulf %674, %1066 : vector<8x128xf32>
    %1069 = arith.subf %1067, %1068 : vector<8x128xf32>
    %1070 = arith.mulf %672, %1066 : vector<8x128xf32>
    %1071 = arith.mulf %674, %1065 : vector<8x128xf32>
    %1072 = arith.addf %1070, %1071 : vector<8x128xf32>
    %c64_370 = arith.constant 64 : index
    %c0_371 = arith.constant 0 : index
    %1073 = vector.load %arg6[%c64_370, %c0_371] : memref<144x128xf32, #tpu.memory_space<vmem>>, vector<8x128xf32>
    %c136_372 = arith.constant 136 : index
    %c0_373 = arith.constant 0 : index
    %1074 = vector.load %arg6[%c136_372, %c0_373] : memref<144x128xf32, #tpu.memory_space<vmem>>, vector<8x128xf32>
    %1075 = arith.mulf %719, %1073 : vector<8x128xf32>
    %1076 = arith.mulf %720, %1074 : vector<8x128xf32>
    %1077 = arith.subf %1075, %1076 : vector<8x128xf32>
    %1078 = arith.mulf %719, %1074 : vector<8x128xf32>
    %1079 = arith.mulf %720, %1073 : vector<8x128xf32>
    %1080 = arith.addf %1078, %1079 : vector<8x128xf32>
    %1081 = arith.addf %1061, %1069 : vector<8x128xf32>
    %1082 = arith.addf %1064, %1072 : vector<8x128xf32>
    %1083 = arith.addf %1081, %1077 : vector<8x128xf32>
    %1084 = arith.addf %1082, %1080 : vector<8x128xf32>
    %1085 = arith.mulf %1083, %754 : vector<8x128xf32>
    %1086 = arith.mulf %1084, %751 : vector<8x128xf32>
    %1087 = arith.addf %1085, %1086 : vector<8x128xf32>
    %1088 = arith.addf %1025, %1056 : vector<8x128xf32>
    %1089 = arith.addf %1088, %1087 : vector<8x128xf32>
    %cst_374 = arith.constant 0.333333343 : f32
    %1090 = vector.broadcast %cst_374 : f32 to vector<8x128xf32>
    %1091 = arith.mulf %1089, %1090 : vector<8x128xf32>
    %1092 = arith.subf %1025, %1091 : vector<8x128xf32>
    %c144 = arith.constant 144 : index
    %c0_375 = arith.constant 0 : index
    %1093 = vector.load %arg5[%c144, %c0_375] : memref<576x128xf32, #tpu.memory_space<vmem>>, vector<8x128xf32>
    tpu.vector_store %arg5[%c144, %c0_375], %0 {strides = array<i32>} : memref<576x128xf32, #tpu.memory_space<vmem>>, vector<8x128xf32>,
    %c216_376 = arith.constant 216 : index
    %c0_377 = arith.constant 0 : index
    %1094 = vector.load %arg5[%c216_376, %c0_377] : memref<576x128xf32, #tpu.memory_space<vmem>>, vector<8x128xf32>
    tpu.vector_store %arg5[%c216_376, %c0_377], %1092 {strides = array<i32>} : memref<576x128xf32, #tpu.memory_space<vmem>>, vector<8x128xf32>,
    %1095 = arith.subf %1056, %1091 : vector<8x128xf32>
    %c176_378 = arith.constant 176 : index
    %c0_379 = arith.constant 0 : index
    %1096 = vector.load %arg5[%c176_378, %c0_379] : memref<576x128xf32, #tpu.memory_space<vmem>>, vector<8x128xf32>
    tpu.vector_store %arg5[%c176_378, %c0_379], %0 {strides = array<i32>} : memref<576x128xf32, #tpu.memory_space<vmem>>, vector<8x128xf32>,
    %c248_380 = arith.constant 248 : index
    %c0_381 = arith.constant 0 : index
    %1097 = vector.load %arg5[%c248_380, %c0_381] : memref<576x128xf32, #tpu.memory_space<vmem>>, vector<8x128xf32>
    tpu.vector_store %arg5[%c248_380, %c0_381], %1095 {strides = array<i32>} : memref<576x128xf32, #tpu.memory_space<vmem>>, vector<8x128xf32>,
    %1098 = arith.subf %1087, %1091 : vector<8x128xf32>
    %c208_382 = arith.constant 208 : index
    %c0_383 = arith.constant 0 : index
    %1099 = vector.load %arg5[%c208_382, %c0_383] : memref<576x128xf32, #tpu.memory_space<vmem>>, vector<8x128xf32>
    tpu.vector_store %arg5[%c208_382, %c0_383], %0 {strides = array<i32>} : memref<576x128xf32, #tpu.memory_space<vmem>>, vector<8x128xf32>,
    %c280_384 = arith.constant 280 : index
    %c0_385 = arith.constant 0 : index
    %1100 = vector.load %arg5[%c280_384, %c0_385] : memref<576x128xf32, #tpu.memory_space<vmem>>, vector<8x128xf32>
    tpu.vector_store %arg5[%c280_384, %c0_385], %1098 {strides = array<i32>} : memref<576x128xf32, #tpu.memory_space<vmem>>, vector<8x128xf32>,
    %c320 = arith.constant 320 : index
    %c0_386 = arith.constant 0 : index
    %1101 = vector.load %arg1[%c320, %c0_386] : memref<640x128xf32, #tpu.memory_space<vmem>>, vector<160x128xf32>
    %c0_387 = arith.constant 0 : index
    %c0_388 = arith.constant 0 : index
    %1102 = vector.load %arg2[%c0_387, %c0_388] : memref<256x160xf32, #tpu.memory_space<vmem>>, vector<256x160xf32>
    %cst_389 = arith.constant dense<0.000000e+00> : vector<256x128xf32>
    %1103 = tpu.matmul %1102, %1101, %cst_389 {dimension_numbers = #tpu.dot_dimension_numbers<[1], [0], [0], [1], [0, 0, 1, 1], [], []>} : vector<256x160xf32>, vector<160x128xf32>, vector<256x128xf32> -> vector<256x128xf32>
    %1104 = math.tanh %1103 : vector<256x128xf32>
    %c0_390 = arith.constant 0 : index
    %c0_391 = arith.constant 0 : index
    %1105 = vector.load %arg3[%c0_390, %c0_391] : memref<144x256xf32, #tpu.memory_space<vmem>>, vector<144x256xf32>
    %cst_392 = arith.constant dense<0.000000e+00> : vector<144x128xf32>
    %1106 = tpu.matmul %1105, %1104, %cst_392 {dimension_numbers = #tpu.dot_dimension_numbers<[1], [0], [0], [1], [0, 0, 1, 1], [], []>} : vector<144x256xf32>, vector<256x128xf32>, vector<144x128xf32> -> vector<144x128xf32>
    %c0_393 = arith.constant 0 : index
    %c0_394 = arith.constant 0 : index
    %1107 = vector.load %arg4[%c0_393, %c0_394] : memref<144x1xf32, #tpu.memory_space<vmem>>, vector<144x1xf32>
    %1108 = vector.broadcast %1107 : vector<144x1xf32> to vector<144x128xf32>
    %1109 = arith.addf %1106, %1108 : vector<144x128xf32>
    %c0_395 = arith.constant 0 : index
    %c0_396 = arith.constant 0 : index
    %1110 = vector.load %arg6[%c0_395, %c0_396] : memref<144x128xf32, #tpu.memory_space<vmem>>, vector<144x128xf32>
    tpu.vector_store %arg6[%c0_395, %c0_396], %1109 {strides = array<i32>} : memref<144x128xf32, #tpu.memory_space<vmem>>, vector<144x128xf32>,
    %c320_397 = arith.constant 320 : index
    %c0_398 = arith.constant 0 : index
    %1111 = vector.load %arg1[%c320_397, %c0_398] : memref<640x128xf32, #tpu.memory_space<vmem>>, vector<8x128xf32>
    %c392 = arith.constant 392 : index
    %c0_399 = arith.constant 0 : index
    %1112 = vector.load %arg1[%c392, %c0_399] : memref<640x128xf32, #tpu.memory_space<vmem>>, vector<8x128xf32>
    %c328 = arith.constant 328 : index
    %c0_400 = arith.constant 0 : index
    %1113 = vector.load %arg1[%c328, %c0_400] : memref<640x128xf32, #tpu.memory_space<vmem>>, vector<8x128xf32>
    %c400 = arith.constant 400 : index
    %c0_401 = arith.constant 0 : index
    %1114 = vector.load %arg1[%c400, %c0_401] : memref<640x128xf32, #tpu.memory_space<vmem>>, vector<8x128xf32>
    %c336 = arith.constant 336 : index
    %c0_402 = arith.constant 0 : index
    %1115 = vector.load %arg1[%c336, %c0_402] : memref<640x128xf32, #tpu.memory_space<vmem>>, vector<8x128xf32>
    %c408 = arith.constant 408 : index
    %c0_403 = arith.constant 0 : index
    %1116 = vector.load %arg1[%c408, %c0_403] : memref<640x128xf32, #tpu.memory_space<vmem>>, vector<8x128xf32>
    %c344 = arith.constant 344 : index
    %c0_404 = arith.constant 0 : index
    %1117 = vector.load %arg1[%c344, %c0_404] : memref<640x128xf32, #tpu.memory_space<vmem>>, vector<8x128xf32>
    %c416 = arith.constant 416 : index
    %c0_405 = arith.constant 0 : index
    %1118 = vector.load %arg1[%c416, %c0_405] : memref<640x128xf32, #tpu.memory_space<vmem>>, vector<8x128xf32>
    %c352 = arith.constant 352 : index
    %c0_406 = arith.constant 0 : index
    %1119 = vector.load %arg1[%c352, %c0_406] : memref<640x128xf32, #tpu.memory_space<vmem>>, vector<8x128xf32>
    %c424 = arith.constant 424 : index
    %c0_407 = arith.constant 0 : index
    %1120 = vector.load %arg1[%c424, %c0_407] : memref<640x128xf32, #tpu.memory_space<vmem>>, vector<8x128xf32>
    %c360 = arith.constant 360 : index
    %c0_408 = arith.constant 0 : index
    %1121 = vector.load %arg1[%c360, %c0_408] : memref<640x128xf32, #tpu.memory_space<vmem>>, vector<8x128xf32>
    %c432 = arith.constant 432 : index
    %c0_409 = arith.constant 0 : index
    %1122 = vector.load %arg1[%c432, %c0_409] : memref<640x128xf32, #tpu.memory_space<vmem>>, vector<8x128xf32>
    %c368 = arith.constant 368 : index
    %c0_410 = arith.constant 0 : index
    %1123 = vector.load %arg1[%c368, %c0_410] : memref<640x128xf32, #tpu.memory_space<vmem>>, vector<8x128xf32>
    %c440 = arith.constant 440 : index
    %c0_411 = arith.constant 0 : index
    %1124 = vector.load %arg1[%c440, %c0_411] : memref<640x128xf32, #tpu.memory_space<vmem>>, vector<8x128xf32>
    %c376 = arith.constant 376 : index
    %c0_412 = arith.constant 0 : index
    %1125 = vector.load %arg1[%c376, %c0_412] : memref<640x128xf32, #tpu.memory_space<vmem>>, vector<8x128xf32>
    %c448 = arith.constant 448 : index
    %c0_413 = arith.constant 0 : index
    %1126 = vector.load %arg1[%c448, %c0_413] : memref<640x128xf32, #tpu.memory_space<vmem>>, vector<8x128xf32>
    %c384 = arith.constant 384 : index
    %c0_414 = arith.constant 0 : index
    %1127 = vector.load %arg1[%c384, %c0_414] : memref<640x128xf32, #tpu.memory_space<vmem>>, vector<8x128xf32>
    %c456 = arith.constant 456 : index
    %c0_415 = arith.constant 0 : index
    %1128 = vector.load %arg1[%c456, %c0_415] : memref<640x128xf32, #tpu.memory_space<vmem>>, vector<8x128xf32>
    %1129 = arith.mulf %1119, %1127 : vector<8x128xf32>
    %1130 = arith.mulf %1120, %1128 : vector<8x128xf32>
    %1131 = arith.subf %1129, %1130 : vector<8x128xf32>
    %1132 = arith.mulf %1119, %1128 : vector<8x128xf32>
    %1133 = arith.mulf %1120, %1127 : vector<8x128xf32>
    %1134 = arith.addf %1132, %1133 : vector<8x128xf32>
    %1135 = arith.mulf %1121, %1125 : vector<8x128xf32>
    %1136 = arith.mulf %1122, %1126 : vector<8x128xf32>
    %1137 = arith.subf %1135, %1136 : vector<8x128xf32>
    %1138 = arith.mulf %1121, %1126 : vector<8x128xf32>
    %1139 = arith.mulf %1122, %1125 : vector<8x128xf32>
    %1140 = arith.addf %1138, %1139 : vector<8x128xf32>
    %1141 = arith.subf %1131, %1137 : vector<8x128xf32>
    %1142 = arith.subf %1134, %1140 : vector<8x128xf32>
    %1143 = arith.mulf %1117, %1127 : vector<8x128xf32>
    %1144 = arith.mulf %1118, %1128 : vector<8x128xf32>
    %1145 = arith.subf %1143, %1144 : vector<8x128xf32>
    %1146 = arith.mulf %1117, %1128 : vector<8x128xf32>
    %1147 = arith.mulf %1118, %1127 : vector<8x128xf32>
    %1148 = arith.addf %1146, %1147 : vector<8x128xf32>
    %1149 = arith.mulf %1121, %1123 : vector<8x128xf32>
    %1150 = arith.mulf %1122, %1124 : vector<8x128xf32>
    %1151 = arith.subf %1149, %1150 : vector<8x128xf32>
    %1152 = arith.mulf %1121, %1124 : vector<8x128xf32>
    %1153 = arith.mulf %1122, %1123 : vector<8x128xf32>
    %1154 = arith.addf %1152, %1153 : vector<8x128xf32>
    %1155 = arith.subf %1145, %1151 : vector<8x128xf32>
    %1156 = arith.subf %1148, %1154 : vector<8x128xf32>
    %cst_416 = arith.constant 0.000000e+00 : f32
    %1157 = vector.broadcast %cst_416 : f32 to vector<8x128xf32>
    %1158 = arith.subf %1157, %1155 : vector<8x128xf32>
    %cst_417 = arith.constant 0.000000e+00 : f32
    %1159 = vector.broadcast %cst_417 : f32 to vector<8x128xf32>
    %1160 = arith.subf %1159, %1156 : vector<8x128xf32>
    %1161 = arith.mulf %1117, %1125 : vector<8x128xf32>
    %1162 = arith.mulf %1118, %1126 : vector<8x128xf32>
    %1163 = arith.subf %1161, %1162 : vector<8x128xf32>
    %1164 = arith.mulf %1117, %1126 : vector<8x128xf32>
    %1165 = arith.mulf %1118, %1125 : vector<8x128xf32>
    %1166 = arith.addf %1164, %1165 : vector<8x128xf32>
    %1167 = arith.mulf %1119, %1123 : vector<8x128xf32>
    %1168 = arith.mulf %1120, %1124 : vector<8x128xf32>
    %1169 = arith.subf %1167, %1168 : vector<8x128xf32>
    %1170 = arith.mulf %1119, %1124 : vector<8x128xf32>
    %1171 = arith.mulf %1120, %1123 : vector<8x128xf32>
    %1172 = arith.addf %1170, %1171 : vector<8x128xf32>
    %1173 = arith.subf %1163, %1169 : vector<8x128xf32>
    %1174 = arith.subf %1166, %1172 : vector<8x128xf32>
    %1175 = arith.mulf %1113, %1127 : vector<8x128xf32>
    %1176 = arith.mulf %1114, %1128 : vector<8x128xf32>
    %1177 = arith.subf %1175, %1176 : vector<8x128xf32>
    %1178 = arith.mulf %1113, %1128 : vector<8x128xf32>
    %1179 = arith.mulf %1114, %1127 : vector<8x128xf32>
    %1180 = arith.addf %1178, %1179 : vector<8x128xf32>
    %1181 = arith.mulf %1115, %1125 : vector<8x128xf32>
    %1182 = arith.mulf %1116, %1126 : vector<8x128xf32>
    %1183 = arith.subf %1181, %1182 : vector<8x128xf32>
    %1184 = arith.mulf %1115, %1126 : vector<8x128xf32>
    %1185 = arith.mulf %1116, %1125 : vector<8x128xf32>
    %1186 = arith.addf %1184, %1185 : vector<8x128xf32>
    %1187 = arith.subf %1177, %1183 : vector<8x128xf32>
    %1188 = arith.subf %1180, %1186 : vector<8x128xf32>
    %cst_418 = arith.constant 0.000000e+00 : f32
    %1189 = vector.broadcast %cst_418 : f32 to vector<8x128xf32>
    %1190 = arith.subf %1189, %1187 : vector<8x128xf32>
    %cst_419 = arith.constant 0.000000e+00 : f32
    %1191 = vector.broadcast %cst_419 : f32 to vector<8x128xf32>
    %1192 = arith.subf %1191, %1188 : vector<8x128xf32>
    %1193 = arith.mulf %1111, %1127 : vector<8x128xf32>
    %1194 = arith.mulf %1112, %1128 : vector<8x128xf32>
    %1195 = arith.subf %1193, %1194 : vector<8x128xf32>
    %1196 = arith.mulf %1111, %1128 : vector<8x128xf32>
    %1197 = arith.mulf %1112, %1127 : vector<8x128xf32>
    %1198 = arith.addf %1196, %1197 : vector<8x128xf32>
    %1199 = arith.mulf %1115, %1123 : vector<8x128xf32>
    %1200 = arith.mulf %1116, %1124 : vector<8x128xf32>
    %1201 = arith.subf %1199, %1200 : vector<8x128xf32>
    %1202 = arith.mulf %1115, %1124 : vector<8x128xf32>
    %1203 = arith.mulf %1116, %1123 : vector<8x128xf32>
    %1204 = arith.addf %1202, %1203 : vector<8x128xf32>
    %1205 = arith.subf %1195, %1201 : vector<8x128xf32>
    %1206 = arith.subf %1198, %1204 : vector<8x128xf32>
    %1207 = arith.mulf %1111, %1125 : vector<8x128xf32>
    %1208 = arith.mulf %1112, %1126 : vector<8x128xf32>
    %1209 = arith.subf %1207, %1208 : vector<8x128xf32>
    %1210 = arith.mulf %1111, %1126 : vector<8x128xf32>
    %1211 = arith.mulf %1112, %1125 : vector<8x128xf32>
    %1212 = arith.addf %1210, %1211 : vector<8x128xf32>
    %1213 = arith.mulf %1113, %1123 : vector<8x128xf32>
    %1214 = arith.mulf %1114, %1124 : vector<8x128xf32>
    %1215 = arith.subf %1213, %1214 : vector<8x128xf32>
    %1216 = arith.mulf %1113, %1124 : vector<8x128xf32>
    %1217 = arith.mulf %1114, %1123 : vector<8x128xf32>
    %1218 = arith.addf %1216, %1217 : vector<8x128xf32>
    %1219 = arith.subf %1209, %1215 : vector<8x128xf32>
    %1220 = arith.subf %1212, %1218 : vector<8x128xf32>
    %cst_420 = arith.constant 0.000000e+00 : f32
    %1221 = vector.broadcast %cst_420 : f32 to vector<8x128xf32>
    %1222 = arith.subf %1221, %1219 : vector<8x128xf32>
    %cst_421 = arith.constant 0.000000e+00 : f32
    %1223 = vector.broadcast %cst_421 : f32 to vector<8x128xf32>
    %1224 = arith.subf %1223, %1220 : vector<8x128xf32>
    %1225 = arith.mulf %1113, %1121 : vector<8x128xf32>
    %1226 = arith.mulf %1114, %1122 : vector<8x128xf32>
    %1227 = arith.subf %1225, %1226 : vector<8x128xf32>
    %1228 = arith.mulf %1113, %1122 : vector<8x128xf32>
    %1229 = arith.mulf %1114, %1121 : vector<8x128xf32>
    %1230 = arith.addf %1228, %1229 : vector<8x128xf32>
    %1231 = arith.mulf %1115, %1119 : vector<8x128xf32>
    %1232 = arith.mulf %1116, %1120 : vector<8x128xf32>
    %1233 = arith.subf %1231, %1232 : vector<8x128xf32>
    %1234 = arith.mulf %1115, %1120 : vector<8x128xf32>
    %1235 = arith.mulf %1116, %1119 : vector<8x128xf32>
    %1236 = arith.addf %1234, %1235 : vector<8x128xf32>
    %1237 = arith.subf %1227, %1233 : vector<8x128xf32>
    %1238 = arith.subf %1230, %1236 : vector<8x128xf32>
    %1239 = arith.mulf %1111, %1121 : vector<8x128xf32>
    %1240 = arith.mulf %1112, %1122 : vector<8x128xf32>
    %1241 = arith.subf %1239, %1240 : vector<8x128xf32>
    %1242 = arith.mulf %1111, %1122 : vector<8x128xf32>
    %1243 = arith.mulf %1112, %1121 : vector<8x128xf32>
    %1244 = arith.addf %1242, %1243 : vector<8x128xf32>
    %1245 = arith.mulf %1115, %1117 : vector<8x128xf32>
    %1246 = arith.mulf %1116, %1118 : vector<8x128xf32>
    %1247 = arith.subf %1245, %1246 : vector<8x128xf32>
    %1248 = arith.mulf %1115, %1118 : vector<8x128xf32>
    %1249 = arith.mulf %1116, %1117 : vector<8x128xf32>
    %1250 = arith.addf %1248, %1249 : vector<8x128xf32>
    %1251 = arith.subf %1241, %1247 : vector<8x128xf32>
    %1252 = arith.subf %1244, %1250 : vector<8x128xf32>
    %cst_422 = arith.constant 0.000000e+00 : f32
    %1253 = vector.broadcast %cst_422 : f32 to vector<8x128xf32>
    %1254 = arith.subf %1253, %1251 : vector<8x128xf32>
    %cst_423 = arith.constant 0.000000e+00 : f32
    %1255 = vector.broadcast %cst_423 : f32 to vector<8x128xf32>
    %1256 = arith.subf %1255, %1252 : vector<8x128xf32>
    %1257 = arith.mulf %1111, %1119 : vector<8x128xf32>
    %1258 = arith.mulf %1112, %1120 : vector<8x128xf32>
    %1259 = arith.subf %1257, %1258 : vector<8x128xf32>
    %1260 = arith.mulf %1111, %1120 : vector<8x128xf32>
    %1261 = arith.mulf %1112, %1119 : vector<8x128xf32>
    %1262 = arith.addf %1260, %1261 : vector<8x128xf32>
    %1263 = arith.mulf %1113, %1117 : vector<8x128xf32>
    %1264 = arith.mulf %1114, %1118 : vector<8x128xf32>
    %1265 = arith.subf %1263, %1264 : vector<8x128xf32>
    %1266 = arith.mulf %1113, %1118 : vector<8x128xf32>
    %1267 = arith.mulf %1114, %1117 : vector<8x128xf32>
    %1268 = arith.addf %1266, %1267 : vector<8x128xf32>
    %1269 = arith.subf %1259, %1265 : vector<8x128xf32>
    %1270 = arith.subf %1262, %1268 : vector<8x128xf32>
    %1271 = arith.mulf %1111, %1141 : vector<8x128xf32>
    %1272 = arith.mulf %1112, %1142 : vector<8x128xf32>
    %1273 = arith.subf %1271, %1272 : vector<8x128xf32>
    %1274 = arith.mulf %1111, %1142 : vector<8x128xf32>
    %1275 = arith.mulf %1112, %1141 : vector<8x128xf32>
    %1276 = arith.addf %1274, %1275 : vector<8x128xf32>
    %1277 = arith.mulf %1113, %1158 : vector<8x128xf32>
    %1278 = arith.mulf %1114, %1160 : vector<8x128xf32>
    %1279 = arith.subf %1277, %1278 : vector<8x128xf32>
    %1280 = arith.mulf %1113, %1160 : vector<8x128xf32>
    %1281 = arith.mulf %1114, %1158 : vector<8x128xf32>
    %1282 = arith.addf %1280, %1281 : vector<8x128xf32>
    %1283 = arith.mulf %1115, %1173 : vector<8x128xf32>
    %1284 = arith.mulf %1116, %1174 : vector<8x128xf32>
    %1285 = arith.subf %1283, %1284 : vector<8x128xf32>
    %1286 = arith.mulf %1115, %1174 : vector<8x128xf32>
    %1287 = arith.mulf %1116, %1173 : vector<8x128xf32>
    %1288 = arith.addf %1286, %1287 : vector<8x128xf32>
    %1289 = arith.addf %1273, %1279 : vector<8x128xf32>
    %1290 = arith.addf %1276, %1282 : vector<8x128xf32>
    %1291 = arith.addf %1289, %1285 : vector<8x128xf32>
    %1292 = arith.addf %1290, %1288 : vector<8x128xf32>
    %1293 = arith.mulf %1291, %1291 : vector<8x128xf32>
    %1294 = arith.mulf %1292, %1292 : vector<8x128xf32>
    %1295 = arith.addf %1293, %1294 : vector<8x128xf32>
    %1296 = tpu.reciprocal %1295 {approx = true} : vector<8x128xf32> -> vector<8x128xf32>
    %1297 = arith.mulf %1295, %1296 : vector<8x128xf32>
    %cst_424 = arith.constant 2.000000e+00 : f32
    %1298 = vector.broadcast %cst_424 : f32 to vector<8x128xf32>
    %1299 = arith.subf %1298, %1297 : vector<8x128xf32>
    %1300 = arith.mulf %1296, %1299 : vector<8x128xf32>
    %1301 = arith.mulf %1291, %1300 : vector<8x128xf32>
    %cst_425 = arith.constant 0.000000e+00 : f32
    %1302 = vector.broadcast %cst_425 : f32 to vector<8x128xf32>
    %1303 = arith.subf %1302, %1292 : vector<8x128xf32>
    %1304 = arith.mulf %1303, %1300 : vector<8x128xf32>
    %c8_426 = arith.constant 8 : index
    %c0_427 = arith.constant 0 : index
    %1305 = vector.load %arg6[%c8_426, %c0_427] : memref<144x128xf32, #tpu.memory_space<vmem>>, vector<8x128xf32>
    %c80_428 = arith.constant 80 : index
    %c0_429 = arith.constant 0 : index
    %1306 = vector.load %arg6[%c80_428, %c0_429] : memref<144x128xf32, #tpu.memory_space<vmem>>, vector<8x128xf32>
    %1307 = arith.mulf %1141, %1305 : vector<8x128xf32>
    %1308 = arith.mulf %1142, %1306 : vector<8x128xf32>
    %1309 = arith.subf %1307, %1308 : vector<8x128xf32>
    %1310 = arith.mulf %1141, %1306 : vector<8x128xf32>
    %1311 = arith.mulf %1142, %1305 : vector<8x128xf32>
    %1312 = arith.addf %1310, %1311 : vector<8x128xf32>
    %c32_430 = arith.constant 32 : index
    %c0_431 = arith.constant 0 : index
    %1313 = vector.load %arg6[%c32_430, %c0_431] : memref<144x128xf32, #tpu.memory_space<vmem>>, vector<8x128xf32>
    %c104_432 = arith.constant 104 : index
    %c0_433 = arith.constant 0 : index
    %1314 = vector.load %arg6[%c104_432, %c0_433] : memref<144x128xf32, #tpu.memory_space<vmem>>, vector<8x128xf32>
    %1315 = arith.mulf %1190, %1313 : vector<8x128xf32>
    %1316 = arith.mulf %1192, %1314 : vector<8x128xf32>
    %1317 = arith.subf %1315, %1316 : vector<8x128xf32>
    %1318 = arith.mulf %1190, %1314 : vector<8x128xf32>
    %1319 = arith.mulf %1192, %1313 : vector<8x128xf32>
    %1320 = arith.addf %1318, %1319 : vector<8x128xf32>
    %c56_434 = arith.constant 56 : index
    %c0_435 = arith.constant 0 : index
    %1321 = vector.load %arg6[%c56_434, %c0_435] : memref<144x128xf32, #tpu.memory_space<vmem>>, vector<8x128xf32>
    %c128_436 = arith.constant 128 : index
    %c0_437 = arith.constant 0 : index
    %1322 = vector.load %arg6[%c128_436, %c0_437] : memref<144x128xf32, #tpu.memory_space<vmem>>, vector<8x128xf32>
    %1323 = arith.mulf %1237, %1321 : vector<8x128xf32>
    %1324 = arith.mulf %1238, %1322 : vector<8x128xf32>
    %1325 = arith.subf %1323, %1324 : vector<8x128xf32>
    %1326 = arith.mulf %1237, %1322 : vector<8x128xf32>
    %1327 = arith.mulf %1238, %1321 : vector<8x128xf32>
    %1328 = arith.addf %1326, %1327 : vector<8x128xf32>
    %1329 = arith.addf %1309, %1317 : vector<8x128xf32>
    %1330 = arith.addf %1312, %1320 : vector<8x128xf32>
    %1331 = arith.addf %1329, %1325 : vector<8x128xf32>
    %1332 = arith.addf %1330, %1328 : vector<8x128xf32>
    %1333 = arith.mulf %1331, %1301 : vector<8x128xf32>
    %1334 = arith.mulf %1332, %1304 : vector<8x128xf32>
    %1335 = arith.subf %1333, %1334 : vector<8x128xf32>
    %1336 = arith.mulf %1331, %1304 : vector<8x128xf32>
    %1337 = arith.mulf %1332, %1301 : vector<8x128xf32>
    %1338 = arith.addf %1336, %1337 : vector<8x128xf32>
    %c0_438 = arith.constant 0 : index
    %c0_439 = arith.constant 0 : index
    %1339 = vector.load %arg6[%c0_438, %c0_439] : memref<144x128xf32, #tpu.memory_space<vmem>>, vector<8x128xf32>
    %c72_440 = arith.constant 72 : index
    %c0_441 = arith.constant 0 : index
    %1340 = vector.load %arg6[%c72_440, %c0_441] : memref<144x128xf32, #tpu.memory_space<vmem>>, vector<8x128xf32>
    %1341 = arith.mulf %1158, %1339 : vector<8x128xf32>
    %1342 = arith.mulf %1160, %1340 : vector<8x128xf32>
    %1343 = arith.subf %1341, %1342 : vector<8x128xf32>
    %1344 = arith.mulf %1158, %1340 : vector<8x128xf32>
    %1345 = arith.mulf %1160, %1339 : vector<8x128xf32>
    %1346 = arith.addf %1344, %1345 : vector<8x128xf32>
    %c24_442 = arith.constant 24 : index
    %c0_443 = arith.constant 0 : index
    %1347 = vector.load %arg6[%c24_442, %c0_443] : memref<144x128xf32, #tpu.memory_space<vmem>>, vector<8x128xf32>
    %c96_444 = arith.constant 96 : index
    %c0_445 = arith.constant 0 : index
    %1348 = vector.load %arg6[%c96_444, %c0_445] : memref<144x128xf32, #tpu.memory_space<vmem>>, vector<8x128xf32>
    %1349 = arith.mulf %1205, %1347 : vector<8x128xf32>
    %1350 = arith.mulf %1206, %1348 : vector<8x128xf32>
    %1351 = arith.subf %1349, %1350 : vector<8x128xf32>
    %1352 = arith.mulf %1205, %1348 : vector<8x128xf32>
    %1353 = arith.mulf %1206, %1347 : vector<8x128xf32>
    %1354 = arith.addf %1352, %1353 : vector<8x128xf32>
    %c48_446 = arith.constant 48 : index
    %c0_447 = arith.constant 0 : index
    %1355 = vector.load %arg6[%c48_446, %c0_447] : memref<144x128xf32, #tpu.memory_space<vmem>>, vector<8x128xf32>
    %c120_448 = arith.constant 120 : index
    %c0_449 = arith.constant 0 : index
    %1356 = vector.load %arg6[%c120_448, %c0_449] : memref<144x128xf32, #tpu.memory_space<vmem>>, vector<8x128xf32>
    %1357 = arith.mulf %1254, %1355 : vector<8x128xf32>
    %1358 = arith.mulf %1256, %1356 : vector<8x128xf32>
    %1359 = arith.subf %1357, %1358 : vector<8x128xf32>
    %1360 = arith.mulf %1254, %1356 : vector<8x128xf32>
    %1361 = arith.mulf %1256, %1355 : vector<8x128xf32>
    %1362 = arith.addf %1360, %1361 : vector<8x128xf32>
    %1363 = arith.addf %1343, %1351 : vector<8x128xf32>
    %1364 = arith.addf %1346, %1354 : vector<8x128xf32>
    %1365 = arith.addf %1363, %1359 : vector<8x128xf32>
    %1366 = arith.addf %1364, %1362 : vector<8x128xf32>
    %1367 = arith.mulf %1365, %1301 : vector<8x128xf32>
    %1368 = arith.mulf %1366, %1304 : vector<8x128xf32>
    %1369 = arith.subf %1367, %1368 : vector<8x128xf32>
    %1370 = arith.mulf %1365, %1304 : vector<8x128xf32>
    %1371 = arith.mulf %1366, %1301 : vector<8x128xf32>
    %1372 = arith.addf %1370, %1371 : vector<8x128xf32>
    %1373 = arith.subf %1335, %1369 : vector<8x128xf32>
    %cst_450 = arith.constant 5.000000e-01 : f32
    %1374 = vector.broadcast %cst_450 : f32 to vector<8x128xf32>
    %1375 = arith.mulf %1373, %1374 : vector<8x128xf32>
    %1376 = arith.addf %1338, %1372 : vector<8x128xf32>
    %cst_451 = arith.constant 5.000000e-01 : f32
    %1377 = vector.broadcast %cst_451 : f32 to vector<8x128xf32>
    %1378 = arith.mulf %1376, %1377 : vector<8x128xf32>
    %c296_452 = arith.constant 296 : index
    %c0_453 = arith.constant 0 : index
    %1379 = vector.load %arg5[%c296_452, %c0_453] : memref<576x128xf32, #tpu.memory_space<vmem>>, vector<8x128xf32>
    tpu.vector_store %arg5[%c296_452, %c0_453], %1375 {strides = array<i32>} : memref<576x128xf32, #tpu.memory_space<vmem>>, vector<8x128xf32>,
    %c368_454 = arith.constant 368 : index
    %c0_455 = arith.constant 0 : index
    %1380 = vector.load %arg5[%c368_454, %c0_455] : memref<576x128xf32, #tpu.memory_space<vmem>>, vector<8x128xf32>
    tpu.vector_store %arg5[%c368_454, %c0_455], %1378 {strides = array<i32>} : memref<576x128xf32, #tpu.memory_space<vmem>>, vector<8x128xf32>,
    %cst_456 = arith.constant 0.000000e+00 : f32
    %1381 = vector.broadcast %cst_456 : f32 to vector<8x128xf32>
    %1382 = arith.subf %1381, %1375 : vector<8x128xf32>
    %c312 = arith.constant 312 : index
    %c0_457 = arith.constant 0 : index
    %1383 = vector.load %arg5[%c312, %c0_457] : memref<576x128xf32, #tpu.memory_space<vmem>>, vector<8x128xf32>
    tpu.vector_store %arg5[%c312, %c0_457], %1382 {strides = array<i32>} : memref<576x128xf32, #tpu.memory_space<vmem>>, vector<8x128xf32>,
    %c384_458 = arith.constant 384 : index
    %c0_459 = arith.constant 0 : index
    %1384 = vector.load %arg5[%c384_458, %c0_459] : memref<576x128xf32, #tpu.memory_space<vmem>>, vector<8x128xf32>
    tpu.vector_store %arg5[%c384_458, %c0_459], %1378 {strides = array<i32>} : memref<576x128xf32, #tpu.memory_space<vmem>>, vector<8x128xf32>,
    %c16_460 = arith.constant 16 : index
    %c0_461 = arith.constant 0 : index
    %1385 = vector.load %arg6[%c16_460, %c0_461] : memref<144x128xf32, #tpu.memory_space<vmem>>, vector<8x128xf32>
    %c88_462 = arith.constant 88 : index
    %c0_463 = arith.constant 0 : index
    %1386 = vector.load %arg6[%c88_462, %c0_463] : memref<144x128xf32, #tpu.memory_space<vmem>>, vector<8x128xf32>
    %1387 = arith.mulf %1141, %1385 : vector<8x128xf32>
    %1388 = arith.mulf %1142, %1386 : vector<8x128xf32>
    %1389 = arith.subf %1387, %1388 : vector<8x128xf32>
    %1390 = arith.mulf %1141, %1386 : vector<8x128xf32>
    %1391 = arith.mulf %1142, %1385 : vector<8x128xf32>
    %1392 = arith.addf %1390, %1391 : vector<8x128xf32>
    %c40_464 = arith.constant 40 : index
    %c0_465 = arith.constant 0 : index
    %1393 = vector.load %arg6[%c40_464, %c0_465] : memref<144x128xf32, #tpu.memory_space<vmem>>, vector<8x128xf32>
    %c112_466 = arith.constant 112 : index
    %c0_467 = arith.constant 0 : index
    %1394 = vector.load %arg6[%c112_466, %c0_467] : memref<144x128xf32, #tpu.memory_space<vmem>>, vector<8x128xf32>
    %1395 = arith.mulf %1190, %1393 : vector<8x128xf32>
    %1396 = arith.mulf %1192, %1394 : vector<8x128xf32>
    %1397 = arith.subf %1395, %1396 : vector<8x128xf32>
    %1398 = arith.mulf %1190, %1394 : vector<8x128xf32>
    %1399 = arith.mulf %1192, %1393 : vector<8x128xf32>
    %1400 = arith.addf %1398, %1399 : vector<8x128xf32>
    %c64_468 = arith.constant 64 : index
    %c0_469 = arith.constant 0 : index
    %1401 = vector.load %arg6[%c64_468, %c0_469] : memref<144x128xf32, #tpu.memory_space<vmem>>, vector<8x128xf32>
    %c136_470 = arith.constant 136 : index
    %c0_471 = arith.constant 0 : index
    %1402 = vector.load %arg6[%c136_470, %c0_471] : memref<144x128xf32, #tpu.memory_space<vmem>>, vector<8x128xf32>
    %1403 = arith.mulf %1237, %1401 : vector<8x128xf32>
    %1404 = arith.mulf %1238, %1402 : vector<8x128xf32>
    %1405 = arith.subf %1403, %1404 : vector<8x128xf32>
    %1406 = arith.mulf %1237, %1402 : vector<8x128xf32>
    %1407 = arith.mulf %1238, %1401 : vector<8x128xf32>
    %1408 = arith.addf %1406, %1407 : vector<8x128xf32>
    %1409 = arith.addf %1389, %1397 : vector<8x128xf32>
    %1410 = arith.addf %1392, %1400 : vector<8x128xf32>
    %1411 = arith.addf %1409, %1405 : vector<8x128xf32>
    %1412 = arith.addf %1410, %1408 : vector<8x128xf32>
    %1413 = arith.mulf %1411, %1301 : vector<8x128xf32>
    %1414 = arith.mulf %1412, %1304 : vector<8x128xf32>
    %1415 = arith.subf %1413, %1414 : vector<8x128xf32>
    %1416 = arith.mulf %1411, %1304 : vector<8x128xf32>
    %1417 = arith.mulf %1412, %1301 : vector<8x128xf32>
    %1418 = arith.addf %1416, %1417 : vector<8x128xf32>
    %c0_472 = arith.constant 0 : index
    %c0_473 = arith.constant 0 : index
    %1419 = vector.load %arg6[%c0_472, %c0_473] : memref<144x128xf32, #tpu.memory_space<vmem>>, vector<8x128xf32>
    %c72_474 = arith.constant 72 : index
    %c0_475 = arith.constant 0 : index
    %1420 = vector.load %arg6[%c72_474, %c0_475] : memref<144x128xf32, #tpu.memory_space<vmem>>, vector<8x128xf32>
    %1421 = arith.mulf %1173, %1419 : vector<8x128xf32>
    %1422 = arith.mulf %1174, %1420 : vector<8x128xf32>
    %1423 = arith.subf %1421, %1422 : vector<8x128xf32>
    %1424 = arith.mulf %1173, %1420 : vector<8x128xf32>
    %1425 = arith.mulf %1174, %1419 : vector<8x128xf32>
    %1426 = arith.addf %1424, %1425 : vector<8x128xf32>
    %c24_476 = arith.constant 24 : index
    %c0_477 = arith.constant 0 : index
    %1427 = vector.load %arg6[%c24_476, %c0_477] : memref<144x128xf32, #tpu.memory_space<vmem>>, vector<8x128xf32>
    %c96_478 = arith.constant 96 : index
    %c0_479 = arith.constant 0 : index
    %1428 = vector.load %arg6[%c96_478, %c0_479] : memref<144x128xf32, #tpu.memory_space<vmem>>, vector<8x128xf32>
    %1429 = arith.mulf %1222, %1427 : vector<8x128xf32>
    %1430 = arith.mulf %1224, %1428 : vector<8x128xf32>
    %1431 = arith.subf %1429, %1430 : vector<8x128xf32>
    %1432 = arith.mulf %1222, %1428 : vector<8x128xf32>
    %1433 = arith.mulf %1224, %1427 : vector<8x128xf32>
    %1434 = arith.addf %1432, %1433 : vector<8x128xf32>
    %c48_480 = arith.constant 48 : index
    %c0_481 = arith.constant 0 : index
    %1435 = vector.load %arg6[%c48_480, %c0_481] : memref<144x128xf32, #tpu.memory_space<vmem>>, vector<8x128xf32>
    %c120_482 = arith.constant 120 : index
    %c0_483 = arith.constant 0 : index
    %1436 = vector.load %arg6[%c120_482, %c0_483] : memref<144x128xf32, #tpu.memory_space<vmem>>, vector<8x128xf32>
    %1437 = arith.mulf %1269, %1435 : vector<8x128xf32>
    %1438 = arith.mulf %1270, %1436 : vector<8x128xf32>
    %1439 = arith.subf %1437, %1438 : vector<8x128xf32>
    %1440 = arith.mulf %1269, %1436 : vector<8x128xf32>
    %1441 = arith.mulf %1270, %1435 : vector<8x128xf32>
    %1442 = arith.addf %1440, %1441 : vector<8x128xf32>
    %1443 = arith.addf %1423, %1431 : vector<8x128xf32>
    %1444 = arith.addf %1426, %1434 : vector<8x128xf32>
    %1445 = arith.addf %1443, %1439 : vector<8x128xf32>
    %1446 = arith.addf %1444, %1442 : vector<8x128xf32>
    %1447 = arith.mulf %1445, %1301 : vector<8x128xf32>
    %1448 = arith.mulf %1446, %1304 : vector<8x128xf32>
    %1449 = arith.subf %1447, %1448 : vector<8x128xf32>
    %1450 = arith.mulf %1445, %1304 : vector<8x128xf32>
    %1451 = arith.mulf %1446, %1301 : vector<8x128xf32>
    %1452 = arith.addf %1450, %1451 : vector<8x128xf32>
    %1453 = arith.subf %1415, %1449 : vector<8x128xf32>
    %cst_484 = arith.constant 5.000000e-01 : f32
    %1454 = vector.broadcast %cst_484 : f32 to vector<8x128xf32>
    %1455 = arith.mulf %1453, %1454 : vector<8x128xf32>
    %1456 = arith.addf %1418, %1452 : vector<8x128xf32>
    %cst_485 = arith.constant 5.000000e-01 : f32
    %1457 = vector.broadcast %cst_485 : f32 to vector<8x128xf32>
    %1458 = arith.mulf %1456, %1457 : vector<8x128xf32>
    %c304 = arith.constant 304 : index
    %c0_486 = arith.constant 0 : index
    %1459 = vector.load %arg5[%c304, %c0_486] : memref<576x128xf32, #tpu.memory_space<vmem>>, vector<8x128xf32>
    tpu.vector_store %arg5[%c304, %c0_486], %1455 {strides = array<i32>} : memref<576x128xf32, #tpu.memory_space<vmem>>, vector<8x128xf32>,
    %c376_487 = arith.constant 376 : index
    %c0_488 = arith.constant 0 : index
    %1460 = vector.load %arg5[%c376_487, %c0_488] : memref<576x128xf32, #tpu.memory_space<vmem>>, vector<8x128xf32>
    tpu.vector_store %arg5[%c376_487, %c0_488], %1458 {strides = array<i32>} : memref<576x128xf32, #tpu.memory_space<vmem>>, vector<8x128xf32>,
    %cst_489 = arith.constant 0.000000e+00 : f32
    %1461 = vector.broadcast %cst_489 : f32 to vector<8x128xf32>
    %1462 = arith.subf %1461, %1455 : vector<8x128xf32>
    %c336_490 = arith.constant 336 : index
    %c0_491 = arith.constant 0 : index
    %1463 = vector.load %arg5[%c336_490, %c0_491] : memref<576x128xf32, #tpu.memory_space<vmem>>, vector<8x128xf32>
    tpu.vector_store %arg5[%c336_490, %c0_491], %1462 {strides = array<i32>} : memref<576x128xf32, #tpu.memory_space<vmem>>, vector<8x128xf32>,
    %c408_492 = arith.constant 408 : index
    %c0_493 = arith.constant 0 : index
    %1464 = vector.load %arg5[%c408_492, %c0_493] : memref<576x128xf32, #tpu.memory_space<vmem>>, vector<8x128xf32>
    tpu.vector_store %arg5[%c408_492, %c0_493], %1458 {strides = array<i32>} : memref<576x128xf32, #tpu.memory_space<vmem>>, vector<8x128xf32>,
    %c16_494 = arith.constant 16 : index
    %c0_495 = arith.constant 0 : index
    %1465 = vector.load %arg6[%c16_494, %c0_495] : memref<144x128xf32, #tpu.memory_space<vmem>>, vector<8x128xf32>
    %c88_496 = arith.constant 88 : index
    %c0_497 = arith.constant 0 : index
    %1466 = vector.load %arg6[%c88_496, %c0_497] : memref<144x128xf32, #tpu.memory_space<vmem>>, vector<8x128xf32>
    %1467 = arith.mulf %1158, %1465 : vector<8x128xf32>
    %1468 = arith.mulf %1160, %1466 : vector<8x128xf32>
    %1469 = arith.subf %1467, %1468 : vector<8x128xf32>
    %1470 = arith.mulf %1158, %1466 : vector<8x128xf32>
    %1471 = arith.mulf %1160, %1465 : vector<8x128xf32>
    %1472 = arith.addf %1470, %1471 : vector<8x128xf32>
    %c40_498 = arith.constant 40 : index
    %c0_499 = arith.constant 0 : index
    %1473 = vector.load %arg6[%c40_498, %c0_499] : memref<144x128xf32, #tpu.memory_space<vmem>>, vector<8x128xf32>
    %c112_500 = arith.constant 112 : index
    %c0_501 = arith.constant 0 : index
    %1474 = vector.load %arg6[%c112_500, %c0_501] : memref<144x128xf32, #tpu.memory_space<vmem>>, vector<8x128xf32>
    %1475 = arith.mulf %1205, %1473 : vector<8x128xf32>
    %1476 = arith.mulf %1206, %1474 : vector<8x128xf32>
    %1477 = arith.subf %1475, %1476 : vector<8x128xf32>
    %1478 = arith.mulf %1205, %1474 : vector<8x128xf32>
    %1479 = arith.mulf %1206, %1473 : vector<8x128xf32>
    %1480 = arith.addf %1478, %1479 : vector<8x128xf32>
    %c64_502 = arith.constant 64 : index
    %c0_503 = arith.constant 0 : index
    %1481 = vector.load %arg6[%c64_502, %c0_503] : memref<144x128xf32, #tpu.memory_space<vmem>>, vector<8x128xf32>
    %c136_504 = arith.constant 136 : index
    %c0_505 = arith.constant 0 : index
    %1482 = vector.load %arg6[%c136_504, %c0_505] : memref<144x128xf32, #tpu.memory_space<vmem>>, vector<8x128xf32>
    %1483 = arith.mulf %1254, %1481 : vector<8x128xf32>
    %1484 = arith.mulf %1256, %1482 : vector<8x128xf32>
    %1485 = arith.subf %1483, %1484 : vector<8x128xf32>
    %1486 = arith.mulf %1254, %1482 : vector<8x128xf32>
    %1487 = arith.mulf %1256, %1481 : vector<8x128xf32>
    %1488 = arith.addf %1486, %1487 : vector<8x128xf32>
    %1489 = arith.addf %1469, %1477 : vector<8x128xf32>
    %1490 = arith.addf %1472, %1480 : vector<8x128xf32>
    %1491 = arith.addf %1489, %1485 : vector<8x128xf32>
    %1492 = arith.addf %1490, %1488 : vector<8x128xf32>
    %1493 = arith.mulf %1491, %1301 : vector<8x128xf32>
    %1494 = arith.mulf %1492, %1304 : vector<8x128xf32>
    %1495 = arith.subf %1493, %1494 : vector<8x128xf32>
    %1496 = arith.mulf %1491, %1304 : vector<8x128xf32>
    %1497 = arith.mulf %1492, %1301 : vector<8x128xf32>
    %1498 = arith.addf %1496, %1497 : vector<8x128xf32>
    %c8_506 = arith.constant 8 : index
    %c0_507 = arith.constant 0 : index
    %1499 = vector.load %arg6[%c8_506, %c0_507] : memref<144x128xf32, #tpu.memory_space<vmem>>, vector<8x128xf32>
    %c80_508 = arith.constant 80 : index
    %c0_509 = arith.constant 0 : index
    %1500 = vector.load %arg6[%c80_508, %c0_509] : memref<144x128xf32, #tpu.memory_space<vmem>>, vector<8x128xf32>
    %1501 = arith.mulf %1173, %1499 : vector<8x128xf32>
    %1502 = arith.mulf %1174, %1500 : vector<8x128xf32>
    %1503 = arith.subf %1501, %1502 : vector<8x128xf32>
    %1504 = arith.mulf %1173, %1500 : vector<8x128xf32>
    %1505 = arith.mulf %1174, %1499 : vector<8x128xf32>
    %1506 = arith.addf %1504, %1505 : vector<8x128xf32>
    %c32_510 = arith.constant 32 : index
    %c0_511 = arith.constant 0 : index
    %1507 = vector.load %arg6[%c32_510, %c0_511] : memref<144x128xf32, #tpu.memory_space<vmem>>, vector<8x128xf32>
    %c104_512 = arith.constant 104 : index
    %c0_513 = arith.constant 0 : index
    %1508 = vector.load %arg6[%c104_512, %c0_513] : memref<144x128xf32, #tpu.memory_space<vmem>>, vector<8x128xf32>
    %1509 = arith.mulf %1222, %1507 : vector<8x128xf32>
    %1510 = arith.mulf %1224, %1508 : vector<8x128xf32>
    %1511 = arith.subf %1509, %1510 : vector<8x128xf32>
    %1512 = arith.mulf %1222, %1508 : vector<8x128xf32>
    %1513 = arith.mulf %1224, %1507 : vector<8x128xf32>
    %1514 = arith.addf %1512, %1513 : vector<8x128xf32>
    %c56_514 = arith.constant 56 : index
    %c0_515 = arith.constant 0 : index
    %1515 = vector.load %arg6[%c56_514, %c0_515] : memref<144x128xf32, #tpu.memory_space<vmem>>, vector<8x128xf32>
    %c128_516 = arith.constant 128 : index
    %c0_517 = arith.constant 0 : index
    %1516 = vector.load %arg6[%c128_516, %c0_517] : memref<144x128xf32, #tpu.memory_space<vmem>>, vector<8x128xf32>
    %1517 = arith.mulf %1269, %1515 : vector<8x128xf32>
    %1518 = arith.mulf %1270, %1516 : vector<8x128xf32>
    %1519 = arith.subf %1517, %1518 : vector<8x128xf32>
    %1520 = arith.mulf %1269, %1516 : vector<8x128xf32>
    %1521 = arith.mulf %1270, %1515 : vector<8x128xf32>
    %1522 = arith.addf %1520, %1521 : vector<8x128xf32>
    %1523 = arith.addf %1503, %1511 : vector<8x128xf32>
    %1524 = arith.addf %1506, %1514 : vector<8x128xf32>
    %1525 = arith.addf %1523, %1519 : vector<8x128xf32>
    %1526 = arith.addf %1524, %1522 : vector<8x128xf32>
    %1527 = arith.mulf %1525, %1301 : vector<8x128xf32>
    %1528 = arith.mulf %1526, %1304 : vector<8x128xf32>
    %1529 = arith.subf %1527, %1528 : vector<8x128xf32>
    %1530 = arith.mulf %1525, %1304 : vector<8x128xf32>
    %1531 = arith.mulf %1526, %1301 : vector<8x128xf32>
    %1532 = arith.addf %1530, %1531 : vector<8x128xf32>
    %1533 = arith.subf %1495, %1529 : vector<8x128xf32>
    %cst_518 = arith.constant 5.000000e-01 : f32
    %1534 = vector.broadcast %cst_518 : f32 to vector<8x128xf32>
    %1535 = arith.mulf %1533, %1534 : vector<8x128xf32>
    %1536 = arith.addf %1498, %1532 : vector<8x128xf32>
    %cst_519 = arith.constant 5.000000e-01 : f32
    %1537 = vector.broadcast %cst_519 : f32 to vector<8x128xf32>
    %1538 = arith.mulf %1536, %1537 : vector<8x128xf32>
    %c328_520 = arith.constant 328 : index
    %c0_521 = arith.constant 0 : index
    %1539 = vector.load %arg5[%c328_520, %c0_521] : memref<576x128xf32, #tpu.memory_space<vmem>>, vector<8x128xf32>
    tpu.vector_store %arg5[%c328_520, %c0_521], %1535 {strides = array<i32>} : memref<576x128xf32, #tpu.memory_space<vmem>>, vector<8x128xf32>,
    %c400_522 = arith.constant 400 : index
    %c0_523 = arith.constant 0 : index
    %1540 = vector.load %arg5[%c400_522, %c0_523] : memref<576x128xf32, #tpu.memory_space<vmem>>, vector<8x128xf32>
    tpu.vector_store %arg5[%c400_522, %c0_523], %1538 {strides = array<i32>} : memref<576x128xf32, #tpu.memory_space<vmem>>, vector<8x128xf32>,
    %cst_524 = arith.constant 0.000000e+00 : f32
    %1541 = vector.broadcast %cst_524 : f32 to vector<8x128xf32>
    %1542 = arith.subf %1541, %1535 : vector<8x128xf32>
    %c344_525 = arith.constant 344 : index
    %c0_526 = arith.constant 0 : index
    %1543 = vector.load %arg5[%c344_525, %c0_526] : memref<576x128xf32, #tpu.memory_space<vmem>>, vector<8x128xf32>
    tpu.vector_store %arg5[%c344_525, %c0_526], %1542 {strides = array<i32>} : memref<576x128xf32, #tpu.memory_space<vmem>>, vector<8x128xf32>,
    %c416_527 = arith.constant 416 : index
    %c0_528 = arith.constant 0 : index
    %1544 = vector.load %arg5[%c416_527, %c0_528] : memref<576x128xf32, #tpu.memory_space<vmem>>, vector<8x128xf32>
    tpu.vector_store %arg5[%c416_527, %c0_528], %1538 {strides = array<i32>} : memref<576x128xf32, #tpu.memory_space<vmem>>, vector<8x128xf32>,
    %c0_529 = arith.constant 0 : index
    %c0_530 = arith.constant 0 : index
    %1545 = vector.load %arg6[%c0_529, %c0_530] : memref<144x128xf32, #tpu.memory_space<vmem>>, vector<8x128xf32>
    %c72_531 = arith.constant 72 : index
    %c0_532 = arith.constant 0 : index
    %1546 = vector.load %arg6[%c72_531, %c0_532] : memref<144x128xf32, #tpu.memory_space<vmem>>, vector<8x128xf32>
    %1547 = arith.mulf %1141, %1545 : vector<8x128xf32>
    %1548 = arith.mulf %1142, %1546 : vector<8x128xf32>
    %1549 = arith.subf %1547, %1548 : vector<8x128xf32>
    %1550 = arith.mulf %1141, %1546 : vector<8x128xf32>
    %1551 = arith.mulf %1142, %1545 : vector<8x128xf32>
    %1552 = arith.addf %1550, %1551 : vector<8x128xf32>
    %c24_533 = arith.constant 24 : index
    %c0_534 = arith.constant 0 : index
    %1553 = vector.load %arg6[%c24_533, %c0_534] : memref<144x128xf32, #tpu.memory_space<vmem>>, vector<8x128xf32>
    %c96_535 = arith.constant 96 : index
    %c0_536 = arith.constant 0 : index
    %1554 = vector.load %arg6[%c96_535, %c0_536] : memref<144x128xf32, #tpu.memory_space<vmem>>, vector<8x128xf32>
    %1555 = arith.mulf %1190, %1553 : vector<8x128xf32>
    %1556 = arith.mulf %1192, %1554 : vector<8x128xf32>
    %1557 = arith.subf %1555, %1556 : vector<8x128xf32>
    %1558 = arith.mulf %1190, %1554 : vector<8x128xf32>
    %1559 = arith.mulf %1192, %1553 : vector<8x128xf32>
    %1560 = arith.addf %1558, %1559 : vector<8x128xf32>
    %c48_537 = arith.constant 48 : index
    %c0_538 = arith.constant 0 : index
    %1561 = vector.load %arg6[%c48_537, %c0_538] : memref<144x128xf32, #tpu.memory_space<vmem>>, vector<8x128xf32>
    %c120_539 = arith.constant 120 : index
    %c0_540 = arith.constant 0 : index
    %1562 = vector.load %arg6[%c120_539, %c0_540] : memref<144x128xf32, #tpu.memory_space<vmem>>, vector<8x128xf32>
    %1563 = arith.mulf %1237, %1561 : vector<8x128xf32>
    %1564 = arith.mulf %1238, %1562 : vector<8x128xf32>
    %1565 = arith.subf %1563, %1564 : vector<8x128xf32>
    %1566 = arith.mulf %1237, %1562 : vector<8x128xf32>
    %1567 = arith.mulf %1238, %1561 : vector<8x128xf32>
    %1568 = arith.addf %1566, %1567 : vector<8x128xf32>
    %1569 = arith.addf %1549, %1557 : vector<8x128xf32>
    %1570 = arith.addf %1552, %1560 : vector<8x128xf32>
    %1571 = arith.addf %1569, %1565 : vector<8x128xf32>
    %1572 = arith.addf %1570, %1568 : vector<8x128xf32>
    %1573 = arith.mulf %1571, %1304 : vector<8x128xf32>
    %1574 = arith.mulf %1572, %1301 : vector<8x128xf32>
    %1575 = arith.addf %1573, %1574 : vector<8x128xf32>
    %c8_541 = arith.constant 8 : index
    %c0_542 = arith.constant 0 : index
    %1576 = vector.load %arg6[%c8_541, %c0_542] : memref<144x128xf32, #tpu.memory_space<vmem>>, vector<8x128xf32>
    %c80_543 = arith.constant 80 : index
    %c0_544 = arith.constant 0 : index
    %1577 = vector.load %arg6[%c80_543, %c0_544] : memref<144x128xf32, #tpu.memory_space<vmem>>, vector<8x128xf32>
    %1578 = arith.mulf %1158, %1576 : vector<8x128xf32>
    %1579 = arith.mulf %1160, %1577 : vector<8x128xf32>
    %1580 = arith.subf %1578, %1579 : vector<8x128xf32>
    %1581 = arith.mulf %1158, %1577 : vector<8x128xf32>
    %1582 = arith.mulf %1160, %1576 : vector<8x128xf32>
    %1583 = arith.addf %1581, %1582 : vector<8x128xf32>
    %c32_545 = arith.constant 32 : index
    %c0_546 = arith.constant 0 : index
    %1584 = vector.load %arg6[%c32_545, %c0_546] : memref<144x128xf32, #tpu.memory_space<vmem>>, vector<8x128xf32>
    %c104_547 = arith.constant 104 : index
    %c0_548 = arith.constant 0 : index
    %1585 = vector.load %arg6[%c104_547, %c0_548] : memref<144x128xf32, #tpu.memory_space<vmem>>, vector<8x128xf32>
    %1586 = arith.mulf %1205, %1584 : vector<8x128xf32>
    %1587 = arith.mulf %1206, %1585 : vector<8x128xf32>
    %1588 = arith.subf %1586, %1587 : vector<8x128xf32>
    %1589 = arith.mulf %1205, %1585 : vector<8x128xf32>
    %1590 = arith.mulf %1206, %1584 : vector<8x128xf32>
    %1591 = arith.addf %1589, %1590 : vector<8x128xf32>
    %c56_549 = arith.constant 56 : index
    %c0_550 = arith.constant 0 : index
    %1592 = vector.load %arg6[%c56_549, %c0_550] : memref<144x128xf32, #tpu.memory_space<vmem>>, vector<8x128xf32>
    %c128_551 = arith.constant 128 : index
    %c0_552 = arith.constant 0 : index
    %1593 = vector.load %arg6[%c128_551, %c0_552] : memref<144x128xf32, #tpu.memory_space<vmem>>, vector<8x128xf32>
    %1594 = arith.mulf %1254, %1592 : vector<8x128xf32>
    %1595 = arith.mulf %1256, %1593 : vector<8x128xf32>
    %1596 = arith.subf %1594, %1595 : vector<8x128xf32>
    %1597 = arith.mulf %1254, %1593 : vector<8x128xf32>
    %1598 = arith.mulf %1256, %1592 : vector<8x128xf32>
    %1599 = arith.addf %1597, %1598 : vector<8x128xf32>
    %1600 = arith.addf %1580, %1588 : vector<8x128xf32>
    %1601 = arith.addf %1583, %1591 : vector<8x128xf32>
    %1602 = arith.addf %1600, %1596 : vector<8x128xf32>
    %1603 = arith.addf %1601, %1599 : vector<8x128xf32>
    %1604 = arith.mulf %1602, %1304 : vector<8x128xf32>
    %1605 = arith.mulf %1603, %1301 : vector<8x128xf32>
    %1606 = arith.addf %1604, %1605 : vector<8x128xf32>
    %c16_553 = arith.constant 16 : index
    %c0_554 = arith.constant 0 : index
    %1607 = vector.load %arg6[%c16_553, %c0_554] : memref<144x128xf32, #tpu.memory_space<vmem>>, vector<8x128xf32>
    %c88_555 = arith.constant 88 : index
    %c0_556 = arith.constant 0 : index
    %1608 = vector.load %arg6[%c88_555, %c0_556] : memref<144x128xf32, #tpu.memory_space<vmem>>, vector<8x128xf32>
    %1609 = arith.mulf %1173, %1607 : vector<8x128xf32>
    %1610 = arith.mulf %1174, %1608 : vector<8x128xf32>
    %1611 = arith.subf %1609, %1610 : vector<8x128xf32>
    %1612 = arith.mulf %1173, %1608 : vector<8x128xf32>
    %1613 = arith.mulf %1174, %1607 : vector<8x128xf32>
    %1614 = arith.addf %1612, %1613 : vector<8x128xf32>
    %c40_557 = arith.constant 40 : index
    %c0_558 = arith.constant 0 : index
    %1615 = vector.load %arg6[%c40_557, %c0_558] : memref<144x128xf32, #tpu.memory_space<vmem>>, vector<8x128xf32>
    %c112_559 = arith.constant 112 : index
    %c0_560 = arith.constant 0 : index
    %1616 = vector.load %arg6[%c112_559, %c0_560] : memref<144x128xf32, #tpu.memory_space<vmem>>, vector<8x128xf32>
    %1617 = arith.mulf %1222, %1615 : vector<8x128xf32>
    %1618 = arith.mulf %1224, %1616 : vector<8x128xf32>
    %1619 = arith.subf %1617, %1618 : vector<8x128xf32>
    %1620 = arith.mulf %1222, %1616 : vector<8x128xf32>
    %1621 = arith.mulf %1224, %1615 : vector<8x128xf32>
    %1622 = arith.addf %1620, %1621 : vector<8x128xf32>
    %c64_561 = arith.constant 64 : index
    %c0_562 = arith.constant 0 : index
    %1623 = vector.load %arg6[%c64_561, %c0_562] : memref<144x128xf32, #tpu.memory_space<vmem>>, vector<8x128xf32>
    %c136_563 = arith.constant 136 : index
    %c0_564 = arith.constant 0 : index
    %1624 = vector.load %arg6[%c136_563, %c0_564] : memref<144x128xf32, #tpu.memory_space<vmem>>, vector<8x128xf32>
    %1625 = arith.mulf %1269, %1623 : vector<8x128xf32>
    %1626 = arith.mulf %1270, %1624 : vector<8x128xf32>
    %1627 = arith.subf %1625, %1626 : vector<8x128xf32>
    %1628 = arith.mulf %1269, %1624 : vector<8x128xf32>
    %1629 = arith.mulf %1270, %1623 : vector<8x128xf32>
    %1630 = arith.addf %1628, %1629 : vector<8x128xf32>
    %1631 = arith.addf %1611, %1619 : vector<8x128xf32>
    %1632 = arith.addf %1614, %1622 : vector<8x128xf32>
    %1633 = arith.addf %1631, %1627 : vector<8x128xf32>
    %1634 = arith.addf %1632, %1630 : vector<8x128xf32>
    %1635 = arith.mulf %1633, %1304 : vector<8x128xf32>
    %1636 = arith.mulf %1634, %1301 : vector<8x128xf32>
    %1637 = arith.addf %1635, %1636 : vector<8x128xf32>
    %1638 = arith.addf %1575, %1606 : vector<8x128xf32>
    %1639 = arith.addf %1638, %1637 : vector<8x128xf32>
    %cst_565 = arith.constant 0.333333343 : f32
    %1640 = vector.broadcast %cst_565 : f32 to vector<8x128xf32>
    %1641 = arith.mulf %1639, %1640 : vector<8x128xf32>
    %1642 = arith.subf %1575, %1641 : vector<8x128xf32>
    %c288_566 = arith.constant 288 : index
    %c0_567 = arith.constant 0 : index
    %1643 = vector.load %arg5[%c288_566, %c0_567] : memref<576x128xf32, #tpu.memory_space<vmem>>, vector<8x128xf32>
    tpu.vector_store %arg5[%c288_566, %c0_567], %0 {strides = array<i32>} : memref<576x128xf32, #tpu.memory_space<vmem>>, vector<8x128xf32>,
    %c360_568 = arith.constant 360 : index
    %c0_569 = arith.constant 0 : index
    %1644 = vector.load %arg5[%c360_568, %c0_569] : memref<576x128xf32, #tpu.memory_space<vmem>>, vector<8x128xf32>
    tpu.vector_store %arg5[%c360_568, %c0_569], %1642 {strides = array<i32>} : memref<576x128xf32, #tpu.memory_space<vmem>>, vector<8x128xf32>,
    %1645 = arith.subf %1606, %1641 : vector<8x128xf32>
    %c320_570 = arith.constant 320 : index
    %c0_571 = arith.constant 0 : index
    %1646 = vector.load %arg5[%c320_570, %c0_571] : memref<576x128xf32, #tpu.memory_space<vmem>>, vector<8x128xf32>
    tpu.vector_store %arg5[%c320_570, %c0_571], %0 {strides = array<i32>} : memref<576x128xf32, #tpu.memory_space<vmem>>, vector<8x128xf32>,
    %c392_572 = arith.constant 392 : index
    %c0_573 = arith.constant 0 : index
    %1647 = vector.load %arg5[%c392_572, %c0_573] : memref<576x128xf32, #tpu.memory_space<vmem>>, vector<8x128xf32>
    tpu.vector_store %arg5[%c392_572, %c0_573], %1645 {strides = array<i32>} : memref<576x128xf32, #tpu.memory_space<vmem>>, vector<8x128xf32>,
    %1648 = arith.subf %1637, %1641 : vector<8x128xf32>
    %c352_574 = arith.constant 352 : index
    %c0_575 = arith.constant 0 : index
    %1649 = vector.load %arg5[%c352_574, %c0_575] : memref<576x128xf32, #tpu.memory_space<vmem>>, vector<8x128xf32>
    tpu.vector_store %arg5[%c352_574, %c0_575], %0 {strides = array<i32>} : memref<576x128xf32, #tpu.memory_space<vmem>>, vector<8x128xf32>,
    %c424_576 = arith.constant 424 : index
    %c0_577 = arith.constant 0 : index
    %1650 = vector.load %arg5[%c424_576, %c0_577] : memref<576x128xf32, #tpu.memory_space<vmem>>, vector<8x128xf32>
    tpu.vector_store %arg5[%c424_576, %c0_577], %1648 {strides = array<i32>} : memref<576x128xf32, #tpu.memory_space<vmem>>, vector<8x128xf32>,
    %c480 = arith.constant 480 : index
    %c0_578 = arith.constant 0 : index
    %1651 = vector.load %arg1[%c480, %c0_578] : memref<640x128xf32, #tpu.memory_space<vmem>>, vector<160x128xf32>
    %c0_579 = arith.constant 0 : index
    %c0_580 = arith.constant 0 : index
    %1652 = vector.load %arg2[%c0_579, %c0_580] : memref<256x160xf32, #tpu.memory_space<vmem>>, vector<256x160xf32>
    %cst_581 = arith.constant dense<0.000000e+00> : vector<256x128xf32>
    %1653 = tpu.matmul %1652, %1651, %cst_581 {dimension_numbers = #tpu.dot_dimension_numbers<[1], [0], [0], [1], [0, 0, 1, 1], [], []>} : vector<256x160xf32>, vector<160x128xf32>, vector<256x128xf32> -> vector<256x128xf32>
    %1654 = math.tanh %1653 : vector<256x128xf32>
    %c0_582 = arith.constant 0 : index
    %c0_583 = arith.constant 0 : index
    %1655 = vector.load %arg3[%c0_582, %c0_583] : memref<144x256xf32, #tpu.memory_space<vmem>>, vector<144x256xf32>
    %cst_584 = arith.constant dense<0.000000e+00> : vector<144x128xf32>
    %1656 = tpu.matmul %1655, %1654, %cst_584 {dimension_numbers = #tpu.dot_dimension_numbers<[1], [0], [0], [1], [0, 0, 1, 1], [], []>} : vector<144x256xf32>, vector<256x128xf32>, vector<144x128xf32> -> vector<144x128xf32>
    %c0_585 = arith.constant 0 : index
    %c0_586 = arith.constant 0 : index
    %1657 = vector.load %arg4[%c0_585, %c0_586] : memref<144x1xf32, #tpu.memory_space<vmem>>, vector<144x1xf32>
    %1658 = vector.broadcast %1657 : vector<144x1xf32> to vector<144x128xf32>
    %1659 = arith.addf %1656, %1658 : vector<144x128xf32>
    %c0_587 = arith.constant 0 : index
    %c0_588 = arith.constant 0 : index
    %1660 = vector.load %arg6[%c0_587, %c0_588] : memref<144x128xf32, #tpu.memory_space<vmem>>, vector<144x128xf32>
    tpu.vector_store %arg6[%c0_587, %c0_588], %1659 {strides = array<i32>} : memref<144x128xf32, #tpu.memory_space<vmem>>, vector<144x128xf32>,
    %c480_589 = arith.constant 480 : index
    %c0_590 = arith.constant 0 : index
    %1661 = vector.load %arg1[%c480_589, %c0_590] : memref<640x128xf32, #tpu.memory_space<vmem>>, vector<8x128xf32>
    %c552 = arith.constant 552 : index
    %c0_591 = arith.constant 0 : index
    %1662 = vector.load %arg1[%c552, %c0_591] : memref<640x128xf32, #tpu.memory_space<vmem>>, vector<8x128xf32>
    %c488 = arith.constant 488 : index
    %c0_592 = arith.constant 0 : index
    %1663 = vector.load %arg1[%c488, %c0_592] : memref<640x128xf32, #tpu.memory_space<vmem>>, vector<8x128xf32>
    %c560 = arith.constant 560 : index
    %c0_593 = arith.constant 0 : index
    %1664 = vector.load %arg1[%c560, %c0_593] : memref<640x128xf32, #tpu.memory_space<vmem>>, vector<8x128xf32>
    %c496 = arith.constant 496 : index
    %c0_594 = arith.constant 0 : index
    %1665 = vector.load %arg1[%c496, %c0_594] : memref<640x128xf32, #tpu.memory_space<vmem>>, vector<8x128xf32>
    %c568 = arith.constant 568 : index
    %c0_595 = arith.constant 0 : index
    %1666 = vector.load %arg1[%c568, %c0_595] : memref<640x128xf32, #tpu.memory_space<vmem>>, vector<8x128xf32>
    %c504 = arith.constant 504 : index
    %c0_596 = arith.constant 0 : index
    %1667 = vector.load %arg1[%c504, %c0_596] : memref<640x128xf32, #tpu.memory_space<vmem>>, vector<8x128xf32>
    %c576 = arith.constant 576 : index
    %c0_597 = arith.constant 0 : index
    %1668 = vector.load %arg1[%c576, %c0_597] : memref<640x128xf32, #tpu.memory_space<vmem>>, vector<8x128xf32>
    %c512 = arith.constant 512 : index
    %c0_598 = arith.constant 0 : index
    %1669 = vector.load %arg1[%c512, %c0_598] : memref<640x128xf32, #tpu.memory_space<vmem>>, vector<8x128xf32>
    %c584 = arith.constant 584 : index
    %c0_599 = arith.constant 0 : index
    %1670 = vector.load %arg1[%c584, %c0_599] : memref<640x128xf32, #tpu.memory_space<vmem>>, vector<8x128xf32>
    %c520 = arith.constant 520 : index
    %c0_600 = arith.constant 0 : index
    %1671 = vector.load %arg1[%c520, %c0_600] : memref<640x128xf32, #tpu.memory_space<vmem>>, vector<8x128xf32>
    %c592 = arith.constant 592 : index
    %c0_601 = arith.constant 0 : index
    %1672 = vector.load %arg1[%c592, %c0_601] : memref<640x128xf32, #tpu.memory_space<vmem>>, vector<8x128xf32>
    %c528 = arith.constant 528 : index
    %c0_602 = arith.constant 0 : index
    %1673 = vector.load %arg1[%c528, %c0_602] : memref<640x128xf32, #tpu.memory_space<vmem>>, vector<8x128xf32>
    %c600 = arith.constant 600 : index
    %c0_603 = arith.constant 0 : index
    %1674 = vector.load %arg1[%c600, %c0_603] : memref<640x128xf32, #tpu.memory_space<vmem>>, vector<8x128xf32>
    %c536 = arith.constant 536 : index
    %c0_604 = arith.constant 0 : index
    %1675 = vector.load %arg1[%c536, %c0_604] : memref<640x128xf32, #tpu.memory_space<vmem>>, vector<8x128xf32>
    %c608 = arith.constant 608 : index
    %c0_605 = arith.constant 0 : index
    %1676 = vector.load %arg1[%c608, %c0_605] : memref<640x128xf32, #tpu.memory_space<vmem>>, vector<8x128xf32>
    %c544 = arith.constant 544 : index
    %c0_606 = arith.constant 0 : index
    %1677 = vector.load %arg1[%c544, %c0_606] : memref<640x128xf32, #tpu.memory_space<vmem>>, vector<8x128xf32>
    %c616 = arith.constant 616 : index
    %c0_607 = arith.constant 0 : index
    %1678 = vector.load %arg1[%c616, %c0_607] : memref<640x128xf32, #tpu.memory_space<vmem>>, vector<8x128xf32>
    %1679 = arith.mulf %1669, %1677 : vector<8x128xf32>
    %1680 = arith.mulf %1670, %1678 : vector<8x128xf32>
    %1681 = arith.subf %1679, %1680 : vector<8x128xf32>
    %1682 = arith.mulf %1669, %1678 : vector<8x128xf32>
    %1683 = arith.mulf %1670, %1677 : vector<8x128xf32>
    %1684 = arith.addf %1682, %1683 : vector<8x128xf32>
    %1685 = arith.mulf %1671, %1675 : vector<8x128xf32>
    %1686 = arith.mulf %1672, %1676 : vector<8x128xf32>
    %1687 = arith.subf %1685, %1686 : vector<8x128xf32>
    %1688 = arith.mulf %1671, %1676 : vector<8x128xf32>
    %1689 = arith.mulf %1672, %1675 : vector<8x128xf32>
    %1690 = arith.addf %1688, %1689 : vector<8x128xf32>
    %1691 = arith.subf %1681, %1687 : vector<8x128xf32>
    %1692 = arith.subf %1684, %1690 : vector<8x128xf32>
    %1693 = arith.mulf %1667, %1677 : vector<8x128xf32>
    %1694 = arith.mulf %1668, %1678 : vector<8x128xf32>
    %1695 = arith.subf %1693, %1694 : vector<8x128xf32>
    %1696 = arith.mulf %1667, %1678 : vector<8x128xf32>
    %1697 = arith.mulf %1668, %1677 : vector<8x128xf32>
    %1698 = arith.addf %1696, %1697 : vector<8x128xf32>
    %1699 = arith.mulf %1671, %1673 : vector<8x128xf32>
    %1700 = arith.mulf %1672, %1674 : vector<8x128xf32>
    %1701 = arith.subf %1699, %1700 : vector<8x128xf32>
    %1702 = arith.mulf %1671, %1674 : vector<8x128xf32>
    %1703 = arith.mulf %1672, %1673 : vector<8x128xf32>
    %1704 = arith.addf %1702, %1703 : vector<8x128xf32>
    %1705 = arith.subf %1695, %1701 : vector<8x128xf32>
    %1706 = arith.subf %1698, %1704 : vector<8x128xf32>
    %cst_608 = arith.constant 0.000000e+00 : f32
    %1707 = vector.broadcast %cst_608 : f32 to vector<8x128xf32>
    %1708 = arith.subf %1707, %1705 : vector<8x128xf32>
    %cst_609 = arith.constant 0.000000e+00 : f32
    %1709 = vector.broadcast %cst_609 : f32 to vector<8x128xf32>
    %1710 = arith.subf %1709, %1706 : vector<8x128xf32>
    %1711 = arith.mulf %1667, %1675 : vector<8x128xf32>
    %1712 = arith.mulf %1668, %1676 : vector<8x128xf32>
    %1713 = arith.subf %1711, %1712 : vector<8x128xf32>
    %1714 = arith.mulf %1667, %1676 : vector<8x128xf32>
    %1715 = arith.mulf %1668, %1675 : vector<8x128xf32>
    %1716 = arith.addf %1714, %1715 : vector<8x128xf32>
    %1717 = arith.mulf %1669, %1673 : vector<8x128xf32>
    %1718 = arith.mulf %1670, %1674 : vector<8x128xf32>
    %1719 = arith.subf %1717, %1718 : vector<8x128xf32>
    %1720 = arith.mulf %1669, %1674 : vector<8x128xf32>
    %1721 = arith.mulf %1670, %1673 : vector<8x128xf32>
    %1722 = arith.addf %1720, %1721 : vector<8x128xf32>
    %1723 = arith.subf %1713, %1719 : vector<8x128xf32>
    %1724 = arith.subf %1716, %1722 : vector<8x128xf32>
    %1725 = arith.mulf %1663, %1677 : vector<8x128xf32>
    %1726 = arith.mulf %1664, %1678 : vector<8x128xf32>
    %1727 = arith.subf %1725, %1726 : vector<8x128xf32>
    %1728 = arith.mulf %1663, %1678 : vector<8x128xf32>
    %1729 = arith.mulf %1664, %1677 : vector<8x128xf32>
    %1730 = arith.addf %1728, %1729 : vector<8x128xf32>
    %1731 = arith.mulf %1665, %1675 : vector<8x128xf32>
    %1732 = arith.mulf %1666, %1676 : vector<8x128xf32>
    %1733 = arith.subf %1731, %1732 : vector<8x128xf32>
    %1734 = arith.mulf %1665, %1676 : vector<8x128xf32>
    %1735 = arith.mulf %1666, %1675 : vector<8x128xf32>
    %1736 = arith.addf %1734, %1735 : vector<8x128xf32>
    %1737 = arith.subf %1727, %1733 : vector<8x128xf32>
    %1738 = arith.subf %1730, %1736 : vector<8x128xf32>
    %cst_610 = arith.constant 0.000000e+00 : f32
    %1739 = vector.broadcast %cst_610 : f32 to vector<8x128xf32>
    %1740 = arith.subf %1739, %1737 : vector<8x128xf32>
    %cst_611 = arith.constant 0.000000e+00 : f32
    %1741 = vector.broadcast %cst_611 : f32 to vector<8x128xf32>
    %1742 = arith.subf %1741, %1738 : vector<8x128xf32>
    %1743 = arith.mulf %1661, %1677 : vector<8x128xf32>
    %1744 = arith.mulf %1662, %1678 : vector<8x128xf32>
    %1745 = arith.subf %1743, %1744 : vector<8x128xf32>
    %1746 = arith.mulf %1661, %1678 : vector<8x128xf32>
    %1747 = arith.mulf %1662, %1677 : vector<8x128xf32>
    %1748 = arith.addf %1746, %1747 : vector<8x128xf32>
    %1749 = arith.mulf %1665, %1673 : vector<8x128xf32>
    %1750 = arith.mulf %1666, %1674 : vector<8x128xf32>
    %1751 = arith.subf %1749, %1750 : vector<8x128xf32>
    %1752 = arith.mulf %1665, %1674 : vector<8x128xf32>
    %1753 = arith.mulf %1666, %1673 : vector<8x128xf32>
    %1754 = arith.addf %1752, %1753 : vector<8x128xf32>
    %1755 = arith.subf %1745, %1751 : vector<8x128xf32>
    %1756 = arith.subf %1748, %1754 : vector<8x128xf32>
    %1757 = arith.mulf %1661, %1675 : vector<8x128xf32>
    %1758 = arith.mulf %1662, %1676 : vector<8x128xf32>
    %1759 = arith.subf %1757, %1758 : vector<8x128xf32>
    %1760 = arith.mulf %1661, %1676 : vector<8x128xf32>
    %1761 = arith.mulf %1662, %1675 : vector<8x128xf32>
    %1762 = arith.addf %1760, %1761 : vector<8x128xf32>
    %1763 = arith.mulf %1663, %1673 : vector<8x128xf32>
    %1764 = arith.mulf %1664, %1674 : vector<8x128xf32>
    %1765 = arith.subf %1763, %1764 : vector<8x128xf32>
    %1766 = arith.mulf %1663, %1674 : vector<8x128xf32>
    %1767 = arith.mulf %1664, %1673 : vector<8x128xf32>
    %1768 = arith.addf %1766, %1767 : vector<8x128xf32>
    %1769 = arith.subf %1759, %1765 : vector<8x128xf32>
    %1770 = arith.subf %1762, %1768 : vector<8x128xf32>
    %cst_612 = arith.constant 0.000000e+00 : f32
    %1771 = vector.broadcast %cst_612 : f32 to vector<8x128xf32>
    %1772 = arith.subf %1771, %1769 : vector<8x128xf32>
    %cst_613 = arith.constant 0.000000e+00 : f32
    %1773 = vector.broadcast %cst_613 : f32 to vector<8x128xf32>
    %1774 = arith.subf %1773, %1770 : vector<8x128xf32>
    %1775 = arith.mulf %1663, %1671 : vector<8x128xf32>
    %1776 = arith.mulf %1664, %1672 : vector<8x128xf32>
    %1777 = arith.subf %1775, %1776 : vector<8x128xf32>
    %1778 = arith.mulf %1663, %1672 : vector<8x128xf32>
    %1779 = arith.mulf %1664, %1671 : vector<8x128xf32>
    %1780 = arith.addf %1778, %1779 : vector<8x128xf32>
    %1781 = arith.mulf %1665, %1669 : vector<8x128xf32>
    %1782 = arith.mulf %1666, %1670 : vector<8x128xf32>
    %1783 = arith.subf %1781, %1782 : vector<8x128xf32>
    %1784 = arith.mulf %1665, %1670 : vector<8x128xf32>
    %1785 = arith.mulf %1666, %1669 : vector<8x128xf32>
    %1786 = arith.addf %1784, %1785 : vector<8x128xf32>
    %1787 = arith.subf %1777, %1783 : vector<8x128xf32>
    %1788 = arith.subf %1780, %1786 : vector<8x128xf32>
    %1789 = arith.mulf %1661, %1671 : vector<8x128xf32>
    %1790 = arith.mulf %1662, %1672 : vector<8x128xf32>
    %1791 = arith.subf %1789, %1790 : vector<8x128xf32>
    %1792 = arith.mulf %1661, %1672 : vector<8x128xf32>
    %1793 = arith.mulf %1662, %1671 : vector<8x128xf32>
    %1794 = arith.addf %1792, %1793 : vector<8x128xf32>
    %1795 = arith.mulf %1665, %1667 : vector<8x128xf32>
    %1796 = arith.mulf %1666, %1668 : vector<8x128xf32>
    %1797 = arith.subf %1795, %1796 : vector<8x128xf32>
    %1798 = arith.mulf %1665, %1668 : vector<8x128xf32>
    %1799 = arith.mulf %1666, %1667 : vector<8x128xf32>
    %1800 = arith.addf %1798, %1799 : vector<8x128xf32>
    %1801 = arith.subf %1791, %1797 : vector<8x128xf32>
    %1802 = arith.subf %1794, %1800 : vector<8x128xf32>
    %cst_614 = arith.constant 0.000000e+00 : f32
    %1803 = vector.broadcast %cst_614 : f32 to vector<8x128xf32>
    %1804 = arith.subf %1803, %1801 : vector<8x128xf32>
    %cst_615 = arith.constant 0.000000e+00 : f32
    %1805 = vector.broadcast %cst_615 : f32 to vector<8x128xf32>
    %1806 = arith.subf %1805, %1802 : vector<8x128xf32>
    %1807 = arith.mulf %1661, %1669 : vector<8x128xf32>
    %1808 = arith.mulf %1662, %1670 : vector<8x128xf32>
    %1809 = arith.subf %1807, %1808 : vector<8x128xf32>
    %1810 = arith.mulf %1661, %1670 : vector<8x128xf32>
    %1811 = arith.mulf %1662, %1669 : vector<8x128xf32>
    %1812 = arith.addf %1810, %1811 : vector<8x128xf32>
    %1813 = arith.mulf %1663, %1667 : vector<8x128xf32>
    %1814 = arith.mulf %1664, %1668 : vector<8x128xf32>
    %1815 = arith.subf %1813, %1814 : vector<8x128xf32>
    %1816 = arith.mulf %1663, %1668 : vector<8x128xf32>
    %1817 = arith.mulf %1664, %1667 : vector<8x128xf32>
    %1818 = arith.addf %1816, %1817 : vector<8x128xf32>
    %1819 = arith.subf %1809, %1815 : vector<8x128xf32>
    %1820 = arith.subf %1812, %1818 : vector<8x128xf32>
    %1821 = arith.mulf %1661, %1691 : vector<8x128xf32>
    %1822 = arith.mulf %1662, %1692 : vector<8x128xf32>
    %1823 = arith.subf %1821, %1822 : vector<8x128xf32>
    %1824 = arith.mulf %1661, %1692 : vector<8x128xf32>
    %1825 = arith.mulf %1662, %1691 : vector<8x128xf32>
    %1826 = arith.addf %1824, %1825 : vector<8x128xf32>
    %1827 = arith.mulf %1663, %1708 : vector<8x128xf32>
    %1828 = arith.mulf %1664, %1710 : vector<8x128xf32>
    %1829 = arith.subf %1827, %1828 : vector<8x128xf32>
    %1830 = arith.mulf %1663, %1710 : vector<8x128xf32>
    %1831 = arith.mulf %1664, %1708 : vector<8x128xf32>
    %1832 = arith.addf %1830, %1831 : vector<8x128xf32>
    %1833 = arith.mulf %1665, %1723 : vector<8x128xf32>
    %1834 = arith.mulf %1666, %1724 : vector<8x128xf32>
    %1835 = arith.subf %1833, %1834 : vector<8x128xf32>
    %1836 = arith.mulf %1665, %1724 : vector<8x128xf32>
    %1837 = arith.mulf %1666, %1723 : vector<8x128xf32>
    %1838 = arith.addf %1836, %1837 : vector<8x128xf32>
    %1839 = arith.addf %1823, %1829 : vector<8x128xf32>
    %1840 = arith.addf %1826, %1832 : vector<8x128xf32>
    %1841 = arith.addf %1839, %1835 : vector<8x128xf32>
    %1842 = arith.addf %1840, %1838 : vector<8x128xf32>
    %1843 = arith.mulf %1841, %1841 : vector<8x128xf32>
    %1844 = arith.mulf %1842, %1842 : vector<8x128xf32>
    %1845 = arith.addf %1843, %1844 : vector<8x128xf32>
    %1846 = tpu.reciprocal %1845 {approx = true} : vector<8x128xf32> -> vector<8x128xf32>
    %1847 = arith.mulf %1845, %1846 : vector<8x128xf32>
    %cst_616 = arith.constant 2.000000e+00 : f32
    %1848 = vector.broadcast %cst_616 : f32 to vector<8x128xf32>
    %1849 = arith.subf %1848, %1847 : vector<8x128xf32>
    %1850 = arith.mulf %1846, %1849 : vector<8x128xf32>
    %1851 = arith.mulf %1841, %1850 : vector<8x128xf32>
    %cst_617 = arith.constant 0.000000e+00 : f32
    %1852 = vector.broadcast %cst_617 : f32 to vector<8x128xf32>
    %1853 = arith.subf %1852, %1842 : vector<8x128xf32>
    %1854 = arith.mulf %1853, %1850 : vector<8x128xf32>
    %c8_618 = arith.constant 8 : index
    %c0_619 = arith.constant 0 : index
    %1855 = vector.load %arg6[%c8_618, %c0_619] : memref<144x128xf32, #tpu.memory_space<vmem>>, vector<8x128xf32>
    %c80_620 = arith.constant 80 : index
    %c0_621 = arith.constant 0 : index
    %1856 = vector.load %arg6[%c80_620, %c0_621] : memref<144x128xf32, #tpu.memory_space<vmem>>, vector<8x128xf32>
    %1857 = arith.mulf %1691, %1855 : vector<8x128xf32>
    %1858 = arith.mulf %1692, %1856 : vector<8x128xf32>
    %1859 = arith.subf %1857, %1858 : vector<8x128xf32>
    %1860 = arith.mulf %1691, %1856 : vector<8x128xf32>
    %1861 = arith.mulf %1692, %1855 : vector<8x128xf32>
    %1862 = arith.addf %1860, %1861 : vector<8x128xf32>
    %c32_622 = arith.constant 32 : index
    %c0_623 = arith.constant 0 : index
    %1863 = vector.load %arg6[%c32_622, %c0_623] : memref<144x128xf32, #tpu.memory_space<vmem>>, vector<8x128xf32>
    %c104_624 = arith.constant 104 : index
    %c0_625 = arith.constant 0 : index
    %1864 = vector.load %arg6[%c104_624, %c0_625] : memref<144x128xf32, #tpu.memory_space<vmem>>, vector<8x128xf32>
    %1865 = arith.mulf %1740, %1863 : vector<8x128xf32>
    %1866 = arith.mulf %1742, %1864 : vector<8x128xf32>
    %1867 = arith.subf %1865, %1866 : vector<8x128xf32>
    %1868 = arith.mulf %1740, %1864 : vector<8x128xf32>
    %1869 = arith.mulf %1742, %1863 : vector<8x128xf32>
    %1870 = arith.addf %1868, %1869 : vector<8x128xf32>
    %c56_626 = arith.constant 56 : index
    %c0_627 = arith.constant 0 : index
    %1871 = vector.load %arg6[%c56_626, %c0_627] : memref<144x128xf32, #tpu.memory_space<vmem>>, vector<8x128xf32>
    %c128_628 = arith.constant 128 : index
    %c0_629 = arith.constant 0 : index
    %1872 = vector.load %arg6[%c128_628, %c0_629] : memref<144x128xf32, #tpu.memory_space<vmem>>, vector<8x128xf32>
    %1873 = arith.mulf %1787, %1871 : vector<8x128xf32>
    %1874 = arith.mulf %1788, %1872 : vector<8x128xf32>
    %1875 = arith.subf %1873, %1874 : vector<8x128xf32>
    %1876 = arith.mulf %1787, %1872 : vector<8x128xf32>
    %1877 = arith.mulf %1788, %1871 : vector<8x128xf32>
    %1878 = arith.addf %1876, %1877 : vector<8x128xf32>
    %1879 = arith.addf %1859, %1867 : vector<8x128xf32>
    %1880 = arith.addf %1862, %1870 : vector<8x128xf32>
    %1881 = arith.addf %1879, %1875 : vector<8x128xf32>
    %1882 = arith.addf %1880, %1878 : vector<8x128xf32>
    %1883 = arith.mulf %1881, %1851 : vector<8x128xf32>
    %1884 = arith.mulf %1882, %1854 : vector<8x128xf32>
    %1885 = arith.subf %1883, %1884 : vector<8x128xf32>
    %1886 = arith.mulf %1881, %1854 : vector<8x128xf32>
    %1887 = arith.mulf %1882, %1851 : vector<8x128xf32>
    %1888 = arith.addf %1886, %1887 : vector<8x128xf32>
    %c0_630 = arith.constant 0 : index
    %c0_631 = arith.constant 0 : index
    %1889 = vector.load %arg6[%c0_630, %c0_631] : memref<144x128xf32, #tpu.memory_space<vmem>>, vector<8x128xf32>
    %c72_632 = arith.constant 72 : index
    %c0_633 = arith.constant 0 : index
    %1890 = vector.load %arg6[%c72_632, %c0_633] : memref<144x128xf32, #tpu.memory_space<vmem>>, vector<8x128xf32>
    %1891 = arith.mulf %1708, %1889 : vector<8x128xf32>
    %1892 = arith.mulf %1710, %1890 : vector<8x128xf32>
    %1893 = arith.subf %1891, %1892 : vector<8x128xf32>
    %1894 = arith.mulf %1708, %1890 : vector<8x128xf32>
    %1895 = arith.mulf %1710, %1889 : vector<8x128xf32>
    %1896 = arith.addf %1894, %1895 : vector<8x128xf32>
    %c24_634 = arith.constant 24 : index
    %c0_635 = arith.constant 0 : index
    %1897 = vector.load %arg6[%c24_634, %c0_635] : memref<144x128xf32, #tpu.memory_space<vmem>>, vector<8x128xf32>
    %c96_636 = arith.constant 96 : index
    %c0_637 = arith.constant 0 : index
    %1898 = vector.load %arg6[%c96_636, %c0_637] : memref<144x128xf32, #tpu.memory_space<vmem>>, vector<8x128xf32>
    %1899 = arith.mulf %1755, %1897 : vector<8x128xf32>
    %1900 = arith.mulf %1756, %1898 : vector<8x128xf32>
    %1901 = arith.subf %1899, %1900 : vector<8x128xf32>
    %1902 = arith.mulf %1755, %1898 : vector<8x128xf32>
    %1903 = arith.mulf %1756, %1897 : vector<8x128xf32>
    %1904 = arith.addf %1902, %1903 : vector<8x128xf32>
    %c48_638 = arith.constant 48 : index
    %c0_639 = arith.constant 0 : index
    %1905 = vector.load %arg6[%c48_638, %c0_639] : memref<144x128xf32, #tpu.memory_space<vmem>>, vector<8x128xf32>
    %c120_640 = arith.constant 120 : index
    %c0_641 = arith.constant 0 : index
    %1906 = vector.load %arg6[%c120_640, %c0_641] : memref<144x128xf32, #tpu.memory_space<vmem>>, vector<8x128xf32>
    %1907 = arith.mulf %1804, %1905 : vector<8x128xf32>
    %1908 = arith.mulf %1806, %1906 : vector<8x128xf32>
    %1909 = arith.subf %1907, %1908 : vector<8x128xf32>
    %1910 = arith.mulf %1804, %1906 : vector<8x128xf32>
    %1911 = arith.mulf %1806, %1905 : vector<8x128xf32>
    %1912 = arith.addf %1910, %1911 : vector<8x128xf32>
    %1913 = arith.addf %1893, %1901 : vector<8x128xf32>
    %1914 = arith.addf %1896, %1904 : vector<8x128xf32>
    %1915 = arith.addf %1913, %1909 : vector<8x128xf32>
    %1916 = arith.addf %1914, %1912 : vector<8x128xf32>
    %1917 = arith.mulf %1915, %1851 : vector<8x128xf32>
    %1918 = arith.mulf %1916, %1854 : vector<8x128xf32>
    %1919 = arith.subf %1917, %1918 : vector<8x128xf32>
    %1920 = arith.mulf %1915, %1854 : vector<8x128xf32>
    %1921 = arith.mulf %1916, %1851 : vector<8x128xf32>
    %1922 = arith.addf %1920, %1921 : vector<8x128xf32>
    %1923 = arith.subf %1885, %1919 : vector<8x128xf32>
    %cst_642 = arith.constant 5.000000e-01 : f32
    %1924 = vector.broadcast %cst_642 : f32 to vector<8x128xf32>
    %1925 = arith.mulf %1923, %1924 : vector<8x128xf32>
    %1926 = arith.addf %1888, %1922 : vector<8x128xf32>
    %cst_643 = arith.constant 5.000000e-01 : f32
    %1927 = vector.broadcast %cst_643 : f32 to vector<8x128xf32>
    %1928 = arith.mulf %1926, %1927 : vector<8x128xf32>
    %c440_644 = arith.constant 440 : index
    %c0_645 = arith.constant 0 : index
    %1929 = vector.load %arg5[%c440_644, %c0_645] : memref<576x128xf32, #tpu.memory_space<vmem>>, vector<8x128xf32>
    tpu.vector_store %arg5[%c440_644, %c0_645], %1925 {strides = array<i32>} : memref<576x128xf32, #tpu.memory_space<vmem>>, vector<8x128xf32>,
    %c512_646 = arith.constant 512 : index
    %c0_647 = arith.constant 0 : index
    %1930 = vector.load %arg5[%c512_646, %c0_647] : memref<576x128xf32, #tpu.memory_space<vmem>>, vector<8x128xf32>
    tpu.vector_store %arg5[%c512_646, %c0_647], %1928 {strides = array<i32>} : memref<576x128xf32, #tpu.memory_space<vmem>>, vector<8x128xf32>,
    %cst_648 = arith.constant 0.000000e+00 : f32
    %1931 = vector.broadcast %cst_648 : f32 to vector<8x128xf32>
    %1932 = arith.subf %1931, %1925 : vector<8x128xf32>
    %c456_649 = arith.constant 456 : index
    %c0_650 = arith.constant 0 : index
    %1933 = vector.load %arg5[%c456_649, %c0_650] : memref<576x128xf32, #tpu.memory_space<vmem>>, vector<8x128xf32>
    tpu.vector_store %arg5[%c456_649, %c0_650], %1932 {strides = array<i32>} : memref<576x128xf32, #tpu.memory_space<vmem>>, vector<8x128xf32>,
    %c528_651 = arith.constant 528 : index
    %c0_652 = arith.constant 0 : index
    %1934 = vector.load %arg5[%c528_651, %c0_652] : memref<576x128xf32, #tpu.memory_space<vmem>>, vector<8x128xf32>
    tpu.vector_store %arg5[%c528_651, %c0_652], %1928 {strides = array<i32>} : memref<576x128xf32, #tpu.memory_space<vmem>>, vector<8x128xf32>,
    %c16_653 = arith.constant 16 : index
    %c0_654 = arith.constant 0 : index
    %1935 = vector.load %arg6[%c16_653, %c0_654] : memref<144x128xf32, #tpu.memory_space<vmem>>, vector<8x128xf32>
    %c88_655 = arith.constant 88 : index
    %c0_656 = arith.constant 0 : index
    %1936 = vector.load %arg6[%c88_655, %c0_656] : memref<144x128xf32, #tpu.memory_space<vmem>>, vector<8x128xf32>
    %1937 = arith.mulf %1691, %1935 : vector<8x128xf32>
    %1938 = arith.mulf %1692, %1936 : vector<8x128xf32>
    %1939 = arith.subf %1937, %1938 : vector<8x128xf32>
    %1940 = arith.mulf %1691, %1936 : vector<8x128xf32>
    %1941 = arith.mulf %1692, %1935 : vector<8x128xf32>
    %1942 = arith.addf %1940, %1941 : vector<8x128xf32>
    %c40_657 = arith.constant 40 : index
    %c0_658 = arith.constant 0 : index
    %1943 = vector.load %arg6[%c40_657, %c0_658] : memref<144x128xf32, #tpu.memory_space<vmem>>, vector<8x128xf32>
    %c112_659 = arith.constant 112 : index
    %c0_660 = arith.constant 0 : index
    %1944 = vector.load %arg6[%c112_659, %c0_660] : memref<144x128xf32, #tpu.memory_space<vmem>>, vector<8x128xf32>
    %1945 = arith.mulf %1740, %1943 : vector<8x128xf32>
    %1946 = arith.mulf %1742, %1944 : vector<8x128xf32>
    %1947 = arith.subf %1945, %1946 : vector<8x128xf32>
    %1948 = arith.mulf %1740, %1944 : vector<8x128xf32>
    %1949 = arith.mulf %1742, %1943 : vector<8x128xf32>
    %1950 = arith.addf %1948, %1949 : vector<8x128xf32>
    %c64_661 = arith.constant 64 : index
    %c0_662 = arith.constant 0 : index
    %1951 = vector.load %arg6[%c64_661, %c0_662] : memref<144x128xf32, #tpu.memory_space<vmem>>, vector<8x128xf32>
    %c136_663 = arith.constant 136 : index
    %c0_664 = arith.constant 0 : index
    %1952 = vector.load %arg6[%c136_663, %c0_664] : memref<144x128xf32, #tpu.memory_space<vmem>>, vector<8x128xf32>
    %1953 = arith.mulf %1787, %1951 : vector<8x128xf32>
    %1954 = arith.mulf %1788, %1952 : vector<8x128xf32>
    %1955 = arith.subf %1953, %1954 : vector<8x128xf32>
    %1956 = arith.mulf %1787, %1952 : vector<8x128xf32>
    %1957 = arith.mulf %1788, %1951 : vector<8x128xf32>
    %1958 = arith.addf %1956, %1957 : vector<8x128xf32>
    %1959 = arith.addf %1939, %1947 : vector<8x128xf32>
    %1960 = arith.addf %1942, %1950 : vector<8x128xf32>
    %1961 = arith.addf %1959, %1955 : vector<8x128xf32>
    %1962 = arith.addf %1960, %1958 : vector<8x128xf32>
    %1963 = arith.mulf %1961, %1851 : vector<8x128xf32>
    %1964 = arith.mulf %1962, %1854 : vector<8x128xf32>
    %1965 = arith.subf %1963, %1964 : vector<8x128xf32>
    %1966 = arith.mulf %1961, %1854 : vector<8x128xf32>
    %1967 = arith.mulf %1962, %1851 : vector<8x128xf32>
    %1968 = arith.addf %1966, %1967 : vector<8x128xf32>
    %c0_665 = arith.constant 0 : index
    %c0_666 = arith.constant 0 : index
    %1969 = vector.load %arg6[%c0_665, %c0_666] : memref<144x128xf32, #tpu.memory_space<vmem>>, vector<8x128xf32>
    %c72_667 = arith.constant 72 : index
    %c0_668 = arith.constant 0 : index
    %1970 = vector.load %arg6[%c72_667, %c0_668] : memref<144x128xf32, #tpu.memory_space<vmem>>, vector<8x128xf32>
    %1971 = arith.mulf %1723, %1969 : vector<8x128xf32>
    %1972 = arith.mulf %1724, %1970 : vector<8x128xf32>
    %1973 = arith.subf %1971, %1972 : vector<8x128xf32>
    %1974 = arith.mulf %1723, %1970 : vector<8x128xf32>
    %1975 = arith.mulf %1724, %1969 : vector<8x128xf32>
    %1976 = arith.addf %1974, %1975 : vector<8x128xf32>
    %c24_669 = arith.constant 24 : index
    %c0_670 = arith.constant 0 : index
    %1977 = vector.load %arg6[%c24_669, %c0_670] : memref<144x128xf32, #tpu.memory_space<vmem>>, vector<8x128xf32>
    %c96_671 = arith.constant 96 : index
    %c0_672 = arith.constant 0 : index
    %1978 = vector.load %arg6[%c96_671, %c0_672] : memref<144x128xf32, #tpu.memory_space<vmem>>, vector<8x128xf32>
    %1979 = arith.mulf %1772, %1977 : vector<8x128xf32>
    %1980 = arith.mulf %1774, %1978 : vector<8x128xf32>
    %1981 = arith.subf %1979, %1980 : vector<8x128xf32>
    %1982 = arith.mulf %1772, %1978 : vector<8x128xf32>
    %1983 = arith.mulf %1774, %1977 : vector<8x128xf32>
    %1984 = arith.addf %1982, %1983 : vector<8x128xf32>
    %c48_673 = arith.constant 48 : index
    %c0_674 = arith.constant 0 : index
    %1985 = vector.load %arg6[%c48_673, %c0_674] : memref<144x128xf32, #tpu.memory_space<vmem>>, vector<8x128xf32>
    %c120_675 = arith.constant 120 : index
    %c0_676 = arith.constant 0 : index
    %1986 = vector.load %arg6[%c120_675, %c0_676] : memref<144x128xf32, #tpu.memory_space<vmem>>, vector<8x128xf32>
    %1987 = arith.mulf %1819, %1985 : vector<8x128xf32>
    %1988 = arith.mulf %1820, %1986 : vector<8x128xf32>
    %1989 = arith.subf %1987, %1988 : vector<8x128xf32>
    %1990 = arith.mulf %1819, %1986 : vector<8x128xf32>
    %1991 = arith.mulf %1820, %1985 : vector<8x128xf32>
    %1992 = arith.addf %1990, %1991 : vector<8x128xf32>
    %1993 = arith.addf %1973, %1981 : vector<8x128xf32>
    %1994 = arith.addf %1976, %1984 : vector<8x128xf32>
    %1995 = arith.addf %1993, %1989 : vector<8x128xf32>
    %1996 = arith.addf %1994, %1992 : vector<8x128xf32>
    %1997 = arith.mulf %1995, %1851 : vector<8x128xf32>
    %1998 = arith.mulf %1996, %1854 : vector<8x128xf32>
    %1999 = arith.subf %1997, %1998 : vector<8x128xf32>
    %2000 = arith.mulf %1995, %1854 : vector<8x128xf32>
    %2001 = arith.mulf %1996, %1851 : vector<8x128xf32>
    %2002 = arith.addf %2000, %2001 : vector<8x128xf32>
    %2003 = arith.subf %1965, %1999 : vector<8x128xf32>
    %cst_677 = arith.constant 5.000000e-01 : f32
    %2004 = vector.broadcast %cst_677 : f32 to vector<8x128xf32>
    %2005 = arith.mulf %2003, %2004 : vector<8x128xf32>
    %2006 = arith.addf %1968, %2002 : vector<8x128xf32>
    %cst_678 = arith.constant 5.000000e-01 : f32
    %2007 = vector.broadcast %cst_678 : f32 to vector<8x128xf32>
    %2008 = arith.mulf %2006, %2007 : vector<8x128xf32>
    %c448_679 = arith.constant 448 : index
    %c0_680 = arith.constant 0 : index
    %2009 = vector.load %arg5[%c448_679, %c0_680] : memref<576x128xf32, #tpu.memory_space<vmem>>, vector<8x128xf32>
    tpu.vector_store %arg5[%c448_679, %c0_680], %2005 {strides = array<i32>} : memref<576x128xf32, #tpu.memory_space<vmem>>, vector<8x128xf32>,
    %c520_681 = arith.constant 520 : index
    %c0_682 = arith.constant 0 : index
    %2010 = vector.load %arg5[%c520_681, %c0_682] : memref<576x128xf32, #tpu.memory_space<vmem>>, vector<8x128xf32>
    tpu.vector_store %arg5[%c520_681, %c0_682], %2008 {strides = array<i32>} : memref<576x128xf32, #tpu.memory_space<vmem>>, vector<8x128xf32>,
    %cst_683 = arith.constant 0.000000e+00 : f32
    %2011 = vector.broadcast %cst_683 : f32 to vector<8x128xf32>
    %2012 = arith.subf %2011, %2005 : vector<8x128xf32>
    %c480_684 = arith.constant 480 : index
    %c0_685 = arith.constant 0 : index
    %2013 = vector.load %arg5[%c480_684, %c0_685] : memref<576x128xf32, #tpu.memory_space<vmem>>, vector<8x128xf32>
    tpu.vector_store %arg5[%c480_684, %c0_685], %2012 {strides = array<i32>} : memref<576x128xf32, #tpu.memory_space<vmem>>, vector<8x128xf32>,
    %c552_686 = arith.constant 552 : index
    %c0_687 = arith.constant 0 : index
    %2014 = vector.load %arg5[%c552_686, %c0_687] : memref<576x128xf32, #tpu.memory_space<vmem>>, vector<8x128xf32>
    tpu.vector_store %arg5[%c552_686, %c0_687], %2008 {strides = array<i32>} : memref<576x128xf32, #tpu.memory_space<vmem>>, vector<8x128xf32>,
    %c16_688 = arith.constant 16 : index
    %c0_689 = arith.constant 0 : index
    %2015 = vector.load %arg6[%c16_688, %c0_689] : memref<144x128xf32, #tpu.memory_space<vmem>>, vector<8x128xf32>
    %c88_690 = arith.constant 88 : index
    %c0_691 = arith.constant 0 : index
    %2016 = vector.load %arg6[%c88_690, %c0_691] : memref<144x128xf32, #tpu.memory_space<vmem>>, vector<8x128xf32>
    %2017 = arith.mulf %1708, %2015 : vector<8x128xf32>
    %2018 = arith.mulf %1710, %2016 : vector<8x128xf32>
    %2019 = arith.subf %2017, %2018 : vector<8x128xf32>
    %2020 = arith.mulf %1708, %2016 : vector<8x128xf32>
    %2021 = arith.mulf %1710, %2015 : vector<8x128xf32>
    %2022 = arith.addf %2020, %2021 : vector<8x128xf32>
    %c40_692 = arith.constant 40 : index
    %c0_693 = arith.constant 0 : index
    %2023 = vector.load %arg6[%c40_692, %c0_693] : memref<144x128xf32, #tpu.memory_space<vmem>>, vector<8x128xf32>
    %c112_694 = arith.constant 112 : index
    %c0_695 = arith.constant 0 : index
    %2024 = vector.load %arg6[%c112_694, %c0_695] : memref<144x128xf32, #tpu.memory_space<vmem>>, vector<8x128xf32>
    %2025 = arith.mulf %1755, %2023 : vector<8x128xf32>
    %2026 = arith.mulf %1756, %2024 : vector<8x128xf32>
    %2027 = arith.subf %2025, %2026 : vector<8x128xf32>
    %2028 = arith.mulf %1755, %2024 : vector<8x128xf32>
    %2029 = arith.mulf %1756, %2023 : vector<8x128xf32>
    %2030 = arith.addf %2028, %2029 : vector<8x128xf32>
    %c64_696 = arith.constant 64 : index
    %c0_697 = arith.constant 0 : index
    %2031 = vector.load %arg6[%c64_696, %c0_697] : memref<144x128xf32, #tpu.memory_space<vmem>>, vector<8x128xf32>
    %c136_698 = arith.constant 136 : index
    %c0_699 = arith.constant 0 : index
    %2032 = vector.load %arg6[%c136_698, %c0_699] : memref<144x128xf32, #tpu.memory_space<vmem>>, vector<8x128xf32>
    %2033 = arith.mulf %1804, %2031 : vector<8x128xf32>
    %2034 = arith.mulf %1806, %2032 : vector<8x128xf32>
    %2035 = arith.subf %2033, %2034 : vector<8x128xf32>
    %2036 = arith.mulf %1804, %2032 : vector<8x128xf32>
    %2037 = arith.mulf %1806, %2031 : vector<8x128xf32>
    %2038 = arith.addf %2036, %2037 : vector<8x128xf32>
    %2039 = arith.addf %2019, %2027 : vector<8x128xf32>
    %2040 = arith.addf %2022, %2030 : vector<8x128xf32>
    %2041 = arith.addf %2039, %2035 : vector<8x128xf32>
    %2042 = arith.addf %2040, %2038 : vector<8x128xf32>
    %2043 = arith.mulf %2041, %1851 : vector<8x128xf32>
    %2044 = arith.mulf %2042, %1854 : vector<8x128xf32>
    %2045 = arith.subf %2043, %2044 : vector<8x128xf32>
    %2046 = arith.mulf %2041, %1854 : vector<8x128xf32>
    %2047 = arith.mulf %2042, %1851 : vector<8x128xf32>
    %2048 = arith.addf %2046, %2047 : vector<8x128xf32>
    %c8_700 = arith.constant 8 : index
    %c0_701 = arith.constant 0 : index
    %2049 = vector.load %arg6[%c8_700, %c0_701] : memref<144x128xf32, #tpu.memory_space<vmem>>, vector<8x128xf32>
    %c80_702 = arith.constant 80 : index
    %c0_703 = arith.constant 0 : index
    %2050 = vector.load %arg6[%c80_702, %c0_703] : memref<144x128xf32, #tpu.memory_space<vmem>>, vector<8x128xf32>
    %2051 = arith.mulf %1723, %2049 : vector<8x128xf32>
    %2052 = arith.mulf %1724, %2050 : vector<8x128xf32>
    %2053 = arith.subf %2051, %2052 : vector<8x128xf32>
    %2054 = arith.mulf %1723, %2050 : vector<8x128xf32>
    %2055 = arith.mulf %1724, %2049 : vector<8x128xf32>
    %2056 = arith.addf %2054, %2055 : vector<8x128xf32>
    %c32_704 = arith.constant 32 : index
    %c0_705 = arith.constant 0 : index
    %2057 = vector.load %arg6[%c32_704, %c0_705] : memref<144x128xf32, #tpu.memory_space<vmem>>, vector<8x128xf32>
    %c104_706 = arith.constant 104 : index
    %c0_707 = arith.constant 0 : index
    %2058 = vector.load %arg6[%c104_706, %c0_707] : memref<144x128xf32, #tpu.memory_space<vmem>>, vector<8x128xf32>
    %2059 = arith.mulf %1772, %2057 : vector<8x128xf32>
    %2060 = arith.mulf %1774, %2058 : vector<8x128xf32>
    %2061 = arith.subf %2059, %2060 : vector<8x128xf32>
    %2062 = arith.mulf %1772, %2058 : vector<8x128xf32>
    %2063 = arith.mulf %1774, %2057 : vector<8x128xf32>
    %2064 = arith.addf %2062, %2063 : vector<8x128xf32>
    %c56_708 = arith.constant 56 : index
    %c0_709 = arith.constant 0 : index
    %2065 = vector.load %arg6[%c56_708, %c0_709] : memref<144x128xf32, #tpu.memory_space<vmem>>, vector<8x128xf32>
    %c128_710 = arith.constant 128 : index
    %c0_711 = arith.constant 0 : index
    %2066 = vector.load %arg6[%c128_710, %c0_711] : memref<144x128xf32, #tpu.memory_space<vmem>>, vector<8x128xf32>
    %2067 = arith.mulf %1819, %2065 : vector<8x128xf32>
    %2068 = arith.mulf %1820, %2066 : vector<8x128xf32>
    %2069 = arith.subf %2067, %2068 : vector<8x128xf32>
    %2070 = arith.mulf %1819, %2066 : vector<8x128xf32>
    %2071 = arith.mulf %1820, %2065 : vector<8x128xf32>
    %2072 = arith.addf %2070, %2071 : vector<8x128xf32>
    %2073 = arith.addf %2053, %2061 : vector<8x128xf32>
    %2074 = arith.addf %2056, %2064 : vector<8x128xf32>
    %2075 = arith.addf %2073, %2069 : vector<8x128xf32>
    %2076 = arith.addf %2074, %2072 : vector<8x128xf32>
    %2077 = arith.mulf %2075, %1851 : vector<8x128xf32>
    %2078 = arith.mulf %2076, %1854 : vector<8x128xf32>
    %2079 = arith.subf %2077, %2078 : vector<8x128xf32>
    %2080 = arith.mulf %2075, %1854 : vector<8x128xf32>
    %2081 = arith.mulf %2076, %1851 : vector<8x128xf32>
    %2082 = arith.addf %2080, %2081 : vector<8x128xf32>
    %2083 = arith.subf %2045, %2079 : vector<8x128xf32>
    %cst_712 = arith.constant 5.000000e-01 : f32
    %2084 = vector.broadcast %cst_712 : f32 to vector<8x128xf32>
    %2085 = arith.mulf %2083, %2084 : vector<8x128xf32>
    %2086 = arith.addf %2048, %2082 : vector<8x128xf32>
    %cst_713 = arith.constant 5.000000e-01 : f32
    %2087 = vector.broadcast %cst_713 : f32 to vector<8x128xf32>
    %2088 = arith.mulf %2086, %2087 : vector<8x128xf32>
    %c472 = arith.constant 472 : index
    %c0_714 = arith.constant 0 : index
    %2089 = vector.load %arg5[%c472, %c0_714] : memref<576x128xf32, #tpu.memory_space<vmem>>, vector<8x128xf32>
    tpu.vector_store %arg5[%c472, %c0_714], %2085 {strides = array<i32>} : memref<576x128xf32, #tpu.memory_space<vmem>>, vector<8x128xf32>,
    %c544_715 = arith.constant 544 : index
    %c0_716 = arith.constant 0 : index
    %2090 = vector.load %arg5[%c544_715, %c0_716] : memref<576x128xf32, #tpu.memory_space<vmem>>, vector<8x128xf32>
    tpu.vector_store %arg5[%c544_715, %c0_716], %2088 {strides = array<i32>} : memref<576x128xf32, #tpu.memory_space<vmem>>, vector<8x128xf32>,
    %cst_717 = arith.constant 0.000000e+00 : f32
    %2091 = vector.broadcast %cst_717 : f32 to vector<8x128xf32>
    %2092 = arith.subf %2091, %2085 : vector<8x128xf32>
    %c488_718 = arith.constant 488 : index
    %c0_719 = arith.constant 0 : index
    %2093 = vector.load %arg5[%c488_718, %c0_719] : memref<576x128xf32, #tpu.memory_space<vmem>>, vector<8x128xf32>
    tpu.vector_store %arg5[%c488_718, %c0_719], %2092 {strides = array<i32>} : memref<576x128xf32, #tpu.memory_space<vmem>>, vector<8x128xf32>,
    %c560_720 = arith.constant 560 : index
    %c0_721 = arith.constant 0 : index
    %2094 = vector.load %arg5[%c560_720, %c0_721] : memref<576x128xf32, #tpu.memory_space<vmem>>, vector<8x128xf32>
    tpu.vector_store %arg5[%c560_720, %c0_721], %2088 {strides = array<i32>} : memref<576x128xf32, #tpu.memory_space<vmem>>, vector<8x128xf32>,
    %c0_722 = arith.constant 0 : index
    %c0_723 = arith.constant 0 : index
    %2095 = vector.load %arg6[%c0_722, %c0_723] : memref<144x128xf32, #tpu.memory_space<vmem>>, vector<8x128xf32>
    %c72_724 = arith.constant 72 : index
    %c0_725 = arith.constant 0 : index
    %2096 = vector.load %arg6[%c72_724, %c0_725] : memref<144x128xf32, #tpu.memory_space<vmem>>, vector<8x128xf32>
    %2097 = arith.mulf %1691, %2095 : vector<8x128xf32>
    %2098 = arith.mulf %1692, %2096 : vector<8x128xf32>
    %2099 = arith.subf %2097, %2098 : vector<8x128xf32>
    %2100 = arith.mulf %1691, %2096 : vector<8x128xf32>
    %2101 = arith.mulf %1692, %2095 : vector<8x128xf32>
    %2102 = arith.addf %2100, %2101 : vector<8x128xf32>
    %c24_726 = arith.constant 24 : index
    %c0_727 = arith.constant 0 : index
    %2103 = vector.load %arg6[%c24_726, %c0_727] : memref<144x128xf32, #tpu.memory_space<vmem>>, vector<8x128xf32>
    %c96_728 = arith.constant 96 : index
    %c0_729 = arith.constant 0 : index
    %2104 = vector.load %arg6[%c96_728, %c0_729] : memref<144x128xf32, #tpu.memory_space<vmem>>, vector<8x128xf32>
    %2105 = arith.mulf %1740, %2103 : vector<8x128xf32>
    %2106 = arith.mulf %1742, %2104 : vector<8x128xf32>
    %2107 = arith.subf %2105, %2106 : vector<8x128xf32>
    %2108 = arith.mulf %1740, %2104 : vector<8x128xf32>
    %2109 = arith.mulf %1742, %2103 : vector<8x128xf32>
    %2110 = arith.addf %2108, %2109 : vector<8x128xf32>
    %c48_730 = arith.constant 48 : index
    %c0_731 = arith.constant 0 : index
    %2111 = vector.load %arg6[%c48_730, %c0_731] : memref<144x128xf32, #tpu.memory_space<vmem>>, vector<8x128xf32>
    %c120_732 = arith.constant 120 : index
    %c0_733 = arith.constant 0 : index
    %2112 = vector.load %arg6[%c120_732, %c0_733] : memref<144x128xf32, #tpu.memory_space<vmem>>, vector<8x128xf32>
    %2113 = arith.mulf %1787, %2111 : vector<8x128xf32>
    %2114 = arith.mulf %1788, %2112 : vector<8x128xf32>
    %2115 = arith.subf %2113, %2114 : vector<8x128xf32>
    %2116 = arith.mulf %1787, %2112 : vector<8x128xf32>
    %2117 = arith.mulf %1788, %2111 : vector<8x128xf32>
    %2118 = arith.addf %2116, %2117 : vector<8x128xf32>
    %2119 = arith.addf %2099, %2107 : vector<8x128xf32>
    %2120 = arith.addf %2102, %2110 : vector<8x128xf32>
    %2121 = arith.addf %2119, %2115 : vector<8x128xf32>
    %2122 = arith.addf %2120, %2118 : vector<8x128xf32>
    %2123 = arith.mulf %2121, %1854 : vector<8x128xf32>
    %2124 = arith.mulf %2122, %1851 : vector<8x128xf32>
    %2125 = arith.addf %2123, %2124 : vector<8x128xf32>
    %c8_734 = arith.constant 8 : index
    %c0_735 = arith.constant 0 : index
    %2126 = vector.load %arg6[%c8_734, %c0_735] : memref<144x128xf32, #tpu.memory_space<vmem>>, vector<8x128xf32>
    %c80_736 = arith.constant 80 : index
    %c0_737 = arith.constant 0 : index
    %2127 = vector.load %arg6[%c80_736, %c0_737] : memref<144x128xf32, #tpu.memory_space<vmem>>, vector<8x128xf32>
    %2128 = arith.mulf %1708, %2126 : vector<8x128xf32>
    %2129 = arith.mulf %1710, %2127 : vector<8x128xf32>
    %2130 = arith.subf %2128, %2129 : vector<8x128xf32>
    %2131 = arith.mulf %1708, %2127 : vector<8x128xf32>
    %2132 = arith.mulf %1710, %2126 : vector<8x128xf32>
    %2133 = arith.addf %2131, %2132 : vector<8x128xf32>
    %c32_738 = arith.constant 32 : index
    %c0_739 = arith.constant 0 : index
    %2134 = vector.load %arg6[%c32_738, %c0_739] : memref<144x128xf32, #tpu.memory_space<vmem>>, vector<8x128xf32>
    %c104_740 = arith.constant 104 : index
    %c0_741 = arith.constant 0 : index
    %2135 = vector.load %arg6[%c104_740, %c0_741] : memref<144x128xf32, #tpu.memory_space<vmem>>, vector<8x128xf32>
    %2136 = arith.mulf %1755, %2134 : vector<8x128xf32>
    %2137 = arith.mulf %1756, %2135 : vector<8x128xf32>
    %2138 = arith.subf %2136, %2137 : vector<8x128xf32>
    %2139 = arith.mulf %1755, %2135 : vector<8x128xf32>
    %2140 = arith.mulf %1756, %2134 : vector<8x128xf32>
    %2141 = arith.addf %2139, %2140 : vector<8x128xf32>
    %c56_742 = arith.constant 56 : index
    %c0_743 = arith.constant 0 : index
    %2142 = vector.load %arg6[%c56_742, %c0_743] : memref<144x128xf32, #tpu.memory_space<vmem>>, vector<8x128xf32>
    %c128_744 = arith.constant 128 : index
    %c0_745 = arith.constant 0 : index
    %2143 = vector.load %arg6[%c128_744, %c0_745] : memref<144x128xf32, #tpu.memory_space<vmem>>, vector<8x128xf32>
    %2144 = arith.mulf %1804, %2142 : vector<8x128xf32>
    %2145 = arith.mulf %1806, %2143 : vector<8x128xf32>
    %2146 = arith.subf %2144, %2145 : vector<8x128xf32>
    %2147 = arith.mulf %1804, %2143 : vector<8x128xf32>
    %2148 = arith.mulf %1806, %2142 : vector<8x128xf32>
    %2149 = arith.addf %2147, %2148 : vector<8x128xf32>
    %2150 = arith.addf %2130, %2138 : vector<8x128xf32>
    %2151 = arith.addf %2133, %2141 : vector<8x128xf32>
    %2152 = arith.addf %2150, %2146 : vector<8x128xf32>
    %2153 = arith.addf %2151, %2149 : vector<8x128xf32>
    %2154 = arith.mulf %2152, %1854 : vector<8x128xf32>
    %2155 = arith.mulf %2153, %1851 : vector<8x128xf32>
    %2156 = arith.addf %2154, %2155 : vector<8x128xf32>
    %c16_746 = arith.constant 16 : index
    %c0_747 = arith.constant 0 : index
    %2157 = vector.load %arg6[%c16_746, %c0_747] : memref<144x128xf32, #tpu.memory_space<vmem>>, vector<8x128xf32>
    %c88_748 = arith.constant 88 : index
    %c0_749 = arith.constant 0 : index
    %2158 = vector.load %arg6[%c88_748, %c0_749] : memref<144x128xf32, #tpu.memory_space<vmem>>, vector<8x128xf32>
    %2159 = arith.mulf %1723, %2157 : vector<8x128xf32>
    %2160 = arith.mulf %1724, %2158 : vector<8x128xf32>
    %2161 = arith.subf %2159, %2160 : vector<8x128xf32>
    %2162 = arith.mulf %1723, %2158 : vector<8x128xf32>
    %2163 = arith.mulf %1724, %2157 : vector<8x128xf32>
    %2164 = arith.addf %2162, %2163 : vector<8x128xf32>
    %c40_750 = arith.constant 40 : index
    %c0_751 = arith.constant 0 : index
    %2165 = vector.load %arg6[%c40_750, %c0_751] : memref<144x128xf32, #tpu.memory_space<vmem>>, vector<8x128xf32>
    %c112_752 = arith.constant 112 : index
    %c0_753 = arith.constant 0 : index
    %2166 = vector.load %arg6[%c112_752, %c0_753] : memref<144x128xf32, #tpu.memory_space<vmem>>, vector<8x128xf32>
    %2167 = arith.mulf %1772, %2165 : vector<8x128xf32>
    %2168 = arith.mulf %1774, %2166 : vector<8x128xf32>
    %2169 = arith.subf %2167, %2168 : vector<8x128xf32>
    %2170 = arith.mulf %1772, %2166 : vector<8x128xf32>
    %2171 = arith.mulf %1774, %2165 : vector<8x128xf32>
    %2172 = arith.addf %2170, %2171 : vector<8x128xf32>
    %c64_754 = arith.constant 64 : index
    %c0_755 = arith.constant 0 : index
    %2173 = vector.load %arg6[%c64_754, %c0_755] : memref<144x128xf32, #tpu.memory_space<vmem>>, vector<8x128xf32>
    %c136_756 = arith.constant 136 : index
    %c0_757 = arith.constant 0 : index
    %2174 = vector.load %arg6[%c136_756, %c0_757] : memref<144x128xf32, #tpu.memory_space<vmem>>, vector<8x128xf32>
    %2175 = arith.mulf %1819, %2173 : vector<8x128xf32>
    %2176 = arith.mulf %1820, %2174 : vector<8x128xf32>
    %2177 = arith.subf %2175, %2176 : vector<8x128xf32>
    %2178 = arith.mulf %1819, %2174 : vector<8x128xf32>
    %2179 = arith.mulf %1820, %2173 : vector<8x128xf32>
    %2180 = arith.addf %2178, %2179 : vector<8x128xf32>
    %2181 = arith.addf %2161, %2169 : vector<8x128xf32>
    %2182 = arith.addf %2164, %2172 : vector<8x128xf32>
    %2183 = arith.addf %2181, %2177 : vector<8x128xf32>
    %2184 = arith.addf %2182, %2180 : vector<8x128xf32>
    %2185 = arith.mulf %2183, %1854 : vector<8x128xf32>
    %2186 = arith.mulf %2184, %1851 : vector<8x128xf32>
    %2187 = arith.addf %2185, %2186 : vector<8x128xf32>
    %2188 = arith.addf %2125, %2156 : vector<8x128xf32>
    %2189 = arith.addf %2188, %2187 : vector<8x128xf32>
    %cst_758 = arith.constant 0.333333343 : f32
    %2190 = vector.broadcast %cst_758 : f32 to vector<8x128xf32>
    %2191 = arith.mulf %2189, %2190 : vector<8x128xf32>
    %2192 = arith.subf %2125, %2191 : vector<8x128xf32>
    %c432_759 = arith.constant 432 : index
    %c0_760 = arith.constant 0 : index
    %2193 = vector.load %arg5[%c432_759, %c0_760] : memref<576x128xf32, #tpu.memory_space<vmem>>, vector<8x128xf32>
    tpu.vector_store %arg5[%c432_759, %c0_760], %0 {strides = array<i32>} : memref<576x128xf32, #tpu.memory_space<vmem>>, vector<8x128xf32>,
    %c504_761 = arith.constant 504 : index
    %c0_762 = arith.constant 0 : index
    %2194 = vector.load %arg5[%c504_761, %c0_762] : memref<576x128xf32, #tpu.memory_space<vmem>>, vector<8x128xf32>
    tpu.vector_store %arg5[%c504_761, %c0_762], %2192 {strides = array<i32>} : memref<576x128xf32, #tpu.memory_space<vmem>>, vector<8x128xf32>,
    %2195 = arith.subf %2156, %2191 : vector<8x128xf32>
    %c464 = arith.constant 464 : index
    %c0_763 = arith.constant 0 : index
    %2196 = vector.load %arg5[%c464, %c0_763] : memref<576x128xf32, #tpu.memory_space<vmem>>, vector<8x128xf32>
    tpu.vector_store %arg5[%c464, %c0_763], %0 {strides = array<i32>} : memref<576x128xf32, #tpu.memory_space<vmem>>, vector<8x128xf32>,
    %c536_764 = arith.constant 536 : index
    %c0_765 = arith.constant 0 : index
    %2197 = vector.load %arg5[%c536_764, %c0_765] : memref<576x128xf32, #tpu.memory_space<vmem>>, vector<8x128xf32>
    tpu.vector_store %arg5[%c536_764, %c0_765], %2195 {strides = array<i32>} : memref<576x128xf32, #tpu.memory_space<vmem>>, vector<8x128xf32>,
    %2198 = arith.subf %2187, %2191 : vector<8x128xf32>
    %c496_766 = arith.constant 496 : index
    %c0_767 = arith.constant 0 : index
    %2199 = vector.load %arg5[%c496_766, %c0_767] : memref<576x128xf32, #tpu.memory_space<vmem>>, vector<8x128xf32>
    tpu.vector_store %arg5[%c496_766, %c0_767], %0 {strides = array<i32>} : memref<576x128xf32, #tpu.memory_space<vmem>>, vector<8x128xf32>,
    %c568_768 = arith.constant 568 : index
    %c0_769 = arith.constant 0 : index
    %2200 = vector.load %arg5[%c568_768, %c0_769] : memref<576x128xf32, #tpu.memory_space<vmem>>, vector<8x128xf32>
    tpu.vector_store %arg5[%c568_768, %c0_769], %2198 {strides = array<i32>} : memref<576x128xf32, #tpu.memory_space<vmem>>, vector<8x128xf32>,
    return
  }
  func.func @transform_0(%arg0: i32) -> (i32, i32) {
    %c0_i32 = arith.constant 0 : i32
    %c0_i32_0 = arith.constant 0 : i32
    return %arg0, %c0_i32 : i32, i32
  }
  func.func @transform_1(%arg0: i32) -> (i32, i32) {
    %c0_i32 = arith.constant 0 : i32
    %c0_i32_0 = arith.constant 0 : i32
    %c0_i32_1 = arith.constant 0 : i32
    return %c0_i32, %c0_i32_0 : i32, i32
  }
  func.func @transform_2(%arg0: i32) -> (i32, i32) {
    %c0_i32 = arith.constant 0 : i32
    %c0_i32_0 = arith.constant 0 : i32
    %c0_i32_1 = arith.constant 0 : i32
    return %c0_i32, %c0_i32_0 : i32, i32
  }
  func.func @transform_3(%arg0: i32) -> (i32, i32) {
    %c0_i32 = arith.constant 0 : i32
    %c0_i32_0 = arith.constant 0 : i32
    %c0_i32_1 = arith.constant 0 : i32
    return %c0_i32, %c0_i32_0 : i32, i32
  }
  func.func @transform_4(%arg0: i32) -> (i32, i32) {
    %c0_i32 = arith.constant 0 : i32
    %c0_i32_0 = arith.constant 0 : i32
    return %arg0, %c0_i32 : i32, i32
  }
}

</mosaic_0001>

<llo_original>
// kernel: tpu_custom_call.1
$region0: #{tpu_custom_call.1}
  #allocation0 [shape = 'u32[]', space=smem, size = 0x4, offset = 0x4, fixed_abs, tag = 'smem constant byte address 0x4 - core index']
  #allocation1 [shape = 'u32[144,128]{1,0:T(1,128)}', space=vmem, size = 0x12000, scoped, tag = 'internal scratch']
  #allocation2 [shape = 'f32[144,128]{1,0:T(8,128)}', space=vmem, size = 0x12000, scoped, tag = 'scratch operand']
  %s0 = inlined_call_operand.hbm [shape: f32[1280,128], index: 0, kind: input, shape index: {}]
  %s1 = inlined_call_operand.vmem [shape: f32[256,160], index: 1, kind: input, shape index: {}]
  %s2 = inlined_call_operand.vmem [shape: f32[144,256], index: 2, kind: input, shape index: {}]
  %s3 = inlined_call_operand.vmem [shape: f32[144,1], index: 3, kind: input, shape index: {}]
  %s4 = inlined_call_operand.hbm [shape: f32[1152,128], index: 4, kind: output, shape index: {}]
  %s5 = sld [smem:[#allocation0]]
  $region53: #{tpu_custom_call.1} parent=0
    _
  %s7 = ssub.s32 1, %s5
  %s8 = scalar_select 0, %s7, %s5
  $region1: #{tpu_custom_call.1} parent=0
    #allocation3 [shape = 'u8[655360]{0}', space=vmem, size = 0xa0000, scoped, tag = 'input window, operand 0']
    #allocation4 [shape = 's32[2]{0}', space=sflag, size = 0x8, scoped, tag = 'scoped memory for tpu_custom_call.1']
    #allocation5 [shape = 's32[2]{0}', space=sflag, size = 0x8, scoped, tag = 'scoped memory for tpu_custom_call.1']
    #allocation6 [shape = 'u8[589824]{0}', space=vmem, size = 0x90000, scoped, tag = 'output window, operand 0']
    %9 = vsyncpa [#allocation4], 0
    %s10 = scalar_lea.sflag [#allocation4], 1
    %11 = vsyncpa %s10, 0
    %12 = vsyncpa [#allocation5], 0
    %s13 = scalar_lea.sflag [#allocation5], 1
    %14 = vsyncpa %s13, 0
    loop: start=0, step=1, limit=4
    $region2: #{tpu_custom_call.1} parent=1 // loop_pre_header
      _
    $region3: #{tpu_custom_call.1} parent=1 // loop_header
      %s16 = sphi 0, %s20
      %p17 = scmp.ge.s32.totalorder %s16, 4
      %s26 = sphi 0, %s28
      %s29 = sphi 0, %s26
      %s30 = sphi 0, %s29
      %s46 = sphi 0, %s30
      %s50 = sphi 0, %s50
      %s52 = sphi 0, %s50
      %s53 = sphi 0, %s52
      %s67 = sphi 0, %s53
      %s71 = sphi 0, %s71
      %s73 = sphi 0, %s71
      %s74 = sphi 0, %s73
      %s88 = sphi 0, %s74
      %s92 = sphi 0, %s92
      %s94 = sphi 0, %s92
      %s95 = sphi 0, %s94
      %s109 = sphi 0, %s95
      %s115 = sphi 0, %s117
      %s118 = sphi 0, %s115
      %s119 = sphi 0, %s118
      %s135 = sphi 0, %s119
    $region4: #{tpu_custom_call.1} parent=1 // loop_header_branch
      %19 = sbr.rel (%p17) target = $region8
    $region5: #{tpu_custom_call.1} parent=1 // loop_body
      %s21 = ssub.s32 %s16, 1
      %s22 = ssub.s32 %s16, 2
      %s23 = sadd.s32 %s16, 1
      %s24 = ssub.s32 %s16, %s23
      %p25 = scmp.eq.s32.totalorder %s24, 0
      %s27 = sadd.s32 %s26, 1
      %s28 = scalar_select %p25, %s26, %s27
      %p31 = pneg %p25
      %p32 = scmp.eq.s32.totalorder %s16, 1
      %p33 = por %p31, %p32
      %p34 = scmp.ne.s32.totalorder %s26, %s29
      %p35 = scmp.eq.s32.totalorder %s16, 0
      %p36 = por %p34, %p35
      %p37 = scmp.ne.s32.totalorder %s26, %s29
      %p38 = scmp.eq.s32.totalorder %s21, 1
      %p39 = por %p37, %p38
      %p40 = scmp.ne.s32.totalorder %s29, %s30
      %p41 = scmp.eq.s32.totalorder %s21, 0
      %p42 = por %p40, %p41
      %p43 = scmp.ne.s32.totalorder %s29, %s30
      %p44 = scmp.eq.s32.totalorder %s22, 1
      %p45 = por %p43, %p44
      %p47 = scmp.ne.s32.totalorder %s30, %s46
      %p48 = scmp.eq.s32.totalorder %s22, 0
      %p49 = por %p47, %p48
      %s51 = sadd.s32 %s50, 1
      %p54 = scmp.eq.s32.totalorder %s16, 1
      %p55 = scmp.ne.s32.totalorder %s50, %s52
      %p56 = scmp.eq.s32.totalorder %s16, 0
      %p57 = por %p55, %p56
      %p58 = scmp.ne.s32.totalorder %s50, %s52
      %p59 = scmp.eq.s32.totalorder %s21, 1
      %p60 = por %p58, %p59
      %p61 = scmp.ne.s32.totalorder %s52, %s53
      %p62 = scmp.eq.s32.totalorder %s21, 0
      %p63 = por %p61, %p62
      %p64 = scmp.ne.s32.totalorder %s52, %s53
      %p65 = scmp.eq.s32.totalorder %s22, 1
      %p66 = por %p64, %p65
      %p68 = scmp.ne.s32.totalorder %s53, %s67
      %p69 = scmp.eq.s32.totalorder %s22, 0
      %p70 = por %p68, %p69
      %s72 = sadd.s32 %s71, 1
      %p75 = scmp.eq.s32.totalorder %s16, 1
      %p76 = scmp.ne.s32.totalorder %s71, %s73
      %p77 = scmp.eq.s32.totalorder %s16, 0
      %p78 = por %p76, %p77
      %p79 = scmp.ne.s32.totalorder %s71, %s73
      %p80 = scmp.eq.s32.totalorder %s21, 1
      %p81 = por %p79, %p80
      %p82 = scmp.ne.s32.totalorder %s73, %s74
      %p83 = scmp.eq.s32.totalorder %s21, 0
      %p84 = por %p82, %p83
      %p85 = scmp.ne.s32.totalorder %s73, %s74
      %p86 = scmp.eq.s32.totalorder %s22, 1
      %p87 = por %p85, %p86
      %p89 = scmp.ne.s32.totalorder %s74, %s88
      %p90 = scmp.eq.s32.totalorder %s22, 0
      %p91 = por %p89, %p90
      %s93 = sadd.s32 %s92, 1
      %p96 = scmp.eq.s32.totalorder %s16, 1
      %p97 = scmp.ne.s32.totalorder %s92, %s94
      %p98 = scmp.eq.s32.totalorder %s16, 0
      %p99 = por %p97, %p98
      %p100 = scmp.ne.s32.totalorder %s92, %s94
      %p101 = scmp.eq.s32.totalorder %s21, 1
      %p102 = por %p100, %p101
      %p103 = scmp.ne.s32.totalorder %s94, %s95
      %p104 = scmp.eq.s32.totalorder %s21, 0
      %p105 = por %p103, %p104
      %p106 = scmp.ne.s32.totalorder %s94, %s95
      %p107 = scmp.eq.s32.totalorder %s22, 1
      %p108 = por %p106, %p107
      %p110 = scmp.ne.s32.totalorder %s95, %s109
      %p111 = scmp.eq.s32.totalorder %s22, 0
      %p112 = por %p110, %p111
      %s113 = ssub.s32 %s16, %s23
      %p114 = scmp.eq.s32.totalorder %s113, 0
      %s116 = sadd.s32 %s115, 1
      %s117 = scalar_select %p114, %s115, %s116
      %p120 = pneg %p114
      %p121 = scmp.eq.s32.totalorder %s16, 1
      %p122 = por %p120, %p121
      %p123 = scmp.ne.s32.totalorder %s115, %s118
      %p124 = scmp.eq.s32.totalorder %s16, 0
      %p125 = por %p123, %p124
      %p126 = scmp.ne.s32.totalorder %s115, %s118
      %p127 = scmp.eq.s32.totalorder %s21, 1
      %p128 = por %p126, %p127
      %p129 = scmp.ne.s32.totalorder %s118, %s119
      %p130 = scmp.eq.s32.totalorder %s21, 0
      %p131 = por %p129, %p130
      %p132 = scmp.ne.s32.totalorder %s118, %s119
      %p133 = scmp.eq.s32.totalorder %s22, 1
      %p134 = por %p132, %p133
      %p136 = scmp.ne.s32.totalorder %s119, %s135
      %p137 = scmp.eq.s32.totalorder %s22, 0
      %p138 = por %p136, %p137
      %p139 = scmp.le.s32.totalorder 1, %s16
      %p140 = scmp.lt.s32.totalorder %s16, 3
      %p141 = pnand %p139, %p140
      %p142 = pneg %p141
      // Predicated region
      $region9: #{tpu_custom_call.1} parent=5 // pred_check
        _
      $region10: #{tpu_custom_call.1} parent=5 // pred_check_branch
        %144 = sbr.rel (%p141) target = $region12
      $region11: #{tpu_custom_call.1} parent=5 // pred_region
        %s145 = ssub.s32 %s16, 1
        // Predicated region
        $region13: #{tpu_custom_call.1} parent=11 // pred_check
          %p146 = pneg %p63
        $region14: #{tpu_custom_call.1} parent=11 // pred_check_branch
          %148 = sbr.rel (%p146) target = $region16
        $region15: #{tpu_custom_call.1} parent=11 // pred_region
          _
        $region16: #{tpu_custom_call.1} parent=11 // pred_fallthru
          _
        // Predicated region
        $region17: #{tpu_custom_call.1} parent=11 // pred_check
          %p149 = pneg %p84
        $region18: #{tpu_custom_call.1} parent=11 // pred_check_branch
          %151 = sbr.rel (%p149) target = $region20
        $region19: #{tpu_custom_call.1} parent=11 // pred_region
          _
        $region20: #{tpu_custom_call.1} parent=11 // pred_fallthru
          _
        // Predicated region
        $region21: #{tpu_custom_call.1} parent=11 // pred_check
          %p152 = pneg %p105
        $region22: #{tpu_custom_call.1} parent=11 // pred_check_branch
          %154 = sbr.rel (%p152) target = $region24
        $region23: #{tpu_custom_call.1} parent=11 // pred_region
          _
        $region24: #{tpu_custom_call.1} parent=11 // pred_fallthru
          _
      $region12: #{tpu_custom_call.1} parent=5 // pred_fallthru
        _
      %p155 = scmp.lt.s32.totalorder %s16, 2
      // Predicated region
      $region25: #{tpu_custom_call.1} parent=5 // pred_check
        %p156 = pneg %p155
      $region26: #{tpu_custom_call.1} parent=5 // pred_check_branch
        %158 = sbr.rel (%p156) target = $region28
      $region27: #{tpu_custom_call.1} parent=5 // pred_region
        // Predicated region
        $region29: #{tpu_custom_call.1} parent=27 // pred_check
          %p159 = pneg %p36
        $region30: #{tpu_custom_call.1} parent=27 // pred_check_branch
          %161 = sbr.rel (%p159) target = $region32
        $region31: #{tpu_custom_call.1} parent=27 // pred_region
          %s162 = sand.u32 %s26, 1
          %s163 = scalar_lea.sflag [#allocation4], %s162
          %s164 = sand.u32 %s26, 1
          %s165 = smul.addr %s164, 640
          %s166 = scalar_lea.vmem [#allocation3], %s165
          %s167 = smul.u32 80, %s16
          %s169 = ssub.s32 10240, 10240
          %170 = vsyncadd %s163, %s169
          %s171 = smul.addr %s167, 128
          %s172 = scalar_lea.hbm %s0, %s171
          %s173 = sshll.u32 %s166, 4
          %s174 = int_to_ptr.vmem [resolvable:$true] %s173
          %179 = dma.hbm_to_vmem [thread:$0]  %s172, 10240, %s174, %s163, 128, 128, 8
        $region32: #{tpu_custom_call.1} parent=27 // pred_fallthru
          _
      $region28: #{tpu_custom_call.1} parent=5 // pred_fallthru
        _
      %p180 = scmp.le.s32.totalorder 1, %s16
      %p181 = scmp.lt.s32.totalorder %s16, 3
      %p182 = pnand %p180, %p181
      %p183 = pneg %p182
      // Predicated region
      $region33: #{tpu_custom_call.1} parent=5 // pred_check
        _
      $region34: #{tpu_custom_call.1} parent=5 // pred_check_branch
        %185 = sbr.rel (%p182) target = $region36
      $region35: #{tpu_custom_call.1} parent=5 // pred_region
        %s186 = ssub.s32 %s16, 1
        %s187 = sand.u32 %s29, 1
        %s188 = scalar_lea.sflag [#allocation4], %s187
        %s189 = sand.u32 %s29, 1
        %s190 = smul.addr %s189, 640
        %s191 = scalar_lea.vmem [#allocation3], %s190
        // Predicated region
        $region37: #{tpu_custom_call.1} parent=35 // pred_check
          %p192 = pneg %p42
        $region38: #{tpu_custom_call.1} parent=35 // pred_check_branch
          %194 = sbr.rel (%p192) target = $region40
        $region39: #{tpu_custom_call.1} parent=35 // pred_region
          %195 = dma.done %s188, 10240
        $region40: #{tpu_custom_call.1} parent=35 // pred_fallthru
          _
        %s196 = sand.u32 %s29, 1
        %s197 = scalar_lea.sflag [#allocation4], %s196
        %s198 = sand.u32 %s29, 1
        %s199 = smul.addr %s198, 640
        %s200 = scalar_lea.vmem [#allocation3], %s199
        %p201 = pneg %p42
        %p202 = pneg %p39
        %p203 = pneg %p63
        %p204 = pneg %p60
        %p205 = pneg %p84
        %p206 = pneg %p81
        %p207 = pneg %p105
        %p208 = pneg %p102
        %p209 = pneg %p131
        %p210 = pneg %p128
        %s211 = sand.u32 %s118, 1
        %s212 = scalar_lea.sflag [#allocation5], %s211
        %s213 = sand.u32 %s118, 1
        %s214 = smul.addr %s213, 576
        %s215 = scalar_lea.vmem [#allocation6], %s214
        %s216 = smul.u32 80, %s21
        %s217 = smul.u32 72, %s21
        %v218 = vld [vmem:[%s191] sm:$0xff]
        %v219 = vld [vmem:[%s191 + $0x8] sm:$0xff]
        %v220 = vld [vmem:[%s191 + $0x10] sm:$0xff]
        %v221 = vld [vmem:[%s191 + $0x18] sm:$0xff]
        %v222 = vld [vmem:[%s191 + $0x20] sm:$0xff]
        %v223 = vld [vmem:[%s191 + $0x28] sm:$0xff]
        %v224 = vld [vmem:[%s191 + $0x30] sm:$0xff]
        %v225 = vld [vmem:[%s191 + $0x38] sm:$0xff]
        %v226 = vld [vmem:[%s191 + $0x40] sm:$0xff]
        %v227 = vld [vmem:[%s191 + $0x48] sm:$0xff]
        %v228 = vld [vmem:[%s191 + $0x50] sm:$0xff]
        %v229 = vld [vmem:[%s191 + $0x58] sm:$0xff]
        %v230 = vld [vmem:[%s191 + $0x60] sm:$0xff]
        %v231 = vld [vmem:[%s191 + $0x68] sm:$0xff]
        %v232 = vld [vmem:[%s191 + $0x70] sm:$0xff]
        %v233 = vld [vmem:[%s191 + $0x78] sm:$0xff]
        %v234 = vld [vmem:[%s191 + $0x80] sm:$0xff]
        %v235 = vld [vmem:[%s191 + $0x88] sm:$0xff]
        %v236 = vld [vmem:[%s191 + $0x90] sm:$0xff]
        %v237 = vld [vmem:[%s191 + $0x98] sm:$0xff]
        %v238 = vld [vmem:[%s1] sm:$0xff]
        %v239 = vld [vmem:[%s1 + $0x8] sm:$0xff]
        %v240 = vld [vmem:[%s1 + $0x10] sm:$0xff]
        %v241 = vld [vmem:[%s1 + $0x18] sm:$0xff]
        %v242 = vld [vmem:[%s1 + $0x20] sm:$0xff]
        %v243 = vld [vmem:[%s1 + $0x28] sm:$0xff]
        %v244 = vld [vmem:[%s1 + $0x30] sm:$0xff]
        %v245 = vld [vmem:[%s1 + $0x38] sm:$0xff]
        %v246 = vld [vmem:[%s1 + $0x40] sm:$0xff]
        %v247 = vld [vmem:[%s1 + $0x48] sm:$0xff]
        %v248 = vld [vmem:[%s1 + $0x50] sm:$0xff]
        %v249 = vld [vmem:[%s1 + $0x58] sm:$0xff]
        %v250 = vld [vmem:[%s1 + $0x60] sm:$0xff]
        %v251 = vld [vmem:[%s1 + $0x68] sm:$0xff]
        %v252 = vld [vmem:[%s1 + $0x70] sm:$0xff]
        %v253 = vld [vmem:[%s1 + $0x78] sm:$0xff]
        %v254 = vld [vmem:[%s1 + $0x80] sm:$0xff]
        %v255 = vld [vmem:[%s1 + $0x88] sm:$0xff]
        %v256 = vld [vmem:[%s1 + $0x90] sm:$0xff]
        %v257 = vld [vmem:[%s1 + $0x98] sm:$0xff]
        %v258 = vld [vmem:[%s1 + $0xa0] sm:$0xff]
        %v259 = vld [vmem:[%s1 + $0xa8] sm:$0xff]
        %v260 = vld [vmem:[%s1 + $0xb0] sm:$0xff]
        %v261 = vld [vmem:[%s1 + $0xb8] sm:$0xff]
        %v262 = vld [vmem:[%s1 + $0xc0] sm:$0xff]
        %v263 = vld [vmem:[%s1 + $0xc8] sm:$0xff]
        %v264 = vld [vmem:[%s1 + $0xd0] sm:$0xff]
        %v265 = vld [vmem:[%s1 + $0xd8] sm:$0xff]
        %v266 = vld [vmem:[%s1 + $0xe0] sm:$0xff]
        %v267 = vld [vmem:[%s1 + $0xe8] sm:$0xff]
        %v268 = vld [vmem:[%s1 + $0xf0] sm:$0xff]
        %v269 = vld [vmem:[%s1 + $0xf8] sm:$0xff]
        %v270 = vld [vmem:[%s1 + $0x100] sm:$0xff]
        %v271 = vld [vmem:[%s1 + $0x108] sm:$0xff]
        %v272 = vld [vmem:[%s1 + $0x110] sm:$0xff]
        %v273 = vld [vmem:[%s1 + $0x118] sm:$0xff]
        %v274 = vld [vmem:[%s1 + $0x120] sm:$0xff]
        %v275 = vld [vmem:[%s1 + $0x128] sm:$0xff]
        %v276 = vld [vmem:[%s1 + $0x130] sm:$0xff]
        %v277 = vld [vmem:[%s1 + $0x138] sm:$0xff]
        %v278 = vld [vmem:[%s1 + $0x140] sm:$0xff]
        %v279 = vld [vmem:[%s1 + $0x148] sm:$0xff]
        %v280 = vld [vmem:[%s1 + $0x150] sm:$0xff]
        %v281 = vld [vmem:[%s1 + $0x158] sm:$0xff]
        %v282 = vld [vmem:[%s1 + $0x160] sm:$0xff]
        %v283 = vld [vmem:[%s1 + $0x168] sm:$0xff]
        %v284 = vld [vmem:[%s1 + $0x170] sm:$0xff]
        %v285 = vld [vmem:[%s1 + $0x178] sm:$0xff]
        %v286 = vld [vmem:[%s1 + $0x180] sm:$0xff]
        %v287 = vld [vmem:[%s1 + $0x188] sm:$0xff]
        %v288 = vld [vmem:[%s1 + $0x190] sm:$0xff]
        %v289 = vld [vmem:[%s1 + $0x198] sm:$0xff]
        %v290 = vld [vmem:[%s1 + $0x1a0] sm:$0xff]
        %v291 = vld [vmem:[%s1 + $0x1a8] sm:$0xff]
        %v292 = vld [vmem:[%s1 + $0x1b0] sm:$0xff]
        %v293 = vld [vmem:[%s1 + $0x1b8] sm:$0xff]
        %v294 = vld [vmem:[%s1 + $0x1c0] sm:$0xff]
        %v295 = vld [vmem:[%s1 + $0x1c8] sm:$0xff]
        %v296 = vld [vmem:[%s1 + $0x1d0] sm:$0xff]
        %v297 = vld [vmem:[%s1 + $0x1d8] sm:$0xff]
        %v298 = vld [vmem:[%s1 + $0x1e0] sm:$0xff]
        %v299 = vld [vmem:[%s1 + $0x1e8] sm:$0xff]
        %v300 = vld [vmem:[%s1 + $0x1f0] sm:$0xff]
        %v301 = vld [vmem:[%s1 + $0x1f8] sm:$0xff]
        %vm302 = vcmask 261120
        %v304 = vsel %vm302, %v239, 0
        %v307 = vsel %vm302, %v241, 0
        %v310 = vsel %vm302, %v243, 0
        %v313 = vsel %vm302, %v245, 0
        %v316 = vsel %vm302, %v247, 0
        %v319 = vsel %vm302, %v249, 0
        %v322 = vsel %vm302, %v251, 0
        %v325 = vsel %vm302, %v253, 0
        %v328 = vsel %vm302, %v255, 0
        %v331 = vsel %vm302, %v257, 0
        %v334 = vsel %vm302, %v259, 0
        %v337 = vsel %vm302, %v261, 0
        %v340 = vsel %vm302, %v263, 0
        %v343 = vsel %vm302, %v265, 0
        %v346 = vsel %vm302, %v267, 0
        %v349 = vsel %vm302, %v269, 0
        %v352 = vsel %vm302, %v271, 0
        %v355 = vsel %vm302, %v273, 0
        %v358 = vsel %vm302, %v275, 0
        %v361 = vsel %vm302, %v277, 0
        %v364 = vsel %vm302, %v279, 0
        %v367 = vsel %vm302, %v281, 0
        %v370 = vsel %vm302, %v283, 0
        %v373 = vsel %vm302, %v285, 0
        %v376 = vsel %vm302, %v287, 0
        %v379 = vsel %vm302, %v289, 0
        %v382 = vsel %vm302, %v291, 0
        %v385 = vsel %vm302, %v293, 0
        %v388 = vsel %vm302, %v295, 0
        %v391 = vsel %vm302, %v297, 0
        %v394 = vsel %vm302, %v299, 0
        %v397 = vsel %vm302, %v301, 0
        %399 = vmatprep.subr.mxu0 0.0
        %400 = vmatpush1.msra.mxu0 %v218
        %401 = vmatprep.subr.mxu0 0.0
        %402 = vmatpush1.msra.mxu0 %v219
        %403 = vmatprep.subr.mxu0 0.0
        %404 = vmatpush1.msra.mxu0 %v220
        %405 = vmatprep.subr.mxu0 0.0
        %406 = vmatpush1.msra.mxu0 %v221
        %407 = vmatprep.subr.mxu0 0.0
        %408 = vmatpush1.msra.mxu0 %v222
        %409 = vmatprep.subr.mxu0 0.0
        %410 = vmatpush1.msra.mxu0 %v223
        %411 = vmatprep.subr.mxu0 0.0
        %412 = vmatpush1.msra.mxu0 %v224
        %413 = vmatprep.subr.mxu0 0.0
        %414 = vmatpush1.msra.mxu0 %v225
        %415 = vmatprep.subr.mxu0 0.0
        %416 = vmatpush1.msra.mxu0 %v226
        %417 = vmatprep.subr.mxu0 0.0
        %418 = vmatpush1.msra.mxu0 %v227
        %419 = vmatprep.subr.mxu0 0.0
        %420 = vmatpush1.msra.mxu0 %v228
        %421 = vmatprep.subr.mxu0 0.0
        %422 = vmatpush1.msra.mxu0 %v229
        %423 = vmatprep.subr.mxu0 0.0
        %424 = vmatpush1.msra.mxu0 %v230
        %425 = vmatprep.subr.mxu0 0.0
        %426 = vmatpush1.msra.mxu0 %v231
        %427 = vmatprep.subr.mxu0 0.0
        %428 = vmatpush1.msra.mxu0 %v232
        %429 = vmatprep.subr.mxu0 0.0
        %430 = vmatpush1.msra.mxu0 %v233
        %431 = vmatprep.subr.mxu0 0.0
        %432 = vmatpush1.msra.mxu0 %v234
        %433 = vmatprep.subr.mxu0 0.0
        %434 = vmatpush1.msra.mxu0 %v235
        %435 = vmatprep.subr.mxu0 0.0
        %436 = vmatpush1.msra.mxu0 %v236
        %437 = vmatprep.subr.mxu0 0.0
        %438 = vmatpush1.msra.mxu0 %v237
        %439 = vmatprep.subr.mxu0 0.0
        %440 = vmatpush1.msra.mxu0 0.0
        %441 = vmatprep.subr.mxu0 0.0
        %442 = vmatpush1.msra.mxu0 0.0
        %443 = vmatprep.subr.mxu0 0.0
        %444 = vmatpush1.msra.mxu0 0.0
        %445 = vmatprep.subr.mxu0 0.0
        %446 = vmatpush1.msra.mxu0 0.0
        %447 = vmatprep.subr.mxu0 0.0
        %448 = vmatpush1.msra.mxu0 0.0
        %449 = vmatprep.subr.mxu0 0.0
        %450 = vmatpush1.msra.mxu0 0.0
        %451 = vmatprep.subr.mxu0 0.0
        %452 = vmatpush1.msra.mxu0 0.0
        %453 = vmatprep.subr.mxu0 0.0
        %454 = vmatpush1.msra.mxu0 0.0
        %455 = vmatprep.subr.mxu0 0.0
        %456 = vmatpush1.msra.mxu0 0.0
        %457 = vmatprep.subr.mxu0 0.0
        %458 = vmatpush1.msra.mxu0 0.0
        %459 = vmatprep.subr.mxu0 0.0
        %460 = vmatpush1.msra.mxu0 0.0
        %461 = vmatprep.subr.mxu0 0.0
        %462 = vmatpush1.msra.mxu0 0.0
        %463 = vmatprep.mubr.f32.mxu0 %v304
        %464 = vmatmul.mubr.f32.gmra.mrb[0].mxu0 %v238
        %v465 = vpop.f32.mrb[0].mxu0
        %v466 = vadd.f32 0.0, %v465
        %v467 = vpop.f32.mrb[0].mxu0
        %468 = vmatprep.mubr.f32.mxu0 %v307
        %469 = vmatmul.mubr.f32.gmra.mrb[0].mxu0 %v240
        %v470 = vpop.f32.mrb[0].mxu0
        %v471 = vadd.f32 0.0, %v470
        %v472 = vpop.f32.mrb[0].mxu0
        %473 = vmatprep.mubr.f32.mxu0 %v310
        %474 = vmatmul.mubr.f32.gmra.mrb[0].mxu0 %v242
        %v475 = vpop.f32.mrb[0].mxu0
        %v476 = vadd.f32 0.0, %v475
        %v477 = vpop.f32.mrb[0].mxu0
        %478 = vmatprep.mubr.f32.mxu0 %v313
        %479 = vmatmul.mubr.f32.gmra.mrb[0].mxu0 %v244
        %v480 = vpop.f32.mrb[0].mxu0
        %v481 = vadd.f32 0.0, %v480
        %v482 = vpop.f32.mrb[0].mxu0
        %483 = vmatprep.mubr.f32.mxu0 %v316
        %484 = vmatmul.mubr.f32.gmra.mrb[0].mxu0 %v246
        %v485 = vpop.f32.mrb[0].mxu0
        %v486 = vadd.f32 0.0, %v485
        %v487 = vpop.f32.mrb[0].mxu0
        %488 = vmatprep.mubr.f32.mxu0 %v319
        %489 = vmatmul.mubr.f32.gmra.mrb[0].mxu0 %v248
        %v490 = vpop.f32.mrb[0].mxu0
        %v491 = vadd.f32 0.0, %v490
        %v492 = vpop.f32.mrb[0].mxu0
        %493 = vmatprep.mubr.f32.mxu0 %v322
        %494 = vmatmul.mubr.f32.gmra.mrb[0].mxu0 %v250
        %v495 = vpop.f32.mrb[0].mxu0
        %v496 = vadd.f32 0.0, %v495
        %v497 = vpop.f32.mrb[0].mxu0
        %498 = vmatprep.mubr.f32.mxu0 %v325
        %499 = vmatmul.mubr.f32.gmra.mrb[0].mxu0 %v252
        %v500 = vpop.f32.mrb[0].mxu0
        %v501 = vadd.f32 0.0, %v500
        %v502 = vpop.f32.mrb[0].mxu0
        %503 = vmatprep.mubr.f32.mxu0 %v328
        %504 = vmatmul.mubr.f32.gmra.mrb[0].mxu0 %v254
        %v505 = vpop.f32.mrb[0].mxu0
        %v506 = vadd.f32 0.0, %v505
        %v507 = vpop.f32.mrb[0].mxu0
        %508 = vmatprep.mubr.f32.mxu0 %v331
        %509 = vmatmul.mubr.f32.gmra.mrb[0].mxu0 %v256
        %v510 = vpop.f32.mrb[0].mxu0
        %v511 = vadd.f32 0.0, %v510
        %v512 = vpop.f32.mrb[0].mxu0
        %513 = vmatprep.mubr.f32.mxu0 %v334
        %514 = vmatmul.mubr.f32.gmra.mrb[0].mxu0 %v258
        %v515 = vpop.f32.mrb[0].mxu0
        %v516 = vadd.f32 0.0, %v515
        %v517 = vpop.f32.mrb[0].mxu0
        %518 = vmatprep.mubr.f32.mxu0 %v337
        %519 = vmatmul.mubr.f32.gmra.mrb[0].mxu0 %v260
        %v520 = vpop.f32.mrb[0].mxu0
        %v521 = vadd.f32 0.0, %v520
        %v522 = vpop.f32.mrb[0].mxu0
        %523 = vmatprep.mubr.f32.mxu0 %v340
        %524 = vmatmul.mubr.f32.gmra.mrb[0].mxu0 %v262
        %v525 = vpop.f32.mrb[0].mxu0
        %v526 = vadd.f32 0.0, %v525
        %v527 = vpop.f32.mrb[0].mxu0
        %528 = vmatprep.mubr.f32.mxu0 %v343
        %529 = vmatmul.mubr.f32.gmra.mrb[0].mxu0 %v264
        %v530 = vpop.f32.mrb[0].mxu0
        %v531 = vadd.f32 0.0, %v530
        %v532 = vpop.f32.mrb[0].mxu0
        %533 = vmatprep.mubr.f32.mxu0 %v346
        %534 = vmatmul.mubr.f32.gmra.mrb[0].mxu0 %v266
        %v535 = vpop.f32.mrb[0].mxu0
        %v536 = vadd.f32 0.0, %v535
        %v537 = vpop.f32.mrb[0].mxu0
        %538 = vmatprep.mubr.f32.mxu0 %v349
        %539 = vmatmul.mubr.f32.gmra.mrb[0].mxu0 %v268
        %v540 = vpop.f32.mrb[0].mxu0
        %v541 = vadd.f32 0.0, %v540
        %v542 = vpop.f32.mrb[0].mxu0
        %543 = vmatprep.mubr.f32.mxu0 %v352
        %544 = vmatmul.mubr.f32.gmra.mrb[0].mxu0 %v270
        %v545 = vpop.f32.mrb[0].mxu0
        %v546 = vadd.f32 0.0, %v545
        %v547 = vpop.f32.mrb[0].mxu0
        %548 = vmatprep.mubr.f32.mxu0 %v355
        %549 = vmatmul.mubr.f32.gmra.mrb[0].mxu0 %v272
        %v550 = vpop.f32.mrb[0].mxu0
        %v551 = vadd.f32 0.0, %v550
        %v552 = vpop.f32.mrb[0].mxu0
        %553 = vmatprep.mubr.f32.mxu0 %v358
        %554 = vmatmul.mubr.f32.gmra.mrb[0].mxu0 %v274
        %v555 = vpop.f32.mrb[0].mxu0
        %v556 = vadd.f32 0.0, %v555
        %v557 = vpop.f32.mrb[0].mxu0
        %558 = vmatprep.mubr.f32.mxu0 %v361
        %559 = vmatmul.mubr.f32.gmra.mrb[0].mxu0 %v276
        %v560 = vpop.f32.mrb[0].mxu0
        %v561 = vadd.f32 0.0, %v560
        %v562 = vpop.f32.mrb[0].mxu0
        %563 = vmatprep.mubr.f32.mxu0 %v364
        %564 = vmatmul.mubr.f32.gmra.mrb[0].mxu0 %v278
        %v565 = vpop.f32.mrb[0].mxu0
        %v566 = vadd.f32 0.0, %v565
        %v567 = vpop.f32.mrb[0].mxu0
        %568 = vmatprep.mubr.f32.mxu0 %v367
        %569 = vmatmul.mubr.f32.gmra.mrb[0].mxu0 %v280
        %v570 = vpop.f32.mrb[0].mxu0
        %v571 = vadd.f32 0.0, %v570
        %v572 = vpop.f32.mrb[0].mxu0
        %573 = vmatprep.mubr.f32.mxu0 %v370
        %574 = vmatmul.mubr.f32.gmra.mrb[0].mxu0 %v282
        %v575 = vpop.f32.mrb[0].mxu0
        %v576 = vadd.f32 0.0, %v575
        %v577 = vpop.f32.mrb[0].mxu0
        %578 = vmatprep.mubr.f32.mxu0 %v373
        %579 = vmatmul.mubr.f32.gmra.mrb[0].mxu0 %v284
        %v580 = vpop.f32.mrb[0].mxu0
        %v581 = vadd.f32 0.0, %v580
        %v582 = vpop.f32.mrb[0].mxu0
        %583 = vmatprep.mubr.f32.mxu0 %v376
        %584 = vmatmul.mubr.f32.gmra.mrb[0].mxu0 %v286
        %v585 = vpop.f32.mrb[0].mxu0
        %v586 = vadd.f32 0.0, %v585
        %v587 = vpop.f32.mrb[0].mxu0
        %588 = vmatprep.mubr.f32.mxu0 %v379
        %589 = vmatmul.mubr.f32.gmra.mrb[0].mxu0 %v288
        %v590 = vpop.f32.mrb[0].mxu0
        %v591 = vadd.f32 0.0, %v590
        %v592 = vpop.f32.mrb[0].mxu0
        %593 = vmatprep.mubr.f32.mxu0 %v382
        %594 = vmatmul.mubr.f32.gmra.mrb[0].mxu0 %v290
        %v595 = vpop.f32.mrb[0].mxu0
        %v596 = vadd.f32 0.0, %v595
        %v597 = vpop.f32.mrb[0].mxu0
        %598 = vmatprep.mubr.f32.mxu0 %v385
        %599 = vmatmul.mubr.f32.gmra.mrb[0].mxu0 %v292
        %v600 = vpop.f32.mrb[0].mxu0
        %v601 = vadd.f32 0.0, %v600
        %v602 = vpop.f32.mrb[0].mxu0
        %603 = vmatprep.mubr.f32.mxu0 %v388
        %604 = vmatmul.mubr.f32.gmra.mrb[0].mxu0 %v294
        %v605 = vpop.f32.mrb[0].mxu0
        %v606 = vadd.f32 0.0, %v605
        %v607 = vpop.f32.mrb[0].mxu0
        %608 = vmatprep.mubr.f32.mxu0 %v391
        %609 = vmatmul.mubr.f32.gmra.mrb[0].mxu0 %v296
        %v610 = vpop.f32.mrb[0].mxu0
        %v611 = vadd.f32 0.0, %v610
        %v612 = vpop.f32.mrb[0].mxu0
        %613 = vmatprep.mubr.f32.mxu0 %v394
        %614 = vmatmul.mubr.f32.gmra.mrb[0].mxu0 %v298
        %v615 = vpop.f32.mrb[0].mxu0
        %v616 = vadd.f32 0.0, %v615
        %v617 = vpop.f32.mrb[0].mxu0
        %618 = vmatprep.mubr.f32.mxu0 %v397
        %619 = vmatmul.mubr.f32.gmra.mrb[0].mxu0 %v300
        %v620 = vpop.f32.mrb[0].mxu0
        %v621 = vadd.f32 0.0, %v620
        %v622 = vpop.f32.mrb[0].mxu0
        %623 = vdwg.mxu0
        %v624 = vtanh.pop %v466
        %v625 = vtanh.pop %v471
        %v626 = vtanh.pop %v476
        %v627 = vtanh.pop %v481
        %v628 = vtanh.pop %v486
        %v629 = vtanh.pop %v491
        %v630 = vtanh.pop %v496
        %v631 = vtanh.pop %v501
        %v632 = vtanh.pop %v506
        %v633 = vtanh.pop %v511
        %v634 = vtanh.pop %v516
        %v635 = vtanh.pop %v521
        %v636 = vtanh.pop %v526
        %v637 = vtanh.pop %v531
        %v638 = vtanh.pop %v536
        %v639 = vtanh.pop %v541
        %v640 = vtanh.pop %v546
        %v641 = vtanh.pop %v551
        %v642 = vtanh.pop %v556
        %v643 = vtanh.pop %v561
        %v644 = vtanh.pop %v566
        %v645 = vtanh.pop %v571
        %v646 = vtanh.pop %v576
        %v647 = vtanh.pop %v581
        %v648 = vtanh.pop %v586
        %v649 = vtanh.pop %v591
        %v650 = vtanh.pop %v596
        %v651 = vtanh.pop %v601
        %v652 = vtanh.pop %v606
        %v653 = vtanh.pop %v611
        %v654 = vtanh.pop %v616
        %v655 = vtanh.pop %v621
        %v656 = vld [vmem:[%s2] sm:$0xff]
        %v657 = vld [vmem:[%s2 + $0x8] sm:$0xff]
        %v658 = vld [vmem:[%s2 + $0x10] sm:$0xff]
        %v659 = vld [vmem:[%s2 + $0x18] sm:$0xff]
        %v660 = vld [vmem:[%s2 + $0x20] sm:$0xff]
        %v661 = vld [vmem:[%s2 + $0x28] sm:$0xff]
        %v662 = vld [vmem:[%s2 + $0x30] sm:$0xff]
        %v663 = vld [vmem:[%s2 + $0x38] sm:$0xff]
        %v664 = vld [vmem:[%s2 + $0x40] sm:$0xff]
        %v665 = vld [vmem:[%s2 + $0x48] sm:$0xff]
        %v666 = vld [vmem:[%s2 + $0x50] sm:$0xff]
        %v667 = vld [vmem:[%s2 + $0x58] sm:$0xff]
        %v668 = vld [vmem:[%s2 + $0x60] sm:$0xff]
        %v669 = vld [vmem:[%s2 + $0x68] sm:$0xff]
        %v670 = vld [vmem:[%s2 + $0x70] sm:$0xff]
        %v671 = vld [vmem:[%s2 + $0x78] sm:$0xff]
        %v672 = vld [vmem:[%s2 + $0x80] sm:$0xff]
        %v673 = vld [vmem:[%s2 + $0x88] sm:$0xff]
        %v674 = vld [vmem:[%s2 + $0x90] sm:$0xff]
        %v675 = vld [vmem:[%s2 + $0x98] sm:$0xff]
        %v676 = vld [vmem:[%s2 + $0xa0] sm:$0xff]
        %v677 = vld [vmem:[%s2 + $0xa8] sm:$0xff]
        %v678 = vld [vmem:[%s2 + $0xb0] sm:$0xff]
        %v679 = vld [vmem:[%s2 + $0xb8] sm:$0xff]
        %v680 = vld [vmem:[%s2 + $0xc0] sm:$0xff]
        %v681 = vld [vmem:[%s2 + $0xc8] sm:$0xff]
        %v682 = vld [vmem:[%s2 + $0xd0] sm:$0xff]
        %v683 = vld [vmem:[%s2 + $0xd8] sm:$0xff]
        %v684 = vld [vmem:[%s2 + $0xe0] sm:$0xff]
        %v685 = vld [vmem:[%s2 + $0xe8] sm:$0xff]
        %v686 = vld [vmem:[%s2 + $0xf0] sm:$0xff]
        %v687 = vld [vmem:[%s2 + $0xf8] sm:$0xff]
        %v688 = vld [vmem:[%s2 + $0x100] sm:$0xff]
        %v689 = vld [vmem:[%s2 + $0x108] sm:$0xff]
        %v690 = vld [vmem:[%s2 + $0x110] sm:$0xff]
        %v691 = vld [vmem:[%s2 + $0x118] sm:$0xff]
        %v692 = vld [vmem:[%s3] sm:$0xff]
        %v693 = vld [vmem:[%s3 + $0x8] sm:$0xff]
        %v694 = vld [vmem:[%s3 + $0x10] sm:$0xff]
        %v695 = vld [vmem:[%s3 + $0x18] sm:$0xff]
        %v696 = vld [vmem:[%s3 + $0x20] sm:$0xff]
        %v697 = vld [vmem:[%s3 + $0x28] sm:$0xff]
        %v698 = vld [vmem:[%s3 + $0x30] sm:$0xff]
        %v699 = vld [vmem:[%s3 + $0x38] sm:$0xff]
        %v700 = vld [vmem:[%s3 + $0x40] sm:$0xff]
        %v701 = vld [vmem:[%s3 + $0x48] sm:$0xff]
        %v702 = vld [vmem:[%s3 + $0x50] sm:$0xff]
        %v703 = vld [vmem:[%s3 + $0x58] sm:$0xff]
        %v704 = vld [vmem:[%s3 + $0x60] sm:$0xff]
        %v705 = vld [vmem:[%s3 + $0x68] sm:$0xff]
        %v706 = vld [vmem:[%s3 + $0x70] sm:$0xff]
        %v707 = vld [vmem:[%s3 + $0x78] sm:$0xff]
        %v708 = vld [vmem:[%s3 + $0x80] sm:$0xff]
        %v709 = vld [vmem:[%s3 + $0x88] sm:$0xff]
        %711 = vset.pattern.permute.xlu0 0
        %712 = vperm.xlu0 %711, %v692
        %v713 = vpop.permute.xlu0 %712
        %716 = vset.pattern.permute.xlu0 0
        %717 = vperm.xlu0 %716, %v693
        %v718 = vpop.permute.xlu0 %717
        %721 = vset.pattern.permute.xlu0 0
        %722 = vperm.xlu0 %721, %v694
        %v723 = vpop.permute.xlu0 %722
        %726 = vset.pattern.permute.xlu0 0
        %727 = vperm.xlu0 %726, %v695
        %v728 = vpop.permute.xlu0 %727
        %731 = vset.pattern.permute.xlu0 0
        %732 = vperm.xlu0 %731, %v696
        %v733 = vpop.permute.xlu0 %732
        %736 = vset.pattern.permute.xlu0 0
        %737 = vperm.xlu0 %736, %v697
        %v738 = vpop.permute.xlu0 %737
        %741 = vset.pattern.permute.xlu0 0
        %742 = vperm.xlu0 %741, %v698
        %v743 = vpop.permute.xlu0 %742
        %746 = vset.pattern.permute.xlu0 0
        %747 = vperm.xlu0 %746, %v699
        %v748 = vpop.permute.xlu0 %747
        %751 = vset.pattern.permute.xlu0 0
        %752 = vperm.xlu0 %751, %v700
        %v753 = vpop.permute.xlu0 %752
        %756 = vset.pattern.permute.xlu0 0
        %757 = vperm.xlu0 %756, %v701
        %v758 = vpop.permute.xlu0 %757
        %761 = vset.pattern.permute.xlu0 0
        %762 = vperm.xlu0 %761, %v702
        %v763 = vpop.permute.xlu0 %762
        %766 = vset.pattern.permute.xlu0 0
        %767 = vperm.xlu0 %766, %v703
        %v768 = vpop.permute.xlu0 %767
        %771 = vset.pattern.permute.xlu0 0
        %772 = vperm.xlu0 %771, %v704
        %v773 = vpop.permute.xlu0 %772
        %776 = vset.pattern.permute.xlu0 0
        %777 = vperm.xlu0 %776, %v705
        %v778 = vpop.permute.xlu0 %777
        %781 = vset.pattern.permute.xlu0 0
        %782 = vperm.xlu0 %781, %v706
        %v783 = vpop.permute.xlu0 %782
        %786 = vset.pattern.permute.xlu0 0
        %787 = vperm.xlu0 %786, %v707
        %v788 = vpop.permute.xlu0 %787
        %791 = vset.pattern.permute.xlu0 0
        %792 = vperm.xlu0 %791, %v708
        %v793 = vpop.permute.xlu0 %792
        %796 = vset.pattern.permute.xlu0 0
        %797 = vperm.xlu0 %796, %v709
        %v798 = vpop.permute.xlu0 %797
        %800 = vmatprep.subr.mxu0 0.0
        %801 = vmatpush1.msra.mxu0 %v624
        %802 = vmatprep.subr.mxu0 0.0
        %803 = vmatpush1.msra.mxu0 %v625
        %804 = vmatprep.subr.mxu0 0.0
        %805 = vmatpush1.msra.mxu0 %v626
        %806 = vmatprep.subr.mxu0 0.0
        %807 = vmatpush1.msra.mxu0 %v627
        %808 = vmatprep.subr.mxu0 0.0
        %809 = vmatpush1.msra.mxu0 %v628
        %810 = vmatprep.subr.mxu0 0.0
        %811 = vmatpush1.msra.mxu0 %v629
        %812 = vmatprep.subr.mxu0 0.0
        %813 = vmatpush1.msra.mxu0 %v630
        %814 = vmatprep.subr.mxu0 0.0
        %815 = vmatpush1.msra.mxu0 %v631
        %816 = vmatprep.subr.mxu0 0.0
        %817 = vmatpush1.msra.mxu0 %v632
        %818 = vmatprep.subr.mxu0 0.0
        %819 = vmatpush1.msra.mxu0 %v633
        %820 = vmatprep.subr.mxu0 0.0
        %821 = vmatpush1.msra.mxu0 %v634
        %822 = vmatprep.subr.mxu0 0.0
        %823 = vmatpush1.msra.mxu0 %v635
        %824 = vmatprep.subr.mxu0 0.0
        %825 = vmatpush1.msra.mxu0 %v636
        %826 = vmatprep.subr.mxu0 0.0
        %827 = vmatpush1.msra.mxu0 %v637
        %828 = vmatprep.subr.mxu0 0.0
        %829 = vmatpush1.msra.mxu0 %v638
        %830 = vmatprep.subr.mxu0 0.0
        %831 = vmatpush1.msra.mxu0 %v639
        %832 = vmatprep.subr.mxu0 0.0
        %833 = vmatpush1.msra.mxu0 %v640
        %834 = vmatprep.subr.mxu0 0.0
        %835 = vmatpush1.msra.mxu0 %v641
        %836 = vmatprep.subr.mxu0 0.0
        %837 = vmatpush1.msra.mxu0 %v642
        %838 = vmatprep.subr.mxu0 0.0
        %839 = vmatpush1.msra.mxu0 %v643
        %840 = vmatprep.subr.mxu0 0.0
        %841 = vmatpush1.msra.mxu0 %v644
        %842 = vmatprep.subr.mxu0 0.0
        %843 = vmatpush1.msra.mxu0 %v645
        %844 = vmatprep.subr.mxu0 0.0
        %845 = vmatpush1.msra.mxu0 %v646
        %846 = vmatprep.subr.mxu0 0.0
        %847 = vmatpush1.msra.mxu0 %v647
        %848 = vmatprep.subr.mxu0 0.0
        %849 = vmatpush1.msra.mxu0 %v648
        %850 = vmatprep.subr.mxu0 0.0
        %851 = vmatpush1.msra.mxu0 %v649
        %852 = vmatprep.subr.mxu0 0.0
        %853 = vmatpush1.msra.mxu0 %v650
        %854 = vmatprep.subr.mxu0 0.0
        %855 = vmatpush1.msra.mxu0 %v651
        %856 = vmatprep.subr.mxu0 0.0
        %857 = vmatpush1.msra.mxu0 %v652
        %858 = vmatprep.subr.mxu0 0.0
        %859 = vmatpush1.msra.mxu0 %v653
        %860 = vmatprep.subr.mxu0 0.0
        %861 = vmatpush1.msra.mxu0 %v654
        %862 = vmatprep.subr.mxu0 0.0
        %863 = vmatpush1.msra.mxu0 %v655
        %864 = vmatprep.mubr.f32.mxu0 %v657
        %865 = vmatmul.mubr.f32.gmra.mrb[0].mxu0 %v656
        %v866 = vpop.f32.mrb[0].mxu0
        %v867 = vadd.f32 %v713, %v866
        %v868 = vpop.f32.mrb[0].mxu0
        %869 = vmatprep.mubr.f32.mxu0 %v659
        %870 = vmatmul.mubr.f32.gmra.mrb[0].mxu0 %v658
        %v871 = vpop.f32.mrb[0].mxu0
        %v872 = vadd.f32 %v718, %v871
        %v873 = vpop.f32.mrb[0].mxu0
        %874 = vmatprep.mubr.f32.mxu0 %v661
        %875 = vmatmul.mubr.f32.gmra.mrb[0].mxu0 %v660
        %v876 = vpop.f32.mrb[0].mxu0
        %v877 = vadd.f32 %v723, %v876
        %v878 = vpop.f32.mrb[0].mxu0
        %879 = vmatprep.mubr.f32.mxu0 %v663
        %880 = vmatmul.mubr.f32.gmra.mrb[0].mxu0 %v662
        %v881 = vpop.f32.mrb[0].mxu0
        %v882 = vadd.f32 %v728, %v881
        %v883 = vpop.f32.mrb[0].mxu0
        %884 = vmatprep.mubr.f32.mxu0 %v665
        %885 = vmatmul.mubr.f32.gmra.mrb[0].mxu0 %v664
        %v886 = vpop.f32.mrb[0].mxu0
        %v887 = vadd.f32 %v733, %v886
        %v888 = vpop.f32.mrb[0].mxu0
        %889 = vmatprep.mubr.f32.mxu0 %v667
        %890 = vmatmul.mubr.f32.gmra.mrb[0].mxu0 %v666
        %v891 = vpop.f32.mrb[0].mxu0
        %v892 = vadd.f32 %v738, %v891
        %v893 = vpop.f32.mrb[0].mxu0
        %894 = vmatprep.mubr.f32.mxu0 %v669
        %895 = vmatmul.mubr.f32.gmra.mrb[0].mxu0 %v668
        %v896 = vpop.f32.mrb[0].mxu0
        %v897 = vadd.f32 %v743, %v896
        %v898 = vpop.f32.mrb[0].mxu0
        %899 = vmatprep.mubr.f32.mxu0 %v671
        %900 = vmatmul.mubr.f32.gmra.mrb[0].mxu0 %v670
        %v901 = vpop.f32.mrb[0].mxu0
        %v902 = vadd.f32 %v748, %v901
        %v903 = vpop.f32.mrb[0].mxu0
        %904 = vmatprep.mubr.f32.mxu0 %v673
        %905 = vmatmul.mubr.f32.gmra.mrb[0].mxu0 %v672
        %v906 = vpop.f32.mrb[0].mxu0
        %v907 = vadd.f32 %v753, %v906
        %v908 = vpop.f32.mrb[0].mxu0
        %909 = vmatprep.mubr.f32.mxu0 %v675
        %910 = vmatmul.mubr.f32.gmra.mrb[0].mxu0 %v674
        %v911 = vpop.f32.mrb[0].mxu0
        %v912 = vadd.f32 %v758, %v911
        %v913 = vpop.f32.mrb[0].mxu0
        %914 = vmatprep.mubr.f32.mxu0 %v677
        %915 = vmatmul.mubr.f32.gmra.mrb[0].mxu0 %v676
        %v916 = vpop.f32.mrb[0].mxu0
        %v917 = vadd.f32 %v763, %v916
        %v918 = vpop.f32.mrb[0].mxu0
        %919 = vmatprep.mubr.f32.mxu0 %v679
        %920 = vmatmul.mubr.f32.gmra.mrb[0].mxu0 %v678
        %v921 = vpop.f32.mrb[0].mxu0
        %v922 = vadd.f32 %v768, %v921
        %v923 = vpop.f32.mrb[0].mxu0
        %924 = vmatprep.mubr.f32.mxu0 %v681
        %925 = vmatmul.mubr.f32.gmra.mrb[0].mxu0 %v680
        %v926 = vpop.f32.mrb[0].mxu0
        %v927 = vadd.f32 %v773, %v926
        %v928 = vpop.f32.mrb[0].mxu0
        %929 = vmatprep.mubr.f32.mxu0 %v683
        %930 = vmatmul.mubr.f32.gmra.mrb[0].mxu0 %v682
        %v931 = vpop.f32.mrb[0].mxu0
        %v932 = vadd.f32 %v778, %v931
        %v933 = vpop.f32.mrb[0].mxu0
        %934 = vmatprep.mubr.f32.mxu0 %v685
        %935 = vmatmul.mubr.f32.gmra.mrb[0].mxu0 %v684
        %v936 = vpop.f32.mrb[0].mxu0
        %v937 = vadd.f32 %v783, %v936
        %v938 = vpop.f32.mrb[0].mxu0
        %939 = vmatprep.mubr.f32.mxu0 %v687
        %940 = vmatmul.mubr.f32.gmra.mrb[0].mxu0 %v686
        %v941 = vpop.f32.mrb[0].mxu0
        %v942 = vadd.f32 %v788, %v941
        %v943 = vpop.f32.mrb[0].mxu0
        %944 = vmatprep.mubr.f32.mxu0 %v689
        %945 = vmatmul.mubr.f32.gmra.mrb[0].mxu0 %v688
        %v946 = vpop.f32.mrb[0].mxu0
        %v947 = vadd.f32 %v793, %v946
        %v948 = vpop.f32.mrb[0].mxu0
        %949 = vmatprep.mubr.f32.mxu0 %v691
        %950 = vmatmul.mubr.f32.gmra.mrb[0].mxu0 %v690
        %v951 = vpop.f32.mrb[0].mxu0
        %v952 = vadd.f32 %v798, %v951
        %v953 = vpop.f32.mrb[0].mxu0
        %954 = vdwg.mxu0
        %955 = vst [vmem:[#allocation2] sm:$0xff] %v867
        %956 = vst [vmem:[#allocation2 + $0x8] sm:$0xff] %v872
        %957 = vst [vmem:[#allocation2 + $0x10] sm:$0xff] %v877
        %958 = vst [vmem:[#allocation2 + $0x18] sm:$0xff] %v882
        %959 = vst [vmem:[#allocation2 + $0x20] sm:$0xff] %v887
        %960 = vst [vmem:[#allocation2 + $0x28] sm:$0xff] %v892
        %961 = vst [vmem:[#allocation2 + $0x30] sm:$0xff] %v897
        %962 = vst [vmem:[#allocation2 + $0x38] sm:$0xff] %v902
        %963 = vst [vmem:[#allocation2 + $0x40] sm:$0xff] %v907
        %964 = vst [vmem:[#allocation2 + $0x48] sm:$0xff] %v912
        %965 = vst [vmem:[#allocation2 + $0x50] sm:$0xff] %v917
        %966 = vst [vmem:[#allocation2 + $0x58] sm:$0xff] %v922
        %967 = vst [vmem:[#allocation2 + $0x60] sm:$0xff] %v927
        %968 = vst [vmem:[#allocation2 + $0x68] sm:$0xff] %v932
        %969 = vst [vmem:[#allocation2 + $0x70] sm:$0xff] %v937
        %970 = vst [vmem:[#allocation2 + $0x78] sm:$0xff] %v942
        %971 = vst [vmem:[#allocation2 + $0x80] sm:$0xff] %v947
        %972 = vst [vmem:[#allocation2 + $0x88] sm:$0xff] %v952
        %v973 = vld [vmem:[%s191] sm:$0xff]
        %v974 = vld [vmem:[%s191 + $0x48] sm:$0xff]
        %v975 = vld [vmem:[%s191 + $0x8] sm:$0xff]
        %v976 = vld [vmem:[%s191 + $0x50] sm:$0xff]
        %v977 = vld [vmem:[%s191 + $0x10] sm:$0xff]
        %v978 = vld [vmem:[%s191 + $0x58] sm:$0xff]
        %v979 = vld [vmem:[%s191 + $0x18] sm:$0xff]
        %v980 = vld [vmem:[%s191 + $0x60] sm:$0xff]
        %v981 = vld [vmem:[%s191 + $0x20] sm:$0xff]
        %v982 = vld [vmem:[%s191 + $0x68] sm:$0xff]
        %v983 = vld [vmem:[%s191 + $0x28] sm:$0xff]
        %v984 = vld [vmem:[%s191 + $0x70] sm:$0xff]
        %v985 = vld [vmem:[%s191 + $0x30] sm:$0xff]
        %v986 = vld [vmem:[%s191 + $0x78] sm:$0xff]
        %v987 = vld [vmem:[%s191 + $0x38] sm:$0xff]
        %v988 = vld [vmem:[%s191 + $0x80] sm:$0xff]
        %v989 = vld [vmem:[%s191 + $0x40] sm:$0xff]
        %v990 = vld [vmem:[%s191 + $0x88] sm:$0xff]
        %v991 = vmul.f32 %v981, %v989
        %v992 = vmul.f32 %v982, %v990
        %v993 = vsub.f32 %v991, %v992
        %v994 = vmul.f32 %v981, %v990
        %v995 = vmul.f32 %v982, %v989
        %v996 = vadd.f32 %v994, %v995
        %v997 = vmul.f32 %v983, %v987
        %v998 = vmul.f32 %v984, %v988
        %v999 = vsub.f32 %v997, %v998
        %v1000 = vmul.f32 %v983, %v988
        %v1001 = vmul.f32 %v984, %v987
        %v1002 = vadd.f32 %v1000, %v1001
        %v1003 = vsub.f32 %v993, %v999
        %v1004 = vsub.f32 %v996, %v1002
        %v1005 = vmul.f32 %v979, %v989
        %v1006 = vmul.f32 %v980, %v990
        %v1007 = vsub.f32 %v1005, %v1006
        %v1008 = vmul.f32 %v979, %v990
        %v1009 = vmul.f32 %v980, %v989
        %v1010 = vadd.f32 %v1008, %v1009
        %v1011 = vmul.f32 %v983, %v985
        %v1012 = vmul.f32 %v984, %v986
        %v1013 = vsub.f32 %v1011, %v1012
        %v1014 = vmul.f32 %v983, %v986
        %v1015 = vmul.f32 %v984, %v985
        %v1016 = vadd.f32 %v1014, %v1015
        %v1017 = vsub.f32 %v1007, %v1013
        %v1018 = vsub.f32 %v1010, %v1016
        %v1019 = vsub.f32 0.0, %v1017
        %v1020 = vsub.f32 0.0, %v1018
        %v1021 = vmul.f32 %v979, %v987
        %v1022 = vmul.f32 %v980, %v988
        %v1023 = vsub.f32 %v1021, %v1022
        %v1024 = vmul.f32 %v979, %v988
        %v1025 = vmul.f32 %v980, %v987
        %v1026 = vadd.f32 %v1024, %v1025
        %v1027 = vmul.f32 %v981, %v985
        %v1028 = vmul.f32 %v982, %v986
        %v1029 = vsub.f32 %v1027, %v1028
        %v1030 = vmul.f32 %v981, %v986
        %v1031 = vmul.f32 %v982, %v985
        %v1032 = vadd.f32 %v1030, %v1031
        %v1033 = vsub.f32 %v1023, %v1029
        %v1034 = vsub.f32 %v1026, %v1032
        %v1035 = vmul.f32 %v975, %v989
        %v1036 = vmul.f32 %v976, %v990
        %v1037 = vsub.f32 %v1035, %v1036
        %v1038 = vmul.f32 %v975, %v990
        %v1039 = vmul.f32 %v976, %v989
        %v1040 = vadd.f32 %v1038, %v1039
        %v1041 = vmul.f32 %v977, %v987
        %v1042 = vmul.f32 %v978, %v988
        %v1043 = vsub.f32 %v1041, %v1042
        %v1044 = vmul.f32 %v977, %v988
        %v1045 = vmul.f32 %v978, %v987
        %v1046 = vadd.f32 %v1044, %v1045
        %v1047 = vsub.f32 %v1037, %v1043
        %v1048 = vsub.f32 %v1040, %v1046
        %v1049 = vsub.f32 0.0, %v1047
        %v1050 = vsub.f32 0.0, %v1048
        %v1051 = vmul.f32 %v973, %v989
        %v1052 = vmul.f32 %v974, %v990
        %v1053 = vsub.f32 %v1051, %v1052
        %v1054 = vmul.f32 %v973, %v990
        %v1055 = vmul.f32 %v974, %v989
        %v1056 = vadd.f32 %v1054, %v1055
        %v1057 = vmul.f32 %v977, %v985
        %v1058 = vmul.f32 %v978, %v986
        %v1059 = vsub.f32 %v1057, %v1058
        %v1060 = vmul.f32 %v977, %v986
        %v1061 = vmul.f32 %v978, %v985
        %v1062 = vadd.f32 %v1060, %v1061
        %v1063 = vsub.f32 %v1053, %v1059
        %v1064 = vsub.f32 %v1056, %v1062
        %v1065 = vmul.f32 %v973, %v987
        %v1066 = vmul.f32 %v974, %v988
        %v1067 = vsub.f32 %v1065, %v1066
        %v1068 = vmul.f32 %v973, %v988
        %v1069 = vmul.f32 %v974, %v987
        %v1070 = vadd.f32 %v1068, %v1069
        %v1071 = vmul.f32 %v975, %v985
        %v1072 = vmul.f32 %v976, %v986
        %v1073 = vsub.f32 %v1071, %v1072
        %v1074 = vmul.f32 %v975, %v986
        %v1075 = vmul.f32 %v976, %v985
        %v1076 = vadd.f32 %v1074, %v1075
        %v1077 = vsub.f32 %v1067, %v1073
        %v1078 = vsub.f32 %v1070, %v1076
        %v1079 = vsub.f32 0.0, %v1077
        %v1080 = vsub.f32 0.0, %v1078
        %v1081 = vmul.f32 %v975, %v983
        %v1082 = vmul.f32 %v976, %v984
        %v1083 = vsub.f32 %v1081, %v1082
        %v1084 = vmul.f32 %v975, %v984
        %v1085 = vmul.f32 %v976, %v983
        %v1086 = vadd.f32 %v1084, %v1085
        %v1087 = vmul.f32 %v977, %v981
        %v1088 = vmul.f32 %v978, %v982
        %v1089 = vsub.f32 %v1087, %v1088
        %v1090 = vmul.f32 %v977, %v982
        %v1091 = vmul.f32 %v978, %v981
        %v1092 = vadd.f32 %v1090, %v1091
        %v1093 = vsub.f32 %v1083, %v1089
        %v1094 = vsub.f32 %v1086, %v1092
        %v1095 = vmul.f32 %v973, %v983
        %v1096 = vmul.f32 %v974, %v984
        %v1097 = vsub.f32 %v1095, %v1096
        %v1098 = vmul.f32 %v973, %v984
        %v1099 = vmul.f32 %v974, %v983
        %v1100 = vadd.f32 %v1098, %v1099
        %v1101 = vmul.f32 %v977, %v979
        %v1102 = vmul.f32 %v978, %v980
        %v1103 = vsub.f32 %v1101, %v1102
        %v1104 = vmul.f32 %v977, %v980
        %v1105 = vmul.f32 %v978, %v979
        %v1106 = vadd.f32 %v1104, %v1105
        %v1107 = vsub.f32 %v1097, %v1103
        %v1108 = vsub.f32 %v1100, %v1106
        %v1109 = vsub.f32 0.0, %v1107
        %v1110 = vsub.f32 0.0, %v1108
        %v1111 = vmul.f32 %v973, %v981
        %v1112 = vmul.f32 %v974, %v982
        %v1113 = vsub.f32 %v1111, %v1112
        %v1114 = vmul.f32 %v973, %v982
        %v1115 = vmul.f32 %v974, %v981
        %v1116 = vadd.f32 %v1114, %v1115
        %v1117 = vmul.f32 %v975, %v979
        %v1118 = vmul.f32 %v976, %v980
        %v1119 = vsub.f32 %v1117, %v1118
        %v1120 = vmul.f32 %v975, %v980
        %v1121 = vmul.f32 %v976, %v979
        %v1122 = vadd.f32 %v1120, %v1121
        %v1123 = vsub.f32 %v1113, %v1119
        %v1124 = vsub.f32 %v1116, %v1122
        %v1125 = vmul.f32 %v973, %v1003
        %v1126 = vmul.f32 %v974, %v1004
        %v1127 = vsub.f32 %v1125, %v1126
        %v1128 = vmul.f32 %v973, %v1004
        %v1129 = vmul.f32 %v974, %v1003
        %v1130 = vadd.f32 %v1128, %v1129
        %v1131 = vmul.f32 %v975, %v1019
        %v1132 = vmul.f32 %v976, %v1020
        %v1133 = vsub.f32 %v1131, %v1132
        %v1134 = vmul.f32 %v975, %v1020
        %v1135 = vmul.f32 %v976, %v1019
        %v1136 = vadd.f32 %v1134, %v1135
        %v1137 = vmul.f32 %v977, %v1033
        %v1138 = vmul.f32 %v978, %v1034
        %v1139 = vsub.f32 %v1137, %v1138
        %v1140 = vmul.f32 %v977, %v1034
        %v1141 = vmul.f32 %v978, %v1033
        %v1142 = vadd.f32 %v1140, %v1141
        %v1143 = vadd.f32 %v1127, %v1133
        %v1144 = vadd.f32 %v1130, %v1136
        %v1145 = vadd.f32 %v1143, %v1139
        %v1146 = vadd.f32 %v1144, %v1142
        %v1147 = vmul.f32 %v1145, %v1145
        %v1148 = vmul.f32 %v1146, %v1146
        %v1149 = vadd.f32 %v1147, %v1148
        %v1150 = vrcp.pop %v1149
        %v1151 = vmul.f32 %v1149, %v1150
        %v1152 = vsub.f32 2.0, %v1151
        %v1153 = vmul.f32 %v1150, %v1152
        %v1154 = vmul.f32 %v1145, %v1153
        %v1155 = vsub.f32 0.0, %v1146
        %v1156 = vmul.f32 %v1155, %v1153
        %v1157 = vld [vmem:[#allocation2 + $0x8] sm:$0xff]
        %v1158 = vld [vmem:[#allocation2 + $0x50] sm:$0xff]
        %v1159 = vmul.f32 %v1003, %v1157
        %v1160 = vmul.f32 %v1004, %v1158
        %v1161 = vsub.f32 %v1159, %v1160
        %v1162 = vmul.f32 %v1003, %v1158
        %v1163 = vmul.f32 %v1004, %v1157
        %v1164 = vadd.f32 %v1162, %v1163
        %v1165 = vld [vmem:[#allocation2 + $0x20] sm:$0xff]
        %v1166 = vld [vmem:[#allocation2 + $0x68] sm:$0xff]
        %v1167 = vmul.f32 %v1049, %v1165
        %v1168 = vmul.f32 %v1050, %v1166
        %v1169 = vsub.f32 %v1167, %v1168
        %v1170 = vmul.f32 %v1049, %v1166
        %v1171 = vmul.f32 %v1050, %v1165
        %v1172 = vadd.f32 %v1170, %v1171
        %v1173 = vld [vmem:[#allocation2 + $0x38] sm:$0xff]
        %v1174 = vld [vmem:[#allocation2 + $0x80] sm:$0xff]
        %v1175 = vmul.f32 %v1093, %v1173
        %v1176 = vmul.f32 %v1094, %v1174
        %v1177 = vsub.f32 %v1175, %v1176
        %v1178 = vmul.f32 %v1093, %v1174
        %v1179 = vmul.f32 %v1094, %v1173
        %v1180 = vadd.f32 %v1178, %v1179
        %v1181 = vadd.f32 %v1161, %v1169
        %v1182 = vadd.f32 %v1164, %v1172
        %v1183 = vadd.f32 %v1181, %v1177
        %v1184 = vadd.f32 %v1182, %v1180
        %v1185 = vmul.f32 %v1183, %v1154
        %v1186 = vmul.f32 %v1184, %v1156
        %v1187 = vsub.f32 %v1185, %v1186
        %v1188 = vmul.f32 %v1183, %v1156
        %v1189 = vmul.f32 %v1184, %v1154
        %v1190 = vadd.f32 %v1188, %v1189
        %v1191 = vld [vmem:[#allocation2] sm:$0xff]
        %v1192 = vld [vmem:[#allocation2 + $0x48] sm:$0xff]
        %v1193 = vmul.f32 %v1019, %v1191
        %v1194 = vmul.f32 %v1020, %v1192
        %v1195 = vsub.f32 %v1193, %v1194
        %v1196 = vmul.f32 %v1019, %v1192
        %v1197 = vmul.f32 %v1020, %v1191
        %v1198 = vadd.f32 %v1196, %v1197
        %v1199 = vld [vmem:[#allocation2 + $0x18] sm:$0xff]
        %v1200 = vld [vmem:[#allocation2 + $0x60] sm:$0xff]
        %v1201 = vmul.f32 %v1063, %v1199
        %v1202 = vmul.f32 %v1064, %v1200
        %v1203 = vsub.f32 %v1201, %v1202
        %v1204 = vmul.f32 %v1063, %v1200
        %v1205 = vmul.f32 %v1064, %v1199
        %v1206 = vadd.f32 %v1204, %v1205
        %v1207 = vld [vmem:[#allocation2 + $0x30] sm:$0xff]
        %v1208 = vld [vmem:[#allocation2 + $0x78] sm:$0xff]
        %v1209 = vmul.f32 %v1109, %v1207
        %v1210 = vmul.f32 %v1110, %v1208
        %v1211 = vsub.f32 %v1209, %v1210
        %v1212 = vmul.f32 %v1109, %v1208
        %v1213 = vmul.f32 %v1110, %v1207
        %v1214 = vadd.f32 %v1212, %v1213
        %v1215 = vadd.f32 %v1195, %v1203
        %v1216 = vadd.f32 %v1198, %v1206
        %v1217 = vadd.f32 %v1215, %v1211
        %v1218 = vadd.f32 %v1216, %v1214
        %v1219 = vmul.f32 %v1217, %v1154
        %v1220 = vmul.f32 %v1218, %v1156
        %v1221 = vsub.f32 %v1219, %v1220
        %v1222 = vmul.f32 %v1217, %v1156
        %v1223 = vmul.f32 %v1218, %v1154
        %v1224 = vadd.f32 %v1222, %v1223
        %v1225 = vsub.f32 %v1187, %v1221
        %v1226 = vmul.f32 %v1225, 0.5
        %v1227 = vadd.f32 %v1190, %v1224
        %v1228 = vmul.f32 %v1227, 0.5
        %1229 = vst [vmem:[%s215 + $0x8] sm:$0xff] %v1226
        %1230 = vst [vmem:[%s215 + $0x50] sm:$0xff] %v1228
        %v1231 = vsub.f32 0.0, %v1226
        %1232 = vst [vmem:[%s215 + $0x18] sm:$0xff] %v1231
        %1233 = vst [vmem:[%s215 + $0x60] sm:$0xff] %v1228
        %v1234 = vld [vmem:[#allocation2 + $0x10] sm:$0xff]
        %v1235 = vld [vmem:[#allocation2 + $0x58] sm:$0xff]
        %v1236 = vmul.f32 %v1003, %v1234
        %v1237 = vmul.f32 %v1004, %v1235
        %v1238 = vsub.f32 %v1236, %v1237
        %v1239 = vmul.f32 %v1003, %v1235
        %v1240 = vmul.f32 %v1004, %v1234
        %v1241 = vadd.f32 %v1239, %v1240
        %v1242 = vld [vmem:[#allocation2 + $0x28] sm:$0xff]
        %v1243 = vld [vmem:[#allocation2 + $0x70] sm:$0xff]
        %v1244 = vmul.f32 %v1049, %v1242
        %v1245 = vmul.f32 %v1050, %v1243
        %v1246 = vsub.f32 %v1244, %v1245
        %v1247 = vmul.f32 %v1049, %v1243
        %v1248 = vmul.f32 %v1050, %v1242
        %v1249 = vadd.f32 %v1247, %v1248
        %v1250 = vld [vmem:[#allocation2 + $0x40] sm:$0xff]
        %v1251 = vld [vmem:[#allocation2 + $0x88] sm:$0xff]
        %v1252 = vmul.f32 %v1093, %v1250
        %v1253 = vmul.f32 %v1094, %v1251
        %v1254 = vsub.f32 %v1252, %v1253
        %v1255 = vmul.f32 %v1093, %v1251
        %v1256 = vmul.f32 %v1094, %v1250
        %v1257 = vadd.f32 %v1255, %v1256
        %v1258 = vadd.f32 %v1238, %v1246
        %v1259 = vadd.f32 %v1241, %v1249
        %v1260 = vadd.f32 %v1258, %v1254
        %v1261 = vadd.f32 %v1259, %v1257
        %v1262 = vmul.f32 %v1260, %v1154
        %v1263 = vmul.f32 %v1261, %v1156
        %v1264 = vsub.f32 %v1262, %v1263
        %v1265 = vmul.f32 %v1260, %v1156
        %v1266 = vmul.f32 %v1261, %v1154
        %v1267 = vadd.f32 %v1265, %v1266
        %v1268 = vld [vmem:[#allocation2] sm:$0xff]
        %v1269 = vld [vmem:[#allocation2 + $0x48] sm:$0xff]
        %v1270 = vmul.f32 %v1033, %v1268
        %v1271 = vmul.f32 %v1034, %v1269
        %v1272 = vsub.f32 %v1270, %v1271
        %v1273 = vmul.f32 %v1033, %v1269
        %v1274 = vmul.f32 %v1034, %v1268
        %v1275 = vadd.f32 %v1273, %v1274
        %v1276 = vld [vmem:[#allocation2 + $0x18] sm:$0xff]
        %v1277 = vld [vmem:[#allocation2 + $0x60] sm:$0xff]
        %v1278 = vmul.f32 %v1079, %v1276
        %v1279 = vmul.f32 %v1080, %v1277
        %v1280 = vsub.f32 %v1278, %v1279
        %v1281 = vmul.f32 %v1079, %v1277
        %v1282 = vmul.f32 %v1080, %v1276
        %v1283 = vadd.f32 %v1281, %v1282
        %v1284 = vld [vmem:[#allocation2 + $0x30] sm:$0xff]
        %v1285 = vld [vmem:[#allocation2 + $0x78] sm:$0xff]
        %v1286 = vmul.f32 %v1123, %v1284
        %v1287 = vmul.f32 %v1124, %v1285
        %v1288 = vsub.f32 %v1286, %v1287
        %v1289 = vmul.f32 %v1123, %v1285
        %v1290 = vmul.f32 %v1124, %v1284
        %v1291 = vadd.f32 %v1289, %v1290
        %v1292 = vadd.f32 %v1272, %v1280
        %v1293 = vadd.f32 %v1275, %v1283
        %v1294 = vadd.f32 %v1292, %v1288
        %v1295 = vadd.f32 %v1293, %v1291
        %v1296 = vmul.f32 %v1294, %v1154
        %v1297 = vmul.f32 %v1295, %v1156
        %v1298 = vsub.f32 %v1296, %v1297
        %v1299 = vmul.f32 %v1294, %v1156
        %v1300 = vmul.f32 %v1295, %v1154
        %v1301 = vadd.f32 %v1299, %v1300
        %v1302 = vsub.f32 %v1264, %v1298
        %v1303 = vmul.f32 %v1302, 0.5
        %v1304 = vadd.f32 %v1267, %v1301
        %v1305 = vmul.f32 %v1304, 0.5
        %1306 = vst [vmem:[%s215 + $0x10] sm:$0xff] %v1303
        %1307 = vst [vmem:[%s215 + $0x58] sm:$0xff] %v1305
        %v1308 = vsub.f32 0.0, %v1303
        %1309 = vst [vmem:[%s215 + $0x30] sm:$0xff] %v1308
        %1310 = vst [vmem:[%s215 + $0x78] sm:$0xff] %v1305
        %v1311 = vld [vmem:[#allocation2 + $0x10] sm:$0xff]
        %v1312 = vld [vmem:[#allocation2 + $0x58] sm:$0xff]
        %v1313 = vmul.f32 %v1019, %v1311
        %v1314 = vmul.f32 %v1020, %v1312
        %v1315 = vsub.f32 %v1313, %v1314
        %v1316 = vmul.f32 %v1019, %v1312
        %v1317 = vmul.f32 %v1020, %v1311
        %v1318 = vadd.f32 %v1316, %v1317
        %v1319 = vld [vmem:[#allocation2 + $0x28] sm:$0xff]
        %v1320 = vld [vmem:[#allocation2 + $0x70] sm:$0xff]
        %v1321 = vmul.f32 %v1063, %v1319
        %v1322 = vmul.f32 %v1064, %v1320
        %v1323 = vsub.f32 %v1321, %v1322
        %v1324 = vmul.f32 %v1063, %v1320
        %v1325 = vmul.f32 %v1064, %v1319
        %v1326 = vadd.f32 %v1324, %v1325
        %v1327 = vld [vmem:[#allocation2 + $0x40] sm:$0xff]
        %v1328 = vld [vmem:[#allocation2 + $0x88] sm:$0xff]
        %v1329 = vmul.f32 %v1109, %v1327
        %v1330 = vmul.f32 %v1110, %v1328
        %v1331 = vsub.f32 %v1329, %v1330
        %v1332 = vmul.f32 %v1109, %v1328
        %v1333 = vmul.f32 %v1110, %v1327
        %v1334 = vadd.f32 %v1332, %v1333
        %v1335 = vadd.f32 %v1315, %v1323
        %v1336 = vadd.f32 %v1318, %v1326
        %v1337 = vadd.f32 %v1335, %v1331
        %v1338 = vadd.f32 %v1336, %v1334
        %v1339 = vmul.f32 %v1337, %v1154
        %v1340 = vmul.f32 %v1338, %v1156
        %v1341 = vsub.f32 %v1339, %v1340
        %v1342 = vmul.f32 %v1337, %v1156
        %v1343 = vmul.f32 %v1338, %v1154
        %v1344 = vadd.f32 %v1342, %v1343
        %v1345 = vld [vmem:[#allocation2 + $0x8] sm:$0xff]
        %v1346 = vld [vmem:[#allocation2 + $0x50] sm:$0xff]
        %v1347 = vmul.f32 %v1033, %v1345
        %v1348 = vmul.f32 %v1034, %v1346
        %v1349 = vsub.f32 %v1347, %v1348
        %v1350 = vmul.f32 %v1033, %v1346
        %v1351 = vmul.f32 %v1034, %v1345
        %v1352 = vadd.f32 %v1350, %v1351
        %v1353 = vld [vmem:[#allocation2 + $0x20] sm:$0xff]
        %v1354 = vld [vmem:[#allocation2 + $0x68] sm:$0xff]
        %v1355 = vmul.f32 %v1079, %v1353
        %v1356 = vmul.f32 %v1080, %v1354
        %v1357 = vsub.f32 %v1355, %v1356
        %v1358 = vmul.f32 %v1079, %v1354
        %v1359 = vmul.f32 %v1080, %v1353
        %v1360 = vadd.f32 %v1358, %v1359
        %v1361 = vld [vmem:[#allocation2 + $0x38] sm:$0xff]
        %v1362 = vld [vmem:[#allocation2 + $0x80] sm:$0xff]
        %v1363 = vmul.f32 %v1123, %v1361
        %v1364 = vmul.f32 %v1124, %v1362
        %v1365 = vsub.f32 %v1363, %v1364
        %v1366 = vmul.f32 %v1123, %v1362
        %v1367 = vmul.f32 %v1124, %v1361
        %v1368 = vadd.f32 %v1366, %v1367
        %v1369 = vadd.f32 %v1349, %v1357
        %v1370 = vadd.f32 %v1352, %v1360
        %v1371 = vadd.f32 %v1369, %v1365
        %v1372 = vadd.f32 %v1370, %v1368
        %v1373 = vmul.f32 %v1371, %v1154
        %v1374 = vmul.f32 %v1372, %v1156
        %v1375 = vsub.f32 %v1373, %v1374
        %v1376 = vmul.f32 %v1371, %v1156
        %v1377 = vmul.f32 %v1372, %v1154
        %v1378 = vadd.f32 %v1376, %v1377
        %v1379 = vsub.f32 %v1341, %v1375
        %v1380 = vmul.f32 %v1379, 0.5
        %v1381 = vadd.f32 %v1344, %v1378
        %v1382 = vmul.f32 %v1381, 0.5
        %1383 = vst [vmem:[%s215 + $0x28] sm:$0xff] %v1380
        %1384 = vst [vmem:[%s215 + $0x70] sm:$0xff] %v1382
        %v1385 = vsub.f32 0.0, %v1380
        %1386 = vst [vmem:[%s215 + $0x38] sm:$0xff] %v1385
        %1387 = vst [vmem:[%s215 + $0x80] sm:$0xff] %v1382
        %v1388 = vld [vmem:[#allocation2] sm:$0xff]
        %v1389 = vld [vmem:[#allocation2 + $0x48] sm:$0xff]
        %v1390 = vmul.f32 %v1003, %v1388
        %v1391 = vmul.f32 %v1004, %v1389
        %v1392 = vsub.f32 %v1390, %v1391
        %v1393 = vmul.f32 %v1003, %v1389
        %v1394 = vmul.f32 %v1004, %v1388
        %v1395 = vadd.f32 %v1393, %v1394
        %v1396 = vld [vmem:[#allocation2 + $0x18] sm:$0xff]
        %v1397 = vld [vmem:[#allocation2 + $0x60] sm:$0xff]
        %v1398 = vmul.f32 %v1049, %v1396
        %v1399 = vmul.f32 %v1050, %v1397
        %v1400 = vsub.f32 %v1398, %v1399
        %v1401 = vmul.f32 %v1049, %v1397
        %v1402 = vmul.f32 %v1050, %v1396
        %v1403 = vadd.f32 %v1401, %v1402
        %v1404 = vld [vmem:[#allocation2 + $0x30] sm:$0xff]
        %v1405 = vld [vmem:[#allocation2 + $0x78] sm:$0xff]
        %v1406 = vmul.f32 %v1093, %v1404
        %v1407 = vmul.f32 %v1094, %v1405
        %v1408 = vsub.f32 %v1406, %v1407
        %v1409 = vmul.f32 %v1093, %v1405
        %v1410 = vmul.f32 %v1094, %v1404
        %v1411 = vadd.f32 %v1409, %v1410
        %v1412 = vadd.f32 %v1392, %v1400
        %v1413 = vadd.f32 %v1395, %v1403
        %v1414 = vadd.f32 %v1412, %v1408
        %v1415 = vadd.f32 %v1413, %v1411
        %v1416 = vmul.f32 %v1414, %v1156
        %v1417 = vmul.f32 %v1415, %v1154
        %v1418 = vadd.f32 %v1416, %v1417
        %v1419 = vld [vmem:[#allocation2 + $0x8] sm:$0xff]
        %v1420 = vld [vmem:[#allocation2 + $0x50] sm:$0xff]
        %v1421 = vmul.f32 %v1019, %v1419
        %v1422 = vmul.f32 %v1020, %v1420
        %v1423 = vsub.f32 %v1421, %v1422
        %v1424 = vmul.f32 %v1019, %v1420
        %v1425 = vmul.f32 %v1020, %v1419
        %v1426 = vadd.f32 %v1424, %v1425
        %v1427 = vld [vmem:[#allocation2 + $0x20] sm:$0xff]
        %v1428 = vld [vmem:[#allocation2 + $0x68] sm:$0xff]
        %v1429 = vmul.f32 %v1063, %v1427
        %v1430 = vmul.f32 %v1064, %v1428
        %v1431 = vsub.f32 %v1429, %v1430
        %v1432 = vmul.f32 %v1063, %v1428
        %v1433 = vmul.f32 %v1064, %v1427
        %v1434 = vadd.f32 %v1432, %v1433
        %v1435 = vld [vmem:[#allocation2 + $0x38] sm:$0xff]
        %v1436 = vld [vmem:[#allocation2 + $0x80] sm:$0xff]
        %v1437 = vmul.f32 %v1109, %v1435
        %v1438 = vmul.f32 %v1110, %v1436
        %v1439 = vsub.f32 %v1437, %v1438
        %v1440 = vmul.f32 %v1109, %v1436
        %v1441 = vmul.f32 %v1110, %v1435
        %v1442 = vadd.f32 %v1440, %v1441
        %v1443 = vadd.f32 %v1423, %v1431
        %v1444 = vadd.f32 %v1426, %v1434
        %v1445 = vadd.f32 %v1443, %v1439
        %v1446 = vadd.f32 %v1444, %v1442
        %v1447 = vmul.f32 %v1445, %v1156
        %v1448 = vmul.f32 %v1446, %v1154
        %v1449 = vadd.f32 %v1447, %v1448
        %v1450 = vld [vmem:[#allocation2 + $0x10] sm:$0xff]
        %v1451 = vld [vmem:[#allocation2 + $0x58] sm:$0xff]
        %v1452 = vmul.f32 %v1033, %v1450
        %v1453 = vmul.f32 %v1034, %v1451
        %v1454 = vsub.f32 %v1452, %v1453
        %v1455 = vmul.f32 %v1033, %v1451
        %v1456 = vmul.f32 %v1034, %v1450
        %v1457 = vadd.f32 %v1455, %v1456
        %v1458 = vld [vmem:[#allocation2 + $0x28] sm:$0xff]
        %v1459 = vld [vmem:[#allocation2 + $0x70] sm:$0xff]
        %v1460 = vmul.f32 %v1079, %v1458
        %v1461 = vmul.f32 %v1080, %v1459
        %v1462 = vsub.f32 %v1460, %v1461
        %v1463 = vmul.f32 %v1079, %v1459
        %v1464 = vmul.f32 %v1080, %v1458
        %v1465 = vadd.f32 %v1463, %v1464
        %v1466 = vld [vmem:[#allocation2 + $0x40] sm:$0xff]
        %v1467 = vld [vmem:[#allocation2 + $0x88] sm:$0xff]
        %v1468 = vmul.f32 %v1123, %v1466
        %v1469 = vmul.f32 %v1124, %v1467
        %v1470 = vsub.f32 %v1468, %v1469
        %v1471 = vmul.f32 %v1123, %v1467
        %v1472 = vmul.f32 %v1124, %v1466
        %v1473 = vadd.f32 %v1471, %v1472
        %v1474 = vadd.f32 %v1454, %v1462
        %v1475 = vadd.f32 %v1457, %v1465
        %v1476 = vadd.f32 %v1474, %v1470
        %v1477 = vadd.f32 %v1475, %v1473
        %v1478 = vmul.f32 %v1476, %v1156
        %v1479 = vmul.f32 %v1477, %v1154
        %v1480 = vadd.f32 %v1478, %v1479
        %v1481 = vadd.f32 %v1418, %v1449
        %v1482 = vadd.f32 %v1481, %v1480
        %v1483 = vmul.f32 %v1482, 0.33333334
        %v1484 = vsub.f32 %v1418, %v1483
        %1485 = vst [vmem:[%s215] sm:$0xff] 0.0
        %1486 = vst [vmem:[%s215 + $0x48] sm:$0xff] %v1484
        %v1487 = vsub.f32 %v1449, %v1483
        %1488 = vst [vmem:[%s215 + $0x20] sm:$0xff] 0.0
        %1489 = vst [vmem:[%s215 + $0x68] sm:$0xff] %v1487
        %v1490 = vsub.f32 %v1480, %v1483
        %1491 = vst [vmem:[%s215 + $0x40] sm:$0xff] 0.0
        %1492 = vst [vmem:[%s215 + $0x88] sm:$0xff] %v1490
        %v1493 = vld [vmem:[%s191 + $0xa0] sm:$0xff]
        %v1494 = vld [vmem:[%s191 + $0xa8] sm:$0xff]
        %v1495 = vld [vmem:[%s191 + $0xb0] sm:$0xff]
        %v1496 = vld [vmem:[%s191 + $0xb8] sm:$0xff]
        %v1497 = vld [vmem:[%s191 + $0xc0] sm:$0xff]
        %v1498 = vld [vmem:[%s191 + $0xc8] sm:$0xff]
        %v1499 = vld [vmem:[%s191 + $0xd0] sm:$0xff]
        %v1500 = vld [vmem:[%s191 + $0xd8] sm:$0xff]
        %v1501 = vld [vmem:[%s191 + $0xe0] sm:$0xff]
        %v1502 = vld [vmem:[%s191 + $0xe8] sm:$0xff]
        %v1503 = vld [vmem:[%s191 + $0xf0] sm:$0xff]
        %v1504 = vld [vmem:[%s191 + $0xf8] sm:$0xff]
        %v1505 = vld [vmem:[%s191 + $0x100] sm:$0xff]
        %v1506 = vld [vmem:[%s191 + $0x108] sm:$0xff]
        %v1507 = vld [vmem:[%s191 + $0x110] sm:$0xff]
        %v1508 = vld [vmem:[%s191 + $0x118] sm:$0xff]
        %v1509 = vld [vmem:[%s191 + $0x120] sm:$0xff]
        %v1510 = vld [vmem:[%s191 + $0x128] sm:$0xff]
        %v1511 = vld [vmem:[%s191 + $0x130] sm:$0xff]
        %v1512 = vld [vmem:[%s191 + $0x138] sm:$0xff]
        %v1513 = vld [vmem:[%s1] sm:$0xff]
        %v1514 = vld [vmem:[%s1 + $0x8] sm:$0xff]
        %v1515 = vld [vmem:[%s1 + $0x10] sm:$0xff]
        %v1516 = vld [vmem:[%s1 + $0x18] sm:$0xff]
        %v1517 = vld [vmem:[%s1 + $0x20] sm:$0xff]
        %v1518 = vld [vmem:[%s1 + $0x28] sm:$0xff]
        %v1519 = vld [vmem:[%s1 + $0x30] sm:$0xff]
        %v1520 = vld [vmem:[%s1 + $0x38] sm:$0xff]
        %v1521 = vld [vmem:[%s1 + $0x40] sm:$0xff]
        %v1522 = vld [vmem:[%s1 + $0x48] sm:$0xff]
        %v1523 = vld [vmem:[%s1 + $0x50] sm:$0xff]
        %v1524 = vld [vmem:[%s1 + $0x58] sm:$0xff]
        %v1525 = vld [vmem:[%s1 + $0x60] sm:$0xff]
        %v1526 = vld [vmem:[%s1 + $0x68] sm:$0xff]
        %v1527 = vld [vmem:[%s1 + $0x70] sm:$0xff]
        %v1528 = vld [vmem:[%s1 + $0x78] sm:$0xff]
        %v1529 = vld [vmem:[%s1 + $0x80] sm:$0xff]
        %v1530 = vld [vmem:[%s1 + $0x88] sm:$0xff]
        %v1531 = vld [vmem:[%s1 + $0x90] sm:$0xff]
        %v1532 = vld [vmem:[%s1 + $0x98] sm:$0xff]
        %v1533 = vld [vmem:[%s1 + $0xa0] sm:$0xff]
        %v1534 = vld [vmem:[%s1 + $0xa8] sm:$0xff]
        %v1535 = vld [vmem:[%s1 + $0xb0] sm:$0xff]
        %v1536 = vld [vmem:[%s1 + $0xb8] sm:$0xff]
        %v1537 = vld [vmem:[%s1 + $0xc0] sm:$0xff]
        %v1538 = vld [vmem:[%s1 + $0xc8] sm:$0xff]
        %v1539 = vld [vmem:[%s1 + $0xd0] sm:$0xff]
        %v1540 = vld [vmem:[%s1 + $0xd8] sm:$0xff]
        %v1541 = vld [vmem:[%s1 + $0xe0] sm:$0xff]
        %v1542 = vld [vmem:[%s1 + $0xe8] sm:$0xff]
        %v1543 = vld [vmem:[%s1 + $0xf0] sm:$0xff]
        %v1544 = vld [vmem:[%s1 + $0xf8] sm:$0xff]
        %v1545 = vld [vmem:[%s1 + $0x100] sm:$0xff]
        %v1546 = vld [vmem:[%s1 + $0x108] sm:$0xff]
        %v1547 = vld [vmem:[%s1 + $0x110] sm:$0xff]
        %v1548 = vld [vmem:[%s1 + $0x118] sm:$0xff]
        %v1549 = vld [vmem:[%s1 + $0x120] sm:$0xff]
        %v1550 = vld [vmem:[%s1 + $0x128] sm:$0xff]
        %v1551 = vld [vmem:[%s1 + $0x130] sm:$0xff]
        %v1552 = vld [vmem:[%s1 + $0x138] sm:$0xff]
        %v1553 = vld [vmem:[%s1 + $0x140] sm:$0xff]
        %v1554 = vld [vmem:[%s1 + $0x148] sm:$0xff]
        %v1555 = vld [vmem:[%s1 + $0x150] sm:$0xff]
        %v1556 = vld [vmem:[%s1 + $0x158] sm:$0xff]
        %v1557 = vld [vmem:[%s1 + $0x160] sm:$0xff]
        %v1558 = vld [vmem:[%s1 + $0x168] sm:$0xff]
        %v1559 = vld [vmem:[%s1 + $0x170] sm:$0xff]
        %v1560 = vld [vmem:[%s1 + $0x178] sm:$0xff]
        %v1561 = vld [vmem:[%s1 + $0x180] sm:$0xff]
        %v1562 = vld [vmem:[%s1 + $0x188] sm:$0xff]
        %v1563 = vld [vmem:[%s1 + $0x190] sm:$0xff]
        %v1564 = vld [vmem:[%s1 + $0x198] sm:$0xff]
        %v1565 = vld [vmem:[%s1 + $0x1a0] sm:$0xff]
        %v1566 = vld [vmem:[%s1 + $0x1a8] sm:$0xff]
        %v1567 = vld [vmem:[%s1 + $0x1b0] sm:$0xff]
        %v1568 = vld [vmem:[%s1 + $0x1b8] sm:$0xff]
        %v1569 = vld [vmem:[%s1 + $0x1c0] sm:$0xff]
        %v1570 = vld [vmem:[%s1 + $0x1c8] sm:$0xff]
        %v1571 = vld [vmem:[%s1 + $0x1d0] sm:$0xff]
        %v1572 = vld [vmem:[%s1 + $0x1d8] sm:$0xff]
        %v1573 = vld [vmem:[%s1 + $0x1e0] sm:$0xff]
        %v1574 = vld [vmem:[%s1 + $0x1e8] sm:$0xff]
        %v1575 = vld [vmem:[%s1 + $0x1f0] sm:$0xff]
        %v1576 = vld [vmem:[%s1 + $0x1f8] sm:$0xff]
        %v1578 = vsel %vm302, %v1514, 0
        %v1581 = vsel %vm302, %v1516, 0
        %v1584 = vsel %vm302, %v1518, 0
        %v1587 = vsel %vm302, %v1520, 0
        %v1590 = vsel %vm302, %v1522, 0
        %v1593 = vsel %vm302, %v1524, 0
        %v1596 = vsel %vm302, %v1526, 0
        %v1599 = vsel %vm302, %v1528, 0
        %v1602 = vsel %vm302, %v1530, 0
        %v1605 = vsel %vm302, %v1532, 0
        %v1608 = vsel %vm302, %v1534, 0
        %v1611 = vsel %vm302, %v1536, 0
        %v1614 = vsel %vm302, %v1538, 0
        %v1617 = vsel %vm302, %v1540, 0
        %v1620 = vsel %vm302, %v1542, 0
        %v1623 = vsel %vm302, %v1544, 0
        %v1626 = vsel %vm302, %v1546, 0
        %v1629 = vsel %vm302, %v1548, 0
        %v1632 = vsel %vm302, %v1550, 0
        %v1635 = vsel %vm302, %v1552, 0
        %v1638 = vsel %vm302, %v1554, 0
        %v1641 = vsel %vm302, %v1556, 0
        %v1644 = vsel %vm302, %v1558, 0
        %v1647 = vsel %vm302, %v1560, 0
        %v1650 = vsel %vm302, %v1562, 0
        %v1653 = vsel %vm302, %v1564, 0
        %v1656 = vsel %vm302, %v1566, 0
        %v1659 = vsel %vm302, %v1568, 0
        %v1662 = vsel %vm302, %v1570, 0
        %v1665 = vsel %vm302, %v1572, 0
        %v1668 = vsel %vm302, %v1574, 0
        %v1671 = vsel %vm302, %v1576, 0
        %1673 = vmatprep.subr.mxu0 0.0
        %1674 = vmatpush1.msra.mxu0 %v1493
        %1675 = vmatprep.subr.mxu0 0.0
        %1676 = vmatpush1.msra.mxu0 %v1494
        %1677 = vmatprep.subr.mxu0 0.0
        %1678 = vmatpush1.msra.mxu0 %v1495
        %1679 = vmatprep.subr.mxu0 0.0
        %1680 = vmatpush1.msra.mxu0 %v1496
        %1681 = vmatprep.subr.mxu0 0.0
        %1682 = vmatpush1.msra.mxu0 %v1497
        %1683 = vmatprep.subr.mxu0 0.0
        %1684 = vmatpush1.msra.mxu0 %v1498
        %1685 = vmatprep.subr.mxu0 0.0
        %1686 = vmatpush1.msra.mxu0 %v1499
        %1687 = vmatprep.subr.mxu0 0.0
        %1688 = vmatpush1.msra.mxu0 %v1500
        %1689 = vmatprep.subr.mxu0 0.0
        %1690 = vmatpush1.msra.mxu0 %v1501
        %1691 = vmatprep.subr.mxu0 0.0
        %1692 = vmatpush1.msra.mxu0 %v1502
        %1693 = vmatprep.subr.mxu0 0.0
        %1694 = vmatpush1.msra.mxu0 %v1503
        %1695 = vmatprep.subr.mxu0 0.0
        %1696 = vmatpush1.msra.mxu0 %v1504
        %1697 = vmatprep.subr.mxu0 0.0
        %1698 = vmatpush1.msra.mxu0 %v1505
        %1699 = vmatprep.subr.mxu0 0.0
        %1700 = vmatpush1.msra.mxu0 %v1506
        %1701 = vmatprep.subr.mxu0 0.0
        %1702 = vmatpush1.msra.mxu0 %v1507
        %1703 = vmatprep.subr.mxu0 0.0
        %1704 = vmatpush1.msra.mxu0 %v1508
        %1705 = vmatprep.subr.mxu0 0.0
        %1706 = vmatpush1.msra.mxu0 %v1509
        %1707 = vmatprep.subr.mxu0 0.0
        %1708 = vmatpush1.msra.mxu0 %v1510
        %1709 = vmatprep.subr.mxu0 0.0
        %1710 = vmatpush1.msra.mxu0 %v1511
        %1711 = vmatprep.subr.mxu0 0.0
        %1712 = vmatpush1.msra.mxu0 %v1512
        %1713 = vmatprep.subr.mxu0 0.0
        %1714 = vmatpush1.msra.mxu0 0.0
        %1715 = vmatprep.subr.mxu0 0.0
        %1716 = vmatpush1.msra.mxu0 0.0
        %1717 = vmatprep.subr.mxu0 0.0
        %1718 = vmatpush1.msra.mxu0 0.0
        %1719 = vmatprep.subr.mxu0 0.0
        %1720 = vmatpush1.msra.mxu0 0.0
        %1721 = vmatprep.subr.mxu0 0.0
        %1722 = vmatpush1.msra.mxu0 0.0
        %1723 = vmatprep.subr.mxu0 0.0
        %1724 = vmatpush1.msra.mxu0 0.0
        %1725 = vmatprep.subr.mxu0 0.0
        %1726 = vmatpush1.msra.mxu0 0.0
        %1727 = vmatprep.subr.mxu0 0.0
        %1728 = vmatpush1.msra.mxu0 0.0
        %1729 = vmatprep.subr.mxu0 0.0
        %1730 = vmatpush1.msra.mxu0 0.0
        %1731 = vmatprep.subr.mxu0 0.0
        %1732 = vmatpush1.msra.mxu0 0.0
        %1733 = vmatprep.subr.mxu0 0.0
        %1734 = vmatpush1.msra.mxu0 0.0
        %1735 = vmatprep.subr.mxu0 0.0
        %1736 = vmatpush1.msra.mxu0 0.0
        %1737 = vmatprep.mubr.f32.mxu0 %v1578
        %1738 = vmatmul.mubr.f32.gmra.mrb[0].mxu0 %v1513
        %v1739 = vpop.f32.mrb[0].mxu0
        %v1740 = vadd.f32 0.0, %v1739
        %v1741 = vpop.f32.mrb[0].mxu0
        %1742 = vmatprep.mubr.f32.mxu0 %v1581
        %1743 = vmatmul.mubr.f32.gmra.mrb[0].mxu0 %v1515
        %v1744 = vpop.f32.mrb[0].mxu0
        %v1745 = vadd.f32 0.0, %v1744
        %v1746 = vpop.f32.mrb[0].mxu0
        %1747 = vmatprep.mubr.f32.mxu0 %v1584
        %1748 = vmatmul.mubr.f32.gmra.mrb[0].mxu0 %v1517
        %v1749 = vpop.f32.mrb[0].mxu0
        %v1750 = vadd.f32 0.0, %v1749
        %v1751 = vpop.f32.mrb[0].mxu0
        %1752 = vmatprep.mubr.f32.mxu0 %v1587
        %1753 = vmatmul.mubr.f32.gmra.mrb[0].mxu0 %v1519
        %v1754 = vpop.f32.mrb[0].mxu0
        %v1755 = vadd.f32 0.0, %v1754
        %v1756 = vpop.f32.mrb[0].mxu0
        %1757 = vmatprep.mubr.f32.mxu0 %v1590
        %1758 = vmatmul.mubr.f32.gmra.mrb[0].mxu0 %v1521
        %v1759 = vpop.f32.mrb[0].mxu0
        %v1760 = vadd.f32 0.0, %v1759
        %v1761 = vpop.f32.mrb[0].mxu0
        %1762 = vmatprep.mubr.f32.mxu0 %v1593
        %1763 = vmatmul.mubr.f32.gmra.mrb[0].mxu0 %v1523
        %v1764 = vpop.f32.mrb[0].mxu0
        %v1765 = vadd.f32 0.0, %v1764
        %v1766 = vpop.f32.mrb[0].mxu0
        %1767 = vmatprep.mubr.f32.mxu0 %v1596
        %1768 = vmatmul.mubr.f32.gmra.mrb[0].mxu0 %v1525
        %v1769 = vpop.f32.mrb[0].mxu0
        %v1770 = vadd.f32 0.0, %v1769
        %v1771 = vpop.f32.mrb[0].mxu0
        %1772 = vmatprep.mubr.f32.mxu0 %v1599
        %1773 = vmatmul.mubr.f32.gmra.mrb[0].mxu0 %v1527
        %v1774 = vpop.f32.mrb[0].mxu0
        %v1775 = vadd.f32 0.0, %v1774
        %v1776 = vpop.f32.mrb[0].mxu0
        %1777 = vmatprep.mubr.f32.mxu0 %v1602
        %1778 = vmatmul.mubr.f32.gmra.mrb[0].mxu0 %v1529
        %v1779 = vpop.f32.mrb[0].mxu0
        %v1780 = vadd.f32 0.0, %v1779
        %v1781 = vpop.f32.mrb[0].mxu0
        %1782 = vmatprep.mubr.f32.mxu0 %v1605
        %1783 = vmatmul.mubr.f32.gmra.mrb[0].mxu0 %v1531
        %v1784 = vpop.f32.mrb[0].mxu0
        %v1785 = vadd.f32 0.0, %v1784
        %v1786 = vpop.f32.mrb[0].mxu0
        %1787 = vmatprep.mubr.f32.mxu0 %v1608
        %1788 = vmatmul.mubr.f32.gmra.mrb[0].mxu0 %v1533
        %v1789 = vpop.f32.mrb[0].mxu0
        %v1790 = vadd.f32 0.0, %v1789
        %v1791 = vpop.f32.mrb[0].mxu0
        %1792 = vmatprep.mubr.f32.mxu0 %v1611
        %1793 = vmatmul.mubr.f32.gmra.mrb[0].mxu0 %v1535
        %v1794 = vpop.f32.mrb[0].mxu0
        %v1795 = vadd.f32 0.0, %v1794
        %v1796 = vpop.f32.mrb[0].mxu0
        %1797 = vmatprep.mubr.f32.mxu0 %v1614
        %1798 = vmatmul.mubr.f32.gmra.mrb[0].mxu0 %v1537
        %v1799 = vpop.f32.mrb[0].mxu0
        %v1800 = vadd.f32 0.0, %v1799
        %v1801 = vpop.f32.mrb[0].mxu0
        %1802 = vmatprep.mubr.f32.mxu0 %v1617
        %1803 = vmatmul.mubr.f32.gmra.mrb[0].mxu0 %v1539
        %v1804 = vpop.f32.mrb[0].mxu0
        %v1805 = vadd.f32 0.0, %v1804
        %v1806 = vpop.f32.mrb[0].mxu0
        %1807 = vmatprep.mubr.f32.mxu0 %v1620
        %1808 = vmatmul.mubr.f32.gmra.mrb[0].mxu0 %v1541
        %v1809 = vpop.f32.mrb[0].mxu0
        %v1810 = vadd.f32 0.0, %v1809
        %v1811 = vpop.f32.mrb[0].mxu0
        %1812 = vmatprep.mubr.f32.mxu0 %v1623
        %1813 = vmatmul.mubr.f32.gmra.mrb[0].mxu0 %v1543
        %v1814 = vpop.f32.mrb[0].mxu0
        %v1815 = vadd.f32 0.0, %v1814
        %v1816 = vpop.f32.mrb[0].mxu0
        %1817 = vmatprep.mubr.f32.mxu0 %v1626
        %1818 = vmatmul.mubr.f32.gmra.mrb[0].mxu0 %v1545
        %v1819 = vpop.f32.mrb[0].mxu0
        %v1820 = vadd.f32 0.0, %v1819
        %v1821 = vpop.f32.mrb[0].mxu0
        %1822 = vmatprep.mubr.f32.mxu0 %v1629
        %1823 = vmatmul.mubr.f32.gmra.mrb[0].mxu0 %v1547
        %v1824 = vpop.f32.mrb[0].mxu0
        %v1825 = vadd.f32 0.0, %v1824
        %v1826 = vpop.f32.mrb[0].mxu0
        %1827 = vmatprep.mubr.f32.mxu0 %v1632
        %1828 = vmatmul.mubr.f32.gmra.mrb[0].mxu0 %v1549
        %v1829 = vpop.f32.mrb[0].mxu0
        %v1830 = vadd.f32 0.0, %v1829
        %v1831 = vpop.f32.mrb[0].mxu0
        %1832 = vmatprep.mubr.f32.mxu0 %v1635
        %1833 = vmatmul.mubr.f32.gmra.mrb[0].mxu0 %v1551
        %v1834 = vpop.f32.mrb[0].mxu0
        %v1835 = vadd.f32 0.0, %v1834
        %v1836 = vpop.f32.mrb[0].mxu0
        %1837 = vmatprep.mubr.f32.mxu0 %v1638
        %1838 = vmatmul.mubr.f32.gmra.mrb[0].mxu0 %v1553
        %v1839 = vpop.f32.mrb[0].mxu0
        %v1840 = vadd.f32 0.0, %v1839
        %v1841 = vpop.f32.mrb[0].mxu0
        %1842 = vmatprep.mubr.f32.mxu0 %v1641
        %1843 = vmatmul.mubr.f32.gmra.mrb[0].mxu0 %v1555
        %v1844 = vpop.f32.mrb[0].mxu0
        %v1845 = vadd.f32 0.0, %v1844
        %v1846 = vpop.f32.mrb[0].mxu0
        %1847 = vmatprep.mubr.f32.mxu0 %v1644
        %1848 = vmatmul.mubr.f32.gmra.mrb[0].mxu0 %v1557
        %v1849 = vpop.f32.mrb[0].mxu0
        %v1850 = vadd.f32 0.0, %v1849
        %v1851 = vpop.f32.mrb[0].mxu0
        %1852 = vmatprep.mubr.f32.mxu0 %v1647
        %1853 = vmatmul.mubr.f32.gmra.mrb[0].mxu0 %v1559
        %v1854 = vpop.f32.mrb[0].mxu0
        %v1855 = vadd.f32 0.0, %v1854
        %v1856 = vpop.f32.mrb[0].mxu0
        %1857 = vmatprep.mubr.f32.mxu0 %v1650
        %1858 = vmatmul.mubr.f32.gmra.mrb[0].mxu0 %v1561
        %v1859 = vpop.f32.mrb[0].mxu0
        %v1860 = vadd.f32 0.0, %v1859
        %v1861 = vpop.f32.mrb[0].mxu0
        %1862 = vmatprep.mubr.f32.mxu0 %v1653
        %1863 = vmatmul.mubr.f32.gmra.mrb[0].mxu0 %v1563
        %v1864 = vpop.f32.mrb[0].mxu0
        %v1865 = vadd.f32 0.0, %v1864
        %v1866 = vpop.f32.mrb[0].mxu0
        %1867 = vmatprep.mubr.f32.mxu0 %v1656
        %1868 = vmatmul.mubr.f32.gmra.mrb[0].mxu0 %v1565
        %v1869 = vpop.f32.mrb[0].mxu0
        %v1870 = vadd.f32 0.0, %v1869
        %v1871 = vpop.f32.mrb[0].mxu0
        %1872 = vmatprep.mubr.f32.mxu0 %v1659
        %1873 = vmatmul.mubr.f32.gmra.mrb[0].mxu0 %v1567
        %v1874 = vpop.f32.mrb[0].mxu0
        %v1875 = vadd.f32 0.0, %v1874
        %v1876 = vpop.f32.mrb[0].mxu0
        %1877 = vmatprep.mubr.f32.mxu0 %v1662
        %1878 = vmatmul.mubr.f32.gmra.mrb[0].mxu0 %v1569
        %v1879 = vpop.f32.mrb[0].mxu0
        %v1880 = vadd.f32 0.0, %v1879
        %v1881 = vpop.f32.mrb[0].mxu0
        %1882 = vmatprep.mubr.f32.mxu0 %v1665
        %1883 = vmatmul.mubr.f32.gmra.mrb[0].mxu0 %v1571
        %v1884 = vpop.f32.mrb[0].mxu0
        %v1885 = vadd.f32 0.0, %v1884
        %v1886 = vpop.f32.mrb[0].mxu0
        %1887 = vmatprep.mubr.f32.mxu0 %v1668
        %1888 = vmatmul.mubr.f32.gmra.mrb[0].mxu0 %v1573
        %v1889 = vpop.f32.mrb[0].mxu0
        %v1890 = vadd.f32 0.0, %v1889
        %v1891 = vpop.f32.mrb[0].mxu0
        %1892 = vmatprep.mubr.f32.mxu0 %v1671
        %1893 = vmatmul.mubr.f32.gmra.mrb[0].mxu0 %v1575
        %v1894 = vpop.f32.mrb[0].mxu0
        %v1895 = vadd.f32 0.0, %v1894
        %v1896 = vpop.f32.mrb[0].mxu0
        %1897 = vdwg.mxu0
        %v1898 = vtanh.pop %v1740
        %v1899 = vtanh.pop %v1745
        %v1900 = vtanh.pop %v1750
        %v1901 = vtanh.pop %v1755
        %v1902 = vtanh.pop %v1760
        %v1903 = vtanh.pop %v1765
        %v1904 = vtanh.pop %v1770
        %v1905 = vtanh.pop %v1775
        %v1906 = vtanh.pop %v1780
        %v1907 = vtanh.pop %v1785
        %v1908 = vtanh.pop %v1790
        %v1909 = vtanh.pop %v1795
        %v1910 = vtanh.pop %v1800
        %v1911 = vtanh.pop %v1805
        %v1912 = vtanh.pop %v1810
        %v1913 = vtanh.pop %v1815
        %v1914 = vtanh.pop %v1820
        %v1915 = vtanh.pop %v1825
        %v1916 = vtanh.pop %v1830
        %v1917 = vtanh.pop %v1835
        %v1918 = vtanh.pop %v1840
        %v1919 = vtanh.pop %v1845
        %v1920 = vtanh.pop %v1850
        %v1921 = vtanh.pop %v1855
        %v1922 = vtanh.pop %v1860
        %v1923 = vtanh.pop %v1865
        %v1924 = vtanh.pop %v1870
        %v1925 = vtanh.pop %v1875
        %v1926 = vtanh.pop %v1880
        %v1927 = vtanh.pop %v1885
        %v1928 = vtanh.pop %v1890
        %v1929 = vtanh.pop %v1895
        %v1930 = vld [vmem:[%s2] sm:$0xff]
        %v1931 = vld [vmem:[%s2 + $0x8] sm:$0xff]
        %v1932 = vld [vmem:[%s2 + $0x10] sm:$0xff]
        %v1933 = vld [vmem:[%s2 + $0x18] sm:$0xff]
        %v1934 = vld [vmem:[%s2 + $0x20] sm:$0xff]
        %v1935 = vld [vmem:[%s2 + $0x28] sm:$0xff]
        %v1936 = vld [vmem:[%s2 + $0x30] sm:$0xff]
        %v1937 = vld [vmem:[%s2 + $0x38] sm:$0xff]
        %v1938 = vld [vmem:[%s2 + $0x40] sm:$0xff]
        %v1939 = vld [vmem:[%s2 + $0x48] sm:$0xff]
        %v1940 = vld [vmem:[%s2 + $0x50] sm:$0xff]
        %v1941 = vld [vmem:[%s2 + $0x58] sm:$0xff]
        %v1942 = vld [vmem:[%s2 + $0x60] sm:$0xff]
        %v1943 = vld [vmem:[%s2 + $0x68] sm:$0xff]
        %v1944 = vld [vmem:[%s2 + $0x70] sm:$0xff]
        %v1945 = vld [vmem:[%s2 + $0x78] sm:$0xff]
        %v1946 = vld [vmem:[%s2 + $0x80] sm:$0xff]
        %v1947 = vld [vmem:[%s2 + $0x88] sm:$0xff]
        %v1948 = vld [vmem:[%s2 + $0x90] sm:$0xff]
        %v1949 = vld [vmem:[%s2 + $0x98] sm:$0xff]
        %v1950 = vld [vmem:[%s2 + $0xa0] sm:$0xff]
        %v1951 = vld [vmem:[%s2 + $0xa8] sm:$0xff]
        %v1952 = vld [vmem:[%s2 + $0xb0] sm:$0xff]
        %v1953 = vld [vmem:[%s2 + $0xb8] sm:$0xff]
        %v1954 = vld [vmem:[%s2 + $0xc0] sm:$0xff]
        %v1955 = vld [vmem:[%s2 + $0xc8] sm:$0xff]
        %v1956 = vld [vmem:[%s2 + $0xd0] sm:$0xff]
        %v1957 = vld [vmem:[%s2 + $0xd8] sm:$0xff]
        %v1958 = vld [vmem:[%s2 + $0xe0] sm:$0xff]
        %v1959 = vld [vmem:[%s2 + $0xe8] sm:$0xff]
        %v1960 = vld [vmem:[%s2 + $0xf0] sm:$0xff]
        %v1961 = vld [vmem:[%s2 + $0xf8] sm:$0xff]
        %v1962 = vld [vmem:[%s2 + $0x100] sm:$0xff]
        %v1963 = vld [vmem:[%s2 + $0x108] sm:$0xff]
        %v1964 = vld [vmem:[%s2 + $0x110] sm:$0xff]
        %v1965 = vld [vmem:[%s2 + $0x118] sm:$0xff]
        %v1966 = vld [vmem:[%s3] sm:$0xff]
        %v1967 = vld [vmem:[%s3 + $0x8] sm:$0xff]
        %v1968 = vld [vmem:[%s3 + $0x10] sm:$0xff]
        %v1969 = vld [vmem:[%s3 + $0x18] sm:$0xff]
        %v1970 = vld [vmem:[%s3 + $0x20] sm:$0xff]
        %v1971 = vld [vmem:[%s3 + $0x28] sm:$0xff]
        %v1972 = vld [vmem:[%s3 + $0x30] sm:$0xff]
        %v1973 = vld [vmem:[%s3 + $0x38] sm:$0xff]
        %v1974 = vld [vmem:[%s3 + $0x40] sm:$0xff]
        %v1975 = vld [vmem:[%s3 + $0x48] sm:$0xff]
        %v1976 = vld [vmem:[%s3 + $0x50] sm:$0xff]
        %v1977 = vld [vmem:[%s3 + $0x58] sm:$0xff]
        %v1978 = vld [vmem:[%s3 + $0x60] sm:$0xff]
        %v1979 = vld [vmem:[%s3 + $0x68] sm:$0xff]
        %v1980 = vld [vmem:[%s3 + $0x70] sm:$0xff]
        %v1981 = vld [vmem:[%s3 + $0x78] sm:$0xff]
        %v1982 = vld [vmem:[%s3 + $0x80] sm:$0xff]
        %v1983 = vld [vmem:[%s3 + $0x88] sm:$0xff]
        %1985 = vset.pattern.permute.xlu0 0
        %1986 = vperm.xlu0 %1985, %v1966
        %v1987 = vpop.permute.xlu0 %1986
        %1990 = vset.pattern.permute.xlu0 0
        %1991 = vperm.xlu0 %1990, %v1967
        %v1992 = vpop.permute.xlu0 %1991
        %1995 = vset.pattern.permute.xlu0 0
        %1996 = vperm.xlu0 %1995, %v1968
        %v1997 = vpop.permute.xlu0 %1996
        %2000 = vset.pattern.permute.xlu0 0
        %2001 = vperm.xlu0 %2000, %v1969
        %v2002 = vpop.permute.xlu0 %2001
        %2005 = vset.pattern.permute.xlu0 0
        %2006 = vperm.xlu0 %2005, %v1970
        %v2007 = vpop.permute.xlu0 %2006
        %2010 = vset.pattern.permute.xlu0 0
        %2011 = vperm.xlu0 %2010, %v1971
        %v2012 = vpop.permute.xlu0 %2011
        %2015 = vset.pattern.permute.xlu0 0
        %2016 = vperm.xlu0 %2015, %v1972
        %v2017 = vpop.permute.xlu0 %2016
        %2020 = vset.pattern.permute.xlu0 0
        %2021 = vperm.xlu0 %2020, %v1973
        %v2022 = vpop.permute.xlu0 %2021
        %2025 = vset.pattern.permute.xlu0 0
        %2026 = vperm.xlu0 %2025, %v1974
        %v2027 = vpop.permute.xlu0 %2026
        %2030 = vset.pattern.permute.xlu0 0
        %2031 = vperm.xlu0 %2030, %v1975
        %v2032 = vpop.permute.xlu0 %2031
        %2035 = vset.pattern.permute.xlu0 0
        %2036 = vperm.xlu0 %2035, %v1976
        %v2037 = vpop.permute.xlu0 %2036
        %2040 = vset.pattern.permute.xlu0 0
        %2041 = vperm.xlu0 %2040, %v1977
        %v2042 = vpop.permute.xlu0 %2041
        %2045 = vset.pattern.permute.xlu0 0
        %2046 = vperm.xlu0 %2045, %v1978
        %v2047 = vpop.permute.xlu0 %2046
        %2050 = vset.pattern.permute.xlu0 0
        %2051 = vperm.xlu0 %2050, %v1979
        %v2052 = vpop.permute.xlu0 %2051
        %2055 = vset.pattern.permute.xlu0 0
        %2056 = vperm.xlu0 %2055, %v1980
        %v2057 = vpop.permute.xlu0 %2056
        %2060 = vset.pattern.permute.xlu0 0
        %2061 = vperm.xlu0 %2060, %v1981
        %v2062 = vpop.permute.xlu0 %2061
        %2065 = vset.pattern.permute.xlu0 0
        %2066 = vperm.xlu0 %2065, %v1982
        %v2067 = vpop.permute.xlu0 %2066
        %2070 = vset.pattern.permute.xlu0 0
        %2071 = vperm.xlu0 %2070, %v1983
        %v2072 = vpop.permute.xlu0 %2071
        %2074 = vmatprep.subr.mxu0 0.0
        %2075 = vmatpush1.msra.mxu0 %v1898
        %2076 = vmatprep.subr.mxu0 0.0
        %2077 = vmatpush1.msra.mxu0 %v1899
        %2078 = vmatprep.subr.mxu0 0.0
        %2079 = vmatpush1.msra.mxu0 %v1900
        %2080 = vmatprep.subr.mxu0 0.0
        %2081 = vmatpush1.msra.mxu0 %v1901
        %2082 = vmatprep.subr.mxu0 0.0
        %2083 = vmatpush1.msra.mxu0 %v1902
        %2084 = vmatprep.subr.mxu0 0.0
        %2085 = vmatpush1.msra.mxu0 %v1903
        %2086 = vmatprep.subr.mxu0 0.0
        %2087 = vmatpush1.msra.mxu0 %v1904
        %2088 = vmatprep.subr.mxu0 0.0
        %2089 = vmatpush1.msra.mxu0 %v1905
        %2090 = vmatprep.subr.mxu0 0.0
        %2091 = vmatpush1.msra.mxu0 %v1906
        %2092 = vmatprep.subr.mxu0 0.0
        %2093 = vmatpush1.msra.mxu0 %v1907
        %2094 = vmatprep.subr.mxu0 0.0
        %2095 = vmatpush1.msra.mxu0 %v1908
        %2096 = vmatprep.subr.mxu0 0.0
        %2097 = vmatpush1.msra.mxu0 %v1909
        %2098 = vmatprep.subr.mxu0 0.0
        %2099 = vmatpush1.msra.mxu0 %v1910
        %2100 = vmatprep.subr.mxu0 0.0
        %2101 = vmatpush1.msra.mxu0 %v1911
        %2102 = vmatprep.subr.mxu0 0.0
        %2103 = vmatpush1.msra.mxu0 %v1912
        %2104 = vmatprep.subr.mxu0 0.0
        %2105 = vmatpush1.msra.mxu0 %v1913
        %2106 = vmatprep.subr.mxu0 0.0
        %2107 = vmatpush1.msra.mxu0 %v1914
        %2108 = vmatprep.subr.mxu0 0.0
        %2109 = vmatpush1.msra.mxu0 %v1915
        %2110 = vmatprep.subr.mxu0 0.0
        %2111 = vmatpush1.msra.mxu0 %v1916
        %2112 = vmatprep.subr.mxu0 0.0
        %2113 = vmatpush1.msra.mxu0 %v1917
        %2114 = vmatprep.subr.mxu0 0.0
        %2115 = vmatpush1.msra.mxu0 %v1918
        %2116 = vmatprep.subr.mxu0 0.0
        %2117 = vmatpush1.msra.mxu0 %v1919
        %2118 = vmatprep.subr.mxu0 0.0
        %2119 = vmatpush1.msra.mxu0 %v1920
        %2120 = vmatprep.subr.mxu0 0.0
        %2121 = vmatpush1.msra.mxu0 %v1921
        %2122 = vmatprep.subr.mxu0 0.0
        %2123 = vmatpush1.msra.mxu0 %v1922
        %2124 = vmatprep.subr.mxu0 0.0
        %2125 = vmatpush1.msra.mxu0 %v1923
        %2126 = vmatprep.subr.mxu0 0.0
        %2127 = vmatpush1.msra.mxu0 %v1924
        %2128 = vmatprep.subr.mxu0 0.0
        %2129 = vmatpush1.msra.mxu0 %v1925
        %2130 = vmatprep.subr.mxu0 0.0
        %2131 = vmatpush1.msra.mxu0 %v1926
        %2132 = vmatprep.subr.mxu0 0.0
        %2133 = vmatpush1.msra.mxu0 %v1927
        %2134 = vmatprep.subr.mxu0 0.0
        %2135 = vmatpush1.msra.mxu0 %v1928
        %2136 = vmatprep.subr.mxu0 0.0
        %2137 = vmatpush1.msra.mxu0 %v1929
        %2138 = vmatprep.mubr.f32.mxu0 %v1931
        %2139 = vmatmul.mubr.f32.gmra.mrb[0].mxu0 %v1930
        %v2140 = vpop.f32.mrb[0].mxu0
        %v2141 = vadd.f32 %v1987, %v2140
        %v2142 = vpop.f32.mrb[0].mxu0
        %2143 = vmatprep.mubr.f32.mxu0 %v1933
        %2144 = vmatmul.mubr.f32.gmra.mrb[0].mxu0 %v1932
        %v2145 = vpop.f32.mrb[0].mxu0
        %v2146 = vadd.f32 %v1992, %v2145
        %v2147 = vpop.f32.mrb[0].mxu0
        %2148 = vmatprep.mubr.f32.mxu0 %v1935
        %2149 = vmatmul.mubr.f32.gmra.mrb[0].mxu0 %v1934
        %v2150 = vpop.f32.mrb[0].mxu0
        %v2151 = vadd.f32 %v1997, %v2150
        %v2152 = vpop.f32.mrb[0].mxu0
        %2153 = vmatprep.mubr.f32.mxu0 %v1937
        %2154 = vmatmul.mubr.f32.gmra.mrb[0].mxu0 %v1936
        %v2155 = vpop.f32.mrb[0].mxu0
        %v2156 = vadd.f32 %v2002, %v2155
        %v2157 = vpop.f32.mrb[0].mxu0
        %2158 = vmatprep.mubr.f32.mxu0 %v1939
        %2159 = vmatmul.mubr.f32.gmra.mrb[0].mxu0 %v1938
        %v2160 = vpop.f32.mrb[0].mxu0
        %v2161 = vadd.f32 %v2007, %v2160
        %v2162 = vpop.f32.mrb[0].mxu0
        %2163 = vmatprep.mubr.f32.mxu0 %v1941
        %2164 = vmatmul.mubr.f32.gmra.mrb[0].mxu0 %v1940
        %v2165 = vpop.f32.mrb[0].mxu0
        %v2166 = vadd.f32 %v2012, %v2165
        %v2167 = vpop.f32.mrb[0].mxu0
        %2168 = vmatprep.mubr.f32.mxu0 %v1943
        %2169 = vmatmul.mubr.f32.gmra.mrb[0].mxu0 %v1942
        %v2170 = vpop.f32.mrb[0].mxu0
        %v2171 = vadd.f32 %v2017, %v2170
        %v2172 = vpop.f32.mrb[0].mxu0
        %2173 = vmatprep.mubr.f32.mxu0 %v1945
        %2174 = vmatmul.mubr.f32.gmra.mrb[0].mxu0 %v1944
        %v2175 = vpop.f32.mrb[0].mxu0
        %v2176 = vadd.f32 %v2022, %v2175
        %v2177 = vpop.f32.mrb[0].mxu0
        %2178 = vmatprep.mubr.f32.mxu0 %v1947
        %2179 = vmatmul.mubr.f32.gmra.mrb[0].mxu0 %v1946
        %v2180 = vpop.f32.mrb[0].mxu0
        %v2181 = vadd.f32 %v2027, %v2180
        %v2182 = vpop.f32.mrb[0].mxu0
        %2183 = vmatprep.mubr.f32.mxu0 %v1949
        %2184 = vmatmul.mubr.f32.gmra.mrb[0].mxu0 %v1948
        %v2185 = vpop.f32.mrb[0].mxu0
        %v2186 = vadd.f32 %v2032, %v2185
        %v2187 = vpop.f32.mrb[0].mxu0
        %2188 = vmatprep.mubr.f32.mxu0 %v1951
        %2189 = vmatmul.mubr.f32.gmra.mrb[0].mxu0 %v1950
        %v2190 = vpop.f32.mrb[0].mxu0
        %v2191 = vadd.f32 %v2037, %v2190
        %v2192 = vpop.f32.mrb[0].mxu0
        %2193 = vmatprep.mubr.f32.mxu0 %v1953
        %2194 = vmatmul.mubr.f32.gmra.mrb[0].mxu0 %v1952
        %v2195 = vpop.f32.mrb[0].mxu0
        %v2196 = vadd.f32 %v2042, %v2195
        %v2197 = vpop.f32.mrb[0].mxu0
        %2198 = vmatprep.mubr.f32.mxu0 %v1955
        %2199 = vmatmul.mubr.f32.gmra.mrb[0].mxu0 %v1954
        %v2200 = vpop.f32.mrb[0].mxu0
        %v2201 = vadd.f32 %v2047, %v2200
        %v2202 = vpop.f32.mrb[0].mxu0
        %2203 = vmatprep.mubr.f32.mxu0 %v1957
        %2204 = vmatmul.mubr.f32.gmra.mrb[0].mxu0 %v1956
        %v2205 = vpop.f32.mrb[0].mxu0
        %v2206 = vadd.f32 %v2052, %v2205
        %v2207 = vpop.f32.mrb[0].mxu0
        %2208 = vmatprep.mubr.f32.mxu0 %v1959
        %2209 = vmatmul.mubr.f32.gmra.mrb[0].mxu0 %v1958
        %v2210 = vpop.f32.mrb[0].mxu0
        %v2211 = vadd.f32 %v2057, %v2210
        %v2212 = vpop.f32.mrb[0].mxu0
        %2213 = vmatprep.mubr.f32.mxu0 %v1961
        %2214 = vmatmul.mubr.f32.gmra.mrb[0].mxu0 %v1960
        %v2215 = vpop.f32.mrb[0].mxu0
        %v2216 = vadd.f32 %v2062, %v2215
        %v2217 = vpop.f32.mrb[0].mxu0
        %2218 = vmatprep.mubr.f32.mxu0 %v1963
        %2219 = vmatmul.mubr.f32.gmra.mrb[0].mxu0 %v1962
        %v2220 = vpop.f32.mrb[0].mxu0
        %v2221 = vadd.f32 %v2067, %v2220
        %v2222 = vpop.f32.mrb[0].mxu0
        %2223 = vmatprep.mubr.f32.mxu0 %v1965
        %2224 = vmatmul.mubr.f32.gmra.mrb[0].mxu0 %v1964
        %v2225 = vpop.f32.mrb[0].mxu0
        %v2226 = vadd.f32 %v2072, %v2225
        %v2227 = vpop.f32.mrb[0].mxu0
        %2228 = vdwg.mxu0
        %2229 = vst [vmem:[#allocation2] sm:$0xff] %v2141
        %2230 = vst [vmem:[#allocation2 + $0x8] sm:$0xff] %v2146
        %2231 = vst [vmem:[#allocation2 + $0x10] sm:$0xff] %v2151
        %2232 = vst [vmem:[#allocation2 + $0x18] sm:$0xff] %v2156
        %2233 = vst [vmem:[#allocation2 + $0x20] sm:$0xff] %v2161
        %2234 = vst [vmem:[#allocation2 + $0x28] sm:$0xff] %v2166
        %2235 = vst [vmem:[#allocation2 + $0x30] sm:$0xff] %v2171
        %2236 = vst [vmem:[#allocation2 + $0x38] sm:$0xff] %v2176
        %2237 = vst [vmem:[#allocation2 + $0x40] sm:$0xff] %v2181
        %2238 = vst [vmem:[#allocation2 + $0x48] sm:$0xff] %v2186
        %2239 = vst [vmem:[#allocation2 + $0x50] sm:$0xff] %v2191
        %2240 = vst [vmem:[#allocation2 + $0x58] sm:$0xff] %v2196
        %2241 = vst [vmem:[#allocation2 + $0x60] sm:$0xff] %v2201
        %2242 = vst [vmem:[#allocation2 + $0x68] sm:$0xff] %v2206
        %2243 = vst [vmem:[#allocation2 + $0x70] sm:$0xff] %v2211
        %2244 = vst [vmem:[#allocation2 + $0x78] sm:$0xff] %v2216
        %2245 = vst [vmem:[#allocation2 + $0x80] sm:$0xff] %v2221
        %2246 = vst [vmem:[#allocation2 + $0x88] sm:$0xff] %v2226
        %v2247 = vld [vmem:[%s191 + $0xa0] sm:$0xff]
        %v2248 = vld [vmem:[%s191 + $0xe8] sm:$0xff]
        %v2249 = vld [vmem:[%s191 + $0xa8] sm:$0xff]
        %v2250 = vld [vmem:[%s191 + $0xf0] sm:$0xff]
        %v2251 = vld [vmem:[%s191 + $0xb0] sm:$0xff]
        %v2252 = vld [vmem:[%s191 + $0xf8] sm:$0xff]
        %v2253 = vld [vmem:[%s191 + $0xb8] sm:$0xff]
        %v2254 = vld [vmem:[%s191 + $0x100] sm:$0xff]
        %v2255 = vld [vmem:[%s191 + $0xc0] sm:$0xff]
        %v2256 = vld [vmem:[%s191 + $0x108] sm:$0xff]
        %v2257 = vld [vmem:[%s191 + $0xc8] sm:$0xff]
        %v2258 = vld [vmem:[%s191 + $0x110] sm:$0xff]
        %v2259 = vld [vmem:[%s191 + $0xd0] sm:$0xff]
        %v2260 = vld [vmem:[%s191 + $0x118] sm:$0xff]
        %v2261 = vld [vmem:[%s191 + $0xd8] sm:$0xff]
        %v2262 = vld [vmem:[%s191 + $0x120] sm:$0xff]
        %v2263 = vld [vmem:[%s191 + $0xe0] sm:$0xff]
        %v2264 = vld [vmem:[%s191 + $0x128] sm:$0xff]
        %v2265 = vmul.f32 %v2255, %v2263
        %v2266 = vmul.f32 %v2256, %v2264
        %v2267 = vsub.f32 %v2265, %v2266
        %v2268 = vmul.f32 %v2255, %v2264
        %v2269 = vmul.f32 %v2256, %v2263
        %v2270 = vadd.f32 %v2268, %v2269
        %v2271 = vmul.f32 %v2257, %v2261
        %v2272 = vmul.f32 %v2258, %v2262
        %v2273 = vsub.f32 %v2271, %v2272
        %v2274 = vmul.f32 %v2257, %v2262
        %v2275 = vmul.f32 %v2258, %v2261
        %v2276 = vadd.f32 %v2274, %v2275
        %v2277 = vsub.f32 %v2267, %v2273
        %v2278 = vsub.f32 %v2270, %v2276
        %v2279 = vmul.f32 %v2253, %v2263
        %v2280 = vmul.f32 %v2254, %v2264
        %v2281 = vsub.f32 %v2279, %v2280
        %v2282 = vmul.f32 %v2253, %v2264
        %v2283 = vmul.f32 %v2254, %v2263
        %v2284 = vadd.f32 %v2282, %v2283
        %v2285 = vmul.f32 %v2257, %v2259
        %v2286 = vmul.f32 %v2258, %v2260
        %v2287 = vsub.f32 %v2285, %v2286
        %v2288 = vmul.f32 %v2257, %v2260
        %v2289 = vmul.f32 %v2258, %v2259
        %v2290 = vadd.f32 %v2288, %v2289
        %v2291 = vsub.f32 %v2281, %v2287
        %v2292 = vsub.f32 %v2284, %v2290
        %v2293 = vsub.f32 0.0, %v2291
        %v2294 = vsub.f32 0.0, %v2292
        %v2295 = vmul.f32 %v2253, %v2261
        %v2296 = vmul.f32 %v2254, %v2262
        %v2297 = vsub.f32 %v2295, %v2296
        %v2298 = vmul.f32 %v2253, %v2262
        %v2299 = vmul.f32 %v2254, %v2261
        %v2300 = vadd.f32 %v2298, %v2299
        %v2301 = vmul.f32 %v2255, %v2259
        %v2302 = vmul.f32 %v2256, %v2260
        %v2303 = vsub.f32 %v2301, %v2302
        %v2304 = vmul.f32 %v2255, %v2260
        %v2305 = vmul.f32 %v2256, %v2259
        %v2306 = vadd.f32 %v2304, %v2305
        %v2307 = vsub.f32 %v2297, %v2303
        %v2308 = vsub.f32 %v2300, %v2306
        %v2309 = vmul.f32 %v2249, %v2263
        %v2310 = vmul.f32 %v2250, %v2264
        %v2311 = vsub.f32 %v2309, %v2310
        %v2312 = vmul.f32 %v2249, %v2264
        %v2313 = vmul.f32 %v2250, %v2263
        %v2314 = vadd.f32 %v2312, %v2313
        %v2315 = vmul.f32 %v2251, %v2261
        %v2316 = vmul.f32 %v2252, %v2262
        %v2317 = vsub.f32 %v2315, %v2316
        %v2318 = vmul.f32 %v2251, %v2262
        %v2319 = vmul.f32 %v2252, %v2261
        %v2320 = vadd.f32 %v2318, %v2319
        %v2321 = vsub.f32 %v2311, %v2317
        %v2322 = vsub.f32 %v2314, %v2320
        %v2323 = vsub.f32 0.0, %v2321
        %v2324 = vsub.f32 0.0, %v2322
        %v2325 = vmul.f32 %v2247, %v2263
        %v2326 = vmul.f32 %v2248, %v2264
        %v2327 = vsub.f32 %v2325, %v2326
        %v2328 = vmul.f32 %v2247, %v2264
        %v2329 = vmul.f32 %v2248, %v2263
        %v2330 = vadd.f32 %v2328, %v2329
        %v2331 = vmul.f32 %v2251, %v2259
        %v2332 = vmul.f32 %v2252, %v2260
        %v2333 = vsub.f32 %v2331, %v2332
        %v2334 = vmul.f32 %v2251, %v2260
        %v2335 = vmul.f32 %v2252, %v2259
        %v2336 = vadd.f32 %v2334, %v2335
        %v2337 = vsub.f32 %v2327, %v2333
        %v2338 = vsub.f32 %v2330, %v2336
        %v2339 = vmul.f32 %v2247, %v2261
        %v2340 = vmul.f32 %v2248, %v2262
        %v2341 = vsub.f32 %v2339, %v2340
        %v2342 = vmul.f32 %v2247, %v2262
        %v2343 = vmul.f32 %v2248, %v2261
        %v2344 = vadd.f32 %v2342, %v2343
        %v2345 = vmul.f32 %v2249, %v2259
        %v2346 = vmul.f32 %v2250, %v2260
        %v2347 = vsub.f32 %v2345, %v2346
        %v2348 = vmul.f32 %v2249, %v2260
        %v2349 = vmul.f32 %v2250, %v2259
        %v2350 = vadd.f32 %v2348, %v2349
        %v2351 = vsub.f32 %v2341, %v2347
        %v2352 = vsub.f32 %v2344, %v2350
        %v2353 = vsub.f32 0.0, %v2351
        %v2354 = vsub.f32 0.0, %v2352
        %v2355 = vmul.f32 %v2249, %v2257
        %v2356 = vmul.f32 %v2250, %v2258
        %v2357 = vsub.f32 %v2355, %v2356
        %v2358 = vmul.f32 %v2249, %v2258
        %v2359 = vmul.f32 %v2250, %v2257
        %v2360 = vadd.f32 %v2358, %v2359
        %v2361 = vmul.f32 %v2251, %v2255
        %v2362 = vmul.f32 %v2252, %v2256
        %v2363 = vsub.f32 %v2361, %v2362
        %v2364 = vmul.f32 %v2251, %v2256
        %v2365 = vmul.f32 %v2252, %v2255
        %v2366 = vadd.f32 %v2364, %v2365
        %v2367 = vsub.f32 %v2357, %v2363
        %v2368 = vsub.f32 %v2360, %v2366
        %v2369 = vmul.f32 %v2247, %v2257
        %v2370 = vmul.f32 %v2248, %v2258
        %v2371 = vsub.f32 %v2369, %v2370
        %v2372 = vmul.f32 %v2247, %v2258
        %v2373 = vmul.f32 %v2248, %v2257
        %v2374 = vadd.f32 %v2372, %v2373
        %v2375 = vmul.f32 %v2251, %v2253
        %v2376 = vmul.f32 %v2252, %v2254
        %v2377 = vsub.f32 %v2375, %v2376
        %v2378 = vmul.f32 %v2251, %v2254
        %v2379 = vmul.f32 %v2252, %v2253
        %v2380 = vadd.f32 %v2378, %v2379
        %v2381 = vsub.f32 %v2371, %v2377
        %v2382 = vsub.f32 %v2374, %v2380
        %v2383 = vsub.f32 0.0, %v2381
        %v2384 = vsub.f32 0.0, %v2382
        %v2385 = vmul.f32 %v2247, %v2255
        %v2386 = vmul.f32 %v2248, %v2256
        %v2387 = vsub.f32 %v2385, %v2386
        %v2388 = vmul.f32 %v2247, %v2256
        %v2389 = vmul.f32 %v2248, %v2255
        %v2390 = vadd.f32 %v2388, %v2389
        %v2391 = vmul.f32 %v2249, %v2253
        %v2392 = vmul.f32 %v2250, %v2254
        %v2393 = vsub.f32 %v2391, %v2392
        %v2394 = vmul.f32 %v2249, %v2254
        %v2395 = vmul.f32 %v2250, %v2253
        %v2396 = vadd.f32 %v2394, %v2395
        %v2397 = vsub.f32 %v2387, %v2393
        %v2398 = vsub.f32 %v2390, %v2396
        %v2399 = vmul.f32 %v2247, %v2277
        %v2400 = vmul.f32 %v2248, %v2278
        %v2401 = vsub.f32 %v2399, %v2400
        %v2402 = vmul.f32 %v2247, %v2278
        %v2403 = vmul.f32 %v2248, %v2277
        %v2404 = vadd.f32 %v2402, %v2403
        %v2405 = vmul.f32 %v2249, %v2293
        %v2406 = vmul.f32 %v2250, %v2294
        %v2407 = vsub.f32 %v2405, %v2406
        %v2408 = vmul.f32 %v2249, %v2294
        %v2409 = vmul.f32 %v2250, %v2293
        %v2410 = vadd.f32 %v2408, %v2409
        %v2411 = vmul.f32 %v2251, %v2307
        %v2412 = vmul.f32 %v2252, %v2308
        %v2413 = vsub.f32 %v2411, %v2412
        %v2414 = vmul.f32 %v2251, %v2308
        %v2415 = vmul.f32 %v2252, %v2307
        %v2416 = vadd.f32 %v2414, %v2415
        %v2417 = vadd.f32 %v2401, %v2407
        %v2418 = vadd.f32 %v2404, %v2410
        %v2419 = vadd.f32 %v2417, %v2413
        %v2420 = vadd.f32 %v2418, %v2416
        %v2421 = vmul.f32 %v2419, %v2419
        %v2422 = vmul.f32 %v2420, %v2420
        %v2423 = vadd.f32 %v2421, %v2422
        %v2424 = vrcp.pop %v2423
        %v2425 = vmul.f32 %v2423, %v2424
        %v2426 = vsub.f32 2.0, %v2425
        %v2427 = vmul.f32 %v2424, %v2426
        %v2428 = vmul.f32 %v2419, %v2427
        %v2429 = vsub.f32 0.0, %v2420
        %v2430 = vmul.f32 %v2429, %v2427
        %v2431 = vld [vmem:[#allocation2 + $0x8] sm:$0xff]
        %v2432 = vld [vmem:[#allocation2 + $0x50] sm:$0xff]
        %v2433 = vmul.f32 %v2277, %v2431
        %v2434 = vmul.f32 %v2278, %v2432
        %v2435 = vsub.f32 %v2433, %v2434
        %v2436 = vmul.f32 %v2277, %v2432
        %v2437 = vmul.f32 %v2278, %v2431
        %v2438 = vadd.f32 %v2436, %v2437
        %v2439 = vld [vmem:[#allocation2 + $0x20] sm:$0xff]
        %v2440 = vld [vmem:[#allocation2 + $0x68] sm:$0xff]
        %v2441 = vmul.f32 %v2323, %v2439
        %v2442 = vmul.f32 %v2324, %v2440
        %v2443 = vsub.f32 %v2441, %v2442
        %v2444 = vmul.f32 %v2323, %v2440
        %v2445 = vmul.f32 %v2324, %v2439
        %v2446 = vadd.f32 %v2444, %v2445
        %v2447 = vld [vmem:[#allocation2 + $0x38] sm:$0xff]
        %v2448 = vld [vmem:[#allocation2 + $0x80] sm:$0xff]
        %v2449 = vmul.f32 %v2367, %v2447
        %v2450 = vmul.f32 %v2368, %v2448
        %v2451 = vsub.f32 %v2449, %v2450
        %v2452 = vmul.f32 %v2367, %v2448
        %v2453 = vmul.f32 %v2368, %v2447
        %v2454 = vadd.f32 %v2452, %v2453
        %v2455 = vadd.f32 %v2435, %v2443
        %v2456 = vadd.f32 %v2438, %v2446
        %v2457 = vadd.f32 %v2455, %v2451
        %v2458 = vadd.f32 %v2456, %v2454
        %v2459 = vmul.f32 %v2457, %v2428
        %v2460 = vmul.f32 %v2458, %v2430
        %v2461 = vsub.f32 %v2459, %v2460
        %v2462 = vmul.f32 %v2457, %v2430
        %v2463 = vmul.f32 %v2458, %v2428
        %v2464 = vadd.f32 %v2462, %v2463
        %v2465 = vld [vmem:[#allocation2] sm:$0xff]
        %v2466 = vld [vmem:[#allocation2 + $0x48] sm:$0xff]
        %v2467 = vmul.f32 %v2293, %v2465
        %v2468 = vmul.f32 %v2294, %v2466
        %v2469 = vsub.f32 %v2467, %v2468
        %v2470 = vmul.f32 %v2293, %v2466
        %v2471 = vmul.f32 %v2294, %v2465
        %v2472 = vadd.f32 %v2470, %v2471
        %v2473 = vld [vmem:[#allocation2 + $0x18] sm:$0xff]
        %v2474 = vld [vmem:[#allocation2 + $0x60] sm:$0xff]
        %v2475 = vmul.f32 %v2337, %v2473
        %v2476 = vmul.f32 %v2338, %v2474
        %v2477 = vsub.f32 %v2475, %v2476
        %v2478 = vmul.f32 %v2337, %v2474
        %v2479 = vmul.f32 %v2338, %v2473
        %v2480 = vadd.f32 %v2478, %v2479
        %v2481 = vld [vmem:[#allocation2 + $0x30] sm:$0xff]
        %v2482 = vld [vmem:[#allocation2 + $0x78] sm:$0xff]
        %v2483 = vmul.f32 %v2383, %v2481
        %v2484 = vmul.f32 %v2384, %v2482
        %v2485 = vsub.f32 %v2483, %v2484
        %v2486 = vmul.f32 %v2383, %v2482
        %v2487 = vmul.f32 %v2384, %v2481
        %v2488 = vadd.f32 %v2486, %v2487
        %v2489 = vadd.f32 %v2469, %v2477
        %v2490 = vadd.f32 %v2472, %v2480
        %v2491 = vadd.f32 %v2489, %v2485
        %v2492 = vadd.f32 %v2490, %v2488
        %v2493 = vmul.f32 %v2491, %v2428
        %v2494 = vmul.f32 %v2492, %v2430
        %v2495 = vsub.f32 %v2493, %v2494
        %v2496 = vmul.f32 %v2491, %v2430
        %v2497 = vmul.f32 %v2492, %v2428
        %v2498 = vadd.f32 %v2496, %v2497
        %v2499 = vsub.f32 %v2461, %v2495
        %v2500 = vmul.f32 %v2499, 0.5
        %v2501 = vadd.f32 %v2464, %v2498
        %v2502 = vmul.f32 %v2501, 0.5
        %2503 = vst [vmem:[%s215 + $0x98] sm:$0xff] %v2500
        %2504 = vst [vmem:[%s215 + $0xe0] sm:$0xff] %v2502
        %v2505 = vsub.f32 0.0, %v2500
        %2506 = vst [vmem:[%s215 + $0xa8] sm:$0xff] %v2505
        %2507 = vst [vmem:[%s215 + $0xf0] sm:$0xff] %v2502
        %v2508 = vld [vmem:[#allocation2 + $0x10] sm:$0xff]
        %v2509 = vld [vmem:[#allocation2 + $0x58] sm:$0xff]
        %v2510 = vmul.f32 %v2277, %v2508
        %v2511 = vmul.f32 %v2278, %v2509
        %v2512 = vsub.f32 %v2510, %v2511
        %v2513 = vmul.f32 %v2277, %v2509
        %v2514 = vmul.f32 %v2278, %v2508
        %v2515 = vadd.f32 %v2513, %v2514
        %v2516 = vld [vmem:[#allocation2 + $0x28] sm:$0xff]
        %v2517 = vld [vmem:[#allocation2 + $0x70] sm:$0xff]
        %v2518 = vmul.f32 %v2323, %v2516
        %v2519 = vmul.f32 %v2324, %v2517
        %v2520 = vsub.f32 %v2518, %v2519
        %v2521 = vmul.f32 %v2323, %v2517
        %v2522 = vmul.f32 %v2324, %v2516
        %v2523 = vadd.f32 %v2521, %v2522
        %v2524 = vld [vmem:[#allocation2 + $0x40] sm:$0xff]
        %v2525 = vld [vmem:[#allocation2 + $0x88] sm:$0xff]
        %v2526 = vmul.f32 %v2367, %v2524
        %v2527 = vmul.f32 %v2368, %v2525
        %v2528 = vsub.f32 %v2526, %v2527
        %v2529 = vmul.f32 %v2367, %v2525
        %v2530 = vmul.f32 %v2368, %v2524
        %v2531 = vadd.f32 %v2529, %v2530
        %v2532 = vadd.f32 %v2512, %v2520
        %v2533 = vadd.f32 %v2515, %v2523
        %v2534 = vadd.f32 %v2532, %v2528
        %v2535 = vadd.f32 %v2533, %v2531
        %v2536 = vmul.f32 %v2534, %v2428
        %v2537 = vmul.f32 %v2535, %v2430
        %v2538 = vsub.f32 %v2536, %v2537
        %v2539 = vmul.f32 %v2534, %v2430
        %v2540 = vmul.f32 %v2535, %v2428
        %v2541 = vadd.f32 %v2539, %v2540
        %v2542 = vld [vmem:[#allocation2] sm:$0xff]
        %v2543 = vld [vmem:[#allocation2 + $0x48] sm:$0xff]
        %v2544 = vmul.f32 %v2307, %v2542
        %v2545 = vmul.f32 %v2308, %v2543
        %v2546 = vsub.f32 %v2544, %v2545
        %v2547 = vmul.f32 %v2307, %v2543
        %v2548 = vmul.f32 %v2308, %v2542
        %v2549 = vadd.f32 %v2547, %v2548
        %v2550 = vld [vmem:[#allocation2 + $0x18] sm:$0xff]
        %v2551 = vld [vmem:[#allocation2 + $0x60] sm:$0xff]
        %v2552 = vmul.f32 %v2353, %v2550
        %v2553 = vmul.f32 %v2354, %v2551
        %v2554 = vsub.f32 %v2552, %v2553
        %v2555 = vmul.f32 %v2353, %v2551
        %v2556 = vmul.f32 %v2354, %v2550
        %v2557 = vadd.f32 %v2555, %v2556
        %v2558 = vld [vmem:[#allocation2 + $0x30] sm:$0xff]
        %v2559 = vld [vmem:[#allocation2 + $0x78] sm:$0xff]
        %v2560 = vmul.f32 %v2397, %v2558
        %v2561 = vmul.f32 %v2398, %v2559
        %v2562 = vsub.f32 %v2560, %v2561
        %v2563 = vmul.f32 %v2397, %v2559
        %v2564 = vmul.f32 %v2398, %v2558
        %v2565 = vadd.f32 %v2563, %v2564
        %v2566 = vadd.f32 %v2546, %v2554
        %v2567 = vadd.f32 %v2549, %v2557
        %v2568 = vadd.f32 %v2566, %v2562
        %v2569 = vadd.f32 %v2567, %v2565
        %v2570 = vmul.f32 %v2568, %v2428
        %v2571 = vmul.f32 %v2569, %v2430
        %v2572 = vsub.f32 %v2570, %v2571
        %v2573 = vmul.f32 %v2568, %v2430
        %v2574 = vmul.f32 %v2569, %v2428
        %v2575 = vadd.f32 %v2573, %v2574
        %v2576 = vsub.f32 %v2538, %v2572
        %v2577 = vmul.f32 %v2576, 0.5
        %v2578 = vadd.f32 %v2541, %v2575
        %v2579 = vmul.f32 %v2578, 0.5
        %2580 = vst [vmem:[%s215 + $0xa0] sm:$0xff] %v2577
        %2581 = vst [vmem:[%s215 + $0xe8] sm:$0xff] %v2579
        %v2582 = vsub.f32 0.0, %v2577
        %2583 = vst [vmem:[%s215 + $0xc0] sm:$0xff] %v2582
        %2584 = vst [vmem:[%s215 + $0x108] sm:$0xff] %v2579
        %v2585 = vld [vmem:[#allocation2 + $0x10] sm:$0xff]
        %v2586 = vld [vmem:[#allocation2 + $0x58] sm:$0xff]
        %v2587 = vmul.f32 %v2293, %v2585
        %v2588 = vmul.f32 %v2294, %v2586
        %v2589 = vsub.f32 %v2587, %v2588
        %v2590 = vmul.f32 %v2293, %v2586
        %v2591 = vmul.f32 %v2294, %v2585
        %v2592 = vadd.f32 %v2590, %v2591
        %v2593 = vld [vmem:[#allocation2 + $0x28] sm:$0xff]
        %v2594 = vld [vmem:[#allocation2 + $0x70] sm:$0xff]
        %v2595 = vmul.f32 %v2337, %v2593
        %v2596 = vmul.f32 %v2338, %v2594
        %v2597 = vsub.f32 %v2595, %v2596
        %v2598 = vmul.f32 %v2337, %v2594
        %v2599 = vmul.f32 %v2338, %v2593
        %v2600 = vadd.f32 %v2598, %v2599
        %v2601 = vld [vmem:[#allocation2 + $0x40] sm:$0xff]
        %v2602 = vld [vmem:[#allocation2 + $0x88] sm:$0xff]
        %v2603 = vmul.f32 %v2383, %v2601
        %v2604 = vmul.f32 %v2384, %v2602
        %v2605 = vsub.f32 %v2603, %v2604
        %v2606 = vmul.f32 %v2383, %v2602
        %v2607 = vmul.f32 %v2384, %v2601
        %v2608 = vadd.f32 %v2606, %v2607
        %v2609 = vadd.f32 %v2589, %v2597
        %v2610 = vadd.f32 %v2592, %v2600
        %v2611 = vadd.f32 %v2609, %v2605
        %v2612 = vadd.f32 %v2610, %v2608
        %v2613 = vmul.f32 %v2611, %v2428
        %v2614 = vmul.f32 %v2612, %v2430
        %v2615 = vsub.f32 %v2613, %v2614
        %v2616 = vmul.f32 %v2611, %v2430
        %v2617 = vmul.f32 %v2612, %v2428
        %v2618 = vadd.f32 %v2616, %v2617
        %v2619 = vld [vmem:[#allocation2 + $0x8] sm:$0xff]
        %v2620 = vld [vmem:[#allocation2 + $0x50] sm:$0xff]
        %v2621 = vmul.f32 %v2307, %v2619
        %v2622 = vmul.f32 %v2308, %v2620
        %v2623 = vsub.f32 %v2621, %v2622
        %v2624 = vmul.f32 %v2307, %v2620
        %v2625 = vmul.f32 %v2308, %v2619
        %v2626 = vadd.f32 %v2624, %v2625
        %v2627 = vld [vmem:[#allocation2 + $0x20] sm:$0xff]
        %v2628 = vld [vmem:[#allocation2 + $0x68] sm:$0xff]
        %v2629 = vmul.f32 %v2353, %v2627
        %v2630 = vmul.f32 %v2354, %v2628
        %v2631 = vsub.f32 %v2629, %v2630
        %v2632 = vmul.f32 %v2353, %v2628
        %v2633 = vmul.f32 %v2354, %v2627
        %v2634 = vadd.f32 %v2632, %v2633
        %v2635 = vld [vmem:[#allocation2 + $0x38] sm:$0xff]
        %v2636 = vld [vmem:[#allocation2 + $0x80] sm:$0xff]
        %v2637 = vmul.f32 %v2397, %v2635
        %v2638 = vmul.f32 %v2398, %v2636
        %v2639 = vsub.f32 %v2637, %v2638
        %v2640 = vmul.f32 %v2397, %v2636
        %v2641 = vmul.f32 %v2398, %v2635
        %v2642 = vadd.f32 %v2640, %v2641
        %v2643 = vadd.f32 %v2623, %v2631
        %v2644 = vadd.f32 %v2626, %v2634
        %v2645 = vadd.f32 %v2643, %v2639
        %v2646 = vadd.f32 %v2644, %v2642
        %v2647 = vmul.f32 %v2645, %v2428
        %v2648 = vmul.f32 %v2646, %v2430
        %v2649 = vsub.f32 %v2647, %v2648
        %v2650 = vmul.f32 %v2645, %v2430
        %v2651 = vmul.f32 %v2646, %v2428
        %v2652 = vadd.f32 %v2650, %v2651
        %v2653 = vsub.f32 %v2615, %v2649
        %v2654 = vmul.f32 %v2653, 0.5
        %v2655 = vadd.f32 %v2618, %v2652
        %v2656 = vmul.f32 %v2655, 0.5
        %2657 = vst [vmem:[%s215 + $0xb8] sm:$0xff] %v2654
        %2658 = vst [vmem:[%s215 + $0x100] sm:$0xff] %v2656
        %v2659 = vsub.f32 0.0, %v2654
        %2660 = vst [vmem:[%s215 + $0xc8] sm:$0xff] %v2659
        %2661 = vst [vmem:[%s215 + $0x110] sm:$0xff] %v2656
        %v2662 = vld [vmem:[#allocation2] sm:$0xff]
        %v2663 = vld [vmem:[#allocation2 + $0x48] sm:$0xff]
        %v2664 = vmul.f32 %v2277, %v2662
        %v2665 = vmul.f32 %v2278, %v2663
        %v2666 = vsub.f32 %v2664, %v2665
        %v2667 = vmul.f32 %v2277, %v2663
        %v2668 = vmul.f32 %v2278, %v2662
        %v2669 = vadd.f32 %v2667, %v2668
        %v2670 = vld [vmem:[#allocation2 + $0x18] sm:$0xff]
        %v2671 = vld [vmem:[#allocation2 + $0x60] sm:$0xff]
        %v2672 = vmul.f32 %v2323, %v2670
        %v2673 = vmul.f32 %v2324, %v2671
        %v2674 = vsub.f32 %v2672, %v2673
        %v2675 = vmul.f32 %v2323, %v2671
        %v2676 = vmul.f32 %v2324, %v2670
        %v2677 = vadd.f32 %v2675, %v2676
        %v2678 = vld [vmem:[#allocation2 + $0x30] sm:$0xff]
        %v2679 = vld [vmem:[#allocation2 + $0x78] sm:$0xff]
        %v2680 = vmul.f32 %v2367, %v2678
        %v2681 = vmul.f32 %v2368, %v2679
        %v2682 = vsub.f32 %v2680, %v2681
        %v2683 = vmul.f32 %v2367, %v2679
        %v2684 = vmul.f32 %v2368, %v2678
        %v2685 = vadd.f32 %v2683, %v2684
        %v2686 = vadd.f32 %v2666, %v2674
        %v2687 = vadd.f32 %v2669, %v2677
        %v2688 = vadd.f32 %v2686, %v2682
        %v2689 = vadd.f32 %v2687, %v2685
        %v2690 = vmul.f32 %v2688, %v2430
        %v2691 = vmul.f32 %v2689, %v2428
        %v2692 = vadd.f32 %v2690, %v2691
        %v2693 = vld [vmem:[#allocation2 + $0x8] sm:$0xff]
        %v2694 = vld [vmem:[#allocation2 + $0x50] sm:$0xff]
        %v2695 = vmul.f32 %v2293, %v2693
        %v2696 = vmul.f32 %v2294, %v2694
        %v2697 = vsub.f32 %v2695, %v2696
        %v2698 = vmul.f32 %v2293, %v2694
        %v2699 = vmul.f32 %v2294, %v2693
        %v2700 = vadd.f32 %v2698, %v2699
        %v2701 = vld [vmem:[#allocation2 + $0x20] sm:$0xff]
        %v2702 = vld [vmem:[#allocation2 + $0x68] sm:$0xff]
        %v2703 = vmul.f32 %v2337, %v2701
        %v2704 = vmul.f32 %v2338, %v2702
        %v2705 = vsub.f32 %v2703, %v2704
        %v2706 = vmul.f32 %v2337, %v2702
        %v2707 = vmul.f32 %v2338, %v2701
        %v2708 = vadd.f32 %v2706, %v2707
        %v2709 = vld [vmem:[#allocation2 + $0x38] sm:$0xff]
        %v2710 = vld [vmem:[#allocation2 + $0x80] sm:$0xff]
        %v2711 = vmul.f32 %v2383, %v2709
        %v2712 = vmul.f32 %v2384, %v2710
        %v2713 = vsub.f32 %v2711, %v2712
        %v2714 = vmul.f32 %v2383, %v2710
        %v2715 = vmul.f32 %v2384, %v2709
        %v2716 = vadd.f32 %v2714, %v2715
        %v2717 = vadd.f32 %v2697, %v2705
        %v2718 = vadd.f32 %v2700, %v2708
        %v2719 = vadd.f32 %v2717, %v2713
        %v2720 = vadd.f32 %v2718, %v2716
        %v2721 = vmul.f32 %v2719, %v2430
        %v2722 = vmul.f32 %v2720, %v2428
        %v2723 = vadd.f32 %v2721, %v2722
        %v2724 = vld [vmem:[#allocation2 + $0x10] sm:$0xff]
        %v2725 = vld [vmem:[#allocation2 + $0x58] sm:$0xff]
        %v2726 = vmul.f32 %v2307, %v2724
        %v2727 = vmul.f32 %v2308, %v2725
        %v2728 = vsub.f32 %v2726, %v2727
        %v2729 = vmul.f32 %v2307, %v2725
        %v2730 = vmul.f32 %v2308, %v2724
        %v2731 = vadd.f32 %v2729, %v2730
        %v2732 = vld [vmem:[#allocation2 + $0x28] sm:$0xff]
        %v2733 = vld [vmem:[#allocation2 + $0x70] sm:$0xff]
        %v2734 = vmul.f32 %v2353, %v2732
        %v2735 = vmul.f32 %v2354, %v2733
        %v2736 = vsub.f32 %v2734, %v2735
        %v2737 = vmul.f32 %v2353, %v2733
        %v2738 = vmul.f32 %v2354, %v2732
        %v2739 = vadd.f32 %v2737, %v2738
        %v2740 = vld [vmem:[#allocation2 + $0x40] sm:$0xff]
        %v2741 = vld [vmem:[#allocation2 + $0x88] sm:$0xff]
        %v2742 = vmul.f32 %v2397, %v2740
        %v2743 = vmul.f32 %v2398, %v2741
        %v2744 = vsub.f32 %v2742, %v2743
        %v2745 = vmul.f32 %v2397, %v2741
        %v2746 = vmul.f32 %v2398, %v2740
        %v2747 = vadd.f32 %v2745, %v2746
        %v2748 = vadd.f32 %v2728, %v2736
        %v2749 = vadd.f32 %v2731, %v2739
        %v2750 = vadd.f32 %v2748, %v2744
        %v2751 = vadd.f32 %v2749, %v2747
        %v2752 = vmul.f32 %v2750, %v2430
        %v2753 = vmul.f32 %v2751, %v2428
        %v2754 = vadd.f32 %v2752, %v2753
        %v2755 = vadd.f32 %v2692, %v2723
        %v2756 = vadd.f32 %v2755, %v2754
        %v2757 = vmul.f32 %v2756, 0.33333334
        %v2758 = vsub.f32 %v2692, %v2757
        %2759 = vst [vmem:[%s215 + $0x90] sm:$0xff] 0.0
        %2760 = vst [vmem:[%s215 + $0xd8] sm:$0xff] %v2758
        %v2761 = vsub.f32 %v2723, %v2757
        %2762 = vst [vmem:[%s215 + $0xb0] sm:$0xff] 0.0
        %2763 = vst [vmem:[%s215 + $0xf8] sm:$0xff] %v2761
        %v2764 = vsub.f32 %v2754, %v2757
        %2765 = vst [vmem:[%s215 + $0xd0] sm:$0xff] 0.0
        %2766 = vst [vmem:[%s215 + $0x118] sm:$0xff] %v2764
        %v2767 = vld [vmem:[%s191 + $0x140] sm:$0xff]
        %v2768 = vld [vmem:[%s191 + $0x148] sm:$0xff]
        %v2769 = vld [vmem:[%s191 + $0x150] sm:$0xff]
        %v2770 = vld [vmem:[%s191 + $0x158] sm:$0xff]
        %v2771 = vld [vmem:[%s191 + $0x160] sm:$0xff]
        %v2772 = vld [vmem:[%s191 + $0x168] sm:$0xff]
        %v2773 = vld [vmem:[%s191 + $0x170] sm:$0xff]
        %v2774 = vld [vmem:[%s191 + $0x178] sm:$0xff]
        %v2775 = vld [vmem:[%s191 + $0x180] sm:$0xff]
        %v2776 = vld [vmem:[%s191 + $0x188] sm:$0xff]
        %v2777 = vld [vmem:[%s191 + $0x190] sm:$0xff]
        %v2778 = vld [vmem:[%s191 + $0x198] sm:$0xff]
        %v2779 = vld [vmem:[%s191 + $0x1a0] sm:$0xff]
        %v2780 = vld [vmem:[%s191 + $0x1a8] sm:$0xff]
        %v2781 = vld [vmem:[%s191 + $0x1b0] sm:$0xff]
        %v2782 = vld [vmem:[%s191 + $0x1b8] sm:$0xff]
        %v2783 = vld [vmem:[%s191 + $0x1c0] sm:$0xff]
        %v2784 = vld [vmem:[%s191 + $0x1c8] sm:$0xff]
        %v2785 = vld [vmem:[%s191 + $0x1d0] sm:$0xff]
        %v2786 = vld [vmem:[%s191 + $0x1d8] sm:$0xff]
        %v2787 = vld [vmem:[%s1] sm:$0xff]
        %v2788 = vld [vmem:[%s1 + $0x8] sm:$0xff]
        %v2789 = vld [vmem:[%s1 + $0x10] sm:$0xff]
        %v2790 = vld [vmem:[%s1 + $0x18] sm:$0xff]
        %v2791 = vld [vmem:[%s1 + $0x20] sm:$0xff]
        %v2792 = vld [vmem:[%s1 + $0x28] sm:$0xff]
        %v2793 = vld [vmem:[%s1 + $0x30] sm:$0xff]
        %v2794 = vld [vmem:[%s1 + $0x38] sm:$0xff]
        %v2795 = vld [vmem:[%s1 + $0x40] sm:$0xff]
        %v2796 = vld [vmem:[%s1 + $0x48] sm:$0xff]
        %v2797 = vld [vmem:[%s1 + $0x50] sm:$0xff]
        %v2798 = vld [vmem:[%s1 + $0x58] sm:$0xff]
        %v2799 = vld [vmem:[%s1 + $0x60] sm:$0xff]
        %v2800 = vld [vmem:[%s1 + $0x68] sm:$0xff]
        %v2801 = vld [vmem:[%s1 + $0x70] sm:$0xff]
        %v2802 = vld [vmem:[%s1 + $0x78] sm:$0xff]
        %v2803 = vld [vmem:[%s1 + $0x80] sm:$0xff]
        %v2804 = vld [vmem:[%s1 + $0x88] sm:$0xff]
        %v2805 = vld [vmem:[%s1 + $0x90] sm:$0xff]
        %v2806 = vld [vmem:[%s1 + $0x98] sm:$0xff]
        %v2807 = vld [vmem:[%s1 + $0xa0] sm:$0xff]
        %v2808 = vld [vmem:[%s1 + $0xa8] sm:$0xff]
        %v2809 = vld [vmem:[%s1 + $0xb0] sm:$0xff]
        %v2810 = vld [vmem:[%s1 + $0xb8] sm:$0xff]
        %v2811 = vld [vmem:[%s1 + $0xc0] sm:$0xff]
        %v2812 = vld [vmem:[%s1 + $0xc8] sm:$0xff]
        %v2813 = vld [vmem:[%s1 + $0xd0] sm:$0xff]
        %v2814 = vld [vmem:[%s1 + $0xd8] sm:$0xff]
        %v2815 = vld [vmem:[%s1 + $0xe0] sm:$0xff]
        %v2816 = vld [vmem:[%s1 + $0xe8] sm:$0xff]
        %v2817 = vld [vmem:[%s1 + $0xf0] sm:$0xff]
        %v2818 = vld [vmem:[%s1 + $0xf8] sm:$0xff]
        %v2819 = vld [vmem:[%s1 + $0x100] sm:$0xff]
        %v2820 = vld [vmem:[%s1 + $0x108] sm:$0xff]
        %v2821 = vld [vmem:[%s1 + $0x110] sm:$0xff]
        %v2822 = vld [vmem:[%s1 + $0x118] sm:$0xff]
        %v2823 = vld [vmem:[%s1 + $0x120] sm:$0xff]
        %v2824 = vld [vmem:[%s1 + $0x128] sm:$0xff]
        %v2825 = vld [vmem:[%s1 + $0x130] sm:$0xff]
        %v2826 = vld [vmem:[%s1 + $0x138] sm:$0xff]
        %v2827 = vld [vmem:[%s1 + $0x140] sm:$0xff]
        %v2828 = vld [vmem:[%s1 + $0x148] sm:$0xff]
        %v2829 = vld [vmem:[%s1 + $0x150] sm:$0xff]
        %v2830 = vld [vmem:[%s1 + $0x158] sm:$0xff]
        %v2831 = vld [vmem:[%s1 + $0x160] sm:$0xff]
        %v2832 = vld [vmem:[%s1 + $0x168] sm:$0xff]
        %v2833 = vld [vmem:[%s1 + $0x170] sm:$0xff]
        %v2834 = vld [vmem:[%s1 + $0x178] sm:$0xff]
        %v2835 = vld [vmem:[%s1 + $0x180] sm:$0xff]
        %v2836 = vld [vmem:[%s1 + $0x188] sm:$0xff]
        %v2837 = vld [vmem:[%s1 + $0x190] sm:$0xff]
        %v2838 = vld [vmem:[%s1 + $0x198] sm:$0xff]
        %v2839 = vld [vmem:[%s1 + $0x1a0] sm:$0xff]
        %v2840 = vld [vmem:[%s1 + $0x1a8] sm:$0xff]
        %v2841 = vld [vmem:[%s1 + $0x1b0] sm:$0xff]
        %v2842 = vld [vmem:[%s1 + $0x1b8] sm:$0xff]
        %v2843 = vld [vmem:[%s1 + $0x1c0] sm:$0xff]
        %v2844 = vld [vmem:[%s1 + $0x1c8] sm:$0xff]
        %v2845 = vld [vmem:[%s1 + $0x1d0] sm:$0xff]
        %v2846 = vld [vmem:[%s1 + $0x1d8] sm:$0xff]
        %v2847 = vld [vmem:[%s1 + $0x1e0] sm:$0xff]
        %v2848 = vld [vmem:[%s1 + $0x1e8] sm:$0xff]
        %v2849 = vld [vmem:[%s1 + $0x1f0] sm:$0xff]
        %v2850 = vld [vmem:[%s1 + $0x1f8] sm:$0xff]
        %v2852 = vsel %vm302, %v2788, 0
        %v2855 = vsel %vm302, %v2790, 0
        %v2858 = vsel %vm302, %v2792, 0
        %v2861 = vsel %vm302, %v2794, 0
        %v2864 = vsel %vm302, %v2796, 0
        %v2867 = vsel %vm302, %v2798, 0
        %v2870 = vsel %vm302, %v2800, 0
        %v2873 = vsel %vm302, %v2802, 0
        %v2876 = vsel %vm302, %v2804, 0
        %v2879 = vsel %vm302, %v2806, 0
        %v2882 = vsel %vm302, %v2808, 0
        %v2885 = vsel %vm302, %v2810, 0
        %v2888 = vsel %vm302, %v2812, 0
        %v2891 = vsel %vm302, %v2814, 0
        %v2894 = vsel %vm302, %v2816, 0
        %v2897 = vsel %vm302, %v2818, 0
        %v2900 = vsel %vm302, %v2820, 0
        %v2903 = vsel %vm302, %v2822, 0
        %v2906 = vsel %vm302, %v2824, 0
        %v2909 = vsel %vm302, %v2826, 0
        %v2912 = vsel %vm302, %v2828, 0
        %v2915 = vsel %vm302, %v2830, 0
        %v2918 = vsel %vm302, %v2832, 0
        %v2921 = vsel %vm302, %v2834, 0
        %v2924 = vsel %vm302, %v2836, 0
        %v2927 = vsel %vm302, %v2838, 0
        %v2930 = vsel %vm302, %v2840, 0
        %v2933 = vsel %vm302, %v2842, 0
        %v2936 = vsel %vm302, %v2844, 0
        %v2939 = vsel %vm302, %v2846, 0
        %v2942 = vsel %vm302, %v2848, 0
        %v2945 = vsel %vm302, %v2850, 0
        %2947 = vmatprep.subr.mxu0 0.0
        %2948 = vmatpush1.msra.mxu0 %v2767
        %2949 = vmatprep.subr.mxu0 0.0
        %2950 = vmatpush1.msra.mxu0 %v2768
        %2951 = vmatprep.subr.mxu0 0.0
        %2952 = vmatpush1.msra.mxu0 %v2769
        %2953 = vmatprep.subr.mxu0 0.0
        %2954 = vmatpush1.msra.mxu0 %v2770
        %2955 = vmatprep.subr.mxu0 0.0
        %2956 = vmatpush1.msra.mxu0 %v2771
        %2957 = vmatprep.subr.mxu0 0.0
        %2958 = vmatpush1.msra.mxu0 %v2772
        %2959 = vmatprep.subr.mxu0 0.0
        %2960 = vmatpush1.msra.mxu0 %v2773
        %2961 = vmatprep.subr.mxu0 0.0
        %2962 = vmatpush1.msra.mxu0 %v2774
        %2963 = vmatprep.subr.mxu0 0.0
        %2964 = vmatpush1.msra.mxu0 %v2775
        %2965 = vmatprep.subr.mxu0 0.0
        %2966 = vmatpush1.msra.mxu0 %v2776
        %2967 = vmatprep.subr.mxu0 0.0
        %2968 = vmatpush1.msra.mxu0 %v2777
        %2969 = vmatprep.subr.mxu0 0.0
        %2970 = vmatpush1.msra.mxu0 %v2778
        %2971 = vmatprep.subr.mxu0 0.0
        %2972 = vmatpush1.msra.mxu0 %v2779
        %2973 = vmatprep.subr.mxu0 0.0
        %2974 = vmatpush1.msra.mxu0 %v2780
        %2975 = vmatprep.subr.mxu0 0.0
        %2976 = vmatpush1.msra.mxu0 %v2781
        %2977 = vmatprep.subr.mxu0 0.0
        %2978 = vmatpush1.msra.mxu0 %v2782
        %2979 = vmatprep.subr.mxu0 0.0
        %2980 = vmatpush1.msra.mxu0 %v2783
        %2981 = vmatprep.subr.mxu0 0.0
        %2982 = vmatpush1.msra.mxu0 %v2784
        %2983 = vmatprep.subr.mxu0 0.0
        %2984 = vmatpush1.msra.mxu0 %v2785
        %2985 = vmatprep.subr.mxu0 0.0
        %2986 = vmatpush1.msra.mxu0 %v2786
        %2987 = vmatprep.subr.mxu0 0.0
        %2988 = vmatpush1.msra.mxu0 0.0
        %2989 = vmatprep.subr.mxu0 0.0
        %2990 = vmatpush1.msra.mxu0 0.0
        %2991 = vmatprep.subr.mxu0 0.0
        %2992 = vmatpush1.msra.mxu0 0.0
        %2993 = vmatprep.subr.mxu0 0.0
        %2994 = vmatpush1.msra.mxu0 0.0
        %2995 = vmatprep.subr.mxu0 0.0
        %2996 = vmatpush1.msra.mxu0 0.0
        %2997 = vmatprep.subr.mxu0 0.0
        %2998 = vmatpush1.msra.mxu0 0.0
        %2999 = vmatprep.subr.mxu0 0.0
        %3000 = vmatpush1.msra.mxu0 0.0
        %3001 = vmatprep.subr.mxu0 0.0
        %3002 = vmatpush1.msra.mxu0 0.0
        %3003 = vmatprep.subr.mxu0 0.0
        %3004 = vmatpush1.msra.mxu0 0.0
        %3005 = vmatprep.subr.mxu0 0.0
        %3006 = vmatpush1.msra.mxu0 0.0
        %3007 = vmatprep.subr.mxu0 0.0
        %3008 = vmatpush1.msra.mxu0 0.0
        %3009 = vmatprep.subr.mxu0 0.0
        %3010 = vmatpush1.msra.mxu0 0.0
        %3011 = vmatprep.mubr.f32.mxu0 %v2852
        %3012 = vmatmul.mubr.f32.gmra.mrb[0].mxu0 %v2787
        %v3013 = vpop.f32.mrb[0].mxu0
        %v3014 = vadd.f32 0.0, %v3013
        %v3015 = vpop.f32.mrb[0].mxu0
        %3016 = vmatprep.mubr.f32.mxu0 %v2855
        %3017 = vmatmul.mubr.f32.gmra.mrb[0].mxu0 %v2789
        %v3018 = vpop.f32.mrb[0].mxu0
        %v3019 = vadd.f32 0.0, %v3018
        %v3020 = vpop.f32.mrb[0].mxu0
        %3021 = vmatprep.mubr.f32.mxu0 %v2858
        %3022 = vmatmul.mubr.f32.gmra.mrb[0].mxu0 %v2791
        %v3023 = vpop.f32.mrb[0].mxu0
        %v3024 = vadd.f32 0.0, %v3023
        %v3025 = vpop.f32.mrb[0].mxu0
        %3026 = vmatprep.mubr.f32.mxu0 %v2861
        %3027 = vmatmul.mubr.f32.gmra.mrb[0].mxu0 %v2793
        %v3028 = vpop.f32.mrb[0].mxu0
        %v3029 = vadd.f32 0.0, %v3028
        %v3030 = vpop.f32.mrb[0].mxu0
        %3031 = vmatprep.mubr.f32.mxu0 %v2864
        %3032 = vmatmul.mubr.f32.gmra.mrb[0].mxu0 %v2795
        %v3033 = vpop.f32.mrb[0].mxu0
        %v3034 = vadd.f32 0.0, %v3033
        %v3035 = vpop.f32.mrb[0].mxu0
        %3036 = vmatprep.mubr.f32.mxu0 %v2867
        %3037 = vmatmul.mubr.f32.gmra.mrb[0].mxu0 %v2797
        %v3038 = vpop.f32.mrb[0].mxu0
        %v3039 = vadd.f32 0.0, %v3038
        %v3040 = vpop.f32.mrb[0].mxu0
        %3041 = vmatprep.mubr.f32.mxu0 %v2870
        %3042 = vmatmul.mubr.f32.gmra.mrb[0].mxu0 %v2799
        %v3043 = vpop.f32.mrb[0].mxu0
        %v3044 = vadd.f32 0.0, %v3043
        %v3045 = vpop.f32.mrb[0].mxu0
        %3046 = vmatprep.mubr.f32.mxu0 %v2873
        %3047 = vmatmul.mubr.f32.gmra.mrb[0].mxu0 %v2801
        %v3048 = vpop.f32.mrb[0].mxu0
        %v3049 = vadd.f32 0.0, %v3048
        %v3050 = vpop.f32.mrb[0].mxu0
        %3051 = vmatprep.mubr.f32.mxu0 %v2876
        %3052 = vmatmul.mubr.f32.gmra.mrb[0].mxu0 %v2803
        %v3053 = vpop.f32.mrb[0].mxu0
        %v3054 = vadd.f32 0.0, %v3053
        %v3055 = vpop.f32.mrb[0].mxu0
        %3056 = vmatprep.mubr.f32.mxu0 %v2879
        %3057 = vmatmul.mubr.f32.gmra.mrb[0].mxu0 %v2805
        %v3058 = vpop.f32.mrb[0].mxu0
        %v3059 = vadd.f32 0.0, %v3058
        %v3060 = vpop.f32.mrb[0].mxu0
        %3061 = vmatprep.mubr.f32.mxu0 %v2882
        %3062 = vmatmul.mubr.f32.gmra.mrb[0].mxu0 %v2807
        %v3063 = vpop.f32.mrb[0].mxu0
        %v3064 = vadd.f32 0.0, %v3063
        %v3065 = vpop.f32.mrb[0].mxu0
        %3066 = vmatprep.mubr.f32.mxu0 %v2885
        %3067 = vmatmul.mubr.f32.gmra.mrb[0].mxu0 %v2809
        %v3068 = vpop.f32.mrb[0].mxu0
        %v3069 = vadd.f32 0.0, %v3068
        %v3070 = vpop.f32.mrb[0].mxu0
        %3071 = vmatprep.mubr.f32.mxu0 %v2888
        %3072 = vmatmul.mubr.f32.gmra.mrb[0].mxu0 %v2811
        %v3073 = vpop.f32.mrb[0].mxu0
        %v3074 = vadd.f32 0.0, %v3073
        %v3075 = vpop.f32.mrb[0].mxu0
        %3076 = vmatprep.mubr.f32.mxu0 %v2891
        %3077 = vmatmul.mubr.f32.gmra.mrb[0].mxu0 %v2813
        %v3078 = vpop.f32.mrb[0].mxu0
        %v3079 = vadd.f32 0.0, %v3078
        %v3080 = vpop.f32.mrb[0].mxu0
        %3081 = vmatprep.mubr.f32.mxu0 %v2894
        %3082 = vmatmul.mubr.f32.gmra.mrb[0].mxu0 %v2815
        %v3083 = vpop.f32.mrb[0].mxu0
        %v3084 = vadd.f32 0.0, %v3083
        %v3085 = vpop.f32.mrb[0].mxu0
        %3086 = vmatprep.mubr.f32.mxu0 %v2897
        %3087 = vmatmul.mubr.f32.gmra.mrb[0].mxu0 %v2817
        %v3088 = vpop.f32.mrb[0].mxu0
        %v3089 = vadd.f32 0.0, %v3088
        %v3090 = vpop.f32.mrb[0].mxu0
        %3091 = vmatprep.mubr.f32.mxu0 %v2900
        %3092 = vmatmul.mubr.f32.gmra.mrb[0].mxu0 %v2819
        %v3093 = vpop.f32.mrb[0].mxu0
        %v3094 = vadd.f32 0.0, %v3093
        %v3095 = vpop.f32.mrb[0].mxu0
        %3096 = vmatprep.mubr.f32.mxu0 %v2903
        %3097 = vmatmul.mubr.f32.gmra.mrb[0].mxu0 %v2821
        %v3098 = vpop.f32.mrb[0].mxu0
        %v3099 = vadd.f32 0.0, %v3098
        %v3100 = vpop.f32.mrb[0].mxu0
        %3101 = vmatprep.mubr.f32.mxu0 %v2906
        %3102 = vmatmul.mubr.f32.gmra.mrb[0].mxu0 %v2823
        %v3103 = vpop.f32.mrb[0].mxu0
        %v3104 = vadd.f32 0.0, %v3103
        %v3105 = vpop.f32.mrb[0].mxu0
        %3106 = vmatprep.mubr.f32.mxu0 %v2909
        %3107 = vmatmul.mubr.f32.gmra.mrb[0].mxu0 %v2825
        %v3108 = vpop.f32.mrb[0].mxu0
        %v3109 = vadd.f32 0.0, %v3108
        %v3110 = vpop.f32.mrb[0].mxu0
        %3111 = vmatprep.mubr.f32.mxu0 %v2912
        %3112 = vmatmul.mubr.f32.gmra.mrb[0].mxu0 %v2827
        %v3113 = vpop.f32.mrb[0].mxu0
        %v3114 = vadd.f32 0.0, %v3113
        %v3115 = vpop.f32.mrb[0].mxu0
        %3116 = vmatprep.mubr.f32.mxu0 %v2915
        %3117 = vmatmul.mubr.f32.gmra.mrb[0].mxu0 %v2829
        %v3118 = vpop.f32.mrb[0].mxu0
        %v3119 = vadd.f32 0.0, %v3118
        %v3120 = vpop.f32.mrb[0].mxu0
        %3121 = vmatprep.mubr.f32.mxu0 %v2918
        %3122 = vmatmul.mubr.f32.gmra.mrb[0].mxu0 %v2831
        %v3123 = vpop.f32.mrb[0].mxu0
        %v3124 = vadd.f32 0.0, %v3123
        %v3125 = vpop.f32.mrb[0].mxu0
        %3126 = vmatprep.mubr.f32.mxu0 %v2921
        %3127 = vmatmul.mubr.f32.gmra.mrb[0].mxu0 %v2833
        %v3128 = vpop.f32.mrb[0].mxu0
        %v3129 = vadd.f32 0.0, %v3128
        %v3130 = vpop.f32.mrb[0].mxu0
        %3131 = vmatprep.mubr.f32.mxu0 %v2924
        %3132 = vmatmul.mubr.f32.gmra.mrb[0].mxu0 %v2835
        %v3133 = vpop.f32.mrb[0].mxu0
        %v3134 = vadd.f32 0.0, %v3133
        %v3135 = vpop.f32.mrb[0].mxu0
        %3136 = vmatprep.mubr.f32.mxu0 %v2927
        %3137 = vmatmul.mubr.f32.gmra.mrb[0].mxu0 %v2837
        %v3138 = vpop.f32.mrb[0].mxu0
        %v3139 = vadd.f32 0.0, %v3138
        %v3140 = vpop.f32.mrb[0].mxu0
        %3141 = vmatprep.mubr.f32.mxu0 %v2930
        %3142 = vmatmul.mubr.f32.gmra.mrb[0].mxu0 %v2839
        %v3143 = vpop.f32.mrb[0].mxu0
        %v3144 = vadd.f32 0.0, %v3143
        %v3145 = vpop.f32.mrb[0].mxu0
        %3146 = vmatprep.mubr.f32.mxu0 %v2933
        %3147 = vmatmul.mubr.f32.gmra.mrb[0].mxu0 %v2841
        %v3148 = vpop.f32.mrb[0].mxu0
        %v3149 = vadd.f32 0.0, %v3148
        %v3150 = vpop.f32.mrb[0].mxu0
        %3151 = vmatprep.mubr.f32.mxu0 %v2936
        %3152 = vmatmul.mubr.f32.gmra.mrb[0].mxu0 %v2843
        %v3153 = vpop.f32.mrb[0].mxu0
        %v3154 = vadd.f32 0.0, %v3153
        %v3155 = vpop.f32.mrb[0].mxu0
        %3156 = vmatprep.mubr.f32.mxu0 %v2939
        %3157 = vmatmul.mubr.f32.gmra.mrb[0].mxu0 %v2845
        %v3158 = vpop.f32.mrb[0].mxu0
        %v3159 = vadd.f32 0.0, %v3158
        %v3160 = vpop.f32.mrb[0].mxu0
        %3161 = vmatprep.mubr.f32.mxu0 %v2942
        %3162 = vmatmul.mubr.f32.gmra.mrb[0].mxu0 %v2847
        %v3163 = vpop.f32.mrb[0].mxu0
        %v3164 = vadd.f32 0.0, %v3163
        %v3165 = vpop.f32.mrb[0].mxu0
        %3166 = vmatprep.mubr.f32.mxu0 %v2945
        %3167 = vmatmul.mubr.f32.gmra.mrb[0].mxu0 %v2849
        %v3168 = vpop.f32.mrb[0].mxu0
        %v3169 = vadd.f32 0.0, %v3168
        %v3170 = vpop.f32.mrb[0].mxu0
        %3171 = vdwg.mxu0
        %v3172 = vtanh.pop %v3014
        %v3173 = vtanh.pop %v3019
        %v3174 = vtanh.pop %v3024
        %v3175 = vtanh.pop %v3029
        %v3176 = vtanh.pop %v3034
        %v3177 = vtanh.pop %v3039
        %v3178 = vtanh.pop %v3044
        %v3179 = vtanh.pop %v3049
        %v3180 = vtanh.pop %v3054
        %v3181 = vtanh.pop %v3059
        %v3182 = vtanh.pop %v3064
        %v3183 = vtanh.pop %v3069
        %v3184 = vtanh.pop %v3074
        %v3185 = vtanh.pop %v3079
        %v3186 = vtanh.pop %v3084
        %v3187 = vtanh.pop %v3089
        %v3188 = vtanh.pop %v3094
        %v3189 = vtanh.pop %v3099
        %v3190 = vtanh.pop %v3104
        %v3191 = vtanh.pop %v3109
        %v3192 = vtanh.pop %v3114
        %v3193 = vtanh.pop %v3119
        %v3194 = vtanh.pop %v3124
        %v3195 = vtanh.pop %v3129
        %v3196 = vtanh.pop %v3134
        %v3197 = vtanh.pop %v3139
        %v3198 = vtanh.pop %v3144
        %v3199 = vtanh.pop %v3149
        %v3200 = vtanh.pop %v3154
        %v3201 = vtanh.pop %v3159
        %v3202 = vtanh.pop %v3164
        %v3203 = vtanh.pop %v3169
        %v3204 = vld [vmem:[%s2] sm:$0xff]
        %v3205 = vld [vmem:[%s2 + $0x8] sm:$0xff]
        %v3206 = vld [vmem:[%s2 + $0x10] sm:$0xff]
        %v3207 = vld [vmem:[%s2 + $0x18] sm:$0xff]
        %v3208 = vld [vmem:[%s2 + $0x20] sm:$0xff]
        %v3209 = vld [vmem:[%s2 + $0x28] sm:$0xff]
        %v3210 = vld [vmem:[%s2 + $0x30] sm:$0xff]
        %v3211 = vld [vmem:[%s2 + $0x38] sm:$0xff]
        %v3212 = vld [vmem:[%s2 + $0x40] sm:$0xff]
        %v3213 = vld [vmem:[%s2 + $0x48] sm:$0xff]
        %v3214 = vld [vmem:[%s2 + $0x50] sm:$0xff]
        %v3215 = vld [vmem:[%s2 + $0x58] sm:$0xff]
        %v3216 = vld [vmem:[%s2 + $0x60] sm:$0xff]
        %v3217 = vld [vmem:[%s2 + $0x68] sm:$0xff]
        %v3218 = vld [vmem:[%s2 + $0x70] sm:$0xff]
        %v3219 = vld [vmem:[%s2 + $0x78] sm:$0xff]
        %v3220 = vld [vmem:[%s2 + $0x80] sm:$0xff]
        %v3221 = vld [vmem:[%s2 + $0x88] sm:$0xff]
        %v3222 = vld [vmem:[%s2 + $0x90] sm:$0xff]
        %v3223 = vld [vmem:[%s2 + $0x98] sm:$0xff]
        %v3224 = vld [vmem:[%s2 + $0xa0] sm:$0xff]
        %v3225 = vld [vmem:[%s2 + $0xa8] sm:$0xff]
        %v3226 = vld [vmem:[%s2 + $0xb0] sm:$0xff]
        %v3227 = vld [vmem:[%s2 + $0xb8] sm:$0xff]
        %v3228 = vld [vmem:[%s2 + $0xc0] sm:$0xff]
        %v3229 = vld [vmem:[%s2 + $0xc8] sm:$0xff]
        %v3230 = vld [vmem:[%s2 + $0xd0] sm:$0xff]
        %v3231 = vld [vmem:[%s2 + $0xd8] sm:$0xff]
        %v3232 = vld [vmem:[%s2 + $0xe0] sm:$0xff]
        %v3233 = vld [vmem:[%s2 + $0xe8] sm:$0xff]
        %v3234 = vld [vmem:[%s2 + $0xf0] sm:$0xff]
        %v3235 = vld [vmem:[%s2 + $0xf8] sm:$0xff]
        %v3236 = vld [vmem:[%s2 + $0x100] sm:$0xff]
        %v3237 = vld [vmem:[%s2 + $0x108] sm:$0xff]
        %v3238 = vld [vmem:[%s2 + $0x110] sm:$0xff]
        %v3239 = vld [vmem:[%s2 + $0x118] sm:$0xff]
        %v3240 = vld [vmem:[%s3] sm:$0xff]
        %v3241 = vld [vmem:[%s3 + $0x8] sm:$0xff]
        %v3242 = vld [vmem:[%s3 + $0x10] sm:$0xff]
        %v3243 = vld [vmem:[%s3 + $0x18] sm:$0xff]
        %v3244 = vld [vmem:[%s3 + $0x20] sm:$0xff]
        %v3245 = vld [vmem:[%s3 + $0x28] sm:$0xff]
        %v3246 = vld [vmem:[%s3 + $0x30] sm:$0xff]
        %v3247 = vld [vmem:[%s3 + $0x38] sm:$0xff]
        %v3248 = vld [vmem:[%s3 + $0x40] sm:$0xff]
        %v3249 = vld [vmem:[%s3 + $0x48] sm:$0xff]
        %v3250 = vld [vmem:[%s3 + $0x50] sm:$0xff]
        %v3251 = vld [vmem:[%s3 + $0x58] sm:$0xff]
        %v3252 = vld [vmem:[%s3 + $0x60] sm:$0xff]
        %v3253 = vld [vmem:[%s3 + $0x68] sm:$0xff]
        %v3254 = vld [vmem:[%s3 + $0x70] sm:$0xff]
        %v3255 = vld [vmem:[%s3 + $0x78] sm:$0xff]
        %v3256 = vld [vmem:[%s3 + $0x80] sm:$0xff]
        %v3257 = vld [vmem:[%s3 + $0x88] sm:$0xff]
        %3259 = vset.pattern.permute.xlu0 0
        %3260 = vperm.xlu0 %3259, %v3240
        %v3261 = vpop.permute.xlu0 %3260
        %3264 = vset.pattern.permute.xlu0 0
        %3265 = vperm.xlu0 %3264, %v3241
        %v3266 = vpop.permute.xlu0 %3265
        %3269 = vset.pattern.permute.xlu0 0
        %3270 = vperm.xlu0 %3269, %v3242
        %v3271 = vpop.permute.xlu0 %3270
        %3274 = vset.pattern.permute.xlu0 0
        %3275 = vperm.xlu0 %3274, %v3243
        %v3276 = vpop.permute.xlu0 %3275
        %3279 = vset.pattern.permute.xlu0 0
        %3280 = vperm.xlu0 %3279, %v3244
        %v3281 = vpop.permute.xlu0 %3280
        %3284 = vset.pattern.permute.xlu0 0
        %3285 = vperm.xlu0 %3284, %v3245
        %v3286 = vpop.permute.xlu0 %3285
        %3289 = vset.pattern.permute.xlu0 0
        %3290 = vperm.xlu0 %3289, %v3246
        %v3291 = vpop.permute.xlu0 %3290
        %3294 = vset.pattern.permute.xlu0 0
        %3295 = vperm.xlu0 %3294, %v3247
        %v3296 = vpop.permute.xlu0 %3295
        %3299 = vset.pattern.permute.xlu0 0
        %3300 = vperm.xlu0 %3299, %v3248
        %v3301 = vpop.permute.xlu0 %3300
        %3304 = vset.pattern.permute.xlu0 0
        %3305 = vperm.xlu0 %3304, %v3249
        %v3306 = vpop.permute.xlu0 %3305
        %3309 = vset.pattern.permute.xlu0 0
        %3310 = vperm.xlu0 %3309, %v3250
        %v3311 = vpop.permute.xlu0 %3310
        %3314 = vset.pattern.permute.xlu0 0
        %3315 = vperm.xlu0 %3314, %v3251
        %v3316 = vpop.permute.xlu0 %3315
        %3319 = vset.pattern.permute.xlu0 0
        %3320 = vperm.xlu0 %3319, %v3252
        %v3321 = vpop.permute.xlu0 %3320
        %3324 = vset.pattern.permute.xlu0 0
        %3325 = vperm.xlu0 %3324, %v3253
        %v3326 = vpop.permute.xlu0 %3325
        %3329 = vset.pattern.permute.xlu0 0
        %3330 = vperm.xlu0 %3329, %v3254
        %v3331 = vpop.permute.xlu0 %3330
        %3334 = vset.pattern.permute.xlu0 0
        %3335 = vperm.xlu0 %3334, %v3255
        %v3336 = vpop.permute.xlu0 %3335
        %3339 = vset.pattern.permute.xlu0 0
        %3340 = vperm.xlu0 %3339, %v3256
        %v3341 = vpop.permute.xlu0 %3340
        %3344 = vset.pattern.permute.xlu0 0
        %3345 = vperm.xlu0 %3344, %v3257
        %v3346 = vpop.permute.xlu0 %3345
        %3348 = vmatprep.subr.mxu0 0.0
        %3349 = vmatpush1.msra.mxu0 %v3172
        %3350 = vmatprep.subr.mxu0 0.0
        %3351 = vmatpush1.msra.mxu0 %v3173
        %3352 = vmatprep.subr.mxu0 0.0
        %3353 = vmatpush1.msra.mxu0 %v3174
        %3354 = vmatprep.subr.mxu0 0.0
        %3355 = vmatpush1.msra.mxu0 %v3175
        %3356 = vmatprep.subr.mxu0 0.0
        %3357 = vmatpush1.msra.mxu0 %v3176
        %3358 = vmatprep.subr.mxu0 0.0
        %3359 = vmatpush1.msra.mxu0 %v3177
        %3360 = vmatprep.subr.mxu0 0.0
        %3361 = vmatpush1.msra.mxu0 %v3178
        %3362 = vmatprep.subr.mxu0 0.0
        %3363 = vmatpush1.msra.mxu0 %v3179
        %3364 = vmatprep.subr.mxu0 0.0
        %3365 = vmatpush1.msra.mxu0 %v3180
        %3366 = vmatprep.subr.mxu0 0.0
        %3367 = vmatpush1.msra.mxu0 %v3181
        %3368 = vmatprep.subr.mxu0 0.0
        %3369 = vmatpush1.msra.mxu0 %v3182
        %3370 = vmatprep.subr.mxu0 0.0
        %3371 = vmatpush1.msra.mxu0 %v3183
        %3372 = vmatprep.subr.mxu0 0.0
        %3373 = vmatpush1.msra.mxu0 %v3184
        %3374 = vmatprep.subr.mxu0 0.0
        %3375 = vmatpush1.msra.mxu0 %v3185
        %3376 = vmatprep.subr.mxu0 0.0
        %3377 = vmatpush1.msra.mxu0 %v3186
        %3378 = vmatprep.subr.mxu0 0.0
        %3379 = vmatpush1.msra.mxu0 %v3187
        %3380 = vmatprep.subr.mxu0 0.0
        %3381 = vmatpush1.msra.mxu0 %v3188
        %3382 = vmatprep.subr.mxu0 0.0
        %3383 = vmatpush1.msra.mxu0 %v3189
        %3384 = vmatprep.subr.mxu0 0.0
        %3385 = vmatpush1.msra.mxu0 %v3190
        %3386 = vmatprep.subr.mxu0 0.0
        %3387 = vmatpush1.msra.mxu0 %v3191
        %3388 = vmatprep.subr.mxu0 0.0
        %3389 = vmatpush1.msra.mxu0 %v3192
        %3390 = vmatprep.subr.mxu0 0.0
        %3391 = vmatpush1.msra.mxu0 %v3193
        %3392 = vmatprep.subr.mxu0 0.0
        %3393 = vmatpush1.msra.mxu0 %v3194
        %3394 = vmatprep.subr.mxu0 0.0
        %3395 = vmatpush1.msra.mxu0 %v3195
        %3396 = vmatprep.subr.mxu0 0.0
        %3397 = vmatpush1.msra.mxu0 %v3196
        %3398 = vmatprep.subr.mxu0 0.0
        %3399 = vmatpush1.msra.mxu0 %v3197
        %3400 = vmatprep.subr.mxu0 0.0
        %3401 = vmatpush1.msra.mxu0 %v3198
        %3402 = vmatprep.subr.mxu0 0.0
        %3403 = vmatpush1.msra.mxu0 %v3199
        %3404 = vmatprep.subr.mxu0 0.0
        %3405 = vmatpush1.msra.mxu0 %v3200
        %3406 = vmatprep.subr.mxu0 0.0
        %3407 = vmatpush1.msra.mxu0 %v3201
        %3408 = vmatprep.subr.mxu0 0.0
        %3409 = vmatpush1.msra.mxu0 %v3202
        %3410 = vmatprep.subr.mxu0 0.0
        %3411 = vmatpush1.msra.mxu0 %v3203
        %3412 = vmatprep.mubr.f32.mxu0 %v3205
        %3413 = vmatmul.mubr.f32.gmra.mrb[0].mxu0 %v3204
        %v3414 = vpop.f32.mrb[0].mxu0
        %v3415 = vadd.f32 %v3261, %v3414
        %v3416 = vpop.f32.mrb[0].mxu0
        %3417 = vmatprep.mubr.f32.mxu0 %v3207
        %3418 = vmatmul.mubr.f32.gmra.mrb[0].mxu0 %v3206
        %v3419 = vpop.f32.mrb[0].mxu0
        %v3420 = vadd.f32 %v3266, %v3419
        %v3421 = vpop.f32.mrb[0].mxu0
        %3422 = vmatprep.mubr.f32.mxu0 %v3209
        %3423 = vmatmul.mubr.f32.gmra.mrb[0].mxu0 %v3208
        %v3424 = vpop.f32.mrb[0].mxu0
        %v3425 = vadd.f32 %v3271, %v3424
        %v3426 = vpop.f32.mrb[0].mxu0
        %3427 = vmatprep.mubr.f32.mxu0 %v3211
        %3428 = vmatmul.mubr.f32.gmra.mrb[0].mxu0 %v3210
        %v3429 = vpop.f32.mrb[0].mxu0
        %v3430 = vadd.f32 %v3276, %v3429
        %v3431 = vpop.f32.mrb[0].mxu0
        %3432 = vmatprep.mubr.f32.mxu0 %v3213
        %3433 = vmatmul.mubr.f32.gmra.mrb[0].mxu0 %v3212
        %v3434 = vpop.f32.mrb[0].mxu0
        %v3435 = vadd.f32 %v3281, %v3434
        %v3436 = vpop.f32.mrb[0].mxu0
        %3437 = vmatprep.mubr.f32.mxu0 %v3215
        %3438 = vmatmul.mubr.f32.gmra.mrb[0].mxu0 %v3214
        %v3439 = vpop.f32.mrb[0].mxu0
        %v3440 = vadd.f32 %v3286, %v3439
        %v3441 = vpop.f32.mrb[0].mxu0
        %3442 = vmatprep.mubr.f32.mxu0 %v3217
        %3443 = vmatmul.mubr.f32.gmra.mrb[0].mxu0 %v3216
        %v3444 = vpop.f32.mrb[0].mxu0
        %v3445 = vadd.f32 %v3291, %v3444
        %v3446 = vpop.f32.mrb[0].mxu0
        %3447 = vmatprep.mubr.f32.mxu0 %v3219
        %3448 = vmatmul.mubr.f32.gmra.mrb[0].mxu0 %v3218
        %v3449 = vpop.f32.mrb[0].mxu0
        %v3450 = vadd.f32 %v3296, %v3449
        %v3451 = vpop.f32.mrb[0].mxu0
        %3452 = vmatprep.mubr.f32.mxu0 %v3221
        %3453 = vmatmul.mubr.f32.gmra.mrb[0].mxu0 %v3220
        %v3454 = vpop.f32.mrb[0].mxu0
        %v3455 = vadd.f32 %v3301, %v3454
        %v3456 = vpop.f32.mrb[0].mxu0
        %3457 = vmatprep.mubr.f32.mxu0 %v3223
        %3458 = vmatmul.mubr.f32.gmra.mrb[0].mxu0 %v3222
        %v3459 = vpop.f32.mrb[0].mxu0
        %v3460 = vadd.f32 %v3306, %v3459
        %v3461 = vpop.f32.mrb[0].mxu0
        %3462 = vmatprep.mubr.f32.mxu0 %v3225
        %3463 = vmatmul.mubr.f32.gmra.mrb[0].mxu0 %v3224
        %v3464 = vpop.f32.mrb[0].mxu0
        %v3465 = vadd.f32 %v3311, %v3464
        %v3466 = vpop.f32.mrb[0].mxu0
        %3467 = vmatprep.mubr.f32.mxu0 %v3227
        %3468 = vmatmul.mubr.f32.gmra.mrb[0].mxu0 %v3226
        %v3469 = vpop.f32.mrb[0].mxu0
        %v3470 = vadd.f32 %v3316, %v3469
        %v3471 = vpop.f32.mrb[0].mxu0
        %3472 = vmatprep.mubr.f32.mxu0 %v3229
        %3473 = vmatmul.mubr.f32.gmra.mrb[0].mxu0 %v3228
        %v3474 = vpop.f32.mrb[0].mxu0
        %v3475 = vadd.f32 %v3321, %v3474
        %v3476 = vpop.f32.mrb[0].mxu0
        %3477 = vmatprep.mubr.f32.mxu0 %v3231
        %3478 = vmatmul.mubr.f32.gmra.mrb[0].mxu0 %v3230
        %v3479 = vpop.f32.mrb[0].mxu0
        %v3480 = vadd.f32 %v3326, %v3479
        %v3481 = vpop.f32.mrb[0].mxu0
        %3482 = vmatprep.mubr.f32.mxu0 %v3233
        %3483 = vmatmul.mubr.f32.gmra.mrb[0].mxu0 %v3232
        %v3484 = vpop.f32.mrb[0].mxu0
        %v3485 = vadd.f32 %v3331, %v3484
        %v3486 = vpop.f32.mrb[0].mxu0
        %3487 = vmatprep.mubr.f32.mxu0 %v3235
        %3488 = vmatmul.mubr.f32.gmra.mrb[0].mxu0 %v3234
        %v3489 = vpop.f32.mrb[0].mxu0
        %v3490 = vadd.f32 %v3336, %v3489
        %v3491 = vpop.f32.mrb[0].mxu0
        %3492 = vmatprep.mubr.f32.mxu0 %v3237
        %3493 = vmatmul.mubr.f32.gmra.mrb[0].mxu0 %v3236
        %v3494 = vpop.f32.mrb[0].mxu0
        %v3495 = vadd.f32 %v3341, %v3494
        %v3496 = vpop.f32.mrb[0].mxu0
        %3497 = vmatprep.mubr.f32.mxu0 %v3239
        %3498 = vmatmul.mubr.f32.gmra.mrb[0].mxu0 %v3238
        %v3499 = vpop.f32.mrb[0].mxu0
        %v3500 = vadd.f32 %v3346, %v3499
        %v3501 = vpop.f32.mrb[0].mxu0
        %3502 = vdwg.mxu0
        %3503 = vst [vmem:[#allocation2] sm:$0xff] %v3415
        %3504 = vst [vmem:[#allocation2 + $0x8] sm:$0xff] %v3420
        %3505 = vst [vmem:[#allocation2 + $0x10] sm:$0xff] %v3425
        %3506 = vst [vmem:[#allocation2 + $0x18] sm:$0xff] %v3430
        %3507 = vst [vmem:[#allocation2 + $0x20] sm:$0xff] %v3435
        %3508 = vst [vmem:[#allocation2 + $0x28] sm:$0xff] %v3440
        %3509 = vst [vmem:[#allocation2 + $0x30] sm:$0xff] %v3445
        %3510 = vst [vmem:[#allocation2 + $0x38] sm:$0xff] %v3450
        %3511 = vst [vmem:[#allocation2 + $0x40] sm:$0xff] %v3455
        %3512 = vst [vmem:[#allocation2 + $0x48] sm:$0xff] %v3460
        %3513 = vst [vmem:[#allocation2 + $0x50] sm:$0xff] %v3465
        %3514 = vst [vmem:[#allocation2 + $0x58] sm:$0xff] %v3470
        %3515 = vst [vmem:[#allocation2 + $0x60] sm:$0xff] %v3475
        %3516 = vst [vmem:[#allocation2 + $0x68] sm:$0xff] %v3480
        %3517 = vst [vmem:[#allocation2 + $0x70] sm:$0xff] %v3485
        %3518 = vst [vmem:[#allocation2 + $0x78] sm:$0xff] %v3490
        %3519 = vst [vmem:[#allocation2 + $0x80] sm:$0xff] %v3495
        %3520 = vst [vmem:[#allocation2 + $0x88] sm:$0xff] %v3500
        %v3521 = vld [vmem:[%s191 + $0x140] sm:$0xff]
        %v3522 = vld [vmem:[%s191 + $0x188] sm:$0xff]
        %v3523 = vld [vmem:[%s191 + $0x148] sm:$0xff]
        %v3524 = vld [vmem:[%s191 + $0x190] sm:$0xff]
        %v3525 = vld [vmem:[%s191 + $0x150] sm:$0xff]
        %v3526 = vld [vmem:[%s191 + $0x198] sm:$0xff]
        %v3527 = vld [vmem:[%s191 + $0x158] sm:$0xff]
        %v3528 = vld [vmem:[%s191 + $0x1a0] sm:$0xff]
        %v3529 = vld [vmem:[%s191 + $0x160] sm:$0xff]
        %v3530 = vld [vmem:[%s191 + $0x1a8] sm:$0xff]
        %v3531 = vld [vmem:[%s191 + $0x168] sm:$0xff]
        %v3532 = vld [vmem:[%s191 + $0x1b0] sm:$0xff]
        %v3533 = vld [vmem:[%s191 + $0x170] sm:$0xff]
        %v3534 = vld [vmem:[%s191 + $0x1b8] sm:$0xff]
        %v3535 = vld [vmem:[%s191 + $0x178] sm:$0xff]
        %v3536 = vld [vmem:[%s191 + $0x1c0] sm:$0xff]
        %v3537 = vld [vmem:[%s191 + $0x180] sm:$0xff]
        %v3538 = vld [vmem:[%s191 + $0x1c8] sm:$0xff]
        %v3539 = vmul.f32 %v3529, %v3537
        %v3540 = vmul.f32 %v3530, %v3538
        %v3541 = vsub.f32 %v3539, %v3540
        %v3542 = vmul.f32 %v3529, %v3538
        %v3543 = vmul.f32 %v3530, %v3537
        %v3544 = vadd.f32 %v3542, %v3543
        %v3545 = vmul.f32 %v3531, %v3535
        %v3546 = vmul.f32 %v3532, %v3536
        %v3547 = vsub.f32 %v3545, %v3546
        %v3548 = vmul.f32 %v3531, %v3536
        %v3549 = vmul.f32 %v3532, %v3535
        %v3550 = vadd.f32 %v3548, %v3549
        %v3551 = vsub.f32 %v3541, %v3547
        %v3552 = vsub.f32 %v3544, %v3550
        %v3553 = vmul.f32 %v3527, %v3537
        %v3554 = vmul.f32 %v3528, %v3538
        %v3555 = vsub.f32 %v3553, %v3554
        %v3556 = vmul.f32 %v3527, %v3538
        %v3557 = vmul.f32 %v3528, %v3537
        %v3558 = vadd.f32 %v3556, %v3557
        %v3559 = vmul.f32 %v3531, %v3533
        %v3560 = vmul.f32 %v3532, %v3534
        %v3561 = vsub.f32 %v3559, %v3560
        %v3562 = vmul.f32 %v3531, %v3534
        %v3563 = vmul.f32 %v3532, %v3533
        %v3564 = vadd.f32 %v3562, %v3563
        %v3565 = vsub.f32 %v3555, %v3561
        %v3566 = vsub.f32 %v3558, %v3564
        %v3567 = vsub.f32 0.0, %v3565
        %v3568 = vsub.f32 0.0, %v3566
        %v3569 = vmul.f32 %v3527, %v3535
        %v3570 = vmul.f32 %v3528, %v3536
        %v3571 = vsub.f32 %v3569, %v3570
        %v3572 = vmul.f32 %v3527, %v3536
        %v3573 = vmul.f32 %v3528, %v3535
        %v3574 = vadd.f32 %v3572, %v3573
        %v3575 = vmul.f32 %v3529, %v3533
        %v3576 = vmul.f32 %v3530, %v3534
        %v3577 = vsub.f32 %v3575, %v3576
        %v3578 = vmul.f32 %v3529, %v3534
        %v3579 = vmul.f32 %v3530, %v3533
        %v3580 = vadd.f32 %v3578, %v3579
        %v3581 = vsub.f32 %v3571, %v3577
        %v3582 = vsub.f32 %v3574, %v3580
        %v3583 = vmul.f32 %v3523, %v3537
        %v3584 = vmul.f32 %v3524, %v3538
        %v3585 = vsub.f32 %v3583, %v3584
        %v3586 = vmul.f32 %v3523, %v3538
        %v3587 = vmul.f32 %v3524, %v3537
        %v3588 = vadd.f32 %v3586, %v3587
        %v3589 = vmul.f32 %v3525, %v3535
        %v3590 = vmul.f32 %v3526, %v3536
        %v3591 = vsub.f32 %v3589, %v3590
        %v3592 = vmul.f32 %v3525, %v3536
        %v3593 = vmul.f32 %v3526, %v3535
        %v3594 = vadd.f32 %v3592, %v3593
        %v3595 = vsub.f32 %v3585, %v3591
        %v3596 = vsub.f32 %v3588, %v3594
        %v3597 = vsub.f32 0.0, %v3595
        %v3598 = vsub.f32 0.0, %v3596
        %v3599 = vmul.f32 %v3521, %v3537
        %v3600 = vmul.f32 %v3522, %v3538
        %v3601 = vsub.f32 %v3599, %v3600
        %v3602 = vmul.f32 %v3521, %v3538
        %v3603 = vmul.f32 %v3522, %v3537
        %v3604 = vadd.f32 %v3602, %v3603
        %v3605 = vmul.f32 %v3525, %v3533
        %v3606 = vmul.f32 %v3526, %v3534
        %v3607 = vsub.f32 %v3605, %v3606
        %v3608 = vmul.f32 %v3525, %v3534
        %v3609 = vmul.f32 %v3526, %v3533
        %v3610 = vadd.f32 %v3608, %v3609
        %v3611 = vsub.f32 %v3601, %v3607
        %v3612 = vsub.f32 %v3604, %v3610
        %v3613 = vmul.f32 %v3521, %v3535
        %v3614 = vmul.f32 %v3522, %v3536
        %v3615 = vsub.f32 %v3613, %v3614
        %v3616 = vmul.f32 %v3521, %v3536
        %v3617 = vmul.f32 %v3522, %v3535
        %v3618 = vadd.f32 %v3616, %v3617
        %v3619 = vmul.f32 %v3523, %v3533
        %v3620 = vmul.f32 %v3524, %v3534
        %v3621 = vsub.f32 %v3619, %v3620
        %v3622 = vmul.f32 %v3523, %v3534
        %v3623 = vmul.f32 %v3524, %v3533
        %v3624 = vadd.f32 %v3622, %v3623
        %v3625 = vsub.f32 %v3615, %v3621
        %v3626 = vsub.f32 %v3618, %v3624
        %v3627 = vsub.f32 0.0, %v3625
        %v3628 = vsub.f32 0.0, %v3626
        %v3629 = vmul.f32 %v3523, %v3531
        %v3630 = vmul.f32 %v3524, %v3532
        %v3631 = vsub.f32 %v3629, %v3630
        %v3632 = vmul.f32 %v3523, %v3532
        %v3633 = vmul.f32 %v3524, %v3531
        %v3634 = vadd.f32 %v3632, %v3633
        %v3635 = vmul.f32 %v3525, %v3529
        %v3636 = vmul.f32 %v3526, %v3530
        %v3637 = vsub.f32 %v3635, %v3636
        %v3638 = vmul.f32 %v3525, %v3530
        %v3639 = vmul.f32 %v3526, %v3529
        %v3640 = vadd.f32 %v3638, %v3639
        %v3641 = vsub.f32 %v3631, %v3637
        %v3642 = vsub.f32 %v3634, %v3640
        %v3643 = vmul.f32 %v3521, %v3531
        %v3644 = vmul.f32 %v3522, %v3532
        %v3645 = vsub.f32 %v3643, %v3644
        %v3646 = vmul.f32 %v3521, %v3532
        %v3647 = vmul.f32 %v3522, %v3531
        %v3648 = vadd.f32 %v3646, %v3647
        %v3649 = vmul.f32 %v3525, %v3527
        %v3650 = vmul.f32 %v3526, %v3528
        %v3651 = vsub.f32 %v3649, %v3650
        %v3652 = vmul.f32 %v3525, %v3528
        %v3653 = vmul.f32 %v3526, %v3527
        %v3654 = vadd.f32 %v3652, %v3653
        %v3655 = vsub.f32 %v3645, %v3651
        %v3656 = vsub.f32 %v3648, %v3654
        %v3657 = vsub.f32 0.0, %v3655
        %v3658 = vsub.f32 0.0, %v3656
        %v3659 = vmul.f32 %v3521, %v3529
        %v3660 = vmul.f32 %v3522, %v3530
        %v3661 = vsub.f32 %v3659, %v3660
        %v3662 = vmul.f32 %v3521, %v3530
        %v3663 = vmul.f32 %v3522, %v3529
        %v3664 = vadd.f32 %v3662, %v3663
        %v3665 = vmul.f32 %v3523, %v3527
        %v3666 = vmul.f32 %v3524, %v3528
        %v3667 = vsub.f32 %v3665, %v3666
        %v3668 = vmul.f32 %v3523, %v3528
        %v3669 = vmul.f32 %v3524, %v3527
        %v3670 = vadd.f32 %v3668, %v3669
        %v3671 = vsub.f32 %v3661, %v3667
        %v3672 = vsub.f32 %v3664, %v3670
        %v3673 = vmul.f32 %v3521, %v3551
        %v3674 = vmul.f32 %v3522, %v3552
        %v3675 = vsub.f32 %v3673, %v3674
        %v3676 = vmul.f32 %v3521, %v3552
        %v3677 = vmul.f32 %v3522, %v3551
        %v3678 = vadd.f32 %v3676, %v3677
        %v3679 = vmul.f32 %v3523, %v3567
        %v3680 = vmul.f32 %v3524, %v3568
        %v3681 = vsub.f32 %v3679, %v3680
        %v3682 = vmul.f32 %v3523, %v3568
        %v3683 = vmul.f32 %v3524, %v3567
        %v3684 = vadd.f32 %v3682, %v3683
        %v3685 = vmul.f32 %v3525, %v3581
        %v3686 = vmul.f32 %v3526, %v3582
        %v3687 = vsub.f32 %v3685, %v3686
        %v3688 = vmul.f32 %v3525, %v3582
        %v3689 = vmul.f32 %v3526, %v3581
        %v3690 = vadd.f32 %v3688, %v3689
        %v3691 = vadd.f32 %v3675, %v3681
        %v3692 = vadd.f32 %v3678, %v3684
        %v3693 = vadd.f32 %v3691, %v3687
        %v3694 = vadd.f32 %v3692, %v3690
        %v3695 = vmul.f32 %v3693, %v3693
        %v3696 = vmul.f32 %v3694, %v3694
        %v3697 = vadd.f32 %v3695, %v3696
        %v3698 = vrcp.pop %v3697
        %v3699 = vmul.f32 %v3697, %v3698
        %v3700 = vsub.f32 2.0, %v3699
        %v3701 = vmul.f32 %v3698, %v3700
        %v3702 = vmul.f32 %v3693, %v3701
        %v3703 = vsub.f32 0.0, %v3694
        %v3704 = vmul.f32 %v3703, %v3701
        %v3705 = vld [vmem:[#allocation2 + $0x8] sm:$0xff]
        %v3706 = vld [vmem:[#allocation2 + $0x50] sm:$0xff]
        %v3707 = vmul.f32 %v3551, %v3705
        %v3708 = vmul.f32 %v3552, %v3706
        %v3709 = vsub.f32 %v3707, %v3708
        %v3710 = vmul.f32 %v3551, %v3706
        %v3711 = vmul.f32 %v3552, %v3705
        %v3712 = vadd.f32 %v3710, %v3711
        %v3713 = vld [vmem:[#allocation2 + $0x20] sm:$0xff]
        %v3714 = vld [vmem:[#allocation2 + $0x68] sm:$0xff]
        %v3715 = vmul.f32 %v3597, %v3713
        %v3716 = vmul.f32 %v3598, %v3714
        %v3717 = vsub.f32 %v3715, %v3716
        %v3718 = vmul.f32 %v3597, %v3714
        %v3719 = vmul.f32 %v3598, %v3713
        %v3720 = vadd.f32 %v3718, %v3719
        %v3721 = vld [vmem:[#allocation2 + $0x38] sm:$0xff]
        %v3722 = vld [vmem:[#allocation2 + $0x80] sm:$0xff]
        %v3723 = vmul.f32 %v3641, %v3721
        %v3724 = vmul.f32 %v3642, %v3722
        %v3725 = vsub.f32 %v3723, %v3724
        %v3726 = vmul.f32 %v3641, %v3722
        %v3727 = vmul.f32 %v3642, %v3721
        %v3728 = vadd.f32 %v3726, %v3727
        %v3729 = vadd.f32 %v3709, %v3717
        %v3730 = vadd.f32 %v3712, %v3720
        %v3731 = vadd.f32 %v3729, %v3725
        %v3732 = vadd.f32 %v3730, %v3728
        %v3733 = vmul.f32 %v3731, %v3702
        %v3734 = vmul.f32 %v3732, %v3704
        %v3735 = vsub.f32 %v3733, %v3734
        %v3736 = vmul.f32 %v3731, %v3704
        %v3737 = vmul.f32 %v3732, %v3702
        %v3738 = vadd.f32 %v3736, %v3737
        %v3739 = vld [vmem:[#allocation2] sm:$0xff]
        %v3740 = vld [vmem:[#allocation2 + $0x48] sm:$0xff]
        %v3741 = vmul.f32 %v3567, %v3739
        %v3742 = vmul.f32 %v3568, %v3740
        %v3743 = vsub.f32 %v3741, %v3742
        %v3744 = vmul.f32 %v3567, %v3740
        %v3745 = vmul.f32 %v3568, %v3739
        %v3746 = vadd.f32 %v3744, %v3745
        %v3747 = vld [vmem:[#allocation2 + $0x18] sm:$0xff]
        %v3748 = vld [vmem:[#allocation2 + $0x60] sm:$0xff]
        %v3749 = vmul.f32 %v3611, %v3747
        %v3750 = vmul.f32 %v3612, %v3748
        %v3751 = vsub.f32 %v3749, %v3750
        %v3752 = vmul.f32 %v3611, %v3748
        %v3753 = vmul.f32 %v3612, %v3747
        %v3754 = vadd.f32 %v3752, %v3753
        %v3755 = vld [vmem:[#allocation2 + $0x30] sm:$0xff]
        %v3756 = vld [vmem:[#allocation2 + $0x78] sm:$0xff]
        %v3757 = vmul.f32 %v3657, %v3755
        %v3758 = vmul.f32 %v3658, %v3756
        %v3759 = vsub.f32 %v3757, %v3758
        %v3760 = vmul.f32 %v3657, %v3756
        %v3761 = vmul.f32 %v3658, %v3755
        %v3762 = vadd.f32 %v3760, %v3761
        %v3763 = vadd.f32 %v3743, %v3751
        %v3764 = vadd.f32 %v3746, %v3754
        %v3765 = vadd.f32 %v3763, %v3759
        %v3766 = vadd.f32 %v3764, %v3762
        %v3767 = vmul.f32 %v3765, %v3702
        %v3768 = vmul.f32 %v3766, %v3704
        %v3769 = vsub.f32 %v3767, %v3768
        %v3770 = vmul.f32 %v3765, %v3704
        %v3771 = vmul.f32 %v3766, %v3702
        %v3772 = vadd.f32 %v3770, %v3771
        %v3773 = vsub.f32 %v3735, %v3769
        %v3774 = vmul.f32 %v3773, 0.5
        %v3775 = vadd.f32 %v3738, %v3772
        %v3776 = vmul.f32 %v3775, 0.5
        %3777 = vst [vmem:[%s215 + $0x128] sm:$0xff] %v3774
        %3778 = vst [vmem:[%s215 + $0x170] sm:$0xff] %v3776
        %v3779 = vsub.f32 0.0, %v3774
        %3780 = vst [vmem:[%s215 + $0x138] sm:$0xff] %v3779
        %3781 = vst [vmem:[%s215 + $0x180] sm:$0xff] %v3776
        %v3782 = vld [vmem:[#allocation2 + $0x10] sm:$0xff]
        %v3783 = vld [vmem:[#allocation2 + $0x58] sm:$0xff]
        %v3784 = vmul.f32 %v3551, %v3782
        %v3785 = vmul.f32 %v3552, %v3783
        %v3786 = vsub.f32 %v3784, %v3785
        %v3787 = vmul.f32 %v3551, %v3783
        %v3788 = vmul.f32 %v3552, %v3782
        %v3789 = vadd.f32 %v3787, %v3788
        %v3790 = vld [vmem:[#allocation2 + $0x28] sm:$0xff]
        %v3791 = vld [vmem:[#allocation2 + $0x70] sm:$0xff]
        %v3792 = vmul.f32 %v3597, %v3790
        %v3793 = vmul.f32 %v3598, %v3791
        %v3794 = vsub.f32 %v3792, %v3793
        %v3795 = vmul.f32 %v3597, %v3791
        %v3796 = vmul.f32 %v3598, %v3790
        %v3797 = vadd.f32 %v3795, %v3796
        %v3798 = vld [vmem:[#allocation2 + $0x40] sm:$0xff]
        %v3799 = vld [vmem:[#allocation2 + $0x88] sm:$0xff]
        %v3800 = vmul.f32 %v3641, %v3798
        %v3801 = vmul.f32 %v3642, %v3799
        %v3802 = vsub.f32 %v3800, %v3801
        %v3803 = vmul.f32 %v3641, %v3799
        %v3804 = vmul.f32 %v3642, %v3798
        %v3805 = vadd.f32 %v3803, %v3804
        %v3806 = vadd.f32 %v3786, %v3794
        %v3807 = vadd.f32 %v3789, %v3797
        %v3808 = vadd.f32 %v3806, %v3802
        %v3809 = vadd.f32 %v3807, %v3805
        %v3810 = vmul.f32 %v3808, %v3702
        %v3811 = vmul.f32 %v3809, %v3704
        %v3812 = vsub.f32 %v3810, %v3811
        %v3813 = vmul.f32 %v3808, %v3704
        %v3814 = vmul.f32 %v3809, %v3702
        %v3815 = vadd.f32 %v3813, %v3814
        %v3816 = vld [vmem:[#allocation2] sm:$0xff]
        %v3817 = vld [vmem:[#allocation2 + $0x48] sm:$0xff]
        %v3818 = vmul.f32 %v3581, %v3816
        %v3819 = vmul.f32 %v3582, %v3817
        %v3820 = vsub.f32 %v3818, %v3819
        %v3821 = vmul.f32 %v3581, %v3817
        %v3822 = vmul.f32 %v3582, %v3816
        %v3823 = vadd.f32 %v3821, %v3822
        %v3824 = vld [vmem:[#allocation2 + $0x18] sm:$0xff]
        %v3825 = vld [vmem:[#allocation2 + $0x60] sm:$0xff]
        %v3826 = vmul.f32 %v3627, %v3824
        %v3827 = vmul.f32 %v3628, %v3825
        %v3828 = vsub.f32 %v3826, %v3827
        %v3829 = vmul.f32 %v3627, %v3825
        %v3830 = vmul.f32 %v3628, %v3824
        %v3831 = vadd.f32 %v3829, %v3830
        %v3832 = vld [vmem:[#allocation2 + $0x30] sm:$0xff]
        %v3833 = vld [vmem:[#allocation2 + $0x78] sm:$0xff]
        %v3834 = vmul.f32 %v3671, %v3832
        %v3835 = vmul.f32 %v3672, %v3833
        %v3836 = vsub.f32 %v3834, %v3835
        %v3837 = vmul.f32 %v3671, %v3833
        %v3838 = vmul.f32 %v3672, %v3832
        %v3839 = vadd.f32 %v3837, %v3838
        %v3840 = vadd.f32 %v3820, %v3828
        %v3841 = vadd.f32 %v3823, %v3831
        %v3842 = vadd.f32 %v3840, %v3836
        %v3843 = vadd.f32 %v3841, %v3839
        %v3844 = vmul.f32 %v3842, %v3702
        %v3845 = vmul.f32 %v3843, %v3704
        %v3846 = vsub.f32 %v3844, %v3845
        %v3847 = vmul.f32 %v3842, %v3704
        %v3848 = vmul.f32 %v3843, %v3702
        %v3849 = vadd.f32 %v3847, %v3848
        %v3850 = vsub.f32 %v3812, %v3846
        %v3851 = vmul.f32 %v3850, 0.5
        %v3852 = vadd.f32 %v3815, %v3849
        %v3853 = vmul.f32 %v3852, 0.5
        %3854 = vst [vmem:[%s215 + $0x130] sm:$0xff] %v3851
        %3855 = vst [vmem:[%s215 + $0x178] sm:$0xff] %v3853
        %v3856 = vsub.f32 0.0, %v3851
        %3857 = vst [vmem:[%s215 + $0x150] sm:$0xff] %v3856
        %3858 = vst [vmem:[%s215 + $0x198] sm:$0xff] %v3853
        %v3859 = vld [vmem:[#allocation2 + $0x10] sm:$0xff]
        %v3860 = vld [vmem:[#allocation2 + $0x58] sm:$0xff]
        %v3861 = vmul.f32 %v3567, %v3859
        %v3862 = vmul.f32 %v3568, %v3860
        %v3863 = vsub.f32 %v3861, %v3862
        %v3864 = vmul.f32 %v3567, %v3860
        %v3865 = vmul.f32 %v3568, %v3859
        %v3866 = vadd.f32 %v3864, %v3865
        %v3867 = vld [vmem:[#allocation2 + $0x28] sm:$0xff]
        %v3868 = vld [vmem:[#allocation2 + $0x70] sm:$0xff]
        %v3869 = vmul.f32 %v3611, %v3867
        %v3870 = vmul.f32 %v3612, %v3868
        %v3871 = vsub.f32 %v3869, %v3870
        %v3872 = vmul.f32 %v3611, %v3868
        %v3873 = vmul.f32 %v3612, %v3867
        %v3874 = vadd.f32 %v3872, %v3873
        %v3875 = vld [vmem:[#allocation2 + $0x40] sm:$0xff]
        %v3876 = vld [vmem:[#allocation2 + $0x88] sm:$0xff]
        %v3877 = vmul.f32 %v3657, %v3875
        %v3878 = vmul.f32 %v3658, %v3876
        %v3879 = vsub.f32 %v3877, %v3878
        %v3880 = vmul.f32 %v3657, %v3876
        %v3881 = vmul.f32 %v3658, %v3875
        %v3882 = vadd.f32 %v3880, %v3881
        %v3883 = vadd.f32 %v3863, %v3871
        %v3884 = vadd.f32 %v3866, %v3874
        %v3885 = vadd.f32 %v3883, %v3879
        %v3886 = vadd.f32 %v3884, %v3882
        %v3887 = vmul.f32 %v3885, %v3702
        %v3888 = vmul.f32 %v3886, %v3704
        %v3889 = vsub.f32 %v3887, %v3888
        %v3890 = vmul.f32 %v3885, %v3704
        %v3891 = vmul.f32 %v3886, %v3702
        %v3892 = vadd.f32 %v3890, %v3891
        %v3893 = vld [vmem:[#allocation2 + $0x8] sm:$0xff]
        %v3894 = vld [vmem:[#allocation2 + $0x50] sm:$0xff]
        %v3895 = vmul.f32 %v3581, %v3893
        %v3896 = vmul.f32 %v3582, %v3894
        %v3897 = vsub.f32 %v3895, %v3896
        %v3898 = vmul.f32 %v3581, %v3894
        %v3899 = vmul.f32 %v3582, %v3893
        %v3900 = vadd.f32 %v3898, %v3899
        %v3901 = vld [vmem:[#allocation2 + $0x20] sm:$0xff]
        %v3902 = vld [vmem:[#allocation2 + $0x68] sm:$0xff]
        %v3903 = vmul.f32 %v3627, %v3901
        %v3904 = vmul.f32 %v3628, %v3902
        %v3905 = vsub.f32 %v3903, %v3904
        %v3906 = vmul.f32 %v3627, %v3902
        %v3907 = vmul.f32 %v3628, %v3901
        %v3908 = vadd.f32 %v3906, %v3907
        %v3909 = vld [vmem:[#allocation2 + $0x38] sm:$0xff]
        %v3910 = vld [vmem:[#allocation2 + $0x80] sm:$0xff]
        %v3911 = vmul.f32 %v3671, %v3909
        %v3912 = vmul.f32 %v3672, %v3910
        %v3913 = vsub.f32 %v3911, %v3912
        %v3914 = vmul.f32 %v3671, %v3910
        %v3915 = vmul.f32 %v3672, %v3909
        %v3916 = vadd.f32 %v3914, %v3915
        %v3917 = vadd.f32 %v3897, %v3905
        %v3918 = vadd.f32 %v3900, %v3908
        %v3919 = vadd.f32 %v3917, %v3913
        %v3920 = vadd.f32 %v3918, %v3916
        %v3921 = vmul.f32 %v3919, %v3702
        %v3922 = vmul.f32 %v3920, %v3704
        %v3923 = vsub.f32 %v3921, %v3922
        %v3924 = vmul.f32 %v3919, %v3704
        %v3925 = vmul.f32 %v3920, %v3702
        %v3926 = vadd.f32 %v3924, %v3925
        %v3927 = vsub.f32 %v3889, %v3923
        %v3928 = vmul.f32 %v3927, 0.5
        %v3929 = vadd.f32 %v3892, %v3926
        %v3930 = vmul.f32 %v3929, 0.5
        %3931 = vst [vmem:[%s215 + $0x148] sm:$0xff] %v3928
        %3932 = vst [vmem:[%s215 + $0x190] sm:$0xff] %v3930
        %v3933 = vsub.f32 0.0, %v3928
        %3934 = vst [vmem:[%s215 + $0x158] sm:$0xff] %v3933
        %3935 = vst [vmem:[%s215 + $0x1a0] sm:$0xff] %v3930
        %v3936 = vld [vmem:[#allocation2] sm:$0xff]
        %v3937 = vld [vmem:[#allocation2 + $0x48] sm:$0xff]
        %v3938 = vmul.f32 %v3551, %v3936
        %v3939 = vmul.f32 %v3552, %v3937
        %v3940 = vsub.f32 %v3938, %v3939
        %v3941 = vmul.f32 %v3551, %v3937
        %v3942 = vmul.f32 %v3552, %v3936
        %v3943 = vadd.f32 %v3941, %v3942
        %v3944 = vld [vmem:[#allocation2 + $0x18] sm:$0xff]
        %v3945 = vld [vmem:[#allocation2 + $0x60] sm:$0xff]
        %v3946 = vmul.f32 %v3597, %v3944
        %v3947 = vmul.f32 %v3598, %v3945
        %v3948 = vsub.f32 %v3946, %v3947
        %v3949 = vmul.f32 %v3597, %v3945
        %v3950 = vmul.f32 %v3598, %v3944
        %v3951 = vadd.f32 %v3949, %v3950
        %v3952 = vld [vmem:[#allocation2 + $0x30] sm:$0xff]
        %v3953 = vld [vmem:[#allocation2 + $0x78] sm:$0xff]
        %v3954 = vmul.f32 %v3641, %v3952
        %v3955 = vmul.f32 %v3642, %v3953
        %v3956 = vsub.f32 %v3954, %v3955
        %v3957 = vmul.f32 %v3641, %v3953
        %v3958 = vmul.f32 %v3642, %v3952
        %v3959 = vadd.f32 %v3957, %v3958
        %v3960 = vadd.f32 %v3940, %v3948
        %v3961 = vadd.f32 %v3943, %v3951
        %v3962 = vadd.f32 %v3960, %v3956
        %v3963 = vadd.f32 %v3961, %v3959
        %v3964 = vmul.f32 %v3962, %v3704
        %v3965 = vmul.f32 %v3963, %v3702
        %v3966 = vadd.f32 %v3964, %v3965
        %v3967 = vld [vmem:[#allocation2 + $0x8] sm:$0xff]
        %v3968 = vld [vmem:[#allocation2 + $0x50] sm:$0xff]
        %v3969 = vmul.f32 %v3567, %v3967
        %v3970 = vmul.f32 %v3568, %v3968
        %v3971 = vsub.f32 %v3969, %v3970
        %v3972 = vmul.f32 %v3567, %v3968
        %v3973 = vmul.f32 %v3568, %v3967
        %v3974 = vadd.f32 %v3972, %v3973
        %v3975 = vld [vmem:[#allocation2 + $0x20] sm:$0xff]
        %v3976 = vld [vmem:[#allocation2 + $0x68] sm:$0xff]
        %v3977 = vmul.f32 %v3611, %v3975
        %v3978 = vmul.f32 %v3612, %v3976
        %v3979 = vsub.f32 %v3977, %v3978
        %v3980 = vmul.f32 %v3611, %v3976
        %v3981 = vmul.f32 %v3612, %v3975
        %v3982 = vadd.f32 %v3980, %v3981
        %v3983 = vld [vmem:[#allocation2 + $0x38] sm:$0xff]
        %v3984 = vld [vmem:[#allocation2 + $0x80] sm:$0xff]
        %v3985 = vmul.f32 %v3657, %v3983
        %v3986 = vmul.f32 %v3658, %v3984
        %v3987 = vsub.f32 %v3985, %v3986
        %v3988 = vmul.f32 %v3657, %v3984
        %v3989 = vmul.f32 %v3658, %v3983
        %v3990 = vadd.f32 %v3988, %v3989
        %v3991 = vadd.f32 %v3971, %v3979
        %v3992 = vadd.f32 %v3974, %v3982
        %v3993 = vadd.f32 %v3991, %v3987
        %v3994 = vadd.f32 %v3992, %v3990
        %v3995 = vmul.f32 %v3993, %v3704
        %v3996 = vmul.f32 %v3994, %v3702
        %v3997 = vadd.f32 %v3995, %v3996
        %v3998 = vld [vmem:[#allocation2 + $0x10] sm:$0xff]
        %v3999 = vld [vmem:[#allocation2 + $0x58] sm:$0xff]
        %v4000 = vmul.f32 %v3581, %v3998
        %v4001 = vmul.f32 %v3582, %v3999
        %v4002 = vsub.f32 %v4000, %v4001
        %v4003 = vmul.f32 %v3581, %v3999
        %v4004 = vmul.f32 %v3582, %v3998
        %v4005 = vadd.f32 %v4003, %v4004
        %v4006 = vld [vmem:[#allocation2 + $0x28] sm:$0xff]
        %v4007 = vld [vmem:[#allocation2 + $0x70] sm:$0xff]
        %v4008 = vmul.f32 %v3627, %v4006
        %v4009 = vmul.f32 %v3628, %v4007
        %v4010 = vsub.f32 %v4008, %v4009
        %v4011 = vmul.f32 %v3627, %v4007
        %v4012 = vmul.f32 %v3628, %v4006
        %v4013 = vadd.f32 %v4011, %v4012
        %v4014 = vld [vmem:[#allocation2 + $0x40] sm:$0xff]
        %v4015 = vld [vmem:[#allocation2 + $0x88] sm:$0xff]
        %v4016 = vmul.f32 %v3671, %v4014
        %v4017 = vmul.f32 %v3672, %v4015
        %v4018 = vsub.f32 %v4016, %v4017
        %v4019 = vmul.f32 %v3671, %v4015
        %v4020 = vmul.f32 %v3672, %v4014
        %v4021 = vadd.f32 %v4019, %v4020
        %v4022 = vadd.f32 %v4002, %v4010
        %v4023 = vadd.f32 %v4005, %v4013
        %v4024 = vadd.f32 %v4022, %v4018
        %v4025 = vadd.f32 %v4023, %v4021
        %v4026 = vmul.f32 %v4024, %v3704
        %v4027 = vmul.f32 %v4025, %v3702
        %v4028 = vadd.f32 %v4026, %v4027
        %v4029 = vadd.f32 %v3966, %v3997
        %v4030 = vadd.f32 %v4029, %v4028
        %v4031 = vmul.f32 %v4030, 0.33333334
        %v4032 = vsub.f32 %v3966, %v4031
        %4033 = vst [vmem:[%s215 + $0x120] sm:$0xff] 0.0
        %4034 = vst [vmem:[%s215 + $0x168] sm:$0xff] %v4032
        %v4035 = vsub.f32 %v3997, %v4031
        %4036 = vst [vmem:[%s215 + $0x140] sm:$0xff] 0.0
        %4037 = vst [vmem:[%s215 + $0x188] sm:$0xff] %v4035
        %v4038 = vsub.f32 %v4028, %v4031
        %4039 = vst [vmem:[%s215 + $0x160] sm:$0xff] 0.0
        %4040 = vst [vmem:[%s215 + $0x1a8] sm:$0xff] %v4038
        %v4041 = vld [vmem:[%s191 + $0x1e0] sm:$0xff]
        %v4042 = vld [vmem:[%s191 + $0x1e8] sm:$0xff]
        %v4043 = vld [vmem:[%s191 + $0x1f0] sm:$0xff]
        %v4044 = vld [vmem:[%s191 + $0x1f8] sm:$0xff]
        %v4045 = vld [vmem:[%s191 + $0x200] sm:$0xff]
        %v4046 = vld [vmem:[%s191 + $0x208] sm:$0xff]
        %v4047 = vld [vmem:[%s191 + $0x210] sm:$0xff]
        %v4048 = vld [vmem:[%s191 + $0x218] sm:$0xff]
        %v4049 = vld [vmem:[%s191 + $0x220] sm:$0xff]
        %v4050 = vld [vmem:[%s191 + $0x228] sm:$0xff]
        %v4051 = vld [vmem:[%s191 + $0x230] sm:$0xff]
        %v4052 = vld [vmem:[%s191 + $0x238] sm:$0xff]
        %v4053 = vld [vmem:[%s191 + $0x240] sm:$0xff]
        %v4054 = vld [vmem:[%s191 + $0x248] sm:$0xff]
        %v4055 = vld [vmem:[%s191 + $0x250] sm:$0xff]
        %v4056 = vld [vmem:[%s191 + $0x258] sm:$0xff]
        %v4057 = vld [vmem:[%s191 + $0x260] sm:$0xff]
        %v4058 = vld [vmem:[%s191 + $0x268] sm:$0xff]
        %v4059 = vld [vmem:[%s191 + $0x270] sm:$0xff]
        %v4060 = vld [vmem:[%s191 + $0x278] sm:$0xff]
        %v4061 = vld [vmem:[%s1] sm:$0xff]
        %v4062 = vld [vmem:[%s1 + $0x8] sm:$0xff]
        %v4063 = vld [vmem:[%s1 + $0x10] sm:$0xff]
        %v4064 = vld [vmem:[%s1 + $0x18] sm:$0xff]
        %v4065 = vld [vmem:[%s1 + $0x20] sm:$0xff]
        %v4066 = vld [vmem:[%s1 + $0x28] sm:$0xff]
        %v4067 = vld [vmem:[%s1 + $0x30] sm:$0xff]
        %v4068 = vld [vmem:[%s1 + $0x38] sm:$0xff]
        %v4069 = vld [vmem:[%s1 + $0x40] sm:$0xff]
        %v4070 = vld [vmem:[%s1 + $0x48] sm:$0xff]
        %v4071 = vld [vmem:[%s1 + $0x50] sm:$0xff]
        %v4072 = vld [vmem:[%s1 + $0x58] sm:$0xff]
        %v4073 = vld [vmem:[%s1 + $0x60] sm:$0xff]
        %v4074 = vld [vmem:[%s1 + $0x68] sm:$0xff]
        %v4075 = vld [vmem:[%s1 + $0x70] sm:$0xff]
        %v4076 = vld [vmem:[%s1 + $0x78] sm:$0xff]
        %v4077 = vld [vmem:[%s1 + $0x80] sm:$0xff]
        %v4078 = vld [vmem:[%s1 + $0x88] sm:$0xff]
        %v4079 = vld [vmem:[%s1 + $0x90] sm:$0xff]
        %v4080 = vld [vmem:[%s1 + $0x98] sm:$0xff]
        %v4081 = vld [vmem:[%s1 + $0xa0] sm:$0xff]
        %v4082 = vld [vmem:[%s1 + $0xa8] sm:$0xff]
        %v4083 = vld [vmem:[%s1 + $0xb0] sm:$0xff]
        %v4084 = vld [vmem:[%s1 + $0xb8] sm:$0xff]
        %v4085 = vld [vmem:[%s1 + $0xc0] sm:$0xff]
        %v4086 = vld [vmem:[%s1 + $0xc8] sm:$0xff]
        %v4087 = vld [vmem:[%s1 + $0xd0] sm:$0xff]
        %v4088 = vld [vmem:[%s1 + $0xd8] sm:$0xff]
        %v4089 = vld [vmem:[%s1 + $0xe0] sm:$0xff]
        %v4090 = vld [vmem:[%s1 + $0xe8] sm:$0xff]
        %v4091 = vld [vmem:[%s1 + $0xf0] sm:$0xff]
        %v4092 = vld [vmem:[%s1 + $0xf8] sm:$0xff]
        %v4093 = vld [vmem:[%s1 + $0x100] sm:$0xff]
        %v4094 = vld [vmem:[%s1 + $0x108] sm:$0xff]
        %v4095 = vld [vmem:[%s1 + $0x110] sm:$0xff]
        %v4096 = vld [vmem:[%s1 + $0x118] sm:$0xff]
        %v4097 = vld [vmem:[%s1 + $0x120] sm:$0xff]
        %v4098 = vld [vmem:[%s1 + $0x128] sm:$0xff]
        %v4099 = vld [vmem:[%s1 + $0x130] sm:$0xff]
        %v4100 = vld [vmem:[%s1 + $0x138] sm:$0xff]
        %v4101 = vld [vmem:[%s1 + $0x140] sm:$0xff]
        %v4102 = vld [vmem:[%s1 + $0x148] sm:$0xff]
        %v4103 = vld [vmem:[%s1 + $0x150] sm:$0xff]
        %v4104 = vld [vmem:[%s1 + $0x158] sm:$0xff]
        %v4105 = vld [vmem:[%s1 + $0x160] sm:$0xff]
        %v4106 = vld [vmem:[%s1 + $0x168] sm:$0xff]
        %v4107 = vld [vmem:[%s1 + $0x170] sm:$0xff]
        %v4108 = vld [vmem:[%s1 + $0x178] sm:$0xff]
        %v4109 = vld [vmem:[%s1 + $0x180] sm:$0xff]
        %v4110 = vld [vmem:[%s1 + $0x188] sm:$0xff]
        %v4111 = vld [vmem:[%s1 + $0x190] sm:$0xff]
        %v4112 = vld [vmem:[%s1 + $0x198] sm:$0xff]
        %v4113 = vld [vmem:[%s1 + $0x1a0] sm:$0xff]
        %v4114 = vld [vmem:[%s1 + $0x1a8] sm:$0xff]
        %v4115 = vld [vmem:[%s1 + $0x1b0] sm:$0xff]
        %v4116 = vld [vmem:[%s1 + $0x1b8] sm:$0xff]
        %v4117 = vld [vmem:[%s1 + $0x1c0] sm:$0xff]
        %v4118 = vld [vmem:[%s1 + $0x1c8] sm:$0xff]
        %v4119 = vld [vmem:[%s1 + $0x1d0] sm:$0xff]
        %v4120 = vld [vmem:[%s1 + $0x1d8] sm:$0xff]
        %v4121 = vld [vmem:[%s1 + $0x1e0] sm:$0xff]
        %v4122 = vld [vmem:[%s1 + $0x1e8] sm:$0xff]
        %v4123 = vld [vmem:[%s1 + $0x1f0] sm:$0xff]
        %v4124 = vld [vmem:[%s1 + $0x1f8] sm:$0xff]
        %v4126 = vsel %vm302, %v4062, 0
        %v4129 = vsel %vm302, %v4064, 0
        %v4132 = vsel %vm302, %v4066, 0
        %v4135 = vsel %vm302, %v4068, 0
        %v4138 = vsel %vm302, %v4070, 0
        %v4141 = vsel %vm302, %v4072, 0
        %v4144 = vsel %vm302, %v4074, 0
        %v4147 = vsel %vm302, %v4076, 0
        %v4150 = vsel %vm302, %v4078, 0
        %v4153 = vsel %vm302, %v4080, 0
        %v4156 = vsel %vm302, %v4082, 0
        %v4159 = vsel %vm302, %v4084, 0
        %v4162 = vsel %vm302, %v4086, 0
        %v4165 = vsel %vm302, %v4088, 0
        %v4168 = vsel %vm302, %v4090, 0
        %v4171 = vsel %vm302, %v4092, 0
        %v4174 = vsel %vm302, %v4094, 0
        %v4177 = vsel %vm302, %v4096, 0
        %v4180 = vsel %vm302, %v4098, 0
        %v4183 = vsel %vm302, %v4100, 0
        %v4186 = vsel %vm302, %v4102, 0
        %v4189 = vsel %vm302, %v4104, 0
        %v4192 = vsel %vm302, %v4106, 0
        %v4195 = vsel %vm302, %v4108, 0
        %v4198 = vsel %vm302, %v4110, 0
        %v4201 = vsel %vm302, %v4112, 0
        %v4204 = vsel %vm302, %v4114, 0
        %v4207 = vsel %vm302, %v4116, 0
        %v4210 = vsel %vm302, %v4118, 0
        %v4213 = vsel %vm302, %v4120, 0
        %v4216 = vsel %vm302, %v4122, 0
        %v4219 = vsel %vm302, %v4124, 0
        %4221 = vmatprep.subr.mxu0 0.0
        %4222 = vmatpush1.msra.mxu0 %v4041
        %4223 = vmatprep.subr.mxu0 0.0
        %4224 = vmatpush1.msra.mxu0 %v4042
        %4225 = vmatprep.subr.mxu0 0.0
        %4226 = vmatpush1.msra.mxu0 %v4043
        %4227 = vmatprep.subr.mxu0 0.0
        %4228 = vmatpush1.msra.mxu0 %v4044
        %4229 = vmatprep.subr.mxu0 0.0
        %4230 = vmatpush1.msra.mxu0 %v4045
        %4231 = vmatprep.subr.mxu0 0.0
        %4232 = vmatpush1.msra.mxu0 %v4046
        %4233 = vmatprep.subr.mxu0 0.0
        %4234 = vmatpush1.msra.mxu0 %v4047
        %4235 = vmatprep.subr.mxu0 0.0
        %4236 = vmatpush1.msra.mxu0 %v4048
        %4237 = vmatprep.subr.mxu0 0.0
        %4238 = vmatpush1.msra.mxu0 %v4049
        %4239 = vmatprep.subr.mxu0 0.0
        %4240 = vmatpush1.msra.mxu0 %v4050
        %4241 = vmatprep.subr.mxu0 0.0
        %4242 = vmatpush1.msra.mxu0 %v4051
        %4243 = vmatprep.subr.mxu0 0.0
        %4244 = vmatpush1.msra.mxu0 %v4052
        %4245 = vmatprep.subr.mxu0 0.0
        %4246 = vmatpush1.msra.mxu0 %v4053
        %4247 = vmatprep.subr.mxu0 0.0
        %4248 = vmatpush1.msra.mxu0 %v4054
        %4249 = vmatprep.subr.mxu0 0.0
        %4250 = vmatpush1.msra.mxu0 %v4055
        %4251 = vmatprep.subr.mxu0 0.0
        %4252 = vmatpush1.msra.mxu0 %v4056
        %4253 = vmatprep.subr.mxu0 0.0
        %4254 = vmatpush1.msra.mxu0 %v4057
        %4255 = vmatprep.subr.mxu0 0.0
        %4256 = vmatpush1.msra.mxu0 %v4058
        %4257 = vmatprep.subr.mxu0 0.0
        %4258 = vmatpush1.msra.mxu0 %v4059
        %4259 = vmatprep.subr.mxu0 0.0
        %4260 = vmatpush1.msra.mxu0 %v4060
        %4261 = vmatprep.subr.mxu0 0.0
        %4262 = vmatpush1.msra.mxu0 0.0
        %4263 = vmatprep.subr.mxu0 0.0
        %4264 = vmatpush1.msra.mxu0 0.0
        %4265 = vmatprep.subr.mxu0 0.0
        %4266 = vmatpush1.msra.mxu0 0.0
        %4267 = vmatprep.subr.mxu0 0.0
        %4268 = vmatpush1.msra.mxu0 0.0
        %4269 = vmatprep.subr.mxu0 0.0
        %4270 = vmatpush1.msra.mxu0 0.0
        %4271 = vmatprep.subr.mxu0 0.0
        %4272 = vmatpush1.msra.mxu0 0.0
        %4273 = vmatprep.subr.mxu0 0.0
        %4274 = vmatpush1.msra.mxu0 0.0
        %4275 = vmatprep.subr.mxu0 0.0
        %4276 = vmatpush1.msra.mxu0 0.0
        %4277 = vmatprep.subr.mxu0 0.0
        %4278 = vmatpush1.msra.mxu0 0.0
        %4279 = vmatprep.subr.mxu0 0.0
        %4280 = vmatpush1.msra.mxu0 0.0
        %4281 = vmatprep.subr.mxu0 0.0
        %4282 = vmatpush1.msra.mxu0 0.0
        %4283 = vmatprep.subr.mxu0 0.0
        %4284 = vmatpush1.msra.mxu0 0.0
        %4285 = vmatprep.mubr.f32.mxu0 %v4126
        %4286 = vmatmul.mubr.f32.gmra.mrb[0].mxu0 %v4061
        %v4287 = vpop.f32.mrb[0].mxu0
        %v4288 = vadd.f32 0.0, %v4287
        %v4289 = vpop.f32.mrb[0].mxu0
        %4290 = vmatprep.mubr.f32.mxu0 %v4129
        %4291 = vmatmul.mubr.f32.gmra.mrb[0].mxu0 %v4063
        %v4292 = vpop.f32.mrb[0].mxu0
        %v4293 = vadd.f32 0.0, %v4292
        %v4294 = vpop.f32.mrb[0].mxu0
        %4295 = vmatprep.mubr.f32.mxu0 %v4132
        %4296 = vmatmul.mubr.f32.gmra.mrb[0].mxu0 %v4065
        %v4297 = vpop.f32.mrb[0].mxu0
        %v4298 = vadd.f32 0.0, %v4297
        %v4299 = vpop.f32.mrb[0].mxu0
        %4300 = vmatprep.mubr.f32.mxu0 %v4135
        %4301 = vmatmul.mubr.f32.gmra.mrb[0].mxu0 %v4067
        %v4302 = vpop.f32.mrb[0].mxu0
        %v4303 = vadd.f32 0.0, %v4302
        %v4304 = vpop.f32.mrb[0].mxu0
        %4305 = vmatprep.mubr.f32.mxu0 %v4138
        %4306 = vmatmul.mubr.f32.gmra.mrb[0].mxu0 %v4069
        %v4307 = vpop.f32.mrb[0].mxu0
        %v4308 = vadd.f32 0.0, %v4307
        %v4309 = vpop.f32.mrb[0].mxu0
        %4310 = vmatprep.mubr.f32.mxu0 %v4141
        %4311 = vmatmul.mubr.f32.gmra.mrb[0].mxu0 %v4071
        %v4312 = vpop.f32.mrb[0].mxu0
        %v4313 = vadd.f32 0.0, %v4312
        %v4314 = vpop.f32.mrb[0].mxu0
        %4315 = vmatprep.mubr.f32.mxu0 %v4144
        %4316 = vmatmul.mubr.f32.gmra.mrb[0].mxu0 %v4073
        %v4317 = vpop.f32.mrb[0].mxu0
        %v4318 = vadd.f32 0.0, %v4317
        %v4319 = vpop.f32.mrb[0].mxu0
        %4320 = vmatprep.mubr.f32.mxu0 %v4147
        %4321 = vmatmul.mubr.f32.gmra.mrb[0].mxu0 %v4075
        %v4322 = vpop.f32.mrb[0].mxu0
        %v4323 = vadd.f32 0.0, %v4322
        %v4324 = vpop.f32.mrb[0].mxu0
        %4325 = vmatprep.mubr.f32.mxu0 %v4150
        %4326 = vmatmul.mubr.f32.gmra.mrb[0].mxu0 %v4077
        %v4327 = vpop.f32.mrb[0].mxu0
        %v4328 = vadd.f32 0.0, %v4327
        %v4329 = vpop.f32.mrb[0].mxu0
        %4330 = vmatprep.mubr.f32.mxu0 %v4153
        %4331 = vmatmul.mubr.f32.gmra.mrb[0].mxu0 %v4079
        %v4332 = vpop.f32.mrb[0].mxu0
        %v4333 = vadd.f32 0.0, %v4332
        %v4334 = vpop.f32.mrb[0].mxu0
        %4335 = vmatprep.mubr.f32.mxu0 %v4156
        %4336 = vmatmul.mubr.f32.gmra.mrb[0].mxu0 %v4081
        %v4337 = vpop.f32.mrb[0].mxu0
        %v4338 = vadd.f32 0.0, %v4337
        %v4339 = vpop.f32.mrb[0].mxu0
        %4340 = vmatprep.mubr.f32.mxu0 %v4159
        %4341 = vmatmul.mubr.f32.gmra.mrb[0].mxu0 %v4083
        %v4342 = vpop.f32.mrb[0].mxu0
        %v4343 = vadd.f32 0.0, %v4342
        %v4344 = vpop.f32.mrb[0].mxu0
        %4345 = vmatprep.mubr.f32.mxu0 %v4162
        %4346 = vmatmul.mubr.f32.gmra.mrb[0].mxu0 %v4085
        %v4347 = vpop.f32.mrb[0].mxu0
        %v4348 = vadd.f32 0.0, %v4347
        %v4349 = vpop.f32.mrb[0].mxu0
        %4350 = vmatprep.mubr.f32.mxu0 %v4165
        %4351 = vmatmul.mubr.f32.gmra.mrb[0].mxu0 %v4087
        %v4352 = vpop.f32.mrb[0].mxu0
        %v4353 = vadd.f32 0.0, %v4352
        %v4354 = vpop.f32.mrb[0].mxu0
        %4355 = vmatprep.mubr.f32.mxu0 %v4168
        %4356 = vmatmul.mubr.f32.gmra.mrb[0].mxu0 %v4089
        %v4357 = vpop.f32.mrb[0].mxu0
        %v4358 = vadd.f32 0.0, %v4357
        %v4359 = vpop.f32.mrb[0].mxu0
        %4360 = vmatprep.mubr.f32.mxu0 %v4171
        %4361 = vmatmul.mubr.f32.gmra.mrb[0].mxu0 %v4091
        %v4362 = vpop.f32.mrb[0].mxu0
        %v4363 = vadd.f32 0.0, %v4362
        %v4364 = vpop.f32.mrb[0].mxu0
        %4365 = vmatprep.mubr.f32.mxu0 %v4174
        %4366 = vmatmul.mubr.f32.gmra.mrb[0].mxu0 %v4093
        %v4367 = vpop.f32.mrb[0].mxu0
        %v4368 = vadd.f32 0.0, %v4367
        %v4369 = vpop.f32.mrb[0].mxu0
        %4370 = vmatprep.mubr.f32.mxu0 %v4177
        %4371 = vmatmul.mubr.f32.gmra.mrb[0].mxu0 %v4095
        %v4372 = vpop.f32.mrb[0].mxu0
        %v4373 = vadd.f32 0.0, %v4372
        %v4374 = vpop.f32.mrb[0].mxu0
        %4375 = vmatprep.mubr.f32.mxu0 %v4180
        %4376 = vmatmul.mubr.f32.gmra.mrb[0].mxu0 %v4097
        %v4377 = vpop.f32.mrb[0].mxu0
        %v4378 = vadd.f32 0.0, %v4377
        %v4379 = vpop.f32.mrb[0].mxu0
        %4380 = vmatprep.mubr.f32.mxu0 %v4183
        %4381 = vmatmul.mubr.f32.gmra.mrb[0].mxu0 %v4099
        %v4382 = vpop.f32.mrb[0].mxu0
        %v4383 = vadd.f32 0.0, %v4382
        %v4384 = vpop.f32.mrb[0].mxu0
        %4385 = vmatprep.mubr.f32.mxu0 %v4186
        %4386 = vmatmul.mubr.f32.gmra.mrb[0].mxu0 %v4101
        %v4387 = vpop.f32.mrb[0].mxu0
        %v4388 = vadd.f32 0.0, %v4387
        %v4389 = vpop.f32.mrb[0].mxu0
        %4390 = vmatprep.mubr.f32.mxu0 %v4189
        %4391 = vmatmul.mubr.f32.gmra.mrb[0].mxu0 %v4103
        %v4392 = vpop.f32.mrb[0].mxu0
        %v4393 = vadd.f32 0.0, %v4392
        %v4394 = vpop.f32.mrb[0].mxu0
        %4395 = vmatprep.mubr.f32.mxu0 %v4192
        %4396 = vmatmul.mubr.f32.gmra.mrb[0].mxu0 %v4105
        %v4397 = vpop.f32.mrb[0].mxu0
        %v4398 = vadd.f32 0.0, %v4397
        %v4399 = vpop.f32.mrb[0].mxu0
        %4400 = vmatprep.mubr.f32.mxu0 %v4195
        %4401 = vmatmul.mubr.f32.gmra.mrb[0].mxu0 %v4107
        %v4402 = vpop.f32.mrb[0].mxu0
        %v4403 = vadd.f32 0.0, %v4402
        %v4404 = vpop.f32.mrb[0].mxu0
        %4405 = vmatprep.mubr.f32.mxu0 %v4198
        %4406 = vmatmul.mubr.f32.gmra.mrb[0].mxu0 %v4109
        %v4407 = vpop.f32.mrb[0].mxu0
        %v4408 = vadd.f32 0.0, %v4407
        %v4409 = vpop.f32.mrb[0].mxu0
        %4410 = vmatprep.mubr.f32.mxu0 %v4201
        %4411 = vmatmul.mubr.f32.gmra.mrb[0].mxu0 %v4111
        %v4412 = vpop.f32.mrb[0].mxu0
        %v4413 = vadd.f32 0.0, %v4412
        %v4414 = vpop.f32.mrb[0].mxu0
        %4415 = vmatprep.mubr.f32.mxu0 %v4204
        %4416 = vmatmul.mubr.f32.gmra.mrb[0].mxu0 %v4113
        %v4417 = vpop.f32.mrb[0].mxu0
        %v4418 = vadd.f32 0.0, %v4417
        %v4419 = vpop.f32.mrb[0].mxu0
        %4420 = vmatprep.mubr.f32.mxu0 %v4207
        %4421 = vmatmul.mubr.f32.gmra.mrb[0].mxu0 %v4115
        %v4422 = vpop.f32.mrb[0].mxu0
        %v4423 = vadd.f32 0.0, %v4422
        %v4424 = vpop.f32.mrb[0].mxu0
        %4425 = vmatprep.mubr.f32.mxu0 %v4210
        %4426 = vmatmul.mubr.f32.gmra.mrb[0].mxu0 %v4117
        %v4427 = vpop.f32.mrb[0].mxu0
        %v4428 = vadd.f32 0.0, %v4427
        %v4429 = vpop.f32.mrb[0].mxu0
        %4430 = vmatprep.mubr.f32.mxu0 %v4213
        %4431 = vmatmul.mubr.f32.gmra.mrb[0].mxu0 %v4119
        %v4432 = vpop.f32.mrb[0].mxu0
        %v4433 = vadd.f32 0.0, %v4432
        %v4434 = vpop.f32.mrb[0].mxu0
        %4435 = vmatprep.mubr.f32.mxu0 %v4216
        %4436 = vmatmul.mubr.f32.gmra.mrb[0].mxu0 %v4121
        %v4437 = vpop.f32.mrb[0].mxu0
        %v4438 = vadd.f32 0.0, %v4437
        %v4439 = vpop.f32.mrb[0].mxu0
        %4440 = vmatprep.mubr.f32.mxu0 %v4219
        %4441 = vmatmul.mubr.f32.gmra.mrb[0].mxu0 %v4123
        %v4442 = vpop.f32.mrb[0].mxu0
        %v4443 = vadd.f32 0.0, %v4442
        %v4444 = vpop.f32.mrb[0].mxu0
        %4445 = vdwg.mxu0
        %v4446 = vtanh.pop %v4288
        %v4447 = vtanh.pop %v4293
        %v4448 = vtanh.pop %v4298
        %v4449 = vtanh.pop %v4303
        %v4450 = vtanh.pop %v4308
        %v4451 = vtanh.pop %v4313
        %v4452 = vtanh.pop %v4318
        %v4453 = vtanh.pop %v4323
        %v4454 = vtanh.pop %v4328
        %v4455 = vtanh.pop %v4333
        %v4456 = vtanh.pop %v4338
        %v4457 = vtanh.pop %v4343
        %v4458 = vtanh.pop %v4348
        %v4459 = vtanh.pop %v4353
        %v4460 = vtanh.pop %v4358
        %v4461 = vtanh.pop %v4363
        %v4462 = vtanh.pop %v4368
        %v4463 = vtanh.pop %v4373
        %v4464 = vtanh.pop %v4378
        %v4465 = vtanh.pop %v4383
        %v4466 = vtanh.pop %v4388
        %v4467 = vtanh.pop %v4393
        %v4468 = vtanh.pop %v4398
        %v4469 = vtanh.pop %v4403
        %v4470 = vtanh.pop %v4408
        %v4471 = vtanh.pop %v4413
        %v4472 = vtanh.pop %v4418
        %v4473 = vtanh.pop %v4423
        %v4474 = vtanh.pop %v4428
        %v4475 = vtanh.pop %v4433
        %v4476 = vtanh.pop %v4438
        %v4477 = vtanh.pop %v4443
        %v4478 = vld [vmem:[%s2] sm:$0xff]
        %v4479 = vld [vmem:[%s2 + $0x8] sm:$0xff]
        %v4480 = vld [vmem:[%s2 + $0x10] sm:$0xff]
        %v4481 = vld [vmem:[%s2 + $0x18] sm:$0xff]
        %v4482 = vld [vmem:[%s2 + $0x20] sm:$0xff]
        %v4483 = vld [vmem:[%s2 + $0x28] sm:$0xff]
        %v4484 = vld [vmem:[%s2 + $0x30] sm:$0xff]
        %v4485 = vld [vmem:[%s2 + $0x38] sm:$0xff]
        %v4486 = vld [vmem:[%s2 + $0x40] sm:$0xff]
        %v4487 = vld [vmem:[%s2 + $0x48] sm:$0xff]
        %v4488 = vld [vmem:[%s2 + $0x50] sm:$0xff]
        %v4489 = vld [vmem:[%s2 + $0x58] sm:$0xff]
        %v4490 = vld [vmem:[%s2 + $0x60] sm:$0xff]
        %v4491 = vld [vmem:[%s2 + $0x68] sm:$0xff]
        %v4492 = vld [vmem:[%s2 + $0x70] sm:$0xff]
        %v4493 = vld [vmem:[%s2 + $0x78] sm:$0xff]
        %v4494 = vld [vmem:[%s2 + $0x80] sm:$0xff]
        %v4495 = vld [vmem:[%s2 + $0x88] sm:$0xff]
        %v4496 = vld [vmem:[%s2 + $0x90] sm:$0xff]
        %v4497 = vld [vmem:[%s2 + $0x98] sm:$0xff]
        %v4498 = vld [vmem:[%s2 + $0xa0] sm:$0xff]
        %v4499 = vld [vmem:[%s2 + $0xa8] sm:$0xff]
        %v4500 = vld [vmem:[%s2 + $0xb0] sm:$0xff]
        %v4501 = vld [vmem:[%s2 + $0xb8] sm:$0xff]
        %v4502 = vld [vmem:[%s2 + $0xc0] sm:$0xff]
        %v4503 = vld [vmem:[%s2 + $0xc8] sm:$0xff]
        %v4504 = vld [vmem:[%s2 + $0xd0] sm:$0xff]
        %v4505 = vld [vmem:[%s2 + $0xd8] sm:$0xff]
        %v4506 = vld [vmem:[%s2 + $0xe0] sm:$0xff]
        %v4507 = vld [vmem:[%s2 + $0xe8] sm:$0xff]
        %v4508 = vld [vmem:[%s2 + $0xf0] sm:$0xff]
        %v4509 = vld [vmem:[%s2 + $0xf8] sm:$0xff]
        %v4510 = vld [vmem:[%s2 + $0x100] sm:$0xff]
        %v4511 = vld [vmem:[%s2 + $0x108] sm:$0xff]
        %v4512 = vld [vmem:[%s2 + $0x110] sm:$0xff]
        %v4513 = vld [vmem:[%s2 + $0x118] sm:$0xff]
        %v4514 = vld [vmem:[%s3] sm:$0xff]
        %v4515 = vld [vmem:[%s3 + $0x8] sm:$0xff]
        %v4516 = vld [vmem:[%s3 + $0x10] sm:$0xff]
        %v4517 = vld [vmem:[%s3 + $0x18] sm:$0xff]
        %v4518 = vld [vmem:[%s3 + $0x20] sm:$0xff]
        %v4519 = vld [vmem:[%s3 + $0x28] sm:$0xff]
        %v4520 = vld [vmem:[%s3 + $0x30] sm:$0xff]
        %v4521 = vld [vmem:[%s3 + $0x38] sm:$0xff]
        %v4522 = vld [vmem:[%s3 + $0x40] sm:$0xff]
        %v4523 = vld [vmem:[%s3 + $0x48] sm:$0xff]
        %v4524 = vld [vmem:[%s3 + $0x50] sm:$0xff]
        %v4525 = vld [vmem:[%s3 + $0x58] sm:$0xff]
        %v4526 = vld [vmem:[%s3 + $0x60] sm:$0xff]
        %v4527 = vld [vmem:[%s3 + $0x68] sm:$0xff]
        %v4528 = vld [vmem:[%s3 + $0x70] sm:$0xff]
        %v4529 = vld [vmem:[%s3 + $0x78] sm:$0xff]
        %v4530 = vld [vmem:[%s3 + $0x80] sm:$0xff]
        %v4531 = vld [vmem:[%s3 + $0x88] sm:$0xff]
        %4533 = vset.pattern.permute.xlu0 0
        %4534 = vperm.xlu0 %4533, %v4514
        %v4535 = vpop.permute.xlu0 %4534
        %4538 = vset.pattern.permute.xlu0 0
        %4539 = vperm.xlu0 %4538, %v4515
        %v4540 = vpop.permute.xlu0 %4539
        %4543 = vset.pattern.permute.xlu0 0
        %4544 = vperm.xlu0 %4543, %v4516
        %v4545 = vpop.permute.xlu0 %4544
        %4548 = vset.pattern.permute.xlu0 0
        %4549 = vperm.xlu0 %4548, %v4517
        %v4550 = vpop.permute.xlu0 %4549
        %4553 = vset.pattern.permute.xlu0 0
        %4554 = vperm.xlu0 %4553, %v4518
        %v4555 = vpop.permute.xlu0 %4554
        %4558 = vset.pattern.permute.xlu0 0
        %4559 = vperm.xlu0 %4558, %v4519
        %v4560 = vpop.permute.xlu0 %4559
        %4563 = vset.pattern.permute.xlu0 0
        %4564 = vperm.xlu0 %4563, %v4520
        %v4565 = vpop.permute.xlu0 %4564
        %4568 = vset.pattern.permute.xlu0 0
        %4569 = vperm.xlu0 %4568, %v4521
        %v4570 = vpop.permute.xlu0 %4569
        %4573 = vset.pattern.permute.xlu0 0
        %4574 = vperm.xlu0 %4573, %v4522
        %v4575 = vpop.permute.xlu0 %4574
        %4578 = vset.pattern.permute.xlu0 0
        %4579 = vperm.xlu0 %4578, %v4523
        %v4580 = vpop.permute.xlu0 %4579
        %4583 = vset.pattern.permute.xlu0 0
        %4584 = vperm.xlu0 %4583, %v4524
        %v4585 = vpop.permute.xlu0 %4584
        %4588 = vset.pattern.permute.xlu0 0
        %4589 = vperm.xlu0 %4588, %v4525
        %v4590 = vpop.permute.xlu0 %4589
        %4593 = vset.pattern.permute.xlu0 0
        %4594 = vperm.xlu0 %4593, %v4526
        %v4595 = vpop.permute.xlu0 %4594
        %4598 = vset.pattern.permute.xlu0 0
        %4599 = vperm.xlu0 %4598, %v4527
        %v4600 = vpop.permute.xlu0 %4599
        %4603 = vset.pattern.permute.xlu0 0
        %4604 = vperm.xlu0 %4603, %v4528
        %v4605 = vpop.permute.xlu0 %4604
        %4608 = vset.pattern.permute.xlu0 0
        %4609 = vperm.xlu0 %4608, %v4529
        %v4610 = vpop.permute.xlu0 %4609
        %4613 = vset.pattern.permute.xlu0 0
        %4614 = vperm.xlu0 %4613, %v4530
        %v4615 = vpop.permute.xlu0 %4614
        %4618 = vset.pattern.permute.xlu0 0
        %4619 = vperm.xlu0 %4618, %v4531
        %v4620 = vpop.permute.xlu0 %4619
        %4622 = vmatprep.subr.mxu0 0.0
        %4623 = vmatpush1.msra.mxu0 %v4446
        %4624 = vmatprep.subr.mxu0 0.0
        %4625 = vmatpush1.msra.mxu0 %v4447
        %4626 = vmatprep.subr.mxu0 0.0
        %4627 = vmatpush1.msra.mxu0 %v4448
        %4628 = vmatprep.subr.mxu0 0.0
        %4629 = vmatpush1.msra.mxu0 %v4449
        %4630 = vmatprep.subr.mxu0 0.0
        %4631 = vmatpush1.msra.mxu0 %v4450
        %4632 = vmatprep.subr.mxu0 0.0
        %4633 = vmatpush1.msra.mxu0 %v4451
        %4634 = vmatprep.subr.mxu0 0.0
        %4635 = vmatpush1.msra.mxu0 %v4452
        %4636 = vmatprep.subr.mxu0 0.0
        %4637 = vmatpush1.msra.mxu0 %v4453
        %4638 = vmatprep.subr.mxu0 0.0
        %4639 = vmatpush1.msra.mxu0 %v4454
        %4640 = vmatprep.subr.mxu0 0.0
        %4641 = vmatpush1.msra.mxu0 %v4455
        %4642 = vmatprep.subr.mxu0 0.0
        %4643 = vmatpush1.msra.mxu0 %v4456
        %4644 = vmatprep.subr.mxu0 0.0
        %4645 = vmatpush1.msra.mxu0 %v4457
        %4646 = vmatprep.subr.mxu0 0.0
        %4647 = vmatpush1.msra.mxu0 %v4458
        %4648 = vmatprep.subr.mxu0 0.0
        %4649 = vmatpush1.msra.mxu0 %v4459
        %4650 = vmatprep.subr.mxu0 0.0
        %4651 = vmatpush1.msra.mxu0 %v4460
        %4652 = vmatprep.subr.mxu0 0.0
        %4653 = vmatpush1.msra.mxu0 %v4461
        %4654 = vmatprep.subr.mxu0 0.0
        %4655 = vmatpush1.msra.mxu0 %v4462
        %4656 = vmatprep.subr.mxu0 0.0
        %4657 = vmatpush1.msra.mxu0 %v4463
        %4658 = vmatprep.subr.mxu0 0.0
        %4659 = vmatpush1.msra.mxu0 %v4464
        %4660 = vmatprep.subr.mxu0 0.0
        %4661 = vmatpush1.msra.mxu0 %v4465
        %4662 = vmatprep.subr.mxu0 0.0
        %4663 = vmatpush1.msra.mxu0 %v4466
        %4664 = vmatprep.subr.mxu0 0.0
        %4665 = vmatpush1.msra.mxu0 %v4467
        %4666 = vmatprep.subr.mxu0 0.0
        %4667 = vmatpush1.msra.mxu0 %v4468
        %4668 = vmatprep.subr.mxu0 0.0
        %4669 = vmatpush1.msra.mxu0 %v4469
        %4670 = vmatprep.subr.mxu0 0.0
        %4671 = vmatpush1.msra.mxu0 %v4470
        %4672 = vmatprep.subr.mxu0 0.0
        %4673 = vmatpush1.msra.mxu0 %v4471
        %4674 = vmatprep.subr.mxu0 0.0
        %4675 = vmatpush1.msra.mxu0 %v4472
        %4676 = vmatprep.subr.mxu0 0.0
        %4677 = vmatpush1.msra.mxu0 %v4473
        %4678 = vmatprep.subr.mxu0 0.0
        %4679 = vmatpush1.msra.mxu0 %v4474
        %4680 = vmatprep.subr.mxu0 0.0
        %4681 = vmatpush1.msra.mxu0 %v4475
        %4682 = vmatprep.subr.mxu0 0.0
        %4683 = vmatpush1.msra.mxu0 %v4476
        %4684 = vmatprep.subr.mxu0 0.0
        %4685 = vmatpush1.msra.mxu0 %v4477
        %4686 = vmatprep.mubr.f32.mxu0 %v4479
        %4687 = vmatmul.mubr.f32.gmra.mrb[0].mxu0 %v4478
        %v4688 = vpop.f32.mrb[0].mxu0
        %v4689 = vadd.f32 %v4535, %v4688
        %v4690 = vpop.f32.mrb[0].mxu0
        %4691 = vmatprep.mubr.f32.mxu0 %v4481
        %4692 = vmatmul.mubr.f32.gmra.mrb[0].mxu0 %v4480
        %v4693 = vpop.f32.mrb[0].mxu0
        %v4694 = vadd.f32 %v4540, %v4693
        %v4695 = vpop.f32.mrb[0].mxu0
        %4696 = vmatprep.mubr.f32.mxu0 %v4483
        %4697 = vmatmul.mubr.f32.gmra.mrb[0].mxu0 %v4482
        %v4698 = vpop.f32.mrb[0].mxu0
        %v4699 = vadd.f32 %v4545, %v4698
        %v4700 = vpop.f32.mrb[0].mxu0
        %4701 = vmatprep.mubr.f32.mxu0 %v4485
        %4702 = vmatmul.mubr.f32.gmra.mrb[0].mxu0 %v4484
        %v4703 = vpop.f32.mrb[0].mxu0
        %v4704 = vadd.f32 %v4550, %v4703
        %v4705 = vpop.f32.mrb[0].mxu0
        %4706 = vmatprep.mubr.f32.mxu0 %v4487
        %4707 = vmatmul.mubr.f32.gmra.mrb[0].mxu0 %v4486
        %v4708 = vpop.f32.mrb[0].mxu0
        %v4709 = vadd.f32 %v4555, %v4708
        %v4710 = vpop.f32.mrb[0].mxu0
        %4711 = vmatprep.mubr.f32.mxu0 %v4489
        %4712 = vmatmul.mubr.f32.gmra.mrb[0].mxu0 %v4488
        %v4713 = vpop.f32.mrb[0].mxu0
        %v4714 = vadd.f32 %v4560, %v4713
        %v4715 = vpop.f32.mrb[0].mxu0
        %4716 = vmatprep.mubr.f32.mxu0 %v4491
        %4717 = vmatmul.mubr.f32.gmra.mrb[0].mxu0 %v4490
        %v4718 = vpop.f32.mrb[0].mxu0
        %v4719 = vadd.f32 %v4565, %v4718
        %v4720 = vpop.f32.mrb[0].mxu0
        %4721 = vmatprep.mubr.f32.mxu0 %v4493
        %4722 = vmatmul.mubr.f32.gmra.mrb[0].mxu0 %v4492
        %v4723 = vpop.f32.mrb[0].mxu0
        %v4724 = vadd.f32 %v4570, %v4723
        %v4725 = vpop.f32.mrb[0].mxu0
        %4726 = vmatprep.mubr.f32.mxu0 %v4495
        %4727 = vmatmul.mubr.f32.gmra.mrb[0].mxu0 %v4494
        %v4728 = vpop.f32.mrb[0].mxu0
        %v4729 = vadd.f32 %v4575, %v4728
        %v4730 = vpop.f32.mrb[0].mxu0
        %4731 = vmatprep.mubr.f32.mxu0 %v4497
        %4732 = vmatmul.mubr.f32.gmra.mrb[0].mxu0 %v4496
        %v4733 = vpop.f32.mrb[0].mxu0
        %v4734 = vadd.f32 %v4580, %v4733
        %v4735 = vpop.f32.mrb[0].mxu0
        %4736 = vmatprep.mubr.f32.mxu0 %v4499
        %4737 = vmatmul.mubr.f32.gmra.mrb[0].mxu0 %v4498
        %v4738 = vpop.f32.mrb[0].mxu0
        %v4739 = vadd.f32 %v4585, %v4738
        %v4740 = vpop.f32.mrb[0].mxu0
        %4741 = vmatprep.mubr.f32.mxu0 %v4501
        %4742 = vmatmul.mubr.f32.gmra.mrb[0].mxu0 %v4500
        %v4743 = vpop.f32.mrb[0].mxu0
        %v4744 = vadd.f32 %v4590, %v4743
        %v4745 = vpop.f32.mrb[0].mxu0
        %4746 = vmatprep.mubr.f32.mxu0 %v4503
        %4747 = vmatmul.mubr.f32.gmra.mrb[0].mxu0 %v4502
        %v4748 = vpop.f32.mrb[0].mxu0
        %v4749 = vadd.f32 %v4595, %v4748
        %v4750 = vpop.f32.mrb[0].mxu0
        %4751 = vmatprep.mubr.f32.mxu0 %v4505
        %4752 = vmatmul.mubr.f32.gmra.mrb[0].mxu0 %v4504
        %v4753 = vpop.f32.mrb[0].mxu0
        %v4754 = vadd.f32 %v4600, %v4753
        %v4755 = vpop.f32.mrb[0].mxu0
        %4756 = vmatprep.mubr.f32.mxu0 %v4507
        %4757 = vmatmul.mubr.f32.gmra.mrb[0].mxu0 %v4506
        %v4758 = vpop.f32.mrb[0].mxu0
        %v4759 = vadd.f32 %v4605, %v4758
        %v4760 = vpop.f32.mrb[0].mxu0
        %4761 = vmatprep.mubr.f32.mxu0 %v4509
        %4762 = vmatmul.mubr.f32.gmra.mrb[0].mxu0 %v4508
        %v4763 = vpop.f32.mrb[0].mxu0
        %v4764 = vadd.f32 %v4610, %v4763
        %v4765 = vpop.f32.mrb[0].mxu0
        %4766 = vmatprep.mubr.f32.mxu0 %v4511
        %4767 = vmatmul.mubr.f32.gmra.mrb[0].mxu0 %v4510
        %v4768 = vpop.f32.mrb[0].mxu0
        %v4769 = vadd.f32 %v4615, %v4768
        %v4770 = vpop.f32.mrb[0].mxu0
        %4771 = vmatprep.mubr.f32.mxu0 %v4513
        %4772 = vmatmul.mubr.f32.gmra.mrb[0].mxu0 %v4512
        %v4773 = vpop.f32.mrb[0].mxu0
        %v4774 = vadd.f32 %v4620, %v4773
        %v4775 = vpop.f32.mrb[0].mxu0
        %4776 = vdwg.mxu0
        %4777 = vst [vmem:[#allocation2] sm:$0xff] %v4689
        %4778 = vst [vmem:[#allocation2 + $0x8] sm:$0xff] %v4694
        %4779 = vst [vmem:[#allocation2 + $0x10] sm:$0xff] %v4699
        %4780 = vst [vmem:[#allocation2 + $0x18] sm:$0xff] %v4704
        %4781 = vst [vmem:[#allocation2 + $0x20] sm:$0xff] %v4709
        %4782 = vst [vmem:[#allocation2 + $0x28] sm:$0xff] %v4714
        %4783 = vst [vmem:[#allocation2 + $0x30] sm:$0xff] %v4719
        %4784 = vst [vmem:[#allocation2 + $0x38] sm:$0xff] %v4724
        %4785 = vst [vmem:[#allocation2 + $0x40] sm:$0xff] %v4729
        %4786 = vst [vmem:[#allocation2 + $0x48] sm:$0xff] %v4734
        %4787 = vst [vmem:[#allocation2 + $0x50] sm:$0xff] %v4739
        %4788 = vst [vmem:[#allocation2 + $0x58] sm:$0xff] %v4744
        %4789 = vst [vmem:[#allocation2 + $0x60] sm:$0xff] %v4749
        %4790 = vst [vmem:[#allocation2 + $0x68] sm:$0xff] %v4754
        %4791 = vst [vmem:[#allocation2 + $0x70] sm:$0xff] %v4759
        %4792 = vst [vmem:[#allocation2 + $0x78] sm:$0xff] %v4764
        %4793 = vst [vmem:[#allocation2 + $0x80] sm:$0xff] %v4769
        %4794 = vst [vmem:[#allocation2 + $0x88] sm:$0xff] %v4774
        %v4795 = vld [vmem:[%s191 + $0x1e0] sm:$0xff]
        %v4796 = vld [vmem:[%s191 + $0x228] sm:$0xff]
        %v4797 = vld [vmem:[%s191 + $0x1e8] sm:$0xff]
        %v4798 = vld [vmem:[%s191 + $0x230] sm:$0xff]
        %v4799 = vld [vmem:[%s191 + $0x1f0] sm:$0xff]
        %v4800 = vld [vmem:[%s191 + $0x238] sm:$0xff]
        %v4801 = vld [vmem:[%s191 + $0x1f8] sm:$0xff]
        %v4802 = vld [vmem:[%s191 + $0x240] sm:$0xff]
        %v4803 = vld [vmem:[%s191 + $0x200] sm:$0xff]
        %v4804 = vld [vmem:[%s191 + $0x248] sm:$0xff]
        %v4805 = vld [vmem:[%s191 + $0x208] sm:$0xff]
        %v4806 = vld [vmem:[%s191 + $0x250] sm:$0xff]
        %v4807 = vld [vmem:[%s191 + $0x210] sm:$0xff]
        %v4808 = vld [vmem:[%s191 + $0x258] sm:$0xff]
        %v4809 = vld [vmem:[%s191 + $0x218] sm:$0xff]
        %v4810 = vld [vmem:[%s191 + $0x260] sm:$0xff]
        %v4811 = vld [vmem:[%s191 + $0x220] sm:$0xff]
        %v4812 = vld [vmem:[%s191 + $0x268] sm:$0xff]
        %v4813 = vmul.f32 %v4803, %v4811
        %v4814 = vmul.f32 %v4804, %v4812
        %v4815 = vsub.f32 %v4813, %v4814
        %v4816 = vmul.f32 %v4803, %v4812
        %v4817 = vmul.f32 %v4804, %v4811
        %v4818 = vadd.f32 %v4816, %v4817
        %v4819 = vmul.f32 %v4805, %v4809
        %v4820 = vmul.f32 %v4806, %v4810
        %v4821 = vsub.f32 %v4819, %v4820
        %v4822 = vmul.f32 %v4805, %v4810
        %v4823 = vmul.f32 %v4806, %v4809
        %v4824 = vadd.f32 %v4822, %v4823
        %v4825 = vsub.f32 %v4815, %v4821
        %v4826 = vsub.f32 %v4818, %v4824
        %v4827 = vmul.f32 %v4801, %v4811
        %v4828 = vmul.f32 %v4802, %v4812
        %v4829 = vsub.f32 %v4827, %v4828
        %v4830 = vmul.f32 %v4801, %v4812
        %v4831 = vmul.f32 %v4802, %v4811
        %v4832 = vadd.f32 %v4830, %v4831
        %v4833 = vmul.f32 %v4805, %v4807
        %v4834 = vmul.f32 %v4806, %v4808
        %v4835 = vsub.f32 %v4833, %v4834
        %v4836 = vmul.f32 %v4805, %v4808
        %v4837 = vmul.f32 %v4806, %v4807
        %v4838 = vadd.f32 %v4836, %v4837
        %v4839 = vsub.f32 %v4829, %v4835
        %v4840 = vsub.f32 %v4832, %v4838
        %v4841 = vsub.f32 0.0, %v4839
        %v4842 = vsub.f32 0.0, %v4840
        %v4843 = vmul.f32 %v4801, %v4809
        %v4844 = vmul.f32 %v4802, %v4810
        %v4845 = vsub.f32 %v4843, %v4844
        %v4846 = vmul.f32 %v4801, %v4810
        %v4847 = vmul.f32 %v4802, %v4809
        %v4848 = vadd.f32 %v4846, %v4847
        %v4849 = vmul.f32 %v4803, %v4807
        %v4850 = vmul.f32 %v4804, %v4808
        %v4851 = vsub.f32 %v4849, %v4850
        %v4852 = vmul.f32 %v4803, %v4808
        %v4853 = vmul.f32 %v4804, %v4807
        %v4854 = vadd.f32 %v4852, %v4853
        %v4855 = vsub.f32 %v4845, %v4851
        %v4856 = vsub.f32 %v4848, %v4854
        %v4857 = vmul.f32 %v4797, %v4811
        %v4858 = vmul.f32 %v4798, %v4812
        %v4859 = vsub.f32 %v4857, %v4858
        %v4860 = vmul.f32 %v4797, %v4812
        %v4861 = vmul.f32 %v4798, %v4811
        %v4862 = vadd.f32 %v4860, %v4861
        %v4863 = vmul.f32 %v4799, %v4809
        %v4864 = vmul.f32 %v4800, %v4810
        %v4865 = vsub.f32 %v4863, %v4864
        %v4866 = vmul.f32 %v4799, %v4810
        %v4867 = vmul.f32 %v4800, %v4809
        %v4868 = vadd.f32 %v4866, %v4867
        %v4869 = vsub.f32 %v4859, %v4865
        %v4870 = vsub.f32 %v4862, %v4868
        %v4871 = vsub.f32 0.0, %v4869
        %v4872 = vsub.f32 0.0, %v4870
        %v4873 = vmul.f32 %v4795, %v4811
        %v4874 = vmul.f32 %v4796, %v4812
        %v4875 = vsub.f32 %v4873, %v4874
        %v4876 = vmul.f32 %v4795, %v4812
        %v4877 = vmul.f32 %v4796, %v4811
        %v4878 = vadd.f32 %v4876, %v4877
        %v4879 = vmul.f32 %v4799, %v4807
        %v4880 = vmul.f32 %v4800, %v4808
        %v4881 = vsub.f32 %v4879, %v4880
        %v4882 = vmul.f32 %v4799, %v4808
        %v4883 = vmul.f32 %v4800, %v4807
        %v4884 = vadd.f32 %v4882, %v4883
        %v4885 = vsub.f32 %v4875, %v4881
        %v4886 = vsub.f32 %v4878, %v4884
        %v4887 = vmul.f32 %v4795, %v4809
        %v4888 = vmul.f32 %v4796, %v4810
        %v4889 = vsub.f32 %v4887, %v4888
        %v4890 = vmul.f32 %v4795, %v4810
        %v4891 = vmul.f32 %v4796, %v4809
        %v4892 = vadd.f32 %v4890, %v4891
        %v4893 = vmul.f32 %v4797, %v4807
        %v4894 = vmul.f32 %v4798, %v4808
        %v4895 = vsub.f32 %v4893, %v4894
        %v4896 = vmul.f32 %v4797, %v4808
        %v4897 = vmul.f32 %v4798, %v4807
        %v4898 = vadd.f32 %v4896, %v4897
        %v4899 = vsub.f32 %v4889, %v4895
        %v4900 = vsub.f32 %v4892, %v4898
        %v4901 = vsub.f32 0.0, %v4899
        %v4902 = vsub.f32 0.0, %v4900
        %v4903 = vmul.f32 %v4797, %v4805
        %v4904 = vmul.f32 %v4798, %v4806
        %v4905 = vsub.f32 %v4903, %v4904
        %v4906 = vmul.f32 %v4797, %v4806
        %v4907 = vmul.f32 %v4798, %v4805
        %v4908 = vadd.f32 %v4906, %v4907
        %v4909 = vmul.f32 %v4799, %v4803
        %v4910 = vmul.f32 %v4800, %v4804
        %v4911 = vsub.f32 %v4909, %v4910
        %v4912 = vmul.f32 %v4799, %v4804
        %v4913 = vmul.f32 %v4800, %v4803
        %v4914 = vadd.f32 %v4912, %v4913
        %v4915 = vsub.f32 %v4905, %v4911
        %v4916 = vsub.f32 %v4908, %v4914
        %v4917 = vmul.f32 %v4795, %v4805
        %v4918 = vmul.f32 %v4796, %v4806
        %v4919 = vsub.f32 %v4917, %v4918
        %v4920 = vmul.f32 %v4795, %v4806
        %v4921 = vmul.f32 %v4796, %v4805
        %v4922 = vadd.f32 %v4920, %v4921
        %v4923 = vmul.f32 %v4799, %v4801
        %v4924 = vmul.f32 %v4800, %v4802
        %v4925 = vsub.f32 %v4923, %v4924
        %v4926 = vmul.f32 %v4799, %v4802
        %v4927 = vmul.f32 %v4800, %v4801
        %v4928 = vadd.f32 %v4926, %v4927
        %v4929 = vsub.f32 %v4919, %v4925
        %v4930 = vsub.f32 %v4922, %v4928
        %v4931 = vsub.f32 0.0, %v4929
        %v4932 = vsub.f32 0.0, %v4930
        %v4933 = vmul.f32 %v4795, %v4803
        %v4934 = vmul.f32 %v4796, %v4804
        %v4935 = vsub.f32 %v4933, %v4934
        %v4936 = vmul.f32 %v4795, %v4804
        %v4937 = vmul.f32 %v4796, %v4803
        %v4938 = vadd.f32 %v4936, %v4937
        %v4939 = vmul.f32 %v4797, %v4801
        %v4940 = vmul.f32 %v4798, %v4802
        %v4941 = vsub.f32 %v4939, %v4940
        %v4942 = vmul.f32 %v4797, %v4802
        %v4943 = vmul.f32 %v4798, %v4801
        %v4944 = vadd.f32 %v4942, %v4943
        %v4945 = vsub.f32 %v4935, %v4941
        %v4946 = vsub.f32 %v4938, %v4944
        %v4947 = vmul.f32 %v4795, %v4825
        %v4948 = vmul.f32 %v4796, %v4826
        %v4949 = vsub.f32 %v4947, %v4948
        %v4950 = vmul.f32 %v4795, %v4826
        %v4951 = vmul.f32 %v4796, %v4825
        %v4952 = vadd.f32 %v4950, %v4951
        %v4953 = vmul.f32 %v4797, %v4841
        %v4954 = vmul.f32 %v4798, %v4842
        %v4955 = vsub.f32 %v4953, %v4954
        %v4956 = vmul.f32 %v4797, %v4842
        %v4957 = vmul.f32 %v4798, %v4841
        %v4958 = vadd.f32 %v4956, %v4957
        %v4959 = vmul.f32 %v4799, %v4855
        %v4960 = vmul.f32 %v4800, %v4856
        %v4961 = vsub.f32 %v4959, %v4960
        %v4962 = vmul.f32 %v4799, %v4856
        %v4963 = vmul.f32 %v4800, %v4855
        %v4964 = vadd.f32 %v4962, %v4963
        %v4965 = vadd.f32 %v4949, %v4955
        %v4966 = vadd.f32 %v4952, %v4958
        %v4967 = vadd.f32 %v4965, %v4961
        %v4968 = vadd.f32 %v4966, %v4964
        %v4969 = vmul.f32 %v4967, %v4967
        %v4970 = vmul.f32 %v4968, %v4968
        %v4971 = vadd.f32 %v4969, %v4970
        %v4972 = vrcp.pop %v4971
        %v4973 = vmul.f32 %v4971, %v4972
        %v4974 = vsub.f32 2.0, %v4973
        %v4975 = vmul.f32 %v4972, %v4974
        %v4976 = vmul.f32 %v4967, %v4975
        %v4977 = vsub.f32 0.0, %v4968
        %v4978 = vmul.f32 %v4977, %v4975
        %v4979 = vld [vmem:[#allocation2 + $0x8] sm:$0xff]
        %v4980 = vld [vmem:[#allocation2 + $0x50] sm:$0xff]
        %v4981 = vmul.f32 %v4825, %v4979
        %v4982 = vmul.f32 %v4826, %v4980
        %v4983 = vsub.f32 %v4981, %v4982
        %v4984 = vmul.f32 %v4825, %v4980
        %v4985 = vmul.f32 %v4826, %v4979
        %v4986 = vadd.f32 %v4984, %v4985
        %v4987 = vld [vmem:[#allocation2 + $0x20] sm:$0xff]
        %v4988 = vld [vmem:[#allocation2 + $0x68] sm:$0xff]
        %v4989 = vmul.f32 %v4871, %v4987
        %v4990 = vmul.f32 %v4872, %v4988
        %v4991 = vsub.f32 %v4989, %v4990
        %v4992 = vmul.f32 %v4871, %v4988
        %v4993 = vmul.f32 %v4872, %v4987
        %v4994 = vadd.f32 %v4992, %v4993
        %v4995 = vld [vmem:[#allocation2 + $0x38] sm:$0xff]
        %v4996 = vld [vmem:[#allocation2 + $0x80] sm:$0xff]
        %v4997 = vmul.f32 %v4915, %v4995
        %v4998 = vmul.f32 %v4916, %v4996
        %v4999 = vsub.f32 %v4997, %v4998
        %v5000 = vmul.f32 %v4915, %v4996
        %v5001 = vmul.f32 %v4916, %v4995
        %v5002 = vadd.f32 %v5000, %v5001
        %v5003 = vadd.f32 %v4983, %v4991
        %v5004 = vadd.f32 %v4986, %v4994
        %v5005 = vadd.f32 %v5003, %v4999
        %v5006 = vadd.f32 %v5004, %v5002
        %v5007 = vmul.f32 %v5005, %v4976
        %v5008 = vmul.f32 %v5006, %v4978
        %v5009 = vsub.f32 %v5007, %v5008
        %v5010 = vmul.f32 %v5005, %v4978
        %v5011 = vmul.f32 %v5006, %v4976
        %v5012 = vadd.f32 %v5010, %v5011
        %v5013 = vld [vmem:[#allocation2] sm:$0xff]
        %v5014 = vld [vmem:[#allocation2 + $0x48] sm:$0xff]
        %v5015 = vmul.f32 %v4841, %v5013
        %v5016 = vmul.f32 %v4842, %v5014
        %v5017 = vsub.f32 %v5015, %v5016
        %v5018 = vmul.f32 %v4841, %v5014
        %v5019 = vmul.f32 %v4842, %v5013
        %v5020 = vadd.f32 %v5018, %v5019
        %v5021 = vld [vmem:[#allocation2 + $0x18] sm:$0xff]
        %v5022 = vld [vmem:[#allocation2 + $0x60] sm:$0xff]
        %v5023 = vmul.f32 %v4885, %v5021
        %v5024 = vmul.f32 %v4886, %v5022
        %v5025 = vsub.f32 %v5023, %v5024
        %v5026 = vmul.f32 %v4885, %v5022
        %v5027 = vmul.f32 %v4886, %v5021
        %v5028 = vadd.f32 %v5026, %v5027
        %v5029 = vld [vmem:[#allocation2 + $0x30] sm:$0xff]
        %v5030 = vld [vmem:[#allocation2 + $0x78] sm:$0xff]
        %v5031 = vmul.f32 %v4931, %v5029
        %v5032 = vmul.f32 %v4932, %v5030
        %v5033 = vsub.f32 %v5031, %v5032
        %v5034 = vmul.f32 %v4931, %v5030
        %v5035 = vmul.f32 %v4932, %v5029
        %v5036 = vadd.f32 %v5034, %v5035
        %v5037 = vadd.f32 %v5017, %v5025
        %v5038 = vadd.f32 %v5020, %v5028
        %v5039 = vadd.f32 %v5037, %v5033
        %v5040 = vadd.f32 %v5038, %v5036
        %v5041 = vmul.f32 %v5039, %v4976
        %v5042 = vmul.f32 %v5040, %v4978
        %v5043 = vsub.f32 %v5041, %v5042
        %v5044 = vmul.f32 %v5039, %v4978
        %v5045 = vmul.f32 %v5040, %v4976
        %v5046 = vadd.f32 %v5044, %v5045
        %v5047 = vsub.f32 %v5009, %v5043
        %v5048 = vmul.f32 %v5047, 0.5
        %v5049 = vadd.f32 %v5012, %v5046
        %v5050 = vmul.f32 %v5049, 0.5
        %5051 = vst [vmem:[%s215 + $0x1b8] sm:$0xff] %v5048
        %5052 = vst [vmem:[%s215 + $0x200] sm:$0xff] %v5050
        %v5053 = vsub.f32 0.0, %v5048
        %5054 = vst [vmem:[%s215 + $0x1c8] sm:$0xff] %v5053
        %5055 = vst [vmem:[%s215 + $0x210] sm:$0xff] %v5050
        %v5056 = vld [vmem:[#allocation2 + $0x10] sm:$0xff]
        %v5057 = vld [vmem:[#allocation2 + $0x58] sm:$0xff]
        %v5058 = vmul.f32 %v4825, %v5056
        %v5059 = vmul.f32 %v4826, %v5057
        %v5060 = vsub.f32 %v5058, %v5059
        %v5061 = vmul.f32 %v4825, %v5057
        %v5062 = vmul.f32 %v4826, %v5056
        %v5063 = vadd.f32 %v5061, %v5062
        %v5064 = vld [vmem:[#allocation2 + $0x28] sm:$0xff]
        %v5065 = vld [vmem:[#allocation2 + $0x70] sm:$0xff]
        %v5066 = vmul.f32 %v4871, %v5064
        %v5067 = vmul.f32 %v4872, %v5065
        %v5068 = vsub.f32 %v5066, %v5067
        %v5069 = vmul.f32 %v4871, %v5065
        %v5070 = vmul.f32 %v4872, %v5064
        %v5071 = vadd.f32 %v5069, %v5070
        %v5072 = vld [vmem:[#allocation2 + $0x40] sm:$0xff]
        %v5073 = vld [vmem:[#allocation2 + $0x88] sm:$0xff]
        %v5074 = vmul.f32 %v4915, %v5072
        %v5075 = vmul.f32 %v4916, %v5073
        %v5076 = vsub.f32 %v5074, %v5075
        %v5077 = vmul.f32 %v4915, %v5073
        %v5078 = vmul.f32 %v4916, %v5072
        %v5079 = vadd.f32 %v5077, %v5078
        %v5080 = vadd.f32 %v5060, %v5068
        %v5081 = vadd.f32 %v5063, %v5071
        %v5082 = vadd.f32 %v5080, %v5076
        %v5083 = vadd.f32 %v5081, %v5079
        %v5084 = vmul.f32 %v5082, %v4976
        %v5085 = vmul.f32 %v5083, %v4978
        %v5086 = vsub.f32 %v5084, %v5085
        %v5087 = vmul.f32 %v5082, %v4978
        %v5088 = vmul.f32 %v5083, %v4976
        %v5089 = vadd.f32 %v5087, %v5088
        %v5090 = vld [vmem:[#allocation2] sm:$0xff]
        %v5091 = vld [vmem:[#allocation2 + $0x48] sm:$0xff]
        %v5092 = vmul.f32 %v4855, %v5090
        %v5093 = vmul.f32 %v4856, %v5091
        %v5094 = vsub.f32 %v5092, %v5093
        %v5095 = vmul.f32 %v4855, %v5091
        %v5096 = vmul.f32 %v4856, %v5090
        %v5097 = vadd.f32 %v5095, %v5096
        %v5098 = vld [vmem:[#allocation2 + $0x18] sm:$0xff]
        %v5099 = vld [vmem:[#allocation2 + $0x60] sm:$0xff]
        %v5100 = vmul.f32 %v4901, %v5098
        %v5101 = vmul.f32 %v4902, %v5099
        %v5102 = vsub.f32 %v5100, %v5101
        %v5103 = vmul.f32 %v4901, %v5099
        %v5104 = vmul.f32 %v4902, %v5098
        %v5105 = vadd.f32 %v5103, %v5104
        %v5106 = vld [vmem:[#allocation2 + $0x30] sm:$0xff]
        %v5107 = vld [vmem:[#allocation2 + $0x78] sm:$0xff]
        %v5108 = vmul.f32 %v4945, %v5106
        %v5109 = vmul.f32 %v4946, %v5107
        %v5110 = vsub.f32 %v5108, %v5109
        %v5111 = vmul.f32 %v4945, %v5107
        %v5112 = vmul.f32 %v4946, %v5106
        %v5113 = vadd.f32 %v5111, %v5112
        %v5114 = vadd.f32 %v5094, %v5102
        %v5115 = vadd.f32 %v5097, %v5105
        %v5116 = vadd.f32 %v5114, %v5110
        %v5117 = vadd.f32 %v5115, %v5113
        %v5118 = vmul.f32 %v5116, %v4976
        %v5119 = vmul.f32 %v5117, %v4978
        %v5120 = vsub.f32 %v5118, %v5119
        %v5121 = vmul.f32 %v5116, %v4978
        %v5122 = vmul.f32 %v5117, %v4976
        %v5123 = vadd.f32 %v5121, %v5122
        %v5124 = vsub.f32 %v5086, %v5120
        %v5125 = vmul.f32 %v5124, 0.5
        %v5126 = vadd.f32 %v5089, %v5123
        %v5127 = vmul.f32 %v5126, 0.5
        %5128 = vst [vmem:[%s215 + $0x1c0] sm:$0xff] %v5125
        %5129 = vst [vmem:[%s215 + $0x208] sm:$0xff] %v5127
        %v5130 = vsub.f32 0.0, %v5125
        %5131 = vst [vmem:[%s215 + $0x1e0] sm:$0xff] %v5130
        %5132 = vst [vmem:[%s215 + $0x228] sm:$0xff] %v5127
        %v5133 = vld [vmem:[#allocation2 + $0x10] sm:$0xff]
        %v5134 = vld [vmem:[#allocation2 + $0x58] sm:$0xff]
        %v5135 = vmul.f32 %v4841, %v5133
        %v5136 = vmul.f32 %v4842, %v5134
        %v5137 = vsub.f32 %v5135, %v5136
        %v5138 = vmul.f32 %v4841, %v5134
        %v5139 = vmul.f32 %v4842, %v5133
        %v5140 = vadd.f32 %v5138, %v5139
        %v5141 = vld [vmem:[#allocation2 + $0x28] sm:$0xff]
        %v5142 = vld [vmem:[#allocation2 + $0x70] sm:$0xff]
        %v5143 = vmul.f32 %v4885, %v5141
        %v5144 = vmul.f32 %v4886, %v5142
        %v5145 = vsub.f32 %v5143, %v5144
        %v5146 = vmul.f32 %v4885, %v5142
        %v5147 = vmul.f32 %v4886, %v5141
        %v5148 = vadd.f32 %v5146, %v5147
        %v5149 = vld [vmem:[#allocation2 + $0x40] sm:$0xff]
        %v5150 = vld [vmem:[#allocation2 + $0x88] sm:$0xff]
        %v5151 = vmul.f32 %v4931, %v5149
        %v5152 = vmul.f32 %v4932, %v5150
        %v5153 = vsub.f32 %v5151, %v5152
        %v5154 = vmul.f32 %v4931, %v5150
        %v5155 = vmul.f32 %v4932, %v5149
        %v5156 = vadd.f32 %v5154, %v5155
        %v5157 = vadd.f32 %v5137, %v5145
        %v5158 = vadd.f32 %v5140, %v5148
        %v5159 = vadd.f32 %v5157, %v5153
        %v5160 = vadd.f32 %v5158, %v5156
        %v5161 = vmul.f32 %v5159, %v4976
        %v5162 = vmul.f32 %v5160, %v4978
        %v5163 = vsub.f32 %v5161, %v5162
        %v5164 = vmul.f32 %v5159, %v4978
        %v5165 = vmul.f32 %v5160, %v4976
        %v5166 = vadd.f32 %v5164, %v5165
        %v5167 = vld [vmem:[#allocation2 + $0x8] sm:$0xff]
        %v5168 = vld [vmem:[#allocation2 + $0x50] sm:$0xff]
        %v5169 = vmul.f32 %v4855, %v5167
        %v5170 = vmul.f32 %v4856, %v5168
        %v5171 = vsub.f32 %v5169, %v5170
        %v5172 = vmul.f32 %v4855, %v5168
        %v5173 = vmul.f32 %v4856, %v5167
        %v5174 = vadd.f32 %v5172, %v5173
        %v5175 = vld [vmem:[#allocation2 + $0x20] sm:$0xff]
        %v5176 = vld [vmem:[#allocation2 + $0x68] sm:$0xff]
        %v5177 = vmul.f32 %v4901, %v5175
        %v5178 = vmul.f32 %v4902, %v5176
        %v5179 = vsub.f32 %v5177, %v5178
        %v5180 = vmul.f32 %v4901, %v5176
        %v5181 = vmul.f32 %v4902, %v5175
        %v5182 = vadd.f32 %v5180, %v5181
        %v5183 = vld [vmem:[#allocation2 + $0x38] sm:$0xff]
        %v5184 = vld [vmem:[#allocation2 + $0x80] sm:$0xff]
        %v5185 = vmul.f32 %v4945, %v5183
        %v5186 = vmul.f32 %v4946, %v5184
        %v5187 = vsub.f32 %v5185, %v5186
        %v5188 = vmul.f32 %v4945, %v5184
        %v5189 = vmul.f32 %v4946, %v5183
        %v5190 = vadd.f32 %v5188, %v5189
        %v5191 = vadd.f32 %v5171, %v5179
        %v5192 = vadd.f32 %v5174, %v5182
        %v5193 = vadd.f32 %v5191, %v5187
        %v5194 = vadd.f32 %v5192, %v5190
        %v5195 = vmul.f32 %v5193, %v4976
        %v5196 = vmul.f32 %v5194, %v4978
        %v5197 = vsub.f32 %v5195, %v5196
        %v5198 = vmul.f32 %v5193, %v4978
        %v5199 = vmul.f32 %v5194, %v4976
        %v5200 = vadd.f32 %v5198, %v5199
        %v5201 = vsub.f32 %v5163, %v5197
        %v5202 = vmul.f32 %v5201, 0.5
        %v5203 = vadd.f32 %v5166, %v5200
        %v5204 = vmul.f32 %v5203, 0.5
        %5205 = vst [vmem:[%s215 + $0x1d8] sm:$0xff] %v5202
        %5206 = vst [vmem:[%s215 + $0x220] sm:$0xff] %v5204
        %v5207 = vsub.f32 0.0, %v5202
        %5208 = vst [vmem:[%s215 + $0x1e8] sm:$0xff] %v5207
        %5209 = vst [vmem:[%s215 + $0x230] sm:$0xff] %v5204
        %v5210 = vld [vmem:[#allocation2] sm:$0xff]
        %v5211 = vld [vmem:[#allocation2 + $0x48] sm:$0xff]
        %v5212 = vmul.f32 %v4825, %v5210
        %v5213 = vmul.f32 %v4826, %v5211
        %v5214 = vsub.f32 %v5212, %v5213
        %v5215 = vmul.f32 %v4825, %v5211
        %v5216 = vmul.f32 %v4826, %v5210
        %v5217 = vadd.f32 %v5215, %v5216
        %v5218 = vld [vmem:[#allocation2 + $0x18] sm:$0xff]
        %v5219 = vld [vmem:[#allocation2 + $0x60] sm:$0xff]
        %v5220 = vmul.f32 %v4871, %v5218
        %v5221 = vmul.f32 %v4872, %v5219
        %v5222 = vsub.f32 %v5220, %v5221
        %v5223 = vmul.f32 %v4871, %v5219
        %v5224 = vmul.f32 %v4872, %v5218
        %v5225 = vadd.f32 %v5223, %v5224
        %v5226 = vld [vmem:[#allocation2 + $0x30] sm:$0xff]
        %v5227 = vld [vmem:[#allocation2 + $0x78] sm:$0xff]
        %v5228 = vmul.f32 %v4915, %v5226
        %v5229 = vmul.f32 %v4916, %v5227
        %v5230 = vsub.f32 %v5228, %v5229
        %v5231 = vmul.f32 %v4915, %v5227
        %v5232 = vmul.f32 %v4916, %v5226
        %v5233 = vadd.f32 %v5231, %v5232
        %v5234 = vadd.f32 %v5214, %v5222
        %v5235 = vadd.f32 %v5217, %v5225
        %v5236 = vadd.f32 %v5234, %v5230
        %v5237 = vadd.f32 %v5235, %v5233
        %v5238 = vmul.f32 %v5236, %v4978
        %v5239 = vmul.f32 %v5237, %v4976
        %v5240 = vadd.f32 %v5238, %v5239
        %v5241 = vld [vmem:[#allocation2 + $0x8] sm:$0xff]
        %v5242 = vld [vmem:[#allocation2 + $0x50] sm:$0xff]
        %v5243 = vmul.f32 %v4841, %v5241
        %v5244 = vmul.f32 %v4842, %v5242
        %v5245 = vsub.f32 %v5243, %v5244
        %v5246 = vmul.f32 %v4841, %v5242
        %v5247 = vmul.f32 %v4842, %v5241
        %v5248 = vadd.f32 %v5246, %v5247
        %v5249 = vld [vmem:[#allocation2 + $0x20] sm:$0xff]
        %v5250 = vld [vmem:[#allocation2 + $0x68] sm:$0xff]
        %v5251 = vmul.f32 %v4885, %v5249
        %v5252 = vmul.f32 %v4886, %v5250
        %v5253 = vsub.f32 %v5251, %v5252
        %v5254 = vmul.f32 %v4885, %v5250
        %v5255 = vmul.f32 %v4886, %v5249
        %v5256 = vadd.f32 %v5254, %v5255
        %v5257 = vld [vmem:[#allocation2 + $0x38] sm:$0xff]
        %v5258 = vld [vmem:[#allocation2 + $0x80] sm:$0xff]
        %v5259 = vmul.f32 %v4931, %v5257
        %v5260 = vmul.f32 %v4932, %v5258
        %v5261 = vsub.f32 %v5259, %v5260
        %v5262 = vmul.f32 %v4931, %v5258
        %v5263 = vmul.f32 %v4932, %v5257
        %v5264 = vadd.f32 %v5262, %v5263
        %v5265 = vadd.f32 %v5245, %v5253
        %v5266 = vadd.f32 %v5248, %v5256
        %v5267 = vadd.f32 %v5265, %v5261
        %v5268 = vadd.f32 %v5266, %v5264
        %v5269 = vmul.f32 %v5267, %v4978
        %v5270 = vmul.f32 %v5268, %v4976
        %v5271 = vadd.f32 %v5269, %v5270
        %v5272 = vld [vmem:[#allocation2 + $0x10] sm:$0xff]
        %v5273 = vld [vmem:[#allocation2 + $0x58] sm:$0xff]
        %v5274 = vmul.f32 %v4855, %v5272
        %v5275 = vmul.f32 %v4856, %v5273
        %v5276 = vsub.f32 %v5274, %v5275
        %v5277 = vmul.f32 %v4855, %v5273
        %v5278 = vmul.f32 %v4856, %v5272
        %v5279 = vadd.f32 %v5277, %v5278
        %v5280 = vld [vmem:[#allocation2 + $0x28] sm:$0xff]
        %v5281 = vld [vmem:[#allocation2 + $0x70] sm:$0xff]
        %v5282 = vmul.f32 %v4901, %v5280
        %v5283 = vmul.f32 %v4902, %v5281
        %v5284 = vsub.f32 %v5282, %v5283
        %v5285 = vmul.f32 %v4901, %v5281
        %v5286 = vmul.f32 %v4902, %v5280
        %v5287 = vadd.f32 %v5285, %v5286
        %v5288 = vld [vmem:[#allocation2 + $0x40] sm:$0xff]
        %v5289 = vld [vmem:[#allocation2 + $0x88] sm:$0xff]
        %v5290 = vmul.f32 %v4945, %v5288
        %v5291 = vmul.f32 %v4946, %v5289
        %v5292 = vsub.f32 %v5290, %v5291
        %v5293 = vmul.f32 %v4945, %v5289
        %v5294 = vmul.f32 %v4946, %v5288
        %v5295 = vadd.f32 %v5293, %v5294
        %v5296 = vadd.f32 %v5276, %v5284
        %v5297 = vadd.f32 %v5279, %v5287
        %v5298 = vadd.f32 %v5296, %v5292
        %v5299 = vadd.f32 %v5297, %v5295
        %v5300 = vmul.f32 %v5298, %v4978
        %v5301 = vmul.f32 %v5299, %v4976
        %v5302 = vadd.f32 %v5300, %v5301
        %v5303 = vadd.f32 %v5240, %v5271
        %v5304 = vadd.f32 %v5303, %v5302
        %v5305 = vmul.f32 %v5304, 0.33333334
        %v5306 = vsub.f32 %v5240, %v5305
        %5307 = vst [vmem:[%s215 + $0x1b0] sm:$0xff] 0.0
        %5308 = vst [vmem:[%s215 + $0x1f8] sm:$0xff] %v5306
        %v5309 = vsub.f32 %v5271, %v5305
        %5310 = vst [vmem:[%s215 + $0x1d0] sm:$0xff] 0.0
        %5311 = vst [vmem:[%s215 + $0x218] sm:$0xff] %v5309
        %v5312 = vsub.f32 %v5302, %v5305
        %5313 = vst [vmem:[%s215 + $0x1f0] sm:$0xff] 0.0
        %5314 = vst [vmem:[%s215 + $0x238] sm:$0xff] %v5312
        %s5315 = sand.u32 %s118, 1
        %s5316 = scalar_lea.sflag [#allocation5], %s5315
        %s5317 = sand.u32 %s118, 1
        %s5318 = smul.addr %s5317, 576
        %s5319 = scalar_lea.vmem [#allocation6], %s5318
        // Predicated region
        $region41: #{tpu_custom_call.1} parent=35 // pred_check
          %p5320 = pneg %p128
        $region42: #{tpu_custom_call.1} parent=35 // pred_check_branch
          %5322 = sbr.rel (%p5320) target = $region44
        $region43: #{tpu_custom_call.1} parent=35 // pred_region
          %s5323 = smul.u32 72, %s21
          %s5325 = ssub.s32 9216, 9216
          %5326 = vsyncadd %s5316, %s5325
          %s5327 = smul.addr %s5323, 128
          %s5328 = scalar_lea.hbm %s4, %s5327
          %s5329 = sshll.u32 %s5319, 4
          %s5330 = int_to_ptr.vmem [resolvable:$true] %s5329
          %5335 = dma.vmem_to_hbm [thread:$0]  %s5330, 9216, %s5328, %s5316, 128, 128, 8
        $region44: #{tpu_custom_call.1} parent=35 // pred_fallthru
          _
      $region36: #{tpu_custom_call.1} parent=5 // pred_fallthru
        _
      %p5336 = scmp.le.s32.totalorder 2, %s16
      // Predicated region
      $region45: #{tpu_custom_call.1} parent=5 // pred_check
        %p5337 = pneg %p5336
      $region46: #{tpu_custom_call.1} parent=5 // pred_check_branch
        %5339 = sbr.rel (%p5337) target = $region48
      $region47: #{tpu_custom_call.1} parent=5 // pred_region
        %s5340 = ssub.s32 %s16, 2
        // Predicated region
        $region49: #{tpu_custom_call.1} parent=47 // pred_check
          %p5341 = pneg %p134
        $region50: #{tpu_custom_call.1} parent=47 // pred_check_branch
          %5343 = sbr.rel (%p5341) target = $region52
        $region51: #{tpu_custom_call.1} parent=47 // pred_region
          %s5344 = sand.u32 %s119, 1
          %s5345 = scalar_lea.sflag [#allocation5], %s5344
          %s5346 = sand.u32 %s119, 1
          %s5347 = smul.addr %s5346, 576
          %s5348 = scalar_lea.vmem [#allocation6], %s5347
          %5349 = dma.done %s5345, 9216
        $region52: #{tpu_custom_call.1} parent=47 // pred_fallthru
          _
      $region48: #{tpu_custom_call.1} parent=5 // pred_fallthru
        _
    $region6: #{tpu_custom_call.1} parent=1 // loop_footer
      %s20 = sadd.s32 1, %s16
    $region7: #{tpu_custom_call.1} parent=1 // loop_footer_branch
      %15 = sbr.rel target = $region3
    $region8: #{tpu_custom_call.1} parent=1 // loop_exit
      _
    %5350 = vsyncpa [#allocation4], 1
    %s5351 = scalar_lea.sflag [#allocation4], 1
    %5352 = vsyncpa %s5351, 1
    %5353 = vsyncpa [#allocation5], 1
    %s5354 = scalar_lea.sflag [#allocation5], 1
    %5355 = vsyncpa %s5354, 1

</llo_original>
